<compile_context>
chip_gen: v5e
topology: v5e:2x2
jax: 0.10.0
libtpu: 0.0.40
codegen_flags: <defaults>
</compile_context>

<pallas_src>
import functools

import jax
import jax.numpy as jnp
import numpy as np
from jax.experimental import pallas as pl
from jax.experimental.pallas import tpu as pltpu

LANE = 128


def _gates_to_hc(gates, c_prev, Hp):
    """PyTorch LSTM gate order (i, f, g, o); f32 math (EUP sigmoid/tanh)."""
    i = jax.nn.sigmoid(gates[:, 0 * Hp:1 * Hp])
    f = jax.nn.sigmoid(gates[:, 1 * Hp:2 * Hp])
    g = jnp.tanh(gates[:, 2 * Hp:3 * Hp])
    o = jax.nn.sigmoid(gates[:, 3 * Hp:4 * Hp])
    c_new = f * c_prev + i * g
    h_new = o * jnp.tanh(c_new)
    return h_new, c_new


def lstm_kernel(last_local,
                x_ref,
                wih0_ref, b0_ref,
                wa_ref, whh1_ref, b1_ref,
                wlin_ref, blin_ref,
                out_ref, hN_ref, cN_ref,
                h0_s, c0_s, h1_s, c1_s, hh0_s, gx_s):
    """One grid step == one chunk of T_blk timesteps; state carried in VMEM scratch.

    last_local is the static local index of the last *real* timestep,
    (S-1) % T_blk.  h_n / c_n are snapshotted there every chunk; only the
    last chunk's snapshot reaches HBM (constant-index output blocks)."""
    T_blk, B, Vp = x_ref.shape
    Hp = h0_s.shape[-1]
    step = pl.program_id(0)

    @pl.when(step == 0)
    def _():
        h0_s[...] = jnp.zeros_like(h0_s)
        c0_s[...] = jnp.zeros_like(c0_s)
        h1_s[...] = jnp.zeros_like(h1_s)
        c1_s[...] = jnp.zeros_like(c1_s)
        hh0_s[...] = jnp.zeros_like(hh0_s)   # h0 == 0  =>  h0 @ W_hh0 == 0

    # ---- Bulk input-to-hidden matmul (layer 0) for the whole chunk ----
    # bf16 MXU operands, f32 accumulate; result (+ bias) parked in VMEM scratch.
    x_flat = x_ref[...].reshape(T_blk * B, Vp).astype(jnp.bfloat16)
    gx = (jnp.dot(x_flat, wih0_ref[...], preferred_element_type=jnp.float32)
          + b0_ref[...])                                      # (T_blk*B, 4Hp)
    gx_s[...] = gx.reshape(T_blk, B, 4 * Hp)

    # Loop-invariant weights / hoisted bias broadcasts (no broadcast_in_dim CSE).
    wa = wa_ref[...]                                  # (Hp, 8Hp) = [W_hh0 | W_ih1]
    whh1 = whh1_ref[...]                              # (Hp, 4Hp)
    wlin = wlin_ref[...]                              # (Hp, Vp)
    b1_b = jnp.broadcast_to(b1_ref[...], (B, 4 * Hp))
    blin_b = jnp.broadcast_to(blin_ref[...], (B, Vp))

    # Recurrent state (f32) lives in VMEM scratch across grid steps.
    h0, c0 = h0_s[...], c0_s[...]
    h1, c1 = h1_s[...], c1_s[...]
    hh0 = hh0_s[...]                  # h0_{t-1} @ W_hh0, from previous fused matmul
    h1b = h1.astype(jnp.bfloat16)

    # Fully unrolled recurrence: one dependent MXU push per timestep.
    for t in range(T_blk):
        # Independent of this step's layer-0 output -> not on the serial chain.
        g1h = jnp.dot(h1b, whh1, preferred_element_type=jnp.float32)

        # Layer 0: x-part precomputed (gx_s), h-part from previous fused matmul.
        h0, c0 = _gates_to_hc(gx_s[t] + hh0, c0, Hp)

        # Fused matmul: left half feeds the NEXT step's layer-0 h-path,
        #               right half is THIS step's layer-1 input path.
        fused = jnp.dot(h0.astype(jnp.bfloat16), wa,
                        preferred_element_type=jnp.float32)    # (B, 8Hp)
        hh0 = fused[:, :4 * Hp]
        h1, c1 = _gates_to_hc(fused[:, 4 * Hp:] + g1h + b1_b, c1, Hp)
        h1b = h1.astype(jnp.bfloat16)

        # Per-timestep Linear head: independent MXU work filling recurrence
        # bubbles; lane-dense (B, Vp) row store.
        out_ref[t] = (jnp.dot(h1b, wlin, preferred_element_type=jnp.float32)
                      + blin_b)

        if t == last_local:            # static condition -> emitted once per chunk
            hN_ref[0] = h0
            hN_ref[1] = h1
            cN_ref[0] = c0
            cN_ref[1] = c1

    h0_s[...] = h0
    c0_s[...] = c0
    h1_s[...] = h1
    c1_s[...] = c1
    hh0_s[...] = hh0


# ----------------------------- wrapper helpers -----------------------------

def _round_up(n, m):
    return (n + m - 1) // m * m


def _pad_axis(a, axis, target):
    if a.shape[axis] == target:
        return a
    pad = [(0, 0)] * a.ndim
    pad[axis] = (0, target - a.shape[axis])
    return jnp.pad(a, pad)


def _pad_gate_axis(w, H, Hp):
    """Zero-pad the trailing (4H) gate axis to (4Hp), per gate block (i,f,g,o)."""
    lead = w.shape[:-1]
    w = w.reshape(lead + (4, H))
    w = _pad_axis(w, -1, Hp)
    return w.reshape(lead + (4 * Hp,))


def text_generation_forward(x, params, max_chunk=32):
    """x: (B, S, V) float32, batch_first like the PyTorch module.

    Returns (logits (B,S,V), (h_n (2,B,H), c_n (2,B,H))) — same as
    TextGenerationModel.forward with states=None.
    """
    B, S, V = x.shape
    H = params["whh0"].shape[0]
    Hp = _round_up(H, LANE)
    Vp = _round_up(V, LANE)

    # Chunking: pad S up to a multiple of T_blk (padded timesteps run on zero
    # inputs and their outputs are sliced away; h_n/c_n come from the snapshot
    # at the last real timestep).
    T_blk = max(1, min(max_chunk, S))
    Sp = _round_up(S, T_blk)
    n_chunks = Sp // T_blk
    last_local = (S - 1) % T_blk

    f32, bf16 = jnp.float32, jnp.bfloat16

    # Pad weights to lane-aligned widths (zero padding keeps math exact:
    # padded hidden units stay 0, padded logit columns are sliced away).
    # MXU operands are stored bf16; biases stay f32 (added into f32 accums).
    wih0 = _pad_axis(_pad_gate_axis(params["wih0"], H, Hp), 0, Vp).astype(bf16)
    whh0 = _pad_axis(_pad_gate_axis(params["whh0"], H, Hp), 0, Hp)
    wih1 = _pad_axis(_pad_gate_axis(params["wih1"], H, Hp), 0, Hp)
    w_a = jnp.concatenate([whh0, wih1], axis=1).astype(bf16)         # (Hp, 8Hp)
    whh1 = _pad_axis(_pad_gate_axis(params["whh1"], H, Hp), 0, Hp).astype(bf16)
    b0 = _pad_gate_axis(params["b0"], H, Hp).astype(f32)             # (1, 4Hp)
    b1 = _pad_gate_axis(params["b1"], H, Hp).astype(f32)             # (1, 4Hp)
    wlin = _pad_axis(_pad_axis(params["wlin"], 0, Hp), 1, Vp).astype(bf16)
    blin = _pad_axis(params["blin"], 1, Vp).astype(f32)              # (1, Vp)

    # Time-major, padded input: (Sp, B, Vp).  Wrapper transpose kept (see header).
    x_tm = jnp.pad(jnp.transpose(x, (1, 0, 2)).astype(f32),
                   ((0, Sp - S), (0, 0), (0, Vp - V)))

    kernel = functools.partial(lstm_kernel, last_local)
    out_shape = (
        jax.ShapeDtypeStruct((Sp, B, Vp), f32),    # logits (time-major, padded)
        jax.ShapeDtypeStruct((2, B, Hp), f32),     # h_n (padded H)
        jax.ShapeDtypeStruct((2, B, Hp), f32),     # c_n (padded H)
    )
    scratch_shapes = [
        pltpu.VMEM((B, Hp), f32),             # h layer 0
        pltpu.VMEM((B, Hp), f32),             # c layer 0
        pltpu.VMEM((B, Hp), f32),             # h layer 1
        pltpu.VMEM((B, Hp), f32),             # c layer 1
        pltpu.VMEM((B, 4 * Hp), f32),         # h0 @ W_hh0 carry
        pltpu.VMEM((T_blk, B, 4 * Hp), f32),  # per-chunk x-gates buffer
    ]

    def run(weight_pipeline_mode):
        def wspec(shape):
            index_map = lambda t: (0,) * len(shape)
            if weight_pipeline_mode is None:
                return pl.BlockSpec(shape, index_map)
            return pl.BlockSpec(shape, index_map,
                                pipeline_mode=weight_pipeline_mode)

        grid_spec = pltpu.PrefetchScalarGridSpec(
            num_scalar_prefetch=0,
            grid=(n_chunks,),
            in_specs=[
                pl.BlockSpec((T_blk, B, Vp), lambda t: (t, 0, 0)),  # x chunk
                wspec((Vp, 4 * Hp)),       # W_ih layer 0
                wspec((1, 4 * Hp)),        # bias  layer 0
                wspec((Hp, 8 * Hp)),       # fused [W_hh0 | W_ih1]
                wspec((Hp, 4 * Hp)),       # W_hh layer 1
                wspec((1, 4 * Hp)),        # bias  layer 1
                wspec((Hp, Vp)),           # linear weight
                wspec((1, Vp)),            # linear bias
            ],
            out_specs=(
                pl.BlockSpec((T_blk, B, Vp), lambda t: (t, 0, 0)),
                pl.BlockSpec((2, B, Hp), lambda t: (0, 0, 0)),
                pl.BlockSpec((2, B, Hp), lambda t: (0, 0, 0)),
            ),
            scratch_shapes=scratch_shapes,
        )
        res = pl.pallas_call(
            kernel,
            out_shape=out_shape,
            grid_spec=grid_spec,
            compiler_params=pltpu.CompilerParams(
                dimension_semantics=("arbitrary",)),   # time axis = recurrence
        )(x_tm, wih0, b0, w_a, whh1, b1, wlin, blin)
        return jax.block_until_ready(res)

    try:
        # Constant-index weights only need a single VMEM buffer.
        out_tm, h_n, c_n = run(pl.Buffered(1))
    except Exception:
        # pipeline_mode / Buffered(1) not supported here -> default buffering.
        out_tm, h_n, c_n = run(None)

    out = jnp.transpose(out_tm[:S, :, :V], (1, 0, 2))
    return out, (h_n[..., :H], c_n[..., :H])


# ------------------------- params / reference / test -----------------------

def init_params(key, vocab_size, hidden):
    """Deterministic synthetic params, PyTorch-style uniform(-1/sqrt(H), 1/sqrt(H)).

    Stored pre-transposed (logical, un-padded): W_ih -> (in_dim, 4H),
    W_hh -> (H, 4H), lin weight -> (H, V); the two LSTM biases are summed."""
    k = 1.0 / np.sqrt(hidden)
    keys = jax.random.split(key, 10)

    def u(kk, shape):
        return jax.random.uniform(kk, shape, jnp.float32, minval=-k, maxval=k)

    return {
        "wih0": u(keys[0], (4 * hidden, vocab_size)).T,            # (V, 4H)
        "whh0": u(keys[1], (4 * hidden, hidden)).T,                # (H, 4H)
        "b0": (u(keys[2], (4 * hidden,)) + u(keys[3], (4 * hidden,)))[None, :],
        "wih1": u(keys[4], (4 * hidden, hidden)).T,                # (H, 4H)
        "whh1": u(keys[5], (4 * hidden, hidden)).T,                # (H, 4H)
        "b1": (u(keys[6], (4 * hidden,)) + u(keys[7], (4 * hidden,)))[None, :],
        "wlin": u(keys[8], (vocab_size, hidden)).T,                # (H, V)
        "blin": u(keys[9], (vocab_size,))[None, :],                # (1, V)
    }


def reference_forward(x, p):
    """Pure-JAX f32 reference (lax.scan LSTM) used as a correctness oracle."""
    B, S, V = x.shape
    H = p["whh0"].shape[0]

    def cell(inp, h, c, wih, whh, b):
        g = inp @ wih + h @ whh + b
        i = jax.nn.sigmoid(g[:, :H])
        f = jax.nn.sigmoid(g[:, H:2 * H])
        gg = jnp.tanh(g[:, 2 * H:3 * H])
        o = jax.nn.sigmoid(g[:, 3 * H:])
        c_n = f * c + i * gg
        return o * jnp.tanh(c_n), c_n

    def step(carry, x_t):
        h0, c0, h1, c1 = carry
        h0, c0 = cell(x_t, h0, c0, p["wih0"], p["whh0"], p["b0"])
        h1, c1 = cell(h0, h1, c1, p["wih1"], p["whh1"], p["b1"])
        out = h1 @ p["wlin"] + p["blin"]
        return (h0, c0, h1, c1), out

    init = tuple(jnp.zeros((B, H), jnp.float32) for _ in range(4))
    (h0, c0, h1, c1), outs = jax.lax.scan(step, init, jnp.transpose(x, (1, 0, 2)))
    return (jnp.transpose(outs, (1, 0, 2)),
            (jnp.stack([h0, h1]), jnp.stack([c0, c1])))


if __name__ == "__main__":
    # Small shapes consistent with the module's forward: x is (batch, seq, vocab).
    # seq_len=19 with max_chunk=8 exercises multi-chunk + ragged-tail padding.
    batch, seq_len, vocab, hidden = 8, 19, 32, 32

    key = jax.random.PRNGKey(0)
    kx, kp = jax.random.split(key)
    x = jax.random.normal(kx, (batch, seq_len, vocab), jnp.float32)
    params = init_params(kp, vocab, hidden)

    out, (h_n, c_n) = text_generation_forward(x, params, max_chunk=8)
    out = jax.block_until_ready(out)
    h_n = jax.block_until_ready(h_n)
    c_n = jax.block_until_ready(c_n)

    # Sanity check vs. the pure-JAX f32 reference (kernel uses bf16 MXU
    # operands, so tolerances are bf16-level).
    ref_out, (ref_h, ref_c) = reference_forward(x, params)
    np.testing.assert_allclose(np.asarray(out), np.asarray(ref_out),
                               rtol=3e-2, atol=3e-2)
    np.testing.assert_allclose(np.asarray(h_n), np.asarray(ref_h),
                               rtol=3e-2, atol=3e-2)
    np.testing.assert_allclose(np.asarray(c_n), np.asarray(ref_c),
                               rtol=3e-2, atol=3e-2)

    assert out.shape == (batch, seq_len, vocab)
    assert h_n.shape == (2, batch, hidden) and c_n.shape == (2, batch, hidden)
    print("KERNEL_OK")
</pallas_src>

<mosaic_0001>
module attributes {stable_mosaic.version = 11 : i64} {
  func.func @lstm_kernel(%arg0: i32, %arg1: memref<8x8x128xf32, #tpu.memory_space<vmem>>, %arg2: memref<128x512xbf16, #tpu.memory_space<vmem>>, %arg3: memref<1x512xf32, #tpu.memory_space<vmem>>, %arg4: memref<128x1024xbf16, #tpu.memory_space<vmem>>, %arg5: memref<128x512xbf16, #tpu.memory_space<vmem>>, %arg6: memref<1x512xf32, #tpu.memory_space<vmem>>, %arg7: memref<128x128xbf16, #tpu.memory_space<vmem>>, %arg8: memref<1x128xf32, #tpu.memory_space<vmem>>, %arg9: memref<8x8x128xf32, #tpu.memory_space<vmem>>, %arg10: memref<2x8x128xf32, #tpu.memory_space<vmem>>, %arg11: memref<2x8x128xf32, #tpu.memory_space<vmem>>, %arg12: memref<8x128xf32, #tpu.memory_space<vmem>>, %arg13: memref<8x128xf32, #tpu.memory_space<vmem>>, %arg14: memref<8x128xf32, #tpu.memory_space<vmem>>, %arg15: memref<8x128xf32, #tpu.memory_space<vmem>>, %arg16: memref<8x512xf32, #tpu.memory_space<vmem>>, %arg17: memref<8x8x512xf32, #tpu.memory_space<vmem>>) attributes {dimension_semantics = [#tpu.dimension_semantics<arbitrary>], iteration_bounds = array<i64: 3>, scalar_prefetch = 0 : i64, scratch_operands = 6 : i64, tpu.core_type = #tpu.core_type<tc>, window_params = [{transform_indices = @transform_0, window_bounds = array<i64: 8, 8, 128>}, {pipeline_mode = #tpu.pipeline_mode<synchronous>, transform_indices = @transform_1, window_bounds = array<i64: 128, 512>}, {pipeline_mode = #tpu.pipeline_mode<synchronous>, transform_indices = @transform_2, window_bounds = array<i64: 1, 512>}, {pipeline_mode = #tpu.pipeline_mode<synchronous>, transform_indices = @transform_3, window_bounds = array<i64: 128, 1024>}, {pipeline_mode = #tpu.pipeline_mode<synchronous>, transform_indices = @transform_4, window_bounds = array<i64: 128, 512>}, {pipeline_mode = #tpu.pipeline_mode<synchronous>, transform_indices = @transform_5, window_bounds = array<i64: 1, 512>}, {pipeline_mode = #tpu.pipeline_mode<synchronous>, transform_indices = @transform_6, window_bounds = array<i64: 128, 128>}, {pipeline_mode = #tpu.pipeline_mode<synchronous>, transform_indices = @transform_7, window_bounds = array<i64: 1, 128>}, {transform_indices = @transform_8, window_bounds = array<i64: 8, 8, 128>}, {pipeline_mode = #tpu.pipeline_mode<synchronous>, transform_indices = @transform_9, window_bounds = array<i64: 2, 8, 128>}, {pipeline_mode = #tpu.pipeline_mode<synchronous>, transform_indices = @transform_10, window_bounds = array<i64: 2, 8, 128>}]} {
    %c0_i32 = arith.constant 0 : i32
    %0 = arith.cmpi eq, %arg0, %c0_i32 : i32
    %1 = arith.extui %0 : i1 to i32
    %c0_i32_0 = arith.constant 0 : i32
    %2 = arith.cmpi ne, %1, %c0_i32_0 : i32
    scf.if %2 {
      %cst_163 = arith.constant 0.000000e+00 : f32
      %572 = vector.broadcast %cst_163 : f32 to vector<8x128xf32>
      %c0_164 = arith.constant 0 : index
      %c0_165 = arith.constant 0 : index
      %573 = vector.load %arg12[%c0_164, %c0_165] : memref<8x128xf32, #tpu.memory_space<vmem>>, vector<8x128xf32>
      tpu.vector_store %arg12[%c0_164, %c0_165], %572 {strides = array<i32>} : memref<8x128xf32, #tpu.memory_space<vmem>>, vector<8x128xf32>,
      %cst_166 = arith.constant 0.000000e+00 : f32
      %574 = vector.broadcast %cst_166 : f32 to vector<8x128xf32>
      %c0_167 = arith.constant 0 : index
      %c0_168 = arith.constant 0 : index
      %575 = vector.load %arg13[%c0_167, %c0_168] : memref<8x128xf32, #tpu.memory_space<vmem>>, vector<8x128xf32>
      tpu.vector_store %arg13[%c0_167, %c0_168], %574 {strides = array<i32>} : memref<8x128xf32, #tpu.memory_space<vmem>>, vector<8x128xf32>,
      %cst_169 = arith.constant 0.000000e+00 : f32
      %576 = vector.broadcast %cst_169 : f32 to vector<8x128xf32>
      %c0_170 = arith.constant 0 : index
      %c0_171 = arith.constant 0 : index
      %577 = vector.load %arg14[%c0_170, %c0_171] : memref<8x128xf32, #tpu.memory_space<vmem>>, vector<8x128xf32>
      tpu.vector_store %arg14[%c0_170, %c0_171], %576 {strides = array<i32>} : memref<8x128xf32, #tpu.memory_space<vmem>>, vector<8x128xf32>,
      %cst_172 = arith.constant 0.000000e+00 : f32
      %578 = vector.broadcast %cst_172 : f32 to vector<8x128xf32>
      %c0_173 = arith.constant 0 : index
      %c0_174 = arith.constant 0 : index
      %579 = vector.load %arg15[%c0_173, %c0_174] : memref<8x128xf32, #tpu.memory_space<vmem>>, vector<8x128xf32>
      tpu.vector_store %arg15[%c0_173, %c0_174], %578 {strides = array<i32>} : memref<8x128xf32, #tpu.memory_space<vmem>>, vector<8x128xf32>,
      %cst_175 = arith.constant 0.000000e+00 : f32
      %580 = vector.broadcast %cst_175 : f32 to vector<8x512xf32>
      %c0_176 = arith.constant 0 : index
      %c0_177 = arith.constant 0 : index
      %581 = vector.load %arg16[%c0_176, %c0_177] : memref<8x512xf32, #tpu.memory_space<vmem>>, vector<8x512xf32>
      tpu.vector_store %arg16[%c0_176, %c0_177], %580 {strides = array<i32>} : memref<8x512xf32, #tpu.memory_space<vmem>>, vector<8x512xf32>,
    } else {
    }
    %c0 = arith.constant 0 : index
    %c0_1 = arith.constant 0 : index
    %c0_2 = arith.constant 0 : index
    %3 = vector.load %arg1[%c0, %c0_1, %c0_2] : memref<8x8x128xf32, #tpu.memory_space<vmem>>, vector<8x8x128xf32>
    %4 = vector.shape_cast %3 : vector<8x8x128xf32> to vector<64x128xf32>
    %5 = arith.truncf %4 : vector<64x128xf32> to vector<64x128xbf16>
    %c0_3 = arith.constant 0 : index
    %c0_4 = arith.constant 0 : index
    %6 = vector.load %arg2[%c0_3, %c0_4] : memref<128x512xbf16, #tpu.memory_space<vmem>>, vector<128x512xbf16>
    %cst = arith.constant dense<0.000000e+00> : vector<64x512xf32>
    %7 = tpu.matmul %5, %6, %cst {dimension_numbers = #tpu.dot_dimension_numbers<[1], [0], [0], [1], [0, 0, 1, 1], [], []>} : vector<64x128xbf16>, vector<128x512xbf16>, vector<64x512xf32> -> vector<64x512xf32>
    %c0_5 = arith.constant 0 : index
    %c0_6 = arith.constant 0 : index
    %8 = vector.load %arg3[%c0_5, %c0_6] : memref<1x512xf32, #tpu.memory_space<vmem>>, vector<1x512xf32>
    %9 = vector.broadcast %8 : vector<1x512xf32> to vector<64x512xf32>
    %10 = arith.addf %7, %9 : vector<64x512xf32>
    %11 = vector.shape_cast %10 : vector<64x512xf32> to vector<8x8x512xf32>
    %c0_7 = arith.constant 0 : index
    %c0_8 = arith.constant 0 : index
    %c0_9 = arith.constant 0 : index
    %12 = vector.load %arg17[%c0_7, %c0_8, %c0_9] : memref<8x8x512xf32, #tpu.memory_space<vmem>>, vector<8x8x512xf32>
    tpu.vector_store %arg17[%c0_7, %c0_8, %c0_9], %11 {strides = array<i32>} : memref<8x8x512xf32, #tpu.memory_space<vmem>>, vector<8x8x512xf32>,
    %c0_10 = arith.constant 0 : index
    %c0_11 = arith.constant 0 : index
    %13 = vector.load %arg4[%c0_10, %c0_11] : memref<128x1024xbf16, #tpu.memory_space<vmem>>, vector<128x1024xbf16>
    %c0_12 = arith.constant 0 : index
    %c0_13 = arith.constant 0 : index
    %14 = vector.load %arg5[%c0_12, %c0_13] : memref<128x512xbf16, #tpu.memory_space<vmem>>, vector<128x512xbf16>
    %c0_14 = arith.constant 0 : index
    %c0_15 = arith.constant 0 : index
    %15 = vector.load %arg7[%c0_14, %c0_15] : memref<128x128xbf16, #tpu.memory_space<vmem>>, vector<128x128xbf16>
    %c0_16 = arith.constant 0 : index
    %c0_17 = arith.constant 0 : index
    %16 = vector.load %arg6[%c0_16, %c0_17] : memref<1x512xf32, #tpu.memory_space<vmem>>, vector<1x512xf32>
    %17 = vector.shape_cast %16 : vector<1x512xf32> to vector<1x512xf32>
    %18 = vector.broadcast %17 : vector<1x512xf32> to vector<8x512xf32>
    %c0_18 = arith.constant 0 : index
    %c0_19 = arith.constant 0 : index
    %19 = vector.load %arg8[%c0_18, %c0_19] : memref<1x128xf32, #tpu.memory_space<vmem>>, vector<1x128xf32>
    %20 = vector.shape_cast %19 : vector<1x128xf32> to vector<1x128xf32>
    %21 = vector.broadcast %20 : vector<1x128xf32> to vector<8x128xf32>
    %c0_20 = arith.constant 0 : index
    %c0_21 = arith.constant 0 : index
    %22 = vector.load %arg13[%c0_20, %c0_21] : memref<8x128xf32, #tpu.memory_space<vmem>>, vector<8x128xf32>
    %c0_22 = arith.constant 0 : index
    %c0_23 = arith.constant 0 : index
    %23 = vector.load %arg14[%c0_22, %c0_23] : memref<8x128xf32, #tpu.memory_space<vmem>>, vector<8x128xf32>
    %c0_24 = arith.constant 0 : index
    %c0_25 = arith.constant 0 : index
    %24 = vector.load %arg15[%c0_24, %c0_25] : memref<8x128xf32, #tpu.memory_space<vmem>>, vector<8x128xf32>
    %c0_26 = arith.constant 0 : index
    %c0_27 = arith.constant 0 : index
    %25 = vector.load %arg16[%c0_26, %c0_27] : memref<8x512xf32, #tpu.memory_space<vmem>>, vector<8x512xf32>
    %26 = arith.truncf %23 : vector<8x128xf32> to vector<8x128xbf16>
    %cst_28 = arith.constant dense<0.000000e+00> : vector<8x512xf32>
    %27 = tpu.matmul %26, %14, %cst_28 {dimension_numbers = #tpu.dot_dimension_numbers<[1], [0], [0], [1], [0, 0, 1, 1], [], []>} : vector<8x128xbf16>, vector<128x512xbf16>, vector<8x512xf32> -> vector<8x512xf32>
    %c0_29 = arith.constant 0 : index
    %c0_30 = arith.constant 0 : index
    %c0_31 = arith.constant 0 : index
    %28 = vector.load %arg17[%c0_29, %c0_30, %c0_31] : memref<8x8x512xf32, #tpu.memory_space<vmem>>, vector<1x8x512xf32>
    %29 = vector.shape_cast %28 : vector<1x8x512xf32> to vector<8x512xf32>
    %30 = arith.addf %29, %25 : vector<8x512xf32>
    %31 = vector.extract_strided_slice %30 {offsets = [0, 0], sizes = [8, 128], strides = [1, 1]} : vector<8x512xf32> to vector<8x128xf32>
    %32 = arith.negf %31 : vector<8x128xf32>
    %33 = math.exp %32 : vector<8x128xf32>
    %cst_32 = arith.constant 1.000000e+00 : f32
    %34 = vector.broadcast %cst_32 : f32 to vector<8x128xf32>
    %35 = arith.addf %34, %33 : vector<8x128xf32>
    %36 = arith.divf %34, %35 : vector<8x128xf32>
    %37 = vector.extract_strided_slice %30 {offsets = [0, 128], sizes = [8, 128], strides = [1, 1]} : vector<8x512xf32> to vector<8x128xf32>
    %38 = arith.negf %37 : vector<8x128xf32>
    %39 = math.exp %38 : vector<8x128xf32>
    %cst_33 = arith.constant 1.000000e+00 : f32
    %40 = vector.broadcast %cst_33 : f32 to vector<8x128xf32>
    %41 = arith.addf %40, %39 : vector<8x128xf32>
    %42 = arith.divf %40, %41 : vector<8x128xf32>
    %43 = vector.extract_strided_slice %30 {offsets = [0, 256], sizes = [8, 128], strides = [1, 1]} : vector<8x512xf32> to vector<8x128xf32>
    %44 = math.tanh %43 : vector<8x128xf32>
    %45 = vector.extract_strided_slice %30 {offsets = [0, 384], sizes = [8, 128], strides = [1, 1]} : vector<8x512xf32> to vector<8x128xf32>
    %46 = arith.negf %45 : vector<8x128xf32>
    %47 = math.exp %46 : vector<8x128xf32>
    %cst_34 = arith.constant 1.000000e+00 : f32
    %48 = vector.broadcast %cst_34 : f32 to vector<8x128xf32>
    %49 = arith.addf %48, %47 : vector<8x128xf32>
    %50 = arith.divf %48, %49 : vector<8x128xf32>
    %51 = arith.mulf %42, %22 : vector<8x128xf32>
    %52 = arith.mulf %36, %44 : vector<8x128xf32>
    %53 = arith.addf %51, %52 : vector<8x128xf32>
    %54 = math.tanh %53 : vector<8x128xf32>
    %55 = arith.mulf %50, %54 : vector<8x128xf32>
    %56 = arith.truncf %55 : vector<8x128xf32> to vector<8x128xbf16>
    %cst_35 = arith.constant dense<0.000000e+00> : vector<8x1024xf32>
    %57 = tpu.matmul %56, %13, %cst_35 {dimension_numbers = #tpu.dot_dimension_numbers<[1], [0], [0], [1], [0, 0, 1, 1], [], []>} : vector<8x128xbf16>, vector<128x1024xbf16>, vector<8x1024xf32> -> vector<8x1024xf32>
    %58 = vector.extract_strided_slice %57 {offsets = [0, 0], sizes = [8, 512], strides = [1, 1]} : vector<8x1024xf32> to vector<8x512xf32>
    %59 = vector.extract_strided_slice %57 {offsets = [0, 512], sizes = [8, 512], strides = [1, 1]} : vector<8x1024xf32> to vector<8x512xf32>
    %60 = arith.addf %59, %27 : vector<8x512xf32>
    %61 = arith.addf %60, %18 : vector<8x512xf32>
    %62 = vector.extract_strided_slice %61 {offsets = [0, 0], sizes = [8, 128], strides = [1, 1]} : vector<8x512xf32> to vector<8x128xf32>
    %63 = arith.negf %62 : vector<8x128xf32>
    %64 = math.exp %63 : vector<8x128xf32>
    %cst_36 = arith.constant 1.000000e+00 : f32
    %65 = vector.broadcast %cst_36 : f32 to vector<8x128xf32>
    %66 = arith.addf %65, %64 : vector<8x128xf32>
    %67 = arith.divf %65, %66 : vector<8x128xf32>
    %68 = vector.extract_strided_slice %61 {offsets = [0, 128], sizes = [8, 128], strides = [1, 1]} : vector<8x512xf32> to vector<8x128xf32>
    %69 = arith.negf %68 : vector<8x128xf32>
    %70 = math.exp %69 : vector<8x128xf32>
    %cst_37 = arith.constant 1.000000e+00 : f32
    %71 = vector.broadcast %cst_37 : f32 to vector<8x128xf32>
    %72 = arith.addf %71, %70 : vector<8x128xf32>
    %73 = arith.divf %71, %72 : vector<8x128xf32>
    %74 = vector.extract_strided_slice %61 {offsets = [0, 256], sizes = [8, 128], strides = [1, 1]} : vector<8x512xf32> to vector<8x128xf32>
    %75 = math.tanh %74 : vector<8x128xf32>
    %76 = vector.extract_strided_slice %61 {offsets = [0, 384], sizes = [8, 128], strides = [1, 1]} : vector<8x512xf32> to vector<8x128xf32>
    %77 = arith.negf %76 : vector<8x128xf32>
    %78 = math.exp %77 : vector<8x128xf32>
    %cst_38 = arith.constant 1.000000e+00 : f32
    %79 = vector.broadcast %cst_38 : f32 to vector<8x128xf32>
    %80 = arith.addf %79, %78 : vector<8x128xf32>
    %81 = arith.divf %79, %80 : vector<8x128xf32>
    %82 = arith.mulf %73, %24 : vector<8x128xf32>
    %83 = arith.mulf %67, %75 : vector<8x128xf32>
    %84 = arith.addf %82, %83 : vector<8x128xf32>
    %85 = math.tanh %84 : vector<8x128xf32>
    %86 = arith.mulf %81, %85 : vector<8x128xf32>
    %87 = arith.truncf %86 : vector<8x128xf32> to vector<8x128xbf16>
    %cst_39 = arith.constant dense<0.000000e+00> : vector<8x128xf32>
    %88 = tpu.matmul %87, %15, %cst_39 {dimension_numbers = #tpu.dot_dimension_numbers<[1], [0], [0], [1], [0, 0, 1, 1], [], []>} : vector<8x128xbf16>, vector<128x128xbf16>, vector<8x128xf32> -> vector<8x128xf32>
    %89 = arith.addf %88, %21 : vector<8x128xf32>
    %c0_40 = arith.constant 0 : index
    %c0_41 = arith.constant 0 : index
    %c0_42 = arith.constant 0 : index
    %90 = vector.load %arg9[%c0_40, %c0_41, %c0_42] : memref<8x8x128xf32, #tpu.memory_space<vmem>>, vector<1x8x128xf32>
    %91 = vector.shape_cast %90 : vector<1x8x128xf32> to vector<8x128xf32>
    %92 = vector.shape_cast %89 : vector<8x128xf32> to vector<1x8x128xf32>
    tpu.vector_store %arg9[%c0_40, %c0_41, %c0_42], %92 {strides = array<i32>} : memref<8x8x128xf32, #tpu.memory_space<vmem>>, vector<1x8x128xf32>,
    %cst_43 = arith.constant dense<0.000000e+00> : vector<8x512xf32>
    %93 = tpu.matmul %87, %14, %cst_43 {dimension_numbers = #tpu.dot_dimension_numbers<[1], [0], [0], [1], [0, 0, 1, 1], [], []>} : vector<8x128xbf16>, vector<128x512xbf16>, vector<8x512xf32> -> vector<8x512xf32>
    %c1 = arith.constant 1 : index
    %c0_44 = arith.constant 0 : index
    %c0_45 = arith.constant 0 : index
    %94 = vector.load %arg17[%c1, %c0_44, %c0_45] : memref<8x8x512xf32, #tpu.memory_space<vmem>>, vector<1x8x512xf32>
    %95 = vector.shape_cast %94 : vector<1x8x512xf32> to vector<8x512xf32>
    %96 = arith.addf %95, %58 : vector<8x512xf32>
    %97 = vector.extract_strided_slice %96 {offsets = [0, 0], sizes = [8, 128], strides = [1, 1]} : vector<8x512xf32> to vector<8x128xf32>
    %98 = arith.negf %97 : vector<8x128xf32>
    %99 = math.exp %98 : vector<8x128xf32>
    %cst_46 = arith.constant 1.000000e+00 : f32
    %100 = vector.broadcast %cst_46 : f32 to vector<8x128xf32>
    %101 = arith.addf %100, %99 : vector<8x128xf32>
    %102 = arith.divf %100, %101 : vector<8x128xf32>
    %103 = vector.extract_strided_slice %96 {offsets = [0, 128], sizes = [8, 128], strides = [1, 1]} : vector<8x512xf32> to vector<8x128xf32>
    %104 = arith.negf %103 : vector<8x128xf32>
    %105 = math.exp %104 : vector<8x128xf32>
    %cst_47 = arith.constant 1.000000e+00 : f32
    %106 = vector.broadcast %cst_47 : f32 to vector<8x128xf32>
    %107 = arith.addf %106, %105 : vector<8x128xf32>
    %108 = arith.divf %106, %107 : vector<8x128xf32>
    %109 = vector.extract_strided_slice %96 {offsets = [0, 256], sizes = [8, 128], strides = [1, 1]} : vector<8x512xf32> to vector<8x128xf32>
    %110 = math.tanh %109 : vector<8x128xf32>
    %111 = vector.extract_strided_slice %96 {offsets = [0, 384], sizes = [8, 128], strides = [1, 1]} : vector<8x512xf32> to vector<8x128xf32>
    %112 = arith.negf %111 : vector<8x128xf32>
    %113 = math.exp %112 : vector<8x128xf32>
    %cst_48 = arith.constant 1.000000e+00 : f32
    %114 = vector.broadcast %cst_48 : f32 to vector<8x128xf32>
    %115 = arith.addf %114, %113 : vector<8x128xf32>
    %116 = arith.divf %114, %115 : vector<8x128xf32>
    %117 = arith.mulf %108, %53 : vector<8x128xf32>
    %118 = arith.mulf %102, %110 : vector<8x128xf32>
    %119 = arith.addf %117, %118 : vector<8x128xf32>
    %120 = math.tanh %119 : vector<8x128xf32>
    %121 = arith.mulf %116, %120 : vector<8x128xf32>
    %122 = arith.truncf %121 : vector<8x128xf32> to vector<8x128xbf16>
    %cst_49 = arith.constant dense<0.000000e+00> : vector<8x1024xf32>
    %123 = tpu.matmul %122, %13, %cst_49 {dimension_numbers = #tpu.dot_dimension_numbers<[1], [0], [0], [1], [0, 0, 1, 1], [], []>} : vector<8x128xbf16>, vector<128x1024xbf16>, vector<8x1024xf32> -> vector<8x1024xf32>
    %124 = vector.extract_strided_slice %123 {offsets = [0, 0], sizes = [8, 512], strides = [1, 1]} : vector<8x1024xf32> to vector<8x512xf32>
    %125 = vector.extract_strided_slice %123 {offsets = [0, 512], sizes = [8, 512], strides = [1, 1]} : vector<8x1024xf32> to vector<8x512xf32>
    %126 = arith.addf %125, %93 : vector<8x512xf32>
    %127 = arith.addf %126, %18 : vector<8x512xf32>
    %128 = vector.extract_strided_slice %127 {offsets = [0, 0], sizes = [8, 128], strides = [1, 1]} : vector<8x512xf32> to vector<8x128xf32>
    %129 = arith.negf %128 : vector<8x128xf32>
    %130 = math.exp %129 : vector<8x128xf32>
    %cst_50 = arith.constant 1.000000e+00 : f32
    %131 = vector.broadcast %cst_50 : f32 to vector<8x128xf32>
    %132 = arith.addf %131, %130 : vector<8x128xf32>
    %133 = arith.divf %131, %132 : vector<8x128xf32>
    %134 = vector.extract_strided_slice %127 {offsets = [0, 128], sizes = [8, 128], strides = [1, 1]} : vector<8x512xf32> to vector<8x128xf32>
    %135 = arith.negf %134 : vector<8x128xf32>
    %136 = math.exp %135 : vector<8x128xf32>
    %cst_51 = arith.constant 1.000000e+00 : f32
    %137 = vector.broadcast %cst_51 : f32 to vector<8x128xf32>
    %138 = arith.addf %137, %136 : vector<8x128xf32>
    %139 = arith.divf %137, %138 : vector<8x128xf32>
    %140 = vector.extract_strided_slice %127 {offsets = [0, 256], sizes = [8, 128], strides = [1, 1]} : vector<8x512xf32> to vector<8x128xf32>
    %141 = math.tanh %140 : vector<8x128xf32>
    %142 = vector.extract_strided_slice %127 {offsets = [0, 384], sizes = [8, 128], strides = [1, 1]} : vector<8x512xf32> to vector<8x128xf32>
    %143 = arith.negf %142 : vector<8x128xf32>
    %144 = math.exp %143 : vector<8x128xf32>
    %cst_52 = arith.constant 1.000000e+00 : f32
    %145 = vector.broadcast %cst_52 : f32 to vector<8x128xf32>
    %146 = arith.addf %145, %144 : vector<8x128xf32>
    %147 = arith.divf %145, %146 : vector<8x128xf32>
    %148 = arith.mulf %139, %84 : vector<8x128xf32>
    %149 = arith.mulf %133, %141 : vector<8x128xf32>
    %150 = arith.addf %148, %149 : vector<8x128xf32>
    %151 = math.tanh %150 : vector<8x128xf32>
    %152 = arith.mulf %147, %151 : vector<8x128xf32>
    %153 = arith.truncf %152 : vector<8x128xf32> to vector<8x128xbf16>
    %cst_53 = arith.constant dense<0.000000e+00> : vector<8x128xf32>
    %154 = tpu.matmul %153, %15, %cst_53 {dimension_numbers = #tpu.dot_dimension_numbers<[1], [0], [0], [1], [0, 0, 1, 1], [], []>} : vector<8x128xbf16>, vector<128x128xbf16>, vector<8x128xf32> -> vector<8x128xf32>
    %155 = arith.addf %154, %21 : vector<8x128xf32>
    %c1_54 = arith.constant 1 : index
    %c0_55 = arith.constant 0 : index
    %c0_56 = arith.constant 0 : index
    %156 = vector.load %arg9[%c1_54, %c0_55, %c0_56] : memref<8x8x128xf32, #tpu.memory_space<vmem>>, vector<1x8x128xf32>
    %157 = vector.shape_cast %156 : vector<1x8x128xf32> to vector<8x128xf32>
    %158 = vector.shape_cast %155 : vector<8x128xf32> to vector<1x8x128xf32>
    tpu.vector_store %arg9[%c1_54, %c0_55, %c0_56], %158 {strides = array<i32>} : memref<8x8x128xf32, #tpu.memory_space<vmem>>, vector<1x8x128xf32>,
    %cst_57 = arith.constant dense<0.000000e+00> : vector<8x512xf32>
    %159 = tpu.matmul %153, %14, %cst_57 {dimension_numbers = #tpu.dot_dimension_numbers<[1], [0], [0], [1], [0, 0, 1, 1], [], []>} : vector<8x128xbf16>, vector<128x512xbf16>, vector<8x512xf32> -> vector<8x512xf32>
    %c2 = arith.constant 2 : index
    %c0_58 = arith.constant 0 : index
    %c0_59 = arith.constant 0 : index
    %160 = vector.load %arg17[%c2, %c0_58, %c0_59] : memref<8x8x512xf32, #tpu.memory_space<vmem>>, vector<1x8x512xf32>
    %161 = vector.shape_cast %160 : vector<1x8x512xf32> to vector<8x512xf32>
    %162 = arith.addf %161, %124 : vector<8x512xf32>
    %163 = vector.extract_strided_slice %162 {offsets = [0, 0], sizes = [8, 128], strides = [1, 1]} : vector<8x512xf32> to vector<8x128xf32>
    %164 = arith.negf %163 : vector<8x128xf32>
    %165 = math.exp %164 : vector<8x128xf32>
    %cst_60 = arith.constant 1.000000e+00 : f32
    %166 = vector.broadcast %cst_60 : f32 to vector<8x128xf32>
    %167 = arith.addf %166, %165 : vector<8x128xf32>
    %168 = arith.divf %166, %167 : vector<8x128xf32>
    %169 = vector.extract_strided_slice %162 {offsets = [0, 128], sizes = [8, 128], strides = [1, 1]} : vector<8x512xf32> to vector<8x128xf32>
    %170 = arith.negf %169 : vector<8x128xf32>
    %171 = math.exp %170 : vector<8x128xf32>
    %cst_61 = arith.constant 1.000000e+00 : f32
    %172 = vector.broadcast %cst_61 : f32 to vector<8x128xf32>
    %173 = arith.addf %172, %171 : vector<8x128xf32>
    %174 = arith.divf %172, %173 : vector<8x128xf32>
    %175 = vector.extract_strided_slice %162 {offsets = [0, 256], sizes = [8, 128], strides = [1, 1]} : vector<8x512xf32> to vector<8x128xf32>
    %176 = math.tanh %175 : vector<8x128xf32>
    %177 = vector.extract_strided_slice %162 {offsets = [0, 384], sizes = [8, 128], strides = [1, 1]} : vector<8x512xf32> to vector<8x128xf32>
    %178 = arith.negf %177 : vector<8x128xf32>
    %179 = math.exp %178 : vector<8x128xf32>
    %cst_62 = arith.constant 1.000000e+00 : f32
    %180 = vector.broadcast %cst_62 : f32 to vector<8x128xf32>
    %181 = arith.addf %180, %179 : vector<8x128xf32>
    %182 = arith.divf %180, %181 : vector<8x128xf32>
    %183 = arith.mulf %174, %119 : vector<8x128xf32>
    %184 = arith.mulf %168, %176 : vector<8x128xf32>
    %185 = arith.addf %183, %184 : vector<8x128xf32>
    %186 = math.tanh %185 : vector<8x128xf32>
    %187 = arith.mulf %182, %186 : vector<8x128xf32>
    %188 = arith.truncf %187 : vector<8x128xf32> to vector<8x128xbf16>
    %cst_63 = arith.constant dense<0.000000e+00> : vector<8x1024xf32>
    %189 = tpu.matmul %188, %13, %cst_63 {dimension_numbers = #tpu.dot_dimension_numbers<[1], [0], [0], [1], [0, 0, 1, 1], [], []>} : vector<8x128xbf16>, vector<128x1024xbf16>, vector<8x1024xf32> -> vector<8x1024xf32>
    %190 = vector.extract_strided_slice %189 {offsets = [0, 0], sizes = [8, 512], strides = [1, 1]} : vector<8x1024xf32> to vector<8x512xf32>
    %191 = vector.extract_strided_slice %189 {offsets = [0, 512], sizes = [8, 512], strides = [1, 1]} : vector<8x1024xf32> to vector<8x512xf32>
    %192 = arith.addf %191, %159 : vector<8x512xf32>
    %193 = arith.addf %192, %18 : vector<8x512xf32>
    %194 = vector.extract_strided_slice %193 {offsets = [0, 0], sizes = [8, 128], strides = [1, 1]} : vector<8x512xf32> to vector<8x128xf32>
    %195 = arith.negf %194 : vector<8x128xf32>
    %196 = math.exp %195 : vector<8x128xf32>
    %cst_64 = arith.constant 1.000000e+00 : f32
    %197 = vector.broadcast %cst_64 : f32 to vector<8x128xf32>
    %198 = arith.addf %197, %196 : vector<8x128xf32>
    %199 = arith.divf %197, %198 : vector<8x128xf32>
    %200 = vector.extract_strided_slice %193 {offsets = [0, 128], sizes = [8, 128], strides = [1, 1]} : vector<8x512xf32> to vector<8x128xf32>
    %201 = arith.negf %200 : vector<8x128xf32>
    %202 = math.exp %201 : vector<8x128xf32>
    %cst_65 = arith.constant 1.000000e+00 : f32
    %203 = vector.broadcast %cst_65 : f32 to vector<8x128xf32>
    %204 = arith.addf %203, %202 : vector<8x128xf32>
    %205 = arith.divf %203, %204 : vector<8x128xf32>
    %206 = vector.extract_strided_slice %193 {offsets = [0, 256], sizes = [8, 128], strides = [1, 1]} : vector<8x512xf32> to vector<8x128xf32>
    %207 = math.tanh %206 : vector<8x128xf32>
    %208 = vector.extract_strided_slice %193 {offsets = [0, 384], sizes = [8, 128], strides = [1, 1]} : vector<8x512xf32> to vector<8x128xf32>
    %209 = arith.negf %208 : vector<8x128xf32>
    %210 = math.exp %209 : vector<8x128xf32>
    %cst_66 = arith.constant 1.000000e+00 : f32
    %211 = vector.broadcast %cst_66 : f32 to vector<8x128xf32>
    %212 = arith.addf %211, %210 : vector<8x128xf32>
    %213 = arith.divf %211, %212 : vector<8x128xf32>
    %214 = arith.mulf %205, %150 : vector<8x128xf32>
    %215 = arith.mulf %199, %207 : vector<8x128xf32>
    %216 = arith.addf %214, %215 : vector<8x128xf32>
    %217 = math.tanh %216 : vector<8x128xf32>
    %218 = arith.mulf %213, %217 : vector<8x128xf32>
    %219 = arith.truncf %218 : vector<8x128xf32> to vector<8x128xbf16>
    %cst_67 = arith.constant dense<0.000000e+00> : vector<8x128xf32>
    %220 = tpu.matmul %219, %15, %cst_67 {dimension_numbers = #tpu.dot_dimension_numbers<[1], [0], [0], [1], [0, 0, 1, 1], [], []>} : vector<8x128xbf16>, vector<128x128xbf16>, vector<8x128xf32> -> vector<8x128xf32>
    %221 = arith.addf %220, %21 : vector<8x128xf32>
    %c2_68 = arith.constant 2 : index
    %c0_69 = arith.constant 0 : index
    %c0_70 = arith.constant 0 : index
    %222 = vector.load %arg9[%c2_68, %c0_69, %c0_70] : memref<8x8x128xf32, #tpu.memory_space<vmem>>, vector<1x8x128xf32>
    %223 = vector.shape_cast %222 : vector<1x8x128xf32> to vector<8x128xf32>
    %224 = vector.shape_cast %221 : vector<8x128xf32> to vector<1x8x128xf32>
    tpu.vector_store %arg9[%c2_68, %c0_69, %c0_70], %224 {strides = array<i32>} : memref<8x8x128xf32, #tpu.memory_space<vmem>>, vector<1x8x128xf32>,
    %c0_71 = arith.constant 0 : index
    %c0_72 = arith.constant 0 : index
    %c0_73 = arith.constant 0 : index
    %225 = vector.load %arg10[%c0_71, %c0_72, %c0_73] : memref<2x8x128xf32, #tpu.memory_space<vmem>>, vector<1x8x128xf32>
    %226 = vector.shape_cast %225 : vector<1x8x128xf32> to vector<8x128xf32>
    %227 = vector.shape_cast %187 : vector<8x128xf32> to vector<1x8x128xf32>
    tpu.vector_store %arg10[%c0_71, %c0_72, %c0_73], %227 {strides = array<i32>} : memref<2x8x128xf32, #tpu.memory_space<vmem>>, vector<1x8x128xf32>,
    %c1_74 = arith.constant 1 : index
    %c0_75 = arith.constant 0 : index
    %c0_76 = arith.constant 0 : index
    %228 = vector.load %arg10[%c1_74, %c0_75, %c0_76] : memref<2x8x128xf32, #tpu.memory_space<vmem>>, vector<1x8x128xf32>
    %229 = vector.shape_cast %228 : vector<1x8x128xf32> to vector<8x128xf32>
    %230 = vector.shape_cast %218 : vector<8x128xf32> to vector<1x8x128xf32>
    tpu.vector_store %arg10[%c1_74, %c0_75, %c0_76], %230 {strides = array<i32>} : memref<2x8x128xf32, #tpu.memory_space<vmem>>, vector<1x8x128xf32>,
    %c0_77 = arith.constant 0 : index
    %c0_78 = arith.constant 0 : index
    %c0_79 = arith.constant 0 : index
    %231 = vector.load %arg11[%c0_77, %c0_78, %c0_79] : memref<2x8x128xf32, #tpu.memory_space<vmem>>, vector<1x8x128xf32>
    %232 = vector.shape_cast %231 : vector<1x8x128xf32> to vector<8x128xf32>
    %233 = vector.shape_cast %185 : vector<8x128xf32> to vector<1x8x128xf32>
    tpu.vector_store %arg11[%c0_77, %c0_78, %c0_79], %233 {strides = array<i32>} : memref<2x8x128xf32, #tpu.memory_space<vmem>>, vector<1x8x128xf32>,
    %c1_80 = arith.constant 1 : index
    %c0_81 = arith.constant 0 : index
    %c0_82 = arith.constant 0 : index
    %234 = vector.load %arg11[%c1_80, %c0_81, %c0_82] : memref<2x8x128xf32, #tpu.memory_space<vmem>>, vector<1x8x128xf32>
    %235 = vector.shape_cast %234 : vector<1x8x128xf32> to vector<8x128xf32>
    %236 = vector.shape_cast %216 : vector<8x128xf32> to vector<1x8x128xf32>
    tpu.vector_store %arg11[%c1_80, %c0_81, %c0_82], %236 {strides = array<i32>} : memref<2x8x128xf32, #tpu.memory_space<vmem>>, vector<1x8x128xf32>,
    %cst_83 = arith.constant dense<0.000000e+00> : vector<8x512xf32>
    %237 = tpu.matmul %219, %14, %cst_83 {dimension_numbers = #tpu.dot_dimension_numbers<[1], [0], [0], [1], [0, 0, 1, 1], [], []>} : vector<8x128xbf16>, vector<128x512xbf16>, vector<8x512xf32> -> vector<8x512xf32>
    %c3 = arith.constant 3 : index
    %c0_84 = arith.constant 0 : index
    %c0_85 = arith.constant 0 : index
    %238 = vector.load %arg17[%c3, %c0_84, %c0_85] : memref<8x8x512xf32, #tpu.memory_space<vmem>>, vector<1x8x512xf32>
    %239 = vector.shape_cast %238 : vector<1x8x512xf32> to vector<8x512xf32>
    %240 = arith.addf %239, %190 : vector<8x512xf32>
    %241 = vector.extract_strided_slice %240 {offsets = [0, 0], sizes = [8, 128], strides = [1, 1]} : vector<8x512xf32> to vector<8x128xf32>
    %242 = arith.negf %241 : vector<8x128xf32>
    %243 = math.exp %242 : vector<8x128xf32>
    %cst_86 = arith.constant 1.000000e+00 : f32
    %244 = vector.broadcast %cst_86 : f32 to vector<8x128xf32>
    %245 = arith.addf %244, %243 : vector<8x128xf32>
    %246 = arith.divf %244, %245 : vector<8x128xf32>
    %247 = vector.extract_strided_slice %240 {offsets = [0, 128], sizes = [8, 128], strides = [1, 1]} : vector<8x512xf32> to vector<8x128xf32>
    %248 = arith.negf %247 : vector<8x128xf32>
    %249 = math.exp %248 : vector<8x128xf32>
    %cst_87 = arith.constant 1.000000e+00 : f32
    %250 = vector.broadcast %cst_87 : f32 to vector<8x128xf32>
    %251 = arith.addf %250, %249 : vector<8x128xf32>
    %252 = arith.divf %250, %251 : vector<8x128xf32>
    %253 = vector.extract_strided_slice %240 {offsets = [0, 256], sizes = [8, 128], strides = [1, 1]} : vector<8x512xf32> to vector<8x128xf32>
    %254 = math.tanh %253 : vector<8x128xf32>
    %255 = vector.extract_strided_slice %240 {offsets = [0, 384], sizes = [8, 128], strides = [1, 1]} : vector<8x512xf32> to vector<8x128xf32>
    %256 = arith.negf %255 : vector<8x128xf32>
    %257 = math.exp %256 : vector<8x128xf32>
    %cst_88 = arith.constant 1.000000e+00 : f32
    %258 = vector.broadcast %cst_88 : f32 to vector<8x128xf32>
    %259 = arith.addf %258, %257 : vector<8x128xf32>
    %260 = arith.divf %258, %259 : vector<8x128xf32>
    %261 = arith.mulf %252, %185 : vector<8x128xf32>
    %262 = arith.mulf %246, %254 : vector<8x128xf32>
    %263 = arith.addf %261, %262 : vector<8x128xf32>
    %264 = math.tanh %263 : vector<8x128xf32>
    %265 = arith.mulf %260, %264 : vector<8x128xf32>
    %266 = arith.truncf %265 : vector<8x128xf32> to vector<8x128xbf16>
    %cst_89 = arith.constant dense<0.000000e+00> : vector<8x1024xf32>
    %267 = tpu.matmul %266, %13, %cst_89 {dimension_numbers = #tpu.dot_dimension_numbers<[1], [0], [0], [1], [0, 0, 1, 1], [], []>} : vector<8x128xbf16>, vector<128x1024xbf16>, vector<8x1024xf32> -> vector<8x1024xf32>
    %268 = vector.extract_strided_slice %267 {offsets = [0, 0], sizes = [8, 512], strides = [1, 1]} : vector<8x1024xf32> to vector<8x512xf32>
    %269 = vector.extract_strided_slice %267 {offsets = [0, 512], sizes = [8, 512], strides = [1, 1]} : vector<8x1024xf32> to vector<8x512xf32>
    %270 = arith.addf %269, %237 : vector<8x512xf32>
    %271 = arith.addf %270, %18 : vector<8x512xf32>
    %272 = vector.extract_strided_slice %271 {offsets = [0, 0], sizes = [8, 128], strides = [1, 1]} : vector<8x512xf32> to vector<8x128xf32>
    %273 = arith.negf %272 : vector<8x128xf32>
    %274 = math.exp %273 : vector<8x128xf32>
    %cst_90 = arith.constant 1.000000e+00 : f32
    %275 = vector.broadcast %cst_90 : f32 to vector<8x128xf32>
    %276 = arith.addf %275, %274 : vector<8x128xf32>
    %277 = arith.divf %275, %276 : vector<8x128xf32>
    %278 = vector.extract_strided_slice %271 {offsets = [0, 128], sizes = [8, 128], strides = [1, 1]} : vector<8x512xf32> to vector<8x128xf32>
    %279 = arith.negf %278 : vector<8x128xf32>
    %280 = math.exp %279 : vector<8x128xf32>
    %cst_91 = arith.constant 1.000000e+00 : f32
    %281 = vector.broadcast %cst_91 : f32 to vector<8x128xf32>
    %282 = arith.addf %281, %280 : vector<8x128xf32>
    %283 = arith.divf %281, %282 : vector<8x128xf32>
    %284 = vector.extract_strided_slice %271 {offsets = [0, 256], sizes = [8, 128], strides = [1, 1]} : vector<8x512xf32> to vector<8x128xf32>
    %285 = math.tanh %284 : vector<8x128xf32>
    %286 = vector.extract_strided_slice %271 {offsets = [0, 384], sizes = [8, 128], strides = [1, 1]} : vector<8x512xf32> to vector<8x128xf32>
    %287 = arith.negf %286 : vector<8x128xf32>
    %288 = math.exp %287 : vector<8x128xf32>
    %cst_92 = arith.constant 1.000000e+00 : f32
    %289 = vector.broadcast %cst_92 : f32 to vector<8x128xf32>
    %290 = arith.addf %289, %288 : vector<8x128xf32>
    %291 = arith.divf %289, %290 : vector<8x128xf32>
    %292 = arith.mulf %283, %216 : vector<8x128xf32>
    %293 = arith.mulf %277, %285 : vector<8x128xf32>
    %294 = arith.addf %292, %293 : vector<8x128xf32>
    %295 = math.tanh %294 : vector<8x128xf32>
    %296 = arith.mulf %291, %295 : vector<8x128xf32>
    %297 = arith.truncf %296 : vector<8x128xf32> to vector<8x128xbf16>
    %cst_93 = arith.constant dense<0.000000e+00> : vector<8x128xf32>
    %298 = tpu.matmul %297, %15, %cst_93 {dimension_numbers = #tpu.dot_dimension_numbers<[1], [0], [0], [1], [0, 0, 1, 1], [], []>} : vector<8x128xbf16>, vector<128x128xbf16>, vector<8x128xf32> -> vector<8x128xf32>
    %299 = arith.addf %298, %21 : vector<8x128xf32>
    %c3_94 = arith.constant 3 : index
    %c0_95 = arith.constant 0 : index
    %c0_96 = arith.constant 0 : index
    %300 = vector.load %arg9[%c3_94, %c0_95, %c0_96] : memref<8x8x128xf32, #tpu.memory_space<vmem>>, vector<1x8x128xf32>
    %301 = vector.shape_cast %300 : vector<1x8x128xf32> to vector<8x128xf32>
    %302 = vector.shape_cast %299 : vector<8x128xf32> to vector<1x8x128xf32>
    tpu.vector_store %arg9[%c3_94, %c0_95, %c0_96], %302 {strides = array<i32>} : memref<8x8x128xf32, #tpu.memory_space<vmem>>, vector<1x8x128xf32>,
    %cst_97 = arith.constant dense<0.000000e+00> : vector<8x512xf32>
    %303 = tpu.matmul %297, %14, %cst_97 {dimension_numbers = #tpu.dot_dimension_numbers<[1], [0], [0], [1], [0, 0, 1, 1], [], []>} : vector<8x128xbf16>, vector<128x512xbf16>, vector<8x512xf32> -> vector<8x512xf32>
    %c4 = arith.constant 4 : index
    %c0_98 = arith.constant 0 : index
    %c0_99 = arith.constant 0 : index
    %304 = vector.load %arg17[%c4, %c0_98, %c0_99] : memref<8x8x512xf32, #tpu.memory_space<vmem>>, vector<1x8x512xf32>
    %305 = vector.shape_cast %304 : vector<1x8x512xf32> to vector<8x512xf32>
    %306 = arith.addf %305, %268 : vector<8x512xf32>
    %307 = vector.extract_strided_slice %306 {offsets = [0, 0], sizes = [8, 128], strides = [1, 1]} : vector<8x512xf32> to vector<8x128xf32>
    %308 = arith.negf %307 : vector<8x128xf32>
    %309 = math.exp %308 : vector<8x128xf32>
    %cst_100 = arith.constant 1.000000e+00 : f32
    %310 = vector.broadcast %cst_100 : f32 to vector<8x128xf32>
    %311 = arith.addf %310, %309 : vector<8x128xf32>
    %312 = arith.divf %310, %311 : vector<8x128xf32>
    %313 = vector.extract_strided_slice %306 {offsets = [0, 128], sizes = [8, 128], strides = [1, 1]} : vector<8x512xf32> to vector<8x128xf32>
    %314 = arith.negf %313 : vector<8x128xf32>
    %315 = math.exp %314 : vector<8x128xf32>
    %cst_101 = arith.constant 1.000000e+00 : f32
    %316 = vector.broadcast %cst_101 : f32 to vector<8x128xf32>
    %317 = arith.addf %316, %315 : vector<8x128xf32>
    %318 = arith.divf %316, %317 : vector<8x128xf32>
    %319 = vector.extract_strided_slice %306 {offsets = [0, 256], sizes = [8, 128], strides = [1, 1]} : vector<8x512xf32> to vector<8x128xf32>
    %320 = math.tanh %319 : vector<8x128xf32>
    %321 = vector.extract_strided_slice %306 {offsets = [0, 384], sizes = [8, 128], strides = [1, 1]} : vector<8x512xf32> to vector<8x128xf32>
    %322 = arith.negf %321 : vector<8x128xf32>
    %323 = math.exp %322 : vector<8x128xf32>
    %cst_102 = arith.constant 1.000000e+00 : f32
    %324 = vector.broadcast %cst_102 : f32 to vector<8x128xf32>
    %325 = arith.addf %324, %323 : vector<8x128xf32>
    %326 = arith.divf %324, %325 : vector<8x128xf32>
    %327 = arith.mulf %318, %263 : vector<8x128xf32>
    %328 = arith.mulf %312, %320 : vector<8x128xf32>
    %329 = arith.addf %327, %328 : vector<8x128xf32>
    %330 = math.tanh %329 : vector<8x128xf32>
    %331 = arith.mulf %326, %330 : vector<8x128xf32>
    %332 = arith.truncf %331 : vector<8x128xf32> to vector<8x128xbf16>
    %cst_103 = arith.constant dense<0.000000e+00> : vector<8x1024xf32>
    %333 = tpu.matmul %332, %13, %cst_103 {dimension_numbers = #tpu.dot_dimension_numbers<[1], [0], [0], [1], [0, 0, 1, 1], [], []>} : vector<8x128xbf16>, vector<128x1024xbf16>, vector<8x1024xf32> -> vector<8x1024xf32>
    %334 = vector.extract_strided_slice %333 {offsets = [0, 0], sizes = [8, 512], strides = [1, 1]} : vector<8x1024xf32> to vector<8x512xf32>
    %335 = vector.extract_strided_slice %333 {offsets = [0, 512], sizes = [8, 512], strides = [1, 1]} : vector<8x1024xf32> to vector<8x512xf32>
    %336 = arith.addf %335, %303 : vector<8x512xf32>
    %337 = arith.addf %336, %18 : vector<8x512xf32>
    %338 = vector.extract_strided_slice %337 {offsets = [0, 0], sizes = [8, 128], strides = [1, 1]} : vector<8x512xf32> to vector<8x128xf32>
    %339 = arith.negf %338 : vector<8x128xf32>
    %340 = math.exp %339 : vector<8x128xf32>
    %cst_104 = arith.constant 1.000000e+00 : f32
    %341 = vector.broadcast %cst_104 : f32 to vector<8x128xf32>
    %342 = arith.addf %341, %340 : vector<8x128xf32>
    %343 = arith.divf %341, %342 : vector<8x128xf32>
    %344 = vector.extract_strided_slice %337 {offsets = [0, 128], sizes = [8, 128], strides = [1, 1]} : vector<8x512xf32> to vector<8x128xf32>
    %345 = arith.negf %344 : vector<8x128xf32>
    %346 = math.exp %345 : vector<8x128xf32>
    %cst_105 = arith.constant 1.000000e+00 : f32
    %347 = vector.broadcast %cst_105 : f32 to vector<8x128xf32>
    %348 = arith.addf %347, %346 : vector<8x128xf32>
    %349 = arith.divf %347, %348 : vector<8x128xf32>
    %350 = vector.extract_strided_slice %337 {offsets = [0, 256], sizes = [8, 128], strides = [1, 1]} : vector<8x512xf32> to vector<8x128xf32>
    %351 = math.tanh %350 : vector<8x128xf32>
    %352 = vector.extract_strided_slice %337 {offsets = [0, 384], sizes = [8, 128], strides = [1, 1]} : vector<8x512xf32> to vector<8x128xf32>
    %353 = arith.negf %352 : vector<8x128xf32>
    %354 = math.exp %353 : vector<8x128xf32>
    %cst_106 = arith.constant 1.000000e+00 : f32
    %355 = vector.broadcast %cst_106 : f32 to vector<8x128xf32>
    %356 = arith.addf %355, %354 : vector<8x128xf32>
    %357 = arith.divf %355, %356 : vector<8x128xf32>
    %358 = arith.mulf %349, %294 : vector<8x128xf32>
    %359 = arith.mulf %343, %351 : vector<8x128xf32>
    %360 = arith.addf %358, %359 : vector<8x128xf32>
    %361 = math.tanh %360 : vector<8x128xf32>
    %362 = arith.mulf %357, %361 : vector<8x128xf32>
    %363 = arith.truncf %362 : vector<8x128xf32> to vector<8x128xbf16>
    %cst_107 = arith.constant dense<0.000000e+00> : vector<8x128xf32>
    %364 = tpu.matmul %363, %15, %cst_107 {dimension_numbers = #tpu.dot_dimension_numbers<[1], [0], [0], [1], [0, 0, 1, 1], [], []>} : vector<8x128xbf16>, vector<128x128xbf16>, vector<8x128xf32> -> vector<8x128xf32>
    %365 = arith.addf %364, %21 : vector<8x128xf32>
    %c4_108 = arith.constant 4 : index
    %c0_109 = arith.constant 0 : index
    %c0_110 = arith.constant 0 : index
    %366 = vector.load %arg9[%c4_108, %c0_109, %c0_110] : memref<8x8x128xf32, #tpu.memory_space<vmem>>, vector<1x8x128xf32>
    %367 = vector.shape_cast %366 : vector<1x8x128xf32> to vector<8x128xf32>
    %368 = vector.shape_cast %365 : vector<8x128xf32> to vector<1x8x128xf32>
    tpu.vector_store %arg9[%c4_108, %c0_109, %c0_110], %368 {strides = array<i32>} : memref<8x8x128xf32, #tpu.memory_space<vmem>>, vector<1x8x128xf32>,
    %cst_111 = arith.constant dense<0.000000e+00> : vector<8x512xf32>
    %369 = tpu.matmul %363, %14, %cst_111 {dimension_numbers = #tpu.dot_dimension_numbers<[1], [0], [0], [1], [0, 0, 1, 1], [], []>} : vector<8x128xbf16>, vector<128x512xbf16>, vector<8x512xf32> -> vector<8x512xf32>
    %c5 = arith.constant 5 : index
    %c0_112 = arith.constant 0 : index
    %c0_113 = arith.constant 0 : index
    %370 = vector.load %arg17[%c5, %c0_112, %c0_113] : memref<8x8x512xf32, #tpu.memory_space<vmem>>, vector<1x8x512xf32>
    %371 = vector.shape_cast %370 : vector<1x8x512xf32> to vector<8x512xf32>
    %372 = arith.addf %371, %334 : vector<8x512xf32>
    %373 = vector.extract_strided_slice %372 {offsets = [0, 0], sizes = [8, 128], strides = [1, 1]} : vector<8x512xf32> to vector<8x128xf32>
    %374 = arith.negf %373 : vector<8x128xf32>
    %375 = math.exp %374 : vector<8x128xf32>
    %cst_114 = arith.constant 1.000000e+00 : f32
    %376 = vector.broadcast %cst_114 : f32 to vector<8x128xf32>
    %377 = arith.addf %376, %375 : vector<8x128xf32>
    %378 = arith.divf %376, %377 : vector<8x128xf32>
    %379 = vector.extract_strided_slice %372 {offsets = [0, 128], sizes = [8, 128], strides = [1, 1]} : vector<8x512xf32> to vector<8x128xf32>
    %380 = arith.negf %379 : vector<8x128xf32>
    %381 = math.exp %380 : vector<8x128xf32>
    %cst_115 = arith.constant 1.000000e+00 : f32
    %382 = vector.broadcast %cst_115 : f32 to vector<8x128xf32>
    %383 = arith.addf %382, %381 : vector<8x128xf32>
    %384 = arith.divf %382, %383 : vector<8x128xf32>
    %385 = vector.extract_strided_slice %372 {offsets = [0, 256], sizes = [8, 128], strides = [1, 1]} : vector<8x512xf32> to vector<8x128xf32>
    %386 = math.tanh %385 : vector<8x128xf32>
    %387 = vector.extract_strided_slice %372 {offsets = [0, 384], sizes = [8, 128], strides = [1, 1]} : vector<8x512xf32> to vector<8x128xf32>
    %388 = arith.negf %387 : vector<8x128xf32>
    %389 = math.exp %388 : vector<8x128xf32>
    %cst_116 = arith.constant 1.000000e+00 : f32
    %390 = vector.broadcast %cst_116 : f32 to vector<8x128xf32>
    %391 = arith.addf %390, %389 : vector<8x128xf32>
    %392 = arith.divf %390, %391 : vector<8x128xf32>
    %393 = arith.mulf %384, %329 : vector<8x128xf32>
    %394 = arith.mulf %378, %386 : vector<8x128xf32>
    %395 = arith.addf %393, %394 : vector<8x128xf32>
    %396 = math.tanh %395 : vector<8x128xf32>
    %397 = arith.mulf %392, %396 : vector<8x128xf32>
    %398 = arith.truncf %397 : vector<8x128xf32> to vector<8x128xbf16>
    %cst_117 = arith.constant dense<0.000000e+00> : vector<8x1024xf32>
    %399 = tpu.matmul %398, %13, %cst_117 {dimension_numbers = #tpu.dot_dimension_numbers<[1], [0], [0], [1], [0, 0, 1, 1], [], []>} : vector<8x128xbf16>, vector<128x1024xbf16>, vector<8x1024xf32> -> vector<8x1024xf32>
    %400 = vector.extract_strided_slice %399 {offsets = [0, 0], sizes = [8, 512], strides = [1, 1]} : vector<8x1024xf32> to vector<8x512xf32>
    %401 = vector.extract_strided_slice %399 {offsets = [0, 512], sizes = [8, 512], strides = [1, 1]} : vector<8x1024xf32> to vector<8x512xf32>
    %402 = arith.addf %401, %369 : vector<8x512xf32>
    %403 = arith.addf %402, %18 : vector<8x512xf32>
    %404 = vector.extract_strided_slice %403 {offsets = [0, 0], sizes = [8, 128], strides = [1, 1]} : vector<8x512xf32> to vector<8x128xf32>
    %405 = arith.negf %404 : vector<8x128xf32>
    %406 = math.exp %405 : vector<8x128xf32>
    %cst_118 = arith.constant 1.000000e+00 : f32
    %407 = vector.broadcast %cst_118 : f32 to vector<8x128xf32>
    %408 = arith.addf %407, %406 : vector<8x128xf32>
    %409 = arith.divf %407, %408 : vector<8x128xf32>
    %410 = vector.extract_strided_slice %403 {offsets = [0, 128], sizes = [8, 128], strides = [1, 1]} : vector<8x512xf32> to vector<8x128xf32>
    %411 = arith.negf %410 : vector<8x128xf32>
    %412 = math.exp %411 : vector<8x128xf32>
    %cst_119 = arith.constant 1.000000e+00 : f32
    %413 = vector.broadcast %cst_119 : f32 to vector<8x128xf32>
    %414 = arith.addf %413, %412 : vector<8x128xf32>
    %415 = arith.divf %413, %414 : vector<8x128xf32>
    %416 = vector.extract_strided_slice %403 {offsets = [0, 256], sizes = [8, 128], strides = [1, 1]} : vector<8x512xf32> to vector<8x128xf32>
    %417 = math.tanh %416 : vector<8x128xf32>
    %418 = vector.extract_strided_slice %403 {offsets = [0, 384], sizes = [8, 128], strides = [1, 1]} : vector<8x512xf32> to vector<8x128xf32>
    %419 = arith.negf %418 : vector<8x128xf32>
    %420 = math.exp %419 : vector<8x128xf32>
    %cst_120 = arith.constant 1.000000e+00 : f32
    %421 = vector.broadcast %cst_120 : f32 to vector<8x128xf32>
    %422 = arith.addf %421, %420 : vector<8x128xf32>
    %423 = arith.divf %421, %422 : vector<8x128xf32>
    %424 = arith.mulf %415, %360 : vector<8x128xf32>
    %425 = arith.mulf %409, %417 : vector<8x128xf32>
    %426 = arith.addf %424, %425 : vector<8x128xf32>
    %427 = math.tanh %426 : vector<8x128xf32>
    %428 = arith.mulf %423, %427 : vector<8x128xf32>
    %429 = arith.truncf %428 : vector<8x128xf32> to vector<8x128xbf16>
    %cst_121 = arith.constant dense<0.000000e+00> : vector<8x128xf32>
    %430 = tpu.matmul %429, %15, %cst_121 {dimension_numbers = #tpu.dot_dimension_numbers<[1], [0], [0], [1], [0, 0, 1, 1], [], []>} : vector<8x128xbf16>, vector<128x128xbf16>, vector<8x128xf32> -> vector<8x128xf32>
    %431 = arith.addf %430, %21 : vector<8x128xf32>
    %c5_122 = arith.constant 5 : index
    %c0_123 = arith.constant 0 : index
    %c0_124 = arith.constant 0 : index
    %432 = vector.load %arg9[%c5_122, %c0_123, %c0_124] : memref<8x8x128xf32, #tpu.memory_space<vmem>>, vector<1x8x128xf32>
    %433 = vector.shape_cast %432 : vector<1x8x128xf32> to vector<8x128xf32>
    %434 = vector.shape_cast %431 : vector<8x128xf32> to vector<1x8x128xf32>
    tpu.vector_store %arg9[%c5_122, %c0_123, %c0_124], %434 {strides = array<i32>} : memref<8x8x128xf32, #tpu.memory_space<vmem>>, vector<1x8x128xf32>,
    %cst_125 = arith.constant dense<0.000000e+00> : vector<8x512xf32>
    %435 = tpu.matmul %429, %14, %cst_125 {dimension_numbers = #tpu.dot_dimension_numbers<[1], [0], [0], [1], [0, 0, 1, 1], [], []>} : vector<8x128xbf16>, vector<128x512xbf16>, vector<8x512xf32> -> vector<8x512xf32>
    %c6 = arith.constant 6 : index
    %c0_126 = arith.constant 0 : index
    %c0_127 = arith.constant 0 : index
    %436 = vector.load %arg17[%c6, %c0_126, %c0_127] : memref<8x8x512xf32, #tpu.memory_space<vmem>>, vector<1x8x512xf32>
    %437 = vector.shape_cast %436 : vector<1x8x512xf32> to vector<8x512xf32>
    %438 = arith.addf %437, %400 : vector<8x512xf32>
    %439 = vector.extract_strided_slice %438 {offsets = [0, 0], sizes = [8, 128], strides = [1, 1]} : vector<8x512xf32> to vector<8x128xf32>
    %440 = arith.negf %439 : vector<8x128xf32>
    %441 = math.exp %440 : vector<8x128xf32>
    %cst_128 = arith.constant 1.000000e+00 : f32
    %442 = vector.broadcast %cst_128 : f32 to vector<8x128xf32>
    %443 = arith.addf %442, %441 : vector<8x128xf32>
    %444 = arith.divf %442, %443 : vector<8x128xf32>
    %445 = vector.extract_strided_slice %438 {offsets = [0, 128], sizes = [8, 128], strides = [1, 1]} : vector<8x512xf32> to vector<8x128xf32>
    %446 = arith.negf %445 : vector<8x128xf32>
    %447 = math.exp %446 : vector<8x128xf32>
    %cst_129 = arith.constant 1.000000e+00 : f32
    %448 = vector.broadcast %cst_129 : f32 to vector<8x128xf32>
    %449 = arith.addf %448, %447 : vector<8x128xf32>
    %450 = arith.divf %448, %449 : vector<8x128xf32>
    %451 = vector.extract_strided_slice %438 {offsets = [0, 256], sizes = [8, 128], strides = [1, 1]} : vector<8x512xf32> to vector<8x128xf32>
    %452 = math.tanh %451 : vector<8x128xf32>
    %453 = vector.extract_strided_slice %438 {offsets = [0, 384], sizes = [8, 128], strides = [1, 1]} : vector<8x512xf32> to vector<8x128xf32>
    %454 = arith.negf %453 : vector<8x128xf32>
    %455 = math.exp %454 : vector<8x128xf32>
    %cst_130 = arith.constant 1.000000e+00 : f32
    %456 = vector.broadcast %cst_130 : f32 to vector<8x128xf32>
    %457 = arith.addf %456, %455 : vector<8x128xf32>
    %458 = arith.divf %456, %457 : vector<8x128xf32>
    %459 = arith.mulf %450, %395 : vector<8x128xf32>
    %460 = arith.mulf %444, %452 : vector<8x128xf32>
    %461 = arith.addf %459, %460 : vector<8x128xf32>
    %462 = math.tanh %461 : vector<8x128xf32>
    %463 = arith.mulf %458, %462 : vector<8x128xf32>
    %464 = arith.truncf %463 : vector<8x128xf32> to vector<8x128xbf16>
    %cst_131 = arith.constant dense<0.000000e+00> : vector<8x1024xf32>
    %465 = tpu.matmul %464, %13, %cst_131 {dimension_numbers = #tpu.dot_dimension_numbers<[1], [0], [0], [1], [0, 0, 1, 1], [], []>} : vector<8x128xbf16>, vector<128x1024xbf16>, vector<8x1024xf32> -> vector<8x1024xf32>
    %466 = vector.extract_strided_slice %465 {offsets = [0, 0], sizes = [8, 512], strides = [1, 1]} : vector<8x1024xf32> to vector<8x512xf32>
    %467 = vector.extract_strided_slice %465 {offsets = [0, 512], sizes = [8, 512], strides = [1, 1]} : vector<8x1024xf32> to vector<8x512xf32>
    %468 = arith.addf %467, %435 : vector<8x512xf32>
    %469 = arith.addf %468, %18 : vector<8x512xf32>
    %470 = vector.extract_strided_slice %469 {offsets = [0, 0], sizes = [8, 128], strides = [1, 1]} : vector<8x512xf32> to vector<8x128xf32>
    %471 = arith.negf %470 : vector<8x128xf32>
    %472 = math.exp %471 : vector<8x128xf32>
    %cst_132 = arith.constant 1.000000e+00 : f32
    %473 = vector.broadcast %cst_132 : f32 to vector<8x128xf32>
    %474 = arith.addf %473, %472 : vector<8x128xf32>
    %475 = arith.divf %473, %474 : vector<8x128xf32>
    %476 = vector.extract_strided_slice %469 {offsets = [0, 128], sizes = [8, 128], strides = [1, 1]} : vector<8x512xf32> to vector<8x128xf32>
    %477 = arith.negf %476 : vector<8x128xf32>
    %478 = math.exp %477 : vector<8x128xf32>
    %cst_133 = arith.constant 1.000000e+00 : f32
    %479 = vector.broadcast %cst_133 : f32 to vector<8x128xf32>
    %480 = arith.addf %479, %478 : vector<8x128xf32>
    %481 = arith.divf %479, %480 : vector<8x128xf32>
    %482 = vector.extract_strided_slice %469 {offsets = [0, 256], sizes = [8, 128], strides = [1, 1]} : vector<8x512xf32> to vector<8x128xf32>
    %483 = math.tanh %482 : vector<8x128xf32>
    %484 = vector.extract_strided_slice %469 {offsets = [0, 384], sizes = [8, 128], strides = [1, 1]} : vector<8x512xf32> to vector<8x128xf32>
    %485 = arith.negf %484 : vector<8x128xf32>
    %486 = math.exp %485 : vector<8x128xf32>
    %cst_134 = arith.constant 1.000000e+00 : f32
    %487 = vector.broadcast %cst_134 : f32 to vector<8x128xf32>
    %488 = arith.addf %487, %486 : vector<8x128xf32>
    %489 = arith.divf %487, %488 : vector<8x128xf32>
    %490 = arith.mulf %481, %426 : vector<8x128xf32>
    %491 = arith.mulf %475, %483 : vector<8x128xf32>
    %492 = arith.addf %490, %491 : vector<8x128xf32>
    %493 = math.tanh %492 : vector<8x128xf32>
    %494 = arith.mulf %489, %493 : vector<8x128xf32>
    %495 = arith.truncf %494 : vector<8x128xf32> to vector<8x128xbf16>
    %cst_135 = arith.constant dense<0.000000e+00> : vector<8x128xf32>
    %496 = tpu.matmul %495, %15, %cst_135 {dimension_numbers = #tpu.dot_dimension_numbers<[1], [0], [0], [1], [0, 0, 1, 1], [], []>} : vector<8x128xbf16>, vector<128x128xbf16>, vector<8x128xf32> -> vector<8x128xf32>
    %497 = arith.addf %496, %21 : vector<8x128xf32>
    %c6_136 = arith.constant 6 : index
    %c0_137 = arith.constant 0 : index
    %c0_138 = arith.constant 0 : index
    %498 = vector.load %arg9[%c6_136, %c0_137, %c0_138] : memref<8x8x128xf32, #tpu.memory_space<vmem>>, vector<1x8x128xf32>
    %499 = vector.shape_cast %498 : vector<1x8x128xf32> to vector<8x128xf32>
    %500 = vector.shape_cast %497 : vector<8x128xf32> to vector<1x8x128xf32>
    tpu.vector_store %arg9[%c6_136, %c0_137, %c0_138], %500 {strides = array<i32>} : memref<8x8x128xf32, #tpu.memory_space<vmem>>, vector<1x8x128xf32>,
    %cst_139 = arith.constant dense<0.000000e+00> : vector<8x512xf32>
    %501 = tpu.matmul %495, %14, %cst_139 {dimension_numbers = #tpu.dot_dimension_numbers<[1], [0], [0], [1], [0, 0, 1, 1], [], []>} : vector<8x128xbf16>, vector<128x512xbf16>, vector<8x512xf32> -> vector<8x512xf32>
    %c7 = arith.constant 7 : index
    %c0_140 = arith.constant 0 : index
    %c0_141 = arith.constant 0 : index
    %502 = vector.load %arg17[%c7, %c0_140, %c0_141] : memref<8x8x512xf32, #tpu.memory_space<vmem>>, vector<1x8x512xf32>
    %503 = vector.shape_cast %502 : vector<1x8x512xf32> to vector<8x512xf32>
    %504 = arith.addf %503, %466 : vector<8x512xf32>
    %505 = vector.extract_strided_slice %504 {offsets = [0, 0], sizes = [8, 128], strides = [1, 1]} : vector<8x512xf32> to vector<8x128xf32>
    %506 = arith.negf %505 : vector<8x128xf32>
    %507 = math.exp %506 : vector<8x128xf32>
    %cst_142 = arith.constant 1.000000e+00 : f32
    %508 = vector.broadcast %cst_142 : f32 to vector<8x128xf32>
    %509 = arith.addf %508, %507 : vector<8x128xf32>
    %510 = arith.divf %508, %509 : vector<8x128xf32>
    %511 = vector.extract_strided_slice %504 {offsets = [0, 128], sizes = [8, 128], strides = [1, 1]} : vector<8x512xf32> to vector<8x128xf32>
    %512 = arith.negf %511 : vector<8x128xf32>
    %513 = math.exp %512 : vector<8x128xf32>
    %cst_143 = arith.constant 1.000000e+00 : f32
    %514 = vector.broadcast %cst_143 : f32 to vector<8x128xf32>
    %515 = arith.addf %514, %513 : vector<8x128xf32>
    %516 = arith.divf %514, %515 : vector<8x128xf32>
    %517 = vector.extract_strided_slice %504 {offsets = [0, 256], sizes = [8, 128], strides = [1, 1]} : vector<8x512xf32> to vector<8x128xf32>
    %518 = math.tanh %517 : vector<8x128xf32>
    %519 = vector.extract_strided_slice %504 {offsets = [0, 384], sizes = [8, 128], strides = [1, 1]} : vector<8x512xf32> to vector<8x128xf32>
    %520 = arith.negf %519 : vector<8x128xf32>
    %521 = math.exp %520 : vector<8x128xf32>
    %cst_144 = arith.constant 1.000000e+00 : f32
    %522 = vector.broadcast %cst_144 : f32 to vector<8x128xf32>
    %523 = arith.addf %522, %521 : vector<8x128xf32>
    %524 = arith.divf %522, %523 : vector<8x128xf32>
    %525 = arith.mulf %516, %461 : vector<8x128xf32>
    %526 = arith.mulf %510, %518 : vector<8x128xf32>
    %527 = arith.addf %525, %526 : vector<8x128xf32>
    %528 = math.tanh %527 : vector<8x128xf32>
    %529 = arith.mulf %524, %528 : vector<8x128xf32>
    %530 = arith.truncf %529 : vector<8x128xf32> to vector<8x128xbf16>
    %cst_145 = arith.constant dense<0.000000e+00> : vector<8x1024xf32>
    %531 = tpu.matmul %530, %13, %cst_145 {dimension_numbers = #tpu.dot_dimension_numbers<[1], [0], [0], [1], [0, 0, 1, 1], [], []>} : vector<8x128xbf16>, vector<128x1024xbf16>, vector<8x1024xf32> -> vector<8x1024xf32>
    %532 = vector.extract_strided_slice %531 {offsets = [0, 0], sizes = [8, 512], strides = [1, 1]} : vector<8x1024xf32> to vector<8x512xf32>
    %533 = vector.extract_strided_slice %531 {offsets = [0, 512], sizes = [8, 512], strides = [1, 1]} : vector<8x1024xf32> to vector<8x512xf32>
    %534 = arith.addf %533, %501 : vector<8x512xf32>
    %535 = arith.addf %534, %18 : vector<8x512xf32>
    %536 = vector.extract_strided_slice %535 {offsets = [0, 0], sizes = [8, 128], strides = [1, 1]} : vector<8x512xf32> to vector<8x128xf32>
    %537 = arith.negf %536 : vector<8x128xf32>
    %538 = math.exp %537 : vector<8x128xf32>
    %cst_146 = arith.constant 1.000000e+00 : f32
    %539 = vector.broadcast %cst_146 : f32 to vector<8x128xf32>
    %540 = arith.addf %539, %538 : vector<8x128xf32>
    %541 = arith.divf %539, %540 : vector<8x128xf32>
    %542 = vector.extract_strided_slice %535 {offsets = [0, 128], sizes = [8, 128], strides = [1, 1]} : vector<8x512xf32> to vector<8x128xf32>
    %543 = arith.negf %542 : vector<8x128xf32>
    %544 = math.exp %543 : vector<8x128xf32>
    %cst_147 = arith.constant 1.000000e+00 : f32
    %545 = vector.broadcast %cst_147 : f32 to vector<8x128xf32>
    %546 = arith.addf %545, %544 : vector<8x128xf32>
    %547 = arith.divf %545, %546 : vector<8x128xf32>
    %548 = vector.extract_strided_slice %535 {offsets = [0, 256], sizes = [8, 128], strides = [1, 1]} : vector<8x512xf32> to vector<8x128xf32>
    %549 = math.tanh %548 : vector<8x128xf32>
    %550 = vector.extract_strided_slice %535 {offsets = [0, 384], sizes = [8, 128], strides = [1, 1]} : vector<8x512xf32> to vector<8x128xf32>
    %551 = arith.negf %550 : vector<8x128xf32>
    %552 = math.exp %551 : vector<8x128xf32>
    %cst_148 = arith.constant 1.000000e+00 : f32
    %553 = vector.broadcast %cst_148 : f32 to vector<8x128xf32>
    %554 = arith.addf %553, %552 : vector<8x128xf32>
    %555 = arith.divf %553, %554 : vector<8x128xf32>
    %556 = arith.mulf %547, %492 : vector<8x128xf32>
    %557 = arith.mulf %541, %549 : vector<8x128xf32>
    %558 = arith.addf %556, %557 : vector<8x128xf32>
    %559 = math.tanh %558 : vector<8x128xf32>
    %560 = arith.mulf %555, %559 : vector<8x128xf32>
    %561 = arith.truncf %560 : vector<8x128xf32> to vector<8x128xbf16>
    %cst_149 = arith.constant dense<0.000000e+00> : vector<8x128xf32>
    %562 = tpu.matmul %561, %15, %cst_149 {dimension_numbers = #tpu.dot_dimension_numbers<[1], [0], [0], [1], [0, 0, 1, 1], [], []>} : vector<8x128xbf16>, vector<128x128xbf16>, vector<8x128xf32> -> vector<8x128xf32>
    %563 = arith.addf %562, %21 : vector<8x128xf32>
    %c7_150 = arith.constant 7 : index
    %c0_151 = arith.constant 0 : index
    %c0_152 = arith.constant 0 : index
    %564 = vector.load %arg9[%c7_150, %c0_151, %c0_152] : memref<8x8x128xf32, #tpu.memory_space<vmem>>, vector<1x8x128xf32>
    %565 = vector.shape_cast %564 : vector<1x8x128xf32> to vector<8x128xf32>
    %566 = vector.shape_cast %563 : vector<8x128xf32> to vector<1x8x128xf32>
    tpu.vector_store %arg9[%c7_150, %c0_151, %c0_152], %566 {strides = array<i32>} : memref<8x8x128xf32, #tpu.memory_space<vmem>>, vector<1x8x128xf32>,
    %c0_153 = arith.constant 0 : index
    %c0_154 = arith.constant 0 : index
    %567 = vector.load %arg12[%c0_153, %c0_154] : memref<8x128xf32, #tpu.memory_space<vmem>>, vector<8x128xf32>
    tpu.vector_store %arg12[%c0_153, %c0_154], %529 {strides = array<i32>} : memref<8x128xf32, #tpu.memory_space<vmem>>, vector<8x128xf32>,
    %c0_155 = arith.constant 0 : index
    %c0_156 = arith.constant 0 : index
    %568 = vector.load %arg13[%c0_155, %c0_156] : memref<8x128xf32, #tpu.memory_space<vmem>>, vector<8x128xf32>
    tpu.vector_store %arg13[%c0_155, %c0_156], %527 {strides = array<i32>} : memref<8x128xf32, #tpu.memory_space<vmem>>, vector<8x128xf32>,
    %c0_157 = arith.constant 0 : index
    %c0_158 = arith.constant 0 : index
    %569 = vector.load %arg14[%c0_157, %c0_158] : memref<8x128xf32, #tpu.memory_space<vmem>>, vector<8x128xf32>
    tpu.vector_store %arg14[%c0_157, %c0_158], %560 {strides = array<i32>} : memref<8x128xf32, #tpu.memory_space<vmem>>, vector<8x128xf32>,
    %c0_159 = arith.constant 0 : index
    %c0_160 = arith.constant 0 : index
    %570 = vector.load %arg15[%c0_159, %c0_160] : memref<8x128xf32, #tpu.memory_space<vmem>>, vector<8x128xf32>
    tpu.vector_store %arg15[%c0_159, %c0_160], %558 {strides = array<i32>} : memref<8x128xf32, #tpu.memory_space<vmem>>, vector<8x128xf32>,
    %c0_161 = arith.constant 0 : index
    %c0_162 = arith.constant 0 : index
    %571 = vector.load %arg16[%c0_161, %c0_162] : memref<8x512xf32, #tpu.memory_space<vmem>>, vector<8x512xf32>
    tpu.vector_store %arg16[%c0_161, %c0_162], %532 {strides = array<i32>} : memref<8x512xf32, #tpu.memory_space<vmem>>, vector<8x512xf32>,
    return
  }
  func.func @transform_0(%arg0: i32) -> (i32, i32, i32) {
    %c0_i32 = arith.constant 0 : i32
    %c0_i32_0 = arith.constant 0 : i32
    %c0_i32_1 = arith.constant 0 : i32
    return %arg0, %c0_i32, %c0_i32_0 : i32, i32, i32
  }
  func.func @transform_1(%arg0: i32) -> (i32, i32) {
    %c0_i32 = arith.constant 0 : i32
    %c0_i32_0 = arith.constant 0 : i32
    %c0_i32_1 = arith.constant 0 : i32
    return %c0_i32, %c0_i32_0 : i32, i32
  }
  func.func @transform_2(%arg0: i32) -> (i32, i32) {
    %c0_i32 = arith.constant 0 : i32
    %c0_i32_0 = arith.constant 0 : i32
    %c0_i32_1 = arith.constant 0 : i32
    return %c0_i32, %c0_i32_0 : i32, i32
  }
  func.func @transform_3(%arg0: i32) -> (i32, i32) {
    %c0_i32 = arith.constant 0 : i32
    %c0_i32_0 = arith.constant 0 : i32
    %c0_i32_1 = arith.constant 0 : i32
    return %c0_i32, %c0_i32_0 : i32, i32
  }
  func.func @transform_4(%arg0: i32) -> (i32, i32) {
    %c0_i32 = arith.constant 0 : i32
    %c0_i32_0 = arith.constant 0 : i32
    %c0_i32_1 = arith.constant 0 : i32
    return %c0_i32, %c0_i32_0 : i32, i32
  }
  func.func @transform_5(%arg0: i32) -> (i32, i32) {
    %c0_i32 = arith.constant 0 : i32
    %c0_i32_0 = arith.constant 0 : i32
    %c0_i32_1 = arith.constant 0 : i32
    return %c0_i32, %c0_i32_0 : i32, i32
  }
  func.func @transform_6(%arg0: i32) -> (i32, i32) {
    %c0_i32 = arith.constant 0 : i32
    %c0_i32_0 = arith.constant 0 : i32
    %c0_i32_1 = arith.constant 0 : i32
    return %c0_i32, %c0_i32_0 : i32, i32
  }
  func.func @transform_7(%arg0: i32) -> (i32, i32) {
    %c0_i32 = arith.constant 0 : i32
    %c0_i32_0 = arith.constant 0 : i32
    %c0_i32_1 = arith.constant 0 : i32
    return %c0_i32, %c0_i32_0 : i32, i32
  }
  func.func @transform_8(%arg0: i32) -> (i32, i32, i32) {
    %c0_i32 = arith.constant 0 : i32
    %c0_i32_0 = arith.constant 0 : i32
    %c0_i32_1 = arith.constant 0 : i32
    return %arg0, %c0_i32, %c0_i32_0 : i32, i32, i32
  }
  func.func @transform_9(%arg0: i32) -> (i32, i32, i32) {
    %c0_i32 = arith.constant 0 : i32
    %c0_i32_0 = arith.constant 0 : i32
    %c0_i32_1 = arith.constant 0 : i32
    %c0_i32_2 = arith.constant 0 : i32
    return %c0_i32, %c0_i32_0, %c0_i32_1 : i32, i32, i32
  }
  func.func @transform_10(%arg0: i32) -> (i32, i32, i32) {
    %c0_i32 = arith.constant 0 : i32
    %c0_i32_0 = arith.constant 0 : i32
    %c0_i32_1 = arith.constant 0 : i32
    %c0_i32_2 = arith.constant 0 : i32
    return %c0_i32, %c0_i32_0, %c0_i32_1 : i32, i32, i32
  }
}

module attributes {stable_mosaic.version = 11 : i64} {
  func.func @lstm_kernel(%arg0: i32, %arg1: memref<8x8x128xf32, #tpu.memory_space<vmem>>, %arg2: memref<128x512xbf16, #tpu.memory_space<vmem>>, %arg3: memref<1x512xf32, #tpu.memory_space<vmem>>, %arg4: memref<128x1024xbf16, #tpu.memory_space<vmem>>, %arg5: memref<128x512xbf16, #tpu.memory_space<vmem>>, %arg6: memref<1x512xf32, #tpu.memory_space<vmem>>, %arg7: memref<128x128xbf16, #tpu.memory_space<vmem>>, %arg8: memref<1x128xf32, #tpu.memory_space<vmem>>, %arg9: memref<8x8x128xf32, #tpu.memory_space<vmem>>, %arg10: memref<2x8x128xf32, #tpu.memory_space<vmem>>, %arg11: memref<2x8x128xf32, #tpu.memory_space<vmem>>, %arg12: memref<8x128xf32, #tpu.memory_space<vmem>>, %arg13: memref<8x128xf32, #tpu.memory_space<vmem>>, %arg14: memref<8x128xf32, #tpu.memory_space<vmem>>, %arg15: memref<8x128xf32, #tpu.memory_space<vmem>>, %arg16: memref<8x512xf32, #tpu.memory_space<vmem>>, %arg17: memref<8x8x512xf32, #tpu.memory_space<vmem>>) attributes {dimension_semantics = [#tpu.dimension_semantics<arbitrary>], iteration_bounds = array<i64: 3>, scalar_prefetch = 0 : i64, scratch_operands = 6 : i64, tpu.core_type = #tpu.core_type<tc>, window_params = [{transform_indices = @transform_0, window_bounds = array<i64: 8, 8, 128>}, {pipeline_mode = #tpu.pipeline_mode<synchronous>, transform_indices = @transform_1, window_bounds = array<i64: 128, 512>}, {pipeline_mode = #tpu.pipeline_mode<synchronous>, transform_indices = @transform_2, window_bounds = array<i64: 1, 512>}, {pipeline_mode = #tpu.pipeline_mode<synchronous>, transform_indices = @transform_3, window_bounds = array<i64: 128, 1024>}, {pipeline_mode = #tpu.pipeline_mode<synchronous>, transform_indices = @transform_4, window_bounds = array<i64: 128, 512>}, {pipeline_mode = #tpu.pipeline_mode<synchronous>, transform_indices = @transform_5, window_bounds = array<i64: 1, 512>}, {pipeline_mode = #tpu.pipeline_mode<synchronous>, transform_indices = @transform_6, window_bounds = array<i64: 128, 128>}, {pipeline_mode = #tpu.pipeline_mode<synchronous>, transform_indices = @transform_7, window_bounds = array<i64: 1, 128>}, {transform_indices = @transform_8, window_bounds = array<i64: 8, 8, 128>}, {pipeline_mode = #tpu.pipeline_mode<synchronous>, transform_indices = @transform_9, window_bounds = array<i64: 2, 8, 128>}, {pipeline_mode = #tpu.pipeline_mode<synchronous>, transform_indices = @transform_10, window_bounds = array<i64: 2, 8, 128>}]} {
    %c0_i32 = arith.constant 0 : i32
    %0 = arith.cmpi eq, %arg0, %c0_i32 : i32
    %1 = arith.extui %0 : i1 to i32
    %c0_i32_0 = arith.constant 0 : i32
    %2 = arith.cmpi ne, %1, %c0_i32_0 : i32
    scf.if %2 {
      %cst_163 = arith.constant 0.000000e+00 : f32
      %572 = vector.broadcast %cst_163 : f32 to vector<8x128xf32>
      %c0_164 = arith.constant 0 : index
      %c0_165 = arith.constant 0 : index
      %573 = vector.load %arg12[%c0_164, %c0_165] : memref<8x128xf32, #tpu.memory_space<vmem>>, vector<8x128xf32>
      tpu.vector_store %arg12[%c0_164, %c0_165], %572 {strides = array<i32>} : memref<8x128xf32, #tpu.memory_space<vmem>>, vector<8x128xf32>,
      %cst_166 = arith.constant 0.000000e+00 : f32
      %574 = vector.broadcast %cst_166 : f32 to vector<8x128xf32>
      %c0_167 = arith.constant 0 : index
      %c0_168 = arith.constant 0 : index
      %575 = vector.load %arg13[%c0_167, %c0_168] : memref<8x128xf32, #tpu.memory_space<vmem>>, vector<8x128xf32>
      tpu.vector_store %arg13[%c0_167, %c0_168], %574 {strides = array<i32>} : memref<8x128xf32, #tpu.memory_space<vmem>>, vector<8x128xf32>,
      %cst_169 = arith.constant 0.000000e+00 : f32
      %576 = vector.broadcast %cst_169 : f32 to vector<8x128xf32>
      %c0_170 = arith.constant 0 : index
      %c0_171 = arith.constant 0 : index
      %577 = vector.load %arg14[%c0_170, %c0_171] : memref<8x128xf32, #tpu.memory_space<vmem>>, vector<8x128xf32>
      tpu.vector_store %arg14[%c0_170, %c0_171], %576 {strides = array<i32>} : memref<8x128xf32, #tpu.memory_space<vmem>>, vector<8x128xf32>,
      %cst_172 = arith.constant 0.000000e+00 : f32
      %578 = vector.broadcast %cst_172 : f32 to vector<8x128xf32>
      %c0_173 = arith.constant 0 : index
      %c0_174 = arith.constant 0 : index
      %579 = vector.load %arg15[%c0_173, %c0_174] : memref<8x128xf32, #tpu.memory_space<vmem>>, vector<8x128xf32>
      tpu.vector_store %arg15[%c0_173, %c0_174], %578 {strides = array<i32>} : memref<8x128xf32, #tpu.memory_space<vmem>>, vector<8x128xf32>,
      %cst_175 = arith.constant 0.000000e+00 : f32
      %580 = vector.broadcast %cst_175 : f32 to vector<8x512xf32>
      %c0_176 = arith.constant 0 : index
      %c0_177 = arith.constant 0 : index
      %581 = vector.load %arg16[%c0_176, %c0_177] : memref<8x512xf32, #tpu.memory_space<vmem>>, vector<8x512xf32>
      tpu.vector_store %arg16[%c0_176, %c0_177], %580 {strides = array<i32>} : memref<8x512xf32, #tpu.memory_space<vmem>>, vector<8x512xf32>,
    } else {
    }
    %c0 = arith.constant 0 : index
    %c0_1 = arith.constant 0 : index
    %c0_2 = arith.constant 0 : index
    %3 = vector.load %arg1[%c0, %c0_1, %c0_2] : memref<8x8x128xf32, #tpu.memory_space<vmem>>, vector<8x8x128xf32>
    %4 = vector.shape_cast %3 : vector<8x8x128xf32> to vector<64x128xf32>
    %5 = arith.truncf %4 : vector<64x128xf32> to vector<64x128xbf16>
    %c0_3 = arith.constant 0 : index
    %c0_4 = arith.constant 0 : index
    %6 = vector.load %arg2[%c0_3, %c0_4] : memref<128x512xbf16, #tpu.memory_space<vmem>>, vector<128x512xbf16>
    %cst = arith.constant dense<0.000000e+00> : vector<64x512xf32>
    %7 = tpu.matmul %5, %6, %cst {dimension_numbers = #tpu.dot_dimension_numbers<[1], [0], [0], [1], [0, 0, 1, 1], [], []>} : vector<64x128xbf16>, vector<128x512xbf16>, vector<64x512xf32> -> vector<64x512xf32>
    %c0_5 = arith.constant 0 : index
    %c0_6 = arith.constant 0 : index
    %8 = vector.load %arg3[%c0_5, %c0_6] : memref<1x512xf32, #tpu.memory_space<vmem>>, vector<1x512xf32>
    %9 = vector.broadcast %8 : vector<1x512xf32> to vector<64x512xf32>
    %10 = arith.addf %7, %9 : vector<64x512xf32>
    %11 = vector.shape_cast %10 : vector<64x512xf32> to vector<8x8x512xf32>
    %c0_7 = arith.constant 0 : index
    %c0_8 = arith.constant 0 : index
    %c0_9 = arith.constant 0 : index
    %12 = vector.load %arg17[%c0_7, %c0_8, %c0_9] : memref<8x8x512xf32, #tpu.memory_space<vmem>>, vector<8x8x512xf32>
    tpu.vector_store %arg17[%c0_7, %c0_8, %c0_9], %11 {strides = array<i32>} : memref<8x8x512xf32, #tpu.memory_space<vmem>>, vector<8x8x512xf32>,
    %c0_10 = arith.constant 0 : index
    %c0_11 = arith.constant 0 : index
    %13 = vector.load %arg4[%c0_10, %c0_11] : memref<128x1024xbf16, #tpu.memory_space<vmem>>, vector<128x1024xbf16>
    %c0_12 = arith.constant 0 : index
    %c0_13 = arith.constant 0 : index
    %14 = vector.load %arg5[%c0_12, %c0_13] : memref<128x512xbf16, #tpu.memory_space<vmem>>, vector<128x512xbf16>
    %c0_14 = arith.constant 0 : index
    %c0_15 = arith.constant 0 : index
    %15 = vector.load %arg7[%c0_14, %c0_15] : memref<128x128xbf16, #tpu.memory_space<vmem>>, vector<128x128xbf16>
    %c0_16 = arith.constant 0 : index
    %c0_17 = arith.constant 0 : index
    %16 = vector.load %arg6[%c0_16, %c0_17] : memref<1x512xf32, #tpu.memory_space<vmem>>, vector<1x512xf32>
    %17 = vector.shape_cast %16 : vector<1x512xf32> to vector<1x512xf32>
    %18 = vector.broadcast %17 : vector<1x512xf32> to vector<8x512xf32>
    %c0_18 = arith.constant 0 : index
    %c0_19 = arith.constant 0 : index
    %19 = vector.load %arg8[%c0_18, %c0_19] : memref<1x128xf32, #tpu.memory_space<vmem>>, vector<1x128xf32>
    %20 = vector.shape_cast %19 : vector<1x128xf32> to vector<1x128xf32>
    %21 = vector.broadcast %20 : vector<1x128xf32> to vector<8x128xf32>
    %c0_20 = arith.constant 0 : index
    %c0_21 = arith.constant 0 : index
    %22 = vector.load %arg13[%c0_20, %c0_21] : memref<8x128xf32, #tpu.memory_space<vmem>>, vector<8x128xf32>
    %c0_22 = arith.constant 0 : index
    %c0_23 = arith.constant 0 : index
    %23 = vector.load %arg14[%c0_22, %c0_23] : memref<8x128xf32, #tpu.memory_space<vmem>>, vector<8x128xf32>
    %c0_24 = arith.constant 0 : index
    %c0_25 = arith.constant 0 : index
    %24 = vector.load %arg15[%c0_24, %c0_25] : memref<8x128xf32, #tpu.memory_space<vmem>>, vector<8x128xf32>
    %c0_26 = arith.constant 0 : index
    %c0_27 = arith.constant 0 : index
    %25 = vector.load %arg16[%c0_26, %c0_27] : memref<8x512xf32, #tpu.memory_space<vmem>>, vector<8x512xf32>
    %26 = arith.truncf %23 : vector<8x128xf32> to vector<8x128xbf16>
    %cst_28 = arith.constant dense<0.000000e+00> : vector<8x512xf32>
    %27 = tpu.matmul %26, %14, %cst_28 {dimension_numbers = #tpu.dot_dimension_numbers<[1], [0], [0], [1], [0, 0, 1, 1], [], []>} : vector<8x128xbf16>, vector<128x512xbf16>, vector<8x512xf32> -> vector<8x512xf32>
    %c0_29 = arith.constant 0 : index
    %c0_30 = arith.constant 0 : index
    %c0_31 = arith.constant 0 : index
    %28 = vector.load %arg17[%c0_29, %c0_30, %c0_31] : memref<8x8x512xf32, #tpu.memory_space<vmem>>, vector<1x8x512xf32>
    %29 = vector.shape_cast %28 : vector<1x8x512xf32> to vector<8x512xf32>
    %30 = arith.addf %29, %25 : vector<8x512xf32>
    %31 = vector.extract_strided_slice %30 {offsets = [0, 0], sizes = [8, 128], strides = [1, 1]} : vector<8x512xf32> to vector<8x128xf32>
    %32 = arith.negf %31 : vector<8x128xf32>
    %33 = math.exp %32 : vector<8x128xf32>
    %cst_32 = arith.constant 1.000000e+00 : f32
    %34 = vector.broadcast %cst_32 : f32 to vector<8x128xf32>
    %35 = arith.addf %34, %33 : vector<8x128xf32>
    %36 = arith.divf %34, %35 : vector<8x128xf32>
    %37 = vector.extract_strided_slice %30 {offsets = [0, 128], sizes = [8, 128], strides = [1, 1]} : vector<8x512xf32> to vector<8x128xf32>
    %38 = arith.negf %37 : vector<8x128xf32>
    %39 = math.exp %38 : vector<8x128xf32>
    %cst_33 = arith.constant 1.000000e+00 : f32
    %40 = vector.broadcast %cst_33 : f32 to vector<8x128xf32>
    %41 = arith.addf %40, %39 : vector<8x128xf32>
    %42 = arith.divf %40, %41 : vector<8x128xf32>
    %43 = vector.extract_strided_slice %30 {offsets = [0, 256], sizes = [8, 128], strides = [1, 1]} : vector<8x512xf32> to vector<8x128xf32>
    %44 = math.tanh %43 : vector<8x128xf32>
    %45 = vector.extract_strided_slice %30 {offsets = [0, 384], sizes = [8, 128], strides = [1, 1]} : vector<8x512xf32> to vector<8x128xf32>
    %46 = arith.negf %45 : vector<8x128xf32>
    %47 = math.exp %46 : vector<8x128xf32>
    %cst_34 = arith.constant 1.000000e+00 : f32
    %48 = vector.broadcast %cst_34 : f32 to vector<8x128xf32>
    %49 = arith.addf %48, %47 : vector<8x128xf32>
    %50 = arith.divf %48, %49 : vector<8x128xf32>
    %51 = arith.mulf %42, %22 : vector<8x128xf32>
    %52 = arith.mulf %36, %44 : vector<8x128xf32>
    %53 = arith.addf %51, %52 : vector<8x128xf32>
    %54 = math.tanh %53 : vector<8x128xf32>
    %55 = arith.mulf %50, %54 : vector<8x128xf32>
    %56 = arith.truncf %55 : vector<8x128xf32> to vector<8x128xbf16>
    %cst_35 = arith.constant dense<0.000000e+00> : vector<8x1024xf32>
    %57 = tpu.matmul %56, %13, %cst_35 {dimension_numbers = #tpu.dot_dimension_numbers<[1], [0], [0], [1], [0, 0, 1, 1], [], []>} : vector<8x128xbf16>, vector<128x1024xbf16>, vector<8x1024xf32> -> vector<8x1024xf32>
    %58 = vector.extract_strided_slice %57 {offsets = [0, 0], sizes = [8, 512], strides = [1, 1]} : vector<8x1024xf32> to vector<8x512xf32>
    %59 = vector.extract_strided_slice %57 {offsets = [0, 512], sizes = [8, 512], strides = [1, 1]} : vector<8x1024xf32> to vector<8x512xf32>
    %60 = arith.addf %59, %27 : vector<8x512xf32>
    %61 = arith.addf %60, %18 : vector<8x512xf32>
    %62 = vector.extract_strided_slice %61 {offsets = [0, 0], sizes = [8, 128], strides = [1, 1]} : vector<8x512xf32> to vector<8x128xf32>
    %63 = arith.negf %62 : vector<8x128xf32>
    %64 = math.exp %63 : vector<8x128xf32>
    %cst_36 = arith.constant 1.000000e+00 : f32
    %65 = vector.broadcast %cst_36 : f32 to vector<8x128xf32>
    %66 = arith.addf %65, %64 : vector<8x128xf32>
    %67 = arith.divf %65, %66 : vector<8x128xf32>
    %68 = vector.extract_strided_slice %61 {offsets = [0, 128], sizes = [8, 128], strides = [1, 1]} : vector<8x512xf32> to vector<8x128xf32>
    %69 = arith.negf %68 : vector<8x128xf32>
    %70 = math.exp %69 : vector<8x128xf32>
    %cst_37 = arith.constant 1.000000e+00 : f32
    %71 = vector.broadcast %cst_37 : f32 to vector<8x128xf32>
    %72 = arith.addf %71, %70 : vector<8x128xf32>
    %73 = arith.divf %71, %72 : vector<8x128xf32>
    %74 = vector.extract_strided_slice %61 {offsets = [0, 256], sizes = [8, 128], strides = [1, 1]} : vector<8x512xf32> to vector<8x128xf32>
    %75 = math.tanh %74 : vector<8x128xf32>
    %76 = vector.extract_strided_slice %61 {offsets = [0, 384], sizes = [8, 128], strides = [1, 1]} : vector<8x512xf32> to vector<8x128xf32>
    %77 = arith.negf %76 : vector<8x128xf32>
    %78 = math.exp %77 : vector<8x128xf32>
    %cst_38 = arith.constant 1.000000e+00 : f32
    %79 = vector.broadcast %cst_38 : f32 to vector<8x128xf32>
    %80 = arith.addf %79, %78 : vector<8x128xf32>
    %81 = arith.divf %79, %80 : vector<8x128xf32>
    %82 = arith.mulf %73, %24 : vector<8x128xf32>
    %83 = arith.mulf %67, %75 : vector<8x128xf32>
    %84 = arith.addf %82, %83 : vector<8x128xf32>
    %85 = math.tanh %84 : vector<8x128xf32>
    %86 = arith.mulf %81, %85 : vector<8x128xf32>
    %87 = arith.truncf %86 : vector<8x128xf32> to vector<8x128xbf16>
    %cst_39 = arith.constant dense<0.000000e+00> : vector<8x128xf32>
    %88 = tpu.matmul %87, %15, %cst_39 {dimension_numbers = #tpu.dot_dimension_numbers<[1], [0], [0], [1], [0, 0, 1, 1], [], []>} : vector<8x128xbf16>, vector<128x128xbf16>, vector<8x128xf32> -> vector<8x128xf32>
    %89 = arith.addf %88, %21 : vector<8x128xf32>
    %c0_40 = arith.constant 0 : index
    %c0_41 = arith.constant 0 : index
    %c0_42 = arith.constant 0 : index
    %90 = vector.load %arg9[%c0_40, %c0_41, %c0_42] : memref<8x8x128xf32, #tpu.memory_space<vmem>>, vector<1x8x128xf32>
    %91 = vector.shape_cast %90 : vector<1x8x128xf32> to vector<8x128xf32>
    %92 = vector.shape_cast %89 : vector<8x128xf32> to vector<1x8x128xf32>
    tpu.vector_store %arg9[%c0_40, %c0_41, %c0_42], %92 {strides = array<i32>} : memref<8x8x128xf32, #tpu.memory_space<vmem>>, vector<1x8x128xf32>,
    %cst_43 = arith.constant dense<0.000000e+00> : vector<8x512xf32>
    %93 = tpu.matmul %87, %14, %cst_43 {dimension_numbers = #tpu.dot_dimension_numbers<[1], [0], [0], [1], [0, 0, 1, 1], [], []>} : vector<8x128xbf16>, vector<128x512xbf16>, vector<8x512xf32> -> vector<8x512xf32>
    %c1 = arith.constant 1 : index
    %c0_44 = arith.constant 0 : index
    %c0_45 = arith.constant 0 : index
    %94 = vector.load %arg17[%c1, %c0_44, %c0_45] : memref<8x8x512xf32, #tpu.memory_space<vmem>>, vector<1x8x512xf32>
    %95 = vector.shape_cast %94 : vector<1x8x512xf32> to vector<8x512xf32>
    %96 = arith.addf %95, %58 : vector<8x512xf32>
    %97 = vector.extract_strided_slice %96 {offsets = [0, 0], sizes = [8, 128], strides = [1, 1]} : vector<8x512xf32> to vector<8x128xf32>
    %98 = arith.negf %97 : vector<8x128xf32>
    %99 = math.exp %98 : vector<8x128xf32>
    %cst_46 = arith.constant 1.000000e+00 : f32
    %100 = vector.broadcast %cst_46 : f32 to vector<8x128xf32>
    %101 = arith.addf %100, %99 : vector<8x128xf32>
    %102 = arith.divf %100, %101 : vector<8x128xf32>
    %103 = vector.extract_strided_slice %96 {offsets = [0, 128], sizes = [8, 128], strides = [1, 1]} : vector<8x512xf32> to vector<8x128xf32>
    %104 = arith.negf %103 : vector<8x128xf32>
    %105 = math.exp %104 : vector<8x128xf32>
    %cst_47 = arith.constant 1.000000e+00 : f32
    %106 = vector.broadcast %cst_47 : f32 to vector<8x128xf32>
    %107 = arith.addf %106, %105 : vector<8x128xf32>
    %108 = arith.divf %106, %107 : vector<8x128xf32>
    %109 = vector.extract_strided_slice %96 {offsets = [0, 256], sizes = [8, 128], strides = [1, 1]} : vector<8x512xf32> to vector<8x128xf32>
    %110 = math.tanh %109 : vector<8x128xf32>
    %111 = vector.extract_strided_slice %96 {offsets = [0, 384], sizes = [8, 128], strides = [1, 1]} : vector<8x512xf32> to vector<8x128xf32>
    %112 = arith.negf %111 : vector<8x128xf32>
    %113 = math.exp %112 : vector<8x128xf32>
    %cst_48 = arith.constant 1.000000e+00 : f32
    %114 = vector.broadcast %cst_48 : f32 to vector<8x128xf32>
    %115 = arith.addf %114, %113 : vector<8x128xf32>
    %116 = arith.divf %114, %115 : vector<8x128xf32>
    %117 = arith.mulf %108, %53 : vector<8x128xf32>
    %118 = arith.mulf %102, %110 : vector<8x128xf32>
    %119 = arith.addf %117, %118 : vector<8x128xf32>
    %120 = math.tanh %119 : vector<8x128xf32>
    %121 = arith.mulf %116, %120 : vector<8x128xf32>
    %122 = arith.truncf %121 : vector<8x128xf32> to vector<8x128xbf16>
    %cst_49 = arith.constant dense<0.000000e+00> : vector<8x1024xf32>
    %123 = tpu.matmul %122, %13, %cst_49 {dimension_numbers = #tpu.dot_dimension_numbers<[1], [0], [0], [1], [0, 0, 1, 1], [], []>} : vector<8x128xbf16>, vector<128x1024xbf16>, vector<8x1024xf32> -> vector<8x1024xf32>
    %124 = vector.extract_strided_slice %123 {offsets = [0, 0], sizes = [8, 512], strides = [1, 1]} : vector<8x1024xf32> to vector<8x512xf32>
    %125 = vector.extract_strided_slice %123 {offsets = [0, 512], sizes = [8, 512], strides = [1, 1]} : vector<8x1024xf32> to vector<8x512xf32>
    %126 = arith.addf %125, %93 : vector<8x512xf32>
    %127 = arith.addf %126, %18 : vector<8x512xf32>
    %128 = vector.extract_strided_slice %127 {offsets = [0, 0], sizes = [8, 128], strides = [1, 1]} : vector<8x512xf32> to vector<8x128xf32>
    %129 = arith.negf %128 : vector<8x128xf32>
    %130 = math.exp %129 : vector<8x128xf32>
    %cst_50 = arith.constant 1.000000e+00 : f32
    %131 = vector.broadcast %cst_50 : f32 to vector<8x128xf32>
    %132 = arith.addf %131, %130 : vector<8x128xf32>
    %133 = arith.divf %131, %132 : vector<8x128xf32>
    %134 = vector.extract_strided_slice %127 {offsets = [0, 128], sizes = [8, 128], strides = [1, 1]} : vector<8x512xf32> to vector<8x128xf32>
    %135 = arith.negf %134 : vector<8x128xf32>
    %136 = math.exp %135 : vector<8x128xf32>
    %cst_51 = arith.constant 1.000000e+00 : f32
    %137 = vector.broadcast %cst_51 : f32 to vector<8x128xf32>
    %138 = arith.addf %137, %136 : vector<8x128xf32>
    %139 = arith.divf %137, %138 : vector<8x128xf32>
    %140 = vector.extract_strided_slice %127 {offsets = [0, 256], sizes = [8, 128], strides = [1, 1]} : vector<8x512xf32> to vector<8x128xf32>
    %141 = math.tanh %140 : vector<8x128xf32>
    %142 = vector.extract_strided_slice %127 {offsets = [0, 384], sizes = [8, 128], strides = [1, 1]} : vector<8x512xf32> to vector<8x128xf32>
    %143 = arith.negf %142 : vector<8x128xf32>
    %144 = math.exp %143 : vector<8x128xf32>
    %cst_52 = arith.constant 1.000000e+00 : f32
    %145 = vector.broadcast %cst_52 : f32 to vector<8x128xf32>
    %146 = arith.addf %145, %144 : vector<8x128xf32>
    %147 = arith.divf %145, %146 : vector<8x128xf32>
    %148 = arith.mulf %139, %84 : vector<8x128xf32>
    %149 = arith.mulf %133, %141 : vector<8x128xf32>
    %150 = arith.addf %148, %149 : vector<8x128xf32>
    %151 = math.tanh %150 : vector<8x128xf32>
    %152 = arith.mulf %147, %151 : vector<8x128xf32>
    %153 = arith.truncf %152 : vector<8x128xf32> to vector<8x128xbf16>
    %cst_53 = arith.constant dense<0.000000e+00> : vector<8x128xf32>
    %154 = tpu.matmul %153, %15, %cst_53 {dimension_numbers = #tpu.dot_dimension_numbers<[1], [0], [0], [1], [0, 0, 1, 1], [], []>} : vector<8x128xbf16>, vector<128x128xbf16>, vector<8x128xf32> -> vector<8x128xf32>
    %155 = arith.addf %154, %21 : vector<8x128xf32>
    %c1_54 = arith.constant 1 : index
    %c0_55 = arith.constant 0 : index
    %c0_56 = arith.constant 0 : index
    %156 = vector.load %arg9[%c1_54, %c0_55, %c0_56] : memref<8x8x128xf32, #tpu.memory_space<vmem>>, vector<1x8x128xf32>
    %157 = vector.shape_cast %156 : vector<1x8x128xf32> to vector<8x128xf32>
    %158 = vector.shape_cast %155 : vector<8x128xf32> to vector<1x8x128xf32>
    tpu.vector_store %arg9[%c1_54, %c0_55, %c0_56], %158 {strides = array<i32>} : memref<8x8x128xf32, #tpu.memory_space<vmem>>, vector<1x8x128xf32>,
    %cst_57 = arith.constant dense<0.000000e+00> : vector<8x512xf32>
    %159 = tpu.matmul %153, %14, %cst_57 {dimension_numbers = #tpu.dot_dimension_numbers<[1], [0], [0], [1], [0, 0, 1, 1], [], []>} : vector<8x128xbf16>, vector<128x512xbf16>, vector<8x512xf32> -> vector<8x512xf32>
    %c2 = arith.constant 2 : index
    %c0_58 = arith.constant 0 : index
    %c0_59 = arith.constant 0 : index
    %160 = vector.load %arg17[%c2, %c0_58, %c0_59] : memref<8x8x512xf32, #tpu.memory_space<vmem>>, vector<1x8x512xf32>
    %161 = vector.shape_cast %160 : vector<1x8x512xf32> to vector<8x512xf32>
    %162 = arith.addf %161, %124 : vector<8x512xf32>
    %163 = vector.extract_strided_slice %162 {offsets = [0, 0], sizes = [8, 128], strides = [1, 1]} : vector<8x512xf32> to vector<8x128xf32>
    %164 = arith.negf %163 : vector<8x128xf32>
    %165 = math.exp %164 : vector<8x128xf32>
    %cst_60 = arith.constant 1.000000e+00 : f32
    %166 = vector.broadcast %cst_60 : f32 to vector<8x128xf32>
    %167 = arith.addf %166, %165 : vector<8x128xf32>
    %168 = arith.divf %166, %167 : vector<8x128xf32>
    %169 = vector.extract_strided_slice %162 {offsets = [0, 128], sizes = [8, 128], strides = [1, 1]} : vector<8x512xf32> to vector<8x128xf32>
    %170 = arith.negf %169 : vector<8x128xf32>
    %171 = math.exp %170 : vector<8x128xf32>
    %cst_61 = arith.constant 1.000000e+00 : f32
    %172 = vector.broadcast %cst_61 : f32 to vector<8x128xf32>
    %173 = arith.addf %172, %171 : vector<8x128xf32>
    %174 = arith.divf %172, %173 : vector<8x128xf32>
    %175 = vector.extract_strided_slice %162 {offsets = [0, 256], sizes = [8, 128], strides = [1, 1]} : vector<8x512xf32> to vector<8x128xf32>
    %176 = math.tanh %175 : vector<8x128xf32>
    %177 = vector.extract_strided_slice %162 {offsets = [0, 384], sizes = [8, 128], strides = [1, 1]} : vector<8x512xf32> to vector<8x128xf32>
    %178 = arith.negf %177 : vector<8x128xf32>
    %179 = math.exp %178 : vector<8x128xf32>
    %cst_62 = arith.constant 1.000000e+00 : f32
    %180 = vector.broadcast %cst_62 : f32 to vector<8x128xf32>
    %181 = arith.addf %180, %179 : vector<8x128xf32>
    %182 = arith.divf %180, %181 : vector<8x128xf32>
    %183 = arith.mulf %174, %119 : vector<8x128xf32>
    %184 = arith.mulf %168, %176 : vector<8x128xf32>
    %185 = arith.addf %183, %184 : vector<8x128xf32>
    %186 = math.tanh %185 : vector<8x128xf32>
    %187 = arith.mulf %182, %186 : vector<8x128xf32>
    %188 = arith.truncf %187 : vector<8x128xf32> to vector<8x128xbf16>
    %cst_63 = arith.constant dense<0.000000e+00> : vector<8x1024xf32>
    %189 = tpu.matmul %188, %13, %cst_63 {dimension_numbers = #tpu.dot_dimension_numbers<[1], [0], [0], [1], [0, 0, 1, 1], [], []>} : vector<8x128xbf16>, vector<128x1024xbf16>, vector<8x1024xf32> -> vector<8x1024xf32>
    %190 = vector.extract_strided_slice %189 {offsets = [0, 0], sizes = [8, 512], strides = [1, 1]} : vector<8x1024xf32> to vector<8x512xf32>
    %191 = vector.extract_strided_slice %189 {offsets = [0, 512], sizes = [8, 512], strides = [1, 1]} : vector<8x1024xf32> to vector<8x512xf32>
    %192 = arith.addf %191, %159 : vector<8x512xf32>
    %193 = arith.addf %192, %18 : vector<8x512xf32>
    %194 = vector.extract_strided_slice %193 {offsets = [0, 0], sizes = [8, 128], strides = [1, 1]} : vector<8x512xf32> to vector<8x128xf32>
    %195 = arith.negf %194 : vector<8x128xf32>
    %196 = math.exp %195 : vector<8x128xf32>
    %cst_64 = arith.constant 1.000000e+00 : f32
    %197 = vector.broadcast %cst_64 : f32 to vector<8x128xf32>
    %198 = arith.addf %197, %196 : vector<8x128xf32>
    %199 = arith.divf %197, %198 : vector<8x128xf32>
    %200 = vector.extract_strided_slice %193 {offsets = [0, 128], sizes = [8, 128], strides = [1, 1]} : vector<8x512xf32> to vector<8x128xf32>
    %201 = arith.negf %200 : vector<8x128xf32>
    %202 = math.exp %201 : vector<8x128xf32>
    %cst_65 = arith.constant 1.000000e+00 : f32
    %203 = vector.broadcast %cst_65 : f32 to vector<8x128xf32>
    %204 = arith.addf %203, %202 : vector<8x128xf32>
    %205 = arith.divf %203, %204 : vector<8x128xf32>
    %206 = vector.extract_strided_slice %193 {offsets = [0, 256], sizes = [8, 128], strides = [1, 1]} : vector<8x512xf32> to vector<8x128xf32>
    %207 = math.tanh %206 : vector<8x128xf32>
    %208 = vector.extract_strided_slice %193 {offsets = [0, 384], sizes = [8, 128], strides = [1, 1]} : vector<8x512xf32> to vector<8x128xf32>
    %209 = arith.negf %208 : vector<8x128xf32>
    %210 = math.exp %209 : vector<8x128xf32>
    %cst_66 = arith.constant 1.000000e+00 : f32
    %211 = vector.broadcast %cst_66 : f32 to vector<8x128xf32>
    %212 = arith.addf %211, %210 : vector<8x128xf32>
    %213 = arith.divf %211, %212 : vector<8x128xf32>
    %214 = arith.mulf %205, %150 : vector<8x128xf32>
    %215 = arith.mulf %199, %207 : vector<8x128xf32>
    %216 = arith.addf %214, %215 : vector<8x128xf32>
    %217 = math.tanh %216 : vector<8x128xf32>
    %218 = arith.mulf %213, %217 : vector<8x128xf32>
    %219 = arith.truncf %218 : vector<8x128xf32> to vector<8x128xbf16>
    %cst_67 = arith.constant dense<0.000000e+00> : vector<8x128xf32>
    %220 = tpu.matmul %219, %15, %cst_67 {dimension_numbers = #tpu.dot_dimension_numbers<[1], [0], [0], [1], [0, 0, 1, 1], [], []>} : vector<8x128xbf16>, vector<128x128xbf16>, vector<8x128xf32> -> vector<8x128xf32>
    %221 = arith.addf %220, %21 : vector<8x128xf32>
    %c2_68 = arith.constant 2 : index
    %c0_69 = arith.constant 0 : index
    %c0_70 = arith.constant 0 : index
    %222 = vector.load %arg9[%c2_68, %c0_69, %c0_70] : memref<8x8x128xf32, #tpu.memory_space<vmem>>, vector<1x8x128xf32>
    %223 = vector.shape_cast %222 : vector<1x8x128xf32> to vector<8x128xf32>
    %224 = vector.shape_cast %221 : vector<8x128xf32> to vector<1x8x128xf32>
    tpu.vector_store %arg9[%c2_68, %c0_69, %c0_70], %224 {strides = array<i32>} : memref<8x8x128xf32, #tpu.memory_space<vmem>>, vector<1x8x128xf32>,
    %c0_71 = arith.constant 0 : index
    %c0_72 = arith.constant 0 : index
    %c0_73 = arith.constant 0 : index
    %225 = vector.load %arg10[%c0_71, %c0_72, %c0_73] : memref<2x8x128xf32, #tpu.memory_space<vmem>>, vector<1x8x128xf32>
    %226 = vector.shape_cast %225 : vector<1x8x128xf32> to vector<8x128xf32>
    %227 = vector.shape_cast %187 : vector<8x128xf32> to vector<1x8x128xf32>
    tpu.vector_store %arg10[%c0_71, %c0_72, %c0_73], %227 {strides = array<i32>} : memref<2x8x128xf32, #tpu.memory_space<vmem>>, vector<1x8x128xf32>,
    %c1_74 = arith.constant 1 : index
    %c0_75 = arith.constant 0 : index
    %c0_76 = arith.constant 0 : index
    %228 = vector.load %arg10[%c1_74, %c0_75, %c0_76] : memref<2x8x128xf32, #tpu.memory_space<vmem>>, vector<1x8x128xf32>
    %229 = vector.shape_cast %228 : vector<1x8x128xf32> to vector<8x128xf32>
    %230 = vector.shape_cast %218 : vector<8x128xf32> to vector<1x8x128xf32>
    tpu.vector_store %arg10[%c1_74, %c0_75, %c0_76], %230 {strides = array<i32>} : memref<2x8x128xf32, #tpu.memory_space<vmem>>, vector<1x8x128xf32>,
    %c0_77 = arith.constant 0 : index
    %c0_78 = arith.constant 0 : index
    %c0_79 = arith.constant 0 : index
    %231 = vector.load %arg11[%c0_77, %c0_78, %c0_79] : memref<2x8x128xf32, #tpu.memory_space<vmem>>, vector<1x8x128xf32>
    %232 = vector.shape_cast %231 : vector<1x8x128xf32> to vector<8x128xf32>
    %233 = vector.shape_cast %185 : vector<8x128xf32> to vector<1x8x128xf32>
    tpu.vector_store %arg11[%c0_77, %c0_78, %c0_79], %233 {strides = array<i32>} : memref<2x8x128xf32, #tpu.memory_space<vmem>>, vector<1x8x128xf32>,
    %c1_80 = arith.constant 1 : index
    %c0_81 = arith.constant 0 : index
    %c0_82 = arith.constant 0 : index
    %234 = vector.load %arg11[%c1_80, %c0_81, %c0_82] : memref<2x8x128xf32, #tpu.memory_space<vmem>>, vector<1x8x128xf32>
    %235 = vector.shape_cast %234 : vector<1x8x128xf32> to vector<8x128xf32>
    %236 = vector.shape_cast %216 : vector<8x128xf32> to vector<1x8x128xf32>
    tpu.vector_store %arg11[%c1_80, %c0_81, %c0_82], %236 {strides = array<i32>} : memref<2x8x128xf32, #tpu.memory_space<vmem>>, vector<1x8x128xf32>,
    %cst_83 = arith.constant dense<0.000000e+00> : vector<8x512xf32>
    %237 = tpu.matmul %219, %14, %cst_83 {dimension_numbers = #tpu.dot_dimension_numbers<[1], [0], [0], [1], [0, 0, 1, 1], [], []>} : vector<8x128xbf16>, vector<128x512xbf16>, vector<8x512xf32> -> vector<8x512xf32>
    %c3 = arith.constant 3 : index
    %c0_84 = arith.constant 0 : index
    %c0_85 = arith.constant 0 : index
    %238 = vector.load %arg17[%c3, %c0_84, %c0_85] : memref<8x8x512xf32, #tpu.memory_space<vmem>>, vector<1x8x512xf32>
    %239 = vector.shape_cast %238 : vector<1x8x512xf32> to vector<8x512xf32>
    %240 = arith.addf %239, %190 : vector<8x512xf32>
    %241 = vector.extract_strided_slice %240 {offsets = [0, 0], sizes = [8, 128], strides = [1, 1]} : vector<8x512xf32> to vector<8x128xf32>
    %242 = arith.negf %241 : vector<8x128xf32>
    %243 = math.exp %242 : vector<8x128xf32>
    %cst_86 = arith.constant 1.000000e+00 : f32
    %244 = vector.broadcast %cst_86 : f32 to vector<8x128xf32>
    %245 = arith.addf %244, %243 : vector<8x128xf32>
    %246 = arith.divf %244, %245 : vector<8x128xf32>
    %247 = vector.extract_strided_slice %240 {offsets = [0, 128], sizes = [8, 128], strides = [1, 1]} : vector<8x512xf32> to vector<8x128xf32>
    %248 = arith.negf %247 : vector<8x128xf32>
    %249 = math.exp %248 : vector<8x128xf32>
    %cst_87 = arith.constant 1.000000e+00 : f32
    %250 = vector.broadcast %cst_87 : f32 to vector<8x128xf32>
    %251 = arith.addf %250, %249 : vector<8x128xf32>
    %252 = arith.divf %250, %251 : vector<8x128xf32>
    %253 = vector.extract_strided_slice %240 {offsets = [0, 256], sizes = [8, 128], strides = [1, 1]} : vector<8x512xf32> to vector<8x128xf32>
    %254 = math.tanh %253 : vector<8x128xf32>
    %255 = vector.extract_strided_slice %240 {offsets = [0, 384], sizes = [8, 128], strides = [1, 1]} : vector<8x512xf32> to vector<8x128xf32>
    %256 = arith.negf %255 : vector<8x128xf32>
    %257 = math.exp %256 : vector<8x128xf32>
    %cst_88 = arith.constant 1.000000e+00 : f32
    %258 = vector.broadcast %cst_88 : f32 to vector<8x128xf32>
    %259 = arith.addf %258, %257 : vector<8x128xf32>
    %260 = arith.divf %258, %259 : vector<8x128xf32>
    %261 = arith.mulf %252, %185 : vector<8x128xf32>
    %262 = arith.mulf %246, %254 : vector<8x128xf32>
    %263 = arith.addf %261, %262 : vector<8x128xf32>
    %264 = math.tanh %263 : vector<8x128xf32>
    %265 = arith.mulf %260, %264 : vector<8x128xf32>
    %266 = arith.truncf %265 : vector<8x128xf32> to vector<8x128xbf16>
    %cst_89 = arith.constant dense<0.000000e+00> : vector<8x1024xf32>
    %267 = tpu.matmul %266, %13, %cst_89 {dimension_numbers = #tpu.dot_dimension_numbers<[1], [0], [0], [1], [0, 0, 1, 1], [], []>} : vector<8x128xbf16>, vector<128x1024xbf16>, vector<8x1024xf32> -> vector<8x1024xf32>
    %268 = vector.extract_strided_slice %267 {offsets = [0, 0], sizes = [8, 512], strides = [1, 1]} : vector<8x1024xf32> to vector<8x512xf32>
    %269 = vector.extract_strided_slice %267 {offsets = [0, 512], sizes = [8, 512], strides = [1, 1]} : vector<8x1024xf32> to vector<8x512xf32>
    %270 = arith.addf %269, %237 : vector<8x512xf32>
    %271 = arith.addf %270, %18 : vector<8x512xf32>
    %272 = vector.extract_strided_slice %271 {offsets = [0, 0], sizes = [8, 128], strides = [1, 1]} : vector<8x512xf32> to vector<8x128xf32>
    %273 = arith.negf %272 : vector<8x128xf32>
    %274 = math.exp %273 : vector<8x128xf32>
    %cst_90 = arith.constant 1.000000e+00 : f32
    %275 = vector.broadcast %cst_90 : f32 to vector<8x128xf32>
    %276 = arith.addf %275, %274 : vector<8x128xf32>
    %277 = arith.divf %275, %276 : vector<8x128xf32>
    %278 = vector.extract_strided_slice %271 {offsets = [0, 128], sizes = [8, 128], strides = [1, 1]} : vector<8x512xf32> to vector<8x128xf32>
    %279 = arith.negf %278 : vector<8x128xf32>
    %280 = math.exp %279 : vector<8x128xf32>
    %cst_91 = arith.constant 1.000000e+00 : f32
    %281 = vector.broadcast %cst_91 : f32 to vector<8x128xf32>
    %282 = arith.addf %281, %280 : vector<8x128xf32>
    %283 = arith.divf %281, %282 : vector<8x128xf32>
    %284 = vector.extract_strided_slice %271 {offsets = [0, 256], sizes = [8, 128], strides = [1, 1]} : vector<8x512xf32> to vector<8x128xf32>
    %285 = math.tanh %284 : vector<8x128xf32>
    %286 = vector.extract_strided_slice %271 {offsets = [0, 384], sizes = [8, 128], strides = [1, 1]} : vector<8x512xf32> to vector<8x128xf32>
    %287 = arith.negf %286 : vector<8x128xf32>
    %288 = math.exp %287 : vector<8x128xf32>
    %cst_92 = arith.constant 1.000000e+00 : f32
    %289 = vector.broadcast %cst_92 : f32 to vector<8x128xf32>
    %290 = arith.addf %289, %288 : vector<8x128xf32>
    %291 = arith.divf %289, %290 : vector<8x128xf32>
    %292 = arith.mulf %283, %216 : vector<8x128xf32>
    %293 = arith.mulf %277, %285 : vector<8x128xf32>
    %294 = arith.addf %292, %293 : vector<8x128xf32>
    %295 = math.tanh %294 : vector<8x128xf32>
    %296 = arith.mulf %291, %295 : vector<8x128xf32>
    %297 = arith.truncf %296 : vector<8x128xf32> to vector<8x128xbf16>
    %cst_93 = arith.constant dense<0.000000e+00> : vector<8x128xf32>
    %298 = tpu.matmul %297, %15, %cst_93 {dimension_numbers = #tpu.dot_dimension_numbers<[1], [0], [0], [1], [0, 0, 1, 1], [], []>} : vector<8x128xbf16>, vector<128x128xbf16>, vector<8x128xf32> -> vector<8x128xf32>
    %299 = arith.addf %298, %21 : vector<8x128xf32>
    %c3_94 = arith.constant 3 : index
    %c0_95 = arith.constant 0 : index
    %c0_96 = arith.constant 0 : index
    %300 = vector.load %arg9[%c3_94, %c0_95, %c0_96] : memref<8x8x128xf32, #tpu.memory_space<vmem>>, vector<1x8x128xf32>
    %301 = vector.shape_cast %300 : vector<1x8x128xf32> to vector<8x128xf32>
    %302 = vector.shape_cast %299 : vector<8x128xf32> to vector<1x8x128xf32>
    tpu.vector_store %arg9[%c3_94, %c0_95, %c0_96], %302 {strides = array<i32>} : memref<8x8x128xf32, #tpu.memory_space<vmem>>, vector<1x8x128xf32>,
    %cst_97 = arith.constant dense<0.000000e+00> : vector<8x512xf32>
    %303 = tpu.matmul %297, %14, %cst_97 {dimension_numbers = #tpu.dot_dimension_numbers<[1], [0], [0], [1], [0, 0, 1, 1], [], []>} : vector<8x128xbf16>, vector<128x512xbf16>, vector<8x512xf32> -> vector<8x512xf32>
    %c4 = arith.constant 4 : index
    %c0_98 = arith.constant 0 : index
    %c0_99 = arith.constant 0 : index
    %304 = vector.load %arg17[%c4, %c0_98, %c0_99] : memref<8x8x512xf32, #tpu.memory_space<vmem>>, vector<1x8x512xf32>
    %305 = vector.shape_cast %304 : vector<1x8x512xf32> to vector<8x512xf32>
    %306 = arith.addf %305, %268 : vector<8x512xf32>
    %307 = vector.extract_strided_slice %306 {offsets = [0, 0], sizes = [8, 128], strides = [1, 1]} : vector<8x512xf32> to vector<8x128xf32>
    %308 = arith.negf %307 : vector<8x128xf32>
    %309 = math.exp %308 : vector<8x128xf32>
    %cst_100 = arith.constant 1.000000e+00 : f32
    %310 = vector.broadcast %cst_100 : f32 to vector<8x128xf32>
    %311 = arith.addf %310, %309 : vector<8x128xf32>
    %312 = arith.divf %310, %311 : vector<8x128xf32>
    %313 = vector.extract_strided_slice %306 {offsets = [0, 128], sizes = [8, 128], strides = [1, 1]} : vector<8x512xf32> to vector<8x128xf32>
    %314 = arith.negf %313 : vector<8x128xf32>
    %315 = math.exp %314 : vector<8x128xf32>
    %cst_101 = arith.constant 1.000000e+00 : f32
    %316 = vector.broadcast %cst_101 : f32 to vector<8x128xf32>
    %317 = arith.addf %316, %315 : vector<8x128xf32>
    %318 = arith.divf %316, %317 : vector<8x128xf32>
    %319 = vector.extract_strided_slice %306 {offsets = [0, 256], sizes = [8, 128], strides = [1, 1]} : vector<8x512xf32> to vector<8x128xf32>
    %320 = math.tanh %319 : vector<8x128xf32>
    %321 = vector.extract_strided_slice %306 {offsets = [0, 384], sizes = [8, 128], strides = [1, 1]} : vector<8x512xf32> to vector<8x128xf32>
    %322 = arith.negf %321 : vector<8x128xf32>
    %323 = math.exp %322 : vector<8x128xf32>
    %cst_102 = arith.constant 1.000000e+00 : f32
    %324 = vector.broadcast %cst_102 : f32 to vector<8x128xf32>
    %325 = arith.addf %324, %323 : vector<8x128xf32>
    %326 = arith.divf %324, %325 : vector<8x128xf32>
    %327 = arith.mulf %318, %263 : vector<8x128xf32>
    %328 = arith.mulf %312, %320 : vector<8x128xf32>
    %329 = arith.addf %327, %328 : vector<8x128xf32>
    %330 = math.tanh %329 : vector<8x128xf32>
    %331 = arith.mulf %326, %330 : vector<8x128xf32>
    %332 = arith.truncf %331 : vector<8x128xf32> to vector<8x128xbf16>
    %cst_103 = arith.constant dense<0.000000e+00> : vector<8x1024xf32>
    %333 = tpu.matmul %332, %13, %cst_103 {dimension_numbers = #tpu.dot_dimension_numbers<[1], [0], [0], [1], [0, 0, 1, 1], [], []>} : vector<8x128xbf16>, vector<128x1024xbf16>, vector<8x1024xf32> -> vector<8x1024xf32>
    %334 = vector.extract_strided_slice %333 {offsets = [0, 0], sizes = [8, 512], strides = [1, 1]} : vector<8x1024xf32> to vector<8x512xf32>
    %335 = vector.extract_strided_slice %333 {offsets = [0, 512], sizes = [8, 512], strides = [1, 1]} : vector<8x1024xf32> to vector<8x512xf32>
    %336 = arith.addf %335, %303 : vector<8x512xf32>
    %337 = arith.addf %336, %18 : vector<8x512xf32>
    %338 = vector.extract_strided_slice %337 {offsets = [0, 0], sizes = [8, 128], strides = [1, 1]} : vector<8x512xf32> to vector<8x128xf32>
    %339 = arith.negf %338 : vector<8x128xf32>
    %340 = math.exp %339 : vector<8x128xf32>
    %cst_104 = arith.constant 1.000000e+00 : f32
    %341 = vector.broadcast %cst_104 : f32 to vector<8x128xf32>
    %342 = arith.addf %341, %340 : vector<8x128xf32>
    %343 = arith.divf %341, %342 : vector<8x128xf32>
    %344 = vector.extract_strided_slice %337 {offsets = [0, 128], sizes = [8, 128], strides = [1, 1]} : vector<8x512xf32> to vector<8x128xf32>
    %345 = arith.negf %344 : vector<8x128xf32>
    %346 = math.exp %345 : vector<8x128xf32>
    %cst_105 = arith.constant 1.000000e+00 : f32
    %347 = vector.broadcast %cst_105 : f32 to vector<8x128xf32>
    %348 = arith.addf %347, %346 : vector<8x128xf32>
    %349 = arith.divf %347, %348 : vector<8x128xf32>
    %350 = vector.extract_strided_slice %337 {offsets = [0, 256], sizes = [8, 128], strides = [1, 1]} : vector<8x512xf32> to vector<8x128xf32>
    %351 = math.tanh %350 : vector<8x128xf32>
    %352 = vector.extract_strided_slice %337 {offsets = [0, 384], sizes = [8, 128], strides = [1, 1]} : vector<8x512xf32> to vector<8x128xf32>
    %353 = arith.negf %352 : vector<8x128xf32>
    %354 = math.exp %353 : vector<8x128xf32>
    %cst_106 = arith.constant 1.000000e+00 : f32
    %355 = vector.broadcast %cst_106 : f32 to vector<8x128xf32>
    %356 = arith.addf %355, %354 : vector<8x128xf32>
    %357 = arith.divf %355, %356 : vector<8x128xf32>
    %358 = arith.mulf %349, %294 : vector<8x128xf32>
    %359 = arith.mulf %343, %351 : vector<8x128xf32>
    %360 = arith.addf %358, %359 : vector<8x128xf32>
    %361 = math.tanh %360 : vector<8x128xf32>
    %362 = arith.mulf %357, %361 : vector<8x128xf32>
    %363 = arith.truncf %362 : vector<8x128xf32> to vector<8x128xbf16>
    %cst_107 = arith.constant dense<0.000000e+00> : vector<8x128xf32>
    %364 = tpu.matmul %363, %15, %cst_107 {dimension_numbers = #tpu.dot_dimension_numbers<[1], [0], [0], [1], [0, 0, 1, 1], [], []>} : vector<8x128xbf16>, vector<128x128xbf16>, vector<8x128xf32> -> vector<8x128xf32>
    %365 = arith.addf %364, %21 : vector<8x128xf32>
    %c4_108 = arith.constant 4 : index
    %c0_109 = arith.constant 0 : index
    %c0_110 = arith.constant 0 : index
    %366 = vector.load %arg9[%c4_108, %c0_109, %c0_110] : memref<8x8x128xf32, #tpu.memory_space<vmem>>, vector<1x8x128xf32>
    %367 = vector.shape_cast %366 : vector<1x8x128xf32> to vector<8x128xf32>
    %368 = vector.shape_cast %365 : vector<8x128xf32> to vector<1x8x128xf32>
    tpu.vector_store %arg9[%c4_108, %c0_109, %c0_110], %368 {strides = array<i32>} : memref<8x8x128xf32, #tpu.memory_space<vmem>>, vector<1x8x128xf32>,
    %cst_111 = arith.constant dense<0.000000e+00> : vector<8x512xf32>
    %369 = tpu.matmul %363, %14, %cst_111 {dimension_numbers = #tpu.dot_dimension_numbers<[1], [0], [0], [1], [0, 0, 1, 1], [], []>} : vector<8x128xbf16>, vector<128x512xbf16>, vector<8x512xf32> -> vector<8x512xf32>
    %c5 = arith.constant 5 : index
    %c0_112 = arith.constant 0 : index
    %c0_113 = arith.constant 0 : index
    %370 = vector.load %arg17[%c5, %c0_112, %c0_113] : memref<8x8x512xf32, #tpu.memory_space<vmem>>, vector<1x8x512xf32>
    %371 = vector.shape_cast %370 : vector<1x8x512xf32> to vector<8x512xf32>
    %372 = arith.addf %371, %334 : vector<8x512xf32>
    %373 = vector.extract_strided_slice %372 {offsets = [0, 0], sizes = [8, 128], strides = [1, 1]} : vector<8x512xf32> to vector<8x128xf32>
    %374 = arith.negf %373 : vector<8x128xf32>
    %375 = math.exp %374 : vector<8x128xf32>
    %cst_114 = arith.constant 1.000000e+00 : f32
    %376 = vector.broadcast %cst_114 : f32 to vector<8x128xf32>
    %377 = arith.addf %376, %375 : vector<8x128xf32>
    %378 = arith.divf %376, %377 : vector<8x128xf32>
    %379 = vector.extract_strided_slice %372 {offsets = [0, 128], sizes = [8, 128], strides = [1, 1]} : vector<8x512xf32> to vector<8x128xf32>
    %380 = arith.negf %379 : vector<8x128xf32>
    %381 = math.exp %380 : vector<8x128xf32>
    %cst_115 = arith.constant 1.000000e+00 : f32
    %382 = vector.broadcast %cst_115 : f32 to vector<8x128xf32>
    %383 = arith.addf %382, %381 : vector<8x128xf32>
    %384 = arith.divf %382, %383 : vector<8x128xf32>
    %385 = vector.extract_strided_slice %372 {offsets = [0, 256], sizes = [8, 128], strides = [1, 1]} : vector<8x512xf32> to vector<8x128xf32>
    %386 = math.tanh %385 : vector<8x128xf32>
    %387 = vector.extract_strided_slice %372 {offsets = [0, 384], sizes = [8, 128], strides = [1, 1]} : vector<8x512xf32> to vector<8x128xf32>
    %388 = arith.negf %387 : vector<8x128xf32>
    %389 = math.exp %388 : vector<8x128xf32>
    %cst_116 = arith.constant 1.000000e+00 : f32
    %390 = vector.broadcast %cst_116 : f32 to vector<8x128xf32>
    %391 = arith.addf %390, %389 : vector<8x128xf32>
    %392 = arith.divf %390, %391 : vector<8x128xf32>
    %393 = arith.mulf %384, %329 : vector<8x128xf32>
    %394 = arith.mulf %378, %386 : vector<8x128xf32>
    %395 = arith.addf %393, %394 : vector<8x128xf32>
    %396 = math.tanh %395 : vector<8x128xf32>
    %397 = arith.mulf %392, %396 : vector<8x128xf32>
    %398 = arith.truncf %397 : vector<8x128xf32> to vector<8x128xbf16>
    %cst_117 = arith.constant dense<0.000000e+00> : vector<8x1024xf32>
    %399 = tpu.matmul %398, %13, %cst_117 {dimension_numbers = #tpu.dot_dimension_numbers<[1], [0], [0], [1], [0, 0, 1, 1], [], []>} : vector<8x128xbf16>, vector<128x1024xbf16>, vector<8x1024xf32> -> vector<8x1024xf32>
    %400 = vector.extract_strided_slice %399 {offsets = [0, 0], sizes = [8, 512], strides = [1, 1]} : vector<8x1024xf32> to vector<8x512xf32>
    %401 = vector.extract_strided_slice %399 {offsets = [0, 512], sizes = [8, 512], strides = [1, 1]} : vector<8x1024xf32> to vector<8x512xf32>
    %402 = arith.addf %401, %369 : vector<8x512xf32>
    %403 = arith.addf %402, %18 : vector<8x512xf32>
    %404 = vector.extract_strided_slice %403 {offsets = [0, 0], sizes = [8, 128], strides = [1, 1]} : vector<8x512xf32> to vector<8x128xf32>
    %405 = arith.negf %404 : vector<8x128xf32>
    %406 = math.exp %405 : vector<8x128xf32>
    %cst_118 = arith.constant 1.000000e+00 : f32
    %407 = vector.broadcast %cst_118 : f32 to vector<8x128xf32>
    %408 = arith.addf %407, %406 : vector<8x128xf32>
    %409 = arith.divf %407, %408 : vector<8x128xf32>
    %410 = vector.extract_strided_slice %403 {offsets = [0, 128], sizes = [8, 128], strides = [1, 1]} : vector<8x512xf32> to vector<8x128xf32>
    %411 = arith.negf %410 : vector<8x128xf32>
    %412 = math.exp %411 : vector<8x128xf32>
    %cst_119 = arith.constant 1.000000e+00 : f32
    %413 = vector.broadcast %cst_119 : f32 to vector<8x128xf32>
    %414 = arith.addf %413, %412 : vector<8x128xf32>
    %415 = arith.divf %413, %414 : vector<8x128xf32>
    %416 = vector.extract_strided_slice %403 {offsets = [0, 256], sizes = [8, 128], strides = [1, 1]} : vector<8x512xf32> to vector<8x128xf32>
    %417 = math.tanh %416 : vector<8x128xf32>
    %418 = vector.extract_strided_slice %403 {offsets = [0, 384], sizes = [8, 128], strides = [1, 1]} : vector<8x512xf32> to vector<8x128xf32>
    %419 = arith.negf %418 : vector<8x128xf32>
    %420 = math.exp %419 : vector<8x128xf32>
    %cst_120 = arith.constant 1.000000e+00 : f32
    %421 = vector.broadcast %cst_120 : f32 to vector<8x128xf32>
    %422 = arith.addf %421, %420 : vector<8x128xf32>
    %423 = arith.divf %421, %422 : vector<8x128xf32>
    %424 = arith.mulf %415, %360 : vector<8x128xf32>
    %425 = arith.mulf %409, %417 : vector<8x128xf32>
    %426 = arith.addf %424, %425 : vector<8x128xf32>
    %427 = math.tanh %426 : vector<8x128xf32>
    %428 = arith.mulf %423, %427 : vector<8x128xf32>
    %429 = arith.truncf %428 : vector<8x128xf32> to vector<8x128xbf16>
    %cst_121 = arith.constant dense<0.000000e+00> : vector<8x128xf32>
    %430 = tpu.matmul %429, %15, %cst_121 {dimension_numbers = #tpu.dot_dimension_numbers<[1], [0], [0], [1], [0, 0, 1, 1], [], []>} : vector<8x128xbf16>, vector<128x128xbf16>, vector<8x128xf32> -> vector<8x128xf32>
    %431 = arith.addf %430, %21 : vector<8x128xf32>
    %c5_122 = arith.constant 5 : index
    %c0_123 = arith.constant 0 : index
    %c0_124 = arith.constant 0 : index
    %432 = vector.load %arg9[%c5_122, %c0_123, %c0_124] : memref<8x8x128xf32, #tpu.memory_space<vmem>>, vector<1x8x128xf32>
    %433 = vector.shape_cast %432 : vector<1x8x128xf32> to vector<8x128xf32>
    %434 = vector.shape_cast %431 : vector<8x128xf32> to vector<1x8x128xf32>
    tpu.vector_store %arg9[%c5_122, %c0_123, %c0_124], %434 {strides = array<i32>} : memref<8x8x128xf32, #tpu.memory_space<vmem>>, vector<1x8x128xf32>,
    %cst_125 = arith.constant dense<0.000000e+00> : vector<8x512xf32>
    %435 = tpu.matmul %429, %14, %cst_125 {dimension_numbers = #tpu.dot_dimension_numbers<[1], [0], [0], [1], [0, 0, 1, 1], [], []>} : vector<8x128xbf16>, vector<128x512xbf16>, vector<8x512xf32> -> vector<8x512xf32>
    %c6 = arith.constant 6 : index
    %c0_126 = arith.constant 0 : index
    %c0_127 = arith.constant 0 : index
    %436 = vector.load %arg17[%c6, %c0_126, %c0_127] : memref<8x8x512xf32, #tpu.memory_space<vmem>>, vector<1x8x512xf32>
    %437 = vector.shape_cast %436 : vector<1x8x512xf32> to vector<8x512xf32>
    %438 = arith.addf %437, %400 : vector<8x512xf32>
    %439 = vector.extract_strided_slice %438 {offsets = [0, 0], sizes = [8, 128], strides = [1, 1]} : vector<8x512xf32> to vector<8x128xf32>
    %440 = arith.negf %439 : vector<8x128xf32>
    %441 = math.exp %440 : vector<8x128xf32>
    %cst_128 = arith.constant 1.000000e+00 : f32
    %442 = vector.broadcast %cst_128 : f32 to vector<8x128xf32>
    %443 = arith.addf %442, %441 : vector<8x128xf32>
    %444 = arith.divf %442, %443 : vector<8x128xf32>
    %445 = vector.extract_strided_slice %438 {offsets = [0, 128], sizes = [8, 128], strides = [1, 1]} : vector<8x512xf32> to vector<8x128xf32>
    %446 = arith.negf %445 : vector<8x128xf32>
    %447 = math.exp %446 : vector<8x128xf32>
    %cst_129 = arith.constant 1.000000e+00 : f32
    %448 = vector.broadcast %cst_129 : f32 to vector<8x128xf32>
    %449 = arith.addf %448, %447 : vector<8x128xf32>
    %450 = arith.divf %448, %449 : vector<8x128xf32>
    %451 = vector.extract_strided_slice %438 {offsets = [0, 256], sizes = [8, 128], strides = [1, 1]} : vector<8x512xf32> to vector<8x128xf32>
    %452 = math.tanh %451 : vector<8x128xf32>
    %453 = vector.extract_strided_slice %438 {offsets = [0, 384], sizes = [8, 128], strides = [1, 1]} : vector<8x512xf32> to vector<8x128xf32>
    %454 = arith.negf %453 : vector<8x128xf32>
    %455 = math.exp %454 : vector<8x128xf32>
    %cst_130 = arith.constant 1.000000e+00 : f32
    %456 = vector.broadcast %cst_130 : f32 to vector<8x128xf32>
    %457 = arith.addf %456, %455 : vector<8x128xf32>
    %458 = arith.divf %456, %457 : vector<8x128xf32>
    %459 = arith.mulf %450, %395 : vector<8x128xf32>
    %460 = arith.mulf %444, %452 : vector<8x128xf32>
    %461 = arith.addf %459, %460 : vector<8x128xf32>
    %462 = math.tanh %461 : vector<8x128xf32>
    %463 = arith.mulf %458, %462 : vector<8x128xf32>
    %464 = arith.truncf %463 : vector<8x128xf32> to vector<8x128xbf16>
    %cst_131 = arith.constant dense<0.000000e+00> : vector<8x1024xf32>
    %465 = tpu.matmul %464, %13, %cst_131 {dimension_numbers = #tpu.dot_dimension_numbers<[1], [0], [0], [1], [0, 0, 1, 1], [], []>} : vector<8x128xbf16>, vector<128x1024xbf16>, vector<8x1024xf32> -> vector<8x1024xf32>
    %466 = vector.extract_strided_slice %465 {offsets = [0, 0], sizes = [8, 512], strides = [1, 1]} : vector<8x1024xf32> to vector<8x512xf32>
    %467 = vector.extract_strided_slice %465 {offsets = [0, 512], sizes = [8, 512], strides = [1, 1]} : vector<8x1024xf32> to vector<8x512xf32>
    %468 = arith.addf %467, %435 : vector<8x512xf32>
    %469 = arith.addf %468, %18 : vector<8x512xf32>
    %470 = vector.extract_strided_slice %469 {offsets = [0, 0], sizes = [8, 128], strides = [1, 1]} : vector<8x512xf32> to vector<8x128xf32>
    %471 = arith.negf %470 : vector<8x128xf32>
    %472 = math.exp %471 : vector<8x128xf32>
    %cst_132 = arith.constant 1.000000e+00 : f32
    %473 = vector.broadcast %cst_132 : f32 to vector<8x128xf32>
    %474 = arith.addf %473, %472 : vector<8x128xf32>
    %475 = arith.divf %473, %474 : vector<8x128xf32>
    %476 = vector.extract_strided_slice %469 {offsets = [0, 128], sizes = [8, 128], strides = [1, 1]} : vector<8x512xf32> to vector<8x128xf32>
    %477 = arith.negf %476 : vector<8x128xf32>
    %478 = math.exp %477 : vector<8x128xf32>
    %cst_133 = arith.constant 1.000000e+00 : f32
    %479 = vector.broadcast %cst_133 : f32 to vector<8x128xf32>
    %480 = arith.addf %479, %478 : vector<8x128xf32>
    %481 = arith.divf %479, %480 : vector<8x128xf32>
    %482 = vector.extract_strided_slice %469 {offsets = [0, 256], sizes = [8, 128], strides = [1, 1]} : vector<8x512xf32> to vector<8x128xf32>
    %483 = math.tanh %482 : vector<8x128xf32>
    %484 = vector.extract_strided_slice %469 {offsets = [0, 384], sizes = [8, 128], strides = [1, 1]} : vector<8x512xf32> to vector<8x128xf32>
    %485 = arith.negf %484 : vector<8x128xf32>
    %486 = math.exp %485 : vector<8x128xf32>
    %cst_134 = arith.constant 1.000000e+00 : f32
    %487 = vector.broadcast %cst_134 : f32 to vector<8x128xf32>
    %488 = arith.addf %487, %486 : vector<8x128xf32>
    %489 = arith.divf %487, %488 : vector<8x128xf32>
    %490 = arith.mulf %481, %426 : vector<8x128xf32>
    %491 = arith.mulf %475, %483 : vector<8x128xf32>
    %492 = arith.addf %490, %491 : vector<8x128xf32>
    %493 = math.tanh %492 : vector<8x128xf32>
    %494 = arith.mulf %489, %493 : vector<8x128xf32>
    %495 = arith.truncf %494 : vector<8x128xf32> to vector<8x128xbf16>
    %cst_135 = arith.constant dense<0.000000e+00> : vector<8x128xf32>
    %496 = tpu.matmul %495, %15, %cst_135 {dimension_numbers = #tpu.dot_dimension_numbers<[1], [0], [0], [1], [0, 0, 1, 1], [], []>} : vector<8x128xbf16>, vector<128x128xbf16>, vector<8x128xf32> -> vector<8x128xf32>
    %497 = arith.addf %496, %21 : vector<8x128xf32>
    %c6_136 = arith.constant 6 : index
    %c0_137 = arith.constant 0 : index
    %c0_138 = arith.constant 0 : index
    %498 = vector.load %arg9[%c6_136, %c0_137, %c0_138] : memref<8x8x128xf32, #tpu.memory_space<vmem>>, vector<1x8x128xf32>
    %499 = vector.shape_cast %498 : vector<1x8x128xf32> to vector<8x128xf32>
    %500 = vector.shape_cast %497 : vector<8x128xf32> to vector<1x8x128xf32>
    tpu.vector_store %arg9[%c6_136, %c0_137, %c0_138], %500 {strides = array<i32>} : memref<8x8x128xf32, #tpu.memory_space<vmem>>, vector<1x8x128xf32>,
    %cst_139 = arith.constant dense<0.000000e+00> : vector<8x512xf32>
    %501 = tpu.matmul %495, %14, %cst_139 {dimension_numbers = #tpu.dot_dimension_numbers<[1], [0], [0], [1], [0, 0, 1, 1], [], []>} : vector<8x128xbf16>, vector<128x512xbf16>, vector<8x512xf32> -> vector<8x512xf32>
    %c7 = arith.constant 7 : index
    %c0_140 = arith.constant 0 : index
    %c0_141 = arith.constant 0 : index
    %502 = vector.load %arg17[%c7, %c0_140, %c0_141] : memref<8x8x512xf32, #tpu.memory_space<vmem>>, vector<1x8x512xf32>
    %503 = vector.shape_cast %502 : vector<1x8x512xf32> to vector<8x512xf32>
    %504 = arith.addf %503, %466 : vector<8x512xf32>
    %505 = vector.extract_strided_slice %504 {offsets = [0, 0], sizes = [8, 128], strides = [1, 1]} : vector<8x512xf32> to vector<8x128xf32>
    %506 = arith.negf %505 : vector<8x128xf32>
    %507 = math.exp %506 : vector<8x128xf32>
    %cst_142 = arith.constant 1.000000e+00 : f32
    %508 = vector.broadcast %cst_142 : f32 to vector<8x128xf32>
    %509 = arith.addf %508, %507 : vector<8x128xf32>
    %510 = arith.divf %508, %509 : vector<8x128xf32>
    %511 = vector.extract_strided_slice %504 {offsets = [0, 128], sizes = [8, 128], strides = [1, 1]} : vector<8x512xf32> to vector<8x128xf32>
    %512 = arith.negf %511 : vector<8x128xf32>
    %513 = math.exp %512 : vector<8x128xf32>
    %cst_143 = arith.constant 1.000000e+00 : f32
    %514 = vector.broadcast %cst_143 : f32 to vector<8x128xf32>
    %515 = arith.addf %514, %513 : vector<8x128xf32>
    %516 = arith.divf %514, %515 : vector<8x128xf32>
    %517 = vector.extract_strided_slice %504 {offsets = [0, 256], sizes = [8, 128], strides = [1, 1]} : vector<8x512xf32> to vector<8x128xf32>
    %518 = math.tanh %517 : vector<8x128xf32>
    %519 = vector.extract_strided_slice %504 {offsets = [0, 384], sizes = [8, 128], strides = [1, 1]} : vector<8x512xf32> to vector<8x128xf32>
    %520 = arith.negf %519 : vector<8x128xf32>
    %521 = math.exp %520 : vector<8x128xf32>
    %cst_144 = arith.constant 1.000000e+00 : f32
    %522 = vector.broadcast %cst_144 : f32 to vector<8x128xf32>
    %523 = arith.addf %522, %521 : vector<8x128xf32>
    %524 = arith.divf %522, %523 : vector<8x128xf32>
    %525 = arith.mulf %516, %461 : vector<8x128xf32>
    %526 = arith.mulf %510, %518 : vector<8x128xf32>
    %527 = arith.addf %525, %526 : vector<8x128xf32>
    %528 = math.tanh %527 : vector<8x128xf32>
    %529 = arith.mulf %524, %528 : vector<8x128xf32>
    %530 = arith.truncf %529 : vector<8x128xf32> to vector<8x128xbf16>
    %cst_145 = arith.constant dense<0.000000e+00> : vector<8x1024xf32>
    %531 = tpu.matmul %530, %13, %cst_145 {dimension_numbers = #tpu.dot_dimension_numbers<[1], [0], [0], [1], [0, 0, 1, 1], [], []>} : vector<8x128xbf16>, vector<128x1024xbf16>, vector<8x1024xf32> -> vector<8x1024xf32>
    %532 = vector.extract_strided_slice %531 {offsets = [0, 0], sizes = [8, 512], strides = [1, 1]} : vector<8x1024xf32> to vector<8x512xf32>
    %533 = vector.extract_strided_slice %531 {offsets = [0, 512], sizes = [8, 512], strides = [1, 1]} : vector<8x1024xf32> to vector<8x512xf32>
    %534 = arith.addf %533, %501 : vector<8x512xf32>
    %535 = arith.addf %534, %18 : vector<8x512xf32>
    %536 = vector.extract_strided_slice %535 {offsets = [0, 0], sizes = [8, 128], strides = [1, 1]} : vector<8x512xf32> to vector<8x128xf32>
    %537 = arith.negf %536 : vector<8x128xf32>
    %538 = math.exp %537 : vector<8x128xf32>
    %cst_146 = arith.constant 1.000000e+00 : f32
    %539 = vector.broadcast %cst_146 : f32 to vector<8x128xf32>
    %540 = arith.addf %539, %538 : vector<8x128xf32>
    %541 = arith.divf %539, %540 : vector<8x128xf32>
    %542 = vector.extract_strided_slice %535 {offsets = [0, 128], sizes = [8, 128], strides = [1, 1]} : vector<8x512xf32> to vector<8x128xf32>
    %543 = arith.negf %542 : vector<8x128xf32>
    %544 = math.exp %543 : vector<8x128xf32>
    %cst_147 = arith.constant 1.000000e+00 : f32
    %545 = vector.broadcast %cst_147 : f32 to vector<8x128xf32>
    %546 = arith.addf %545, %544 : vector<8x128xf32>
    %547 = arith.divf %545, %546 : vector<8x128xf32>
    %548 = vector.extract_strided_slice %535 {offsets = [0, 256], sizes = [8, 128], strides = [1, 1]} : vector<8x512xf32> to vector<8x128xf32>
    %549 = math.tanh %548 : vector<8x128xf32>
    %550 = vector.extract_strided_slice %535 {offsets = [0, 384], sizes = [8, 128], strides = [1, 1]} : vector<8x512xf32> to vector<8x128xf32>
    %551 = arith.negf %550 : vector<8x128xf32>
    %552 = math.exp %551 : vector<8x128xf32>
    %cst_148 = arith.constant 1.000000e+00 : f32
    %553 = vector.broadcast %cst_148 : f32 to vector<8x128xf32>
    %554 = arith.addf %553, %552 : vector<8x128xf32>
    %555 = arith.divf %553, %554 : vector<8x128xf32>
    %556 = arith.mulf %547, %492 : vector<8x128xf32>
    %557 = arith.mulf %541, %549 : vector<8x128xf32>
    %558 = arith.addf %556, %557 : vector<8x128xf32>
    %559 = math.tanh %558 : vector<8x128xf32>
    %560 = arith.mulf %555, %559 : vector<8x128xf32>
    %561 = arith.truncf %560 : vector<8x128xf32> to vector<8x128xbf16>
    %cst_149 = arith.constant dense<0.000000e+00> : vector<8x128xf32>
    %562 = tpu.matmul %561, %15, %cst_149 {dimension_numbers = #tpu.dot_dimension_numbers<[1], [0], [0], [1], [0, 0, 1, 1], [], []>} : vector<8x128xbf16>, vector<128x128xbf16>, vector<8x128xf32> -> vector<8x128xf32>
    %563 = arith.addf %562, %21 : vector<8x128xf32>
    %c7_150 = arith.constant 7 : index
    %c0_151 = arith.constant 0 : index
    %c0_152 = arith.constant 0 : index
    %564 = vector.load %arg9[%c7_150, %c0_151, %c0_152] : memref<8x8x128xf32, #tpu.memory_space<vmem>>, vector<1x8x128xf32>
    %565 = vector.shape_cast %564 : vector<1x8x128xf32> to vector<8x128xf32>
    %566 = vector.shape_cast %563 : vector<8x128xf32> to vector<1x8x128xf32>
    tpu.vector_store %arg9[%c7_150, %c0_151, %c0_152], %566 {strides = array<i32>} : memref<8x8x128xf32, #tpu.memory_space<vmem>>, vector<1x8x128xf32>,
    %c0_153 = arith.constant 0 : index
    %c0_154 = arith.constant 0 : index
    %567 = vector.load %arg12[%c0_153, %c0_154] : memref<8x128xf32, #tpu.memory_space<vmem>>, vector<8x128xf32>
    tpu.vector_store %arg12[%c0_153, %c0_154], %529 {strides = array<i32>} : memref<8x128xf32, #tpu.memory_space<vmem>>, vector<8x128xf32>,
    %c0_155 = arith.constant 0 : index
    %c0_156 = arith.constant 0 : index
    %568 = vector.load %arg13[%c0_155, %c0_156] : memref<8x128xf32, #tpu.memory_space<vmem>>, vector<8x128xf32>
    tpu.vector_store %arg13[%c0_155, %c0_156], %527 {strides = array<i32>} : memref<8x128xf32, #tpu.memory_space<vmem>>, vector<8x128xf32>,
    %c0_157 = arith.constant 0 : index
    %c0_158 = arith.constant 0 : index
    %569 = vector.load %arg14[%c0_157, %c0_158] : memref<8x128xf32, #tpu.memory_space<vmem>>, vector<8x128xf32>
    tpu.vector_store %arg14[%c0_157, %c0_158], %560 {strides = array<i32>} : memref<8x128xf32, #tpu.memory_space<vmem>>, vector<8x128xf32>,
    %c0_159 = arith.constant 0 : index
    %c0_160 = arith.constant 0 : index
    %570 = vector.load %arg15[%c0_159, %c0_160] : memref<8x128xf32, #tpu.memory_space<vmem>>, vector<8x128xf32>
    tpu.vector_store %arg15[%c0_159, %c0_160], %558 {strides = array<i32>} : memref<8x128xf32, #tpu.memory_space<vmem>>, vector<8x128xf32>,
    %c0_161 = arith.constant 0 : index
    %c0_162 = arith.constant 0 : index
    %571 = vector.load %arg16[%c0_161, %c0_162] : memref<8x512xf32, #tpu.memory_space<vmem>>, vector<8x512xf32>
    tpu.vector_store %arg16[%c0_161, %c0_162], %532 {strides = array<i32>} : memref<8x512xf32, #tpu.memory_space<vmem>>, vector<8x512xf32>,
    return
  }
  func.func @transform_0(%arg0: i32) -> (i32, i32, i32) {
    %c0_i32 = arith.constant 0 : i32
    %c0_i32_0 = arith.constant 0 : i32
    %c0_i32_1 = arith.constant 0 : i32
    return %arg0, %c0_i32, %c0_i32_0 : i32, i32, i32
  }
  func.func @transform_1(%arg0: i32) -> (i32, i32) {
    %c0_i32 = arith.constant 0 : i32
    %c0_i32_0 = arith.constant 0 : i32
    %c0_i32_1 = arith.constant 0 : i32
    return %c0_i32, %c0_i32_0 : i32, i32
  }
  func.func @transform_2(%arg0: i32) -> (i32, i32) {
    %c0_i32 = arith.constant 0 : i32
    %c0_i32_0 = arith.constant 0 : i32
    %c0_i32_1 = arith.constant 0 : i32
    return %c0_i32, %c0_i32_0 : i32, i32
  }
  func.func @transform_3(%arg0: i32) -> (i32, i32) {
    %c0_i32 = arith.constant 0 : i32
    %c0_i32_0 = arith.constant 0 : i32
    %c0_i32_1 = arith.constant 0 : i32
    return %c0_i32, %c0_i32_0 : i32, i32
  }
  func.func @transform_4(%arg0: i32) -> (i32, i32) {
    %c0_i32 = arith.constant 0 : i32
    %c0_i32_0 = arith.constant 0 : i32
    %c0_i32_1 = arith.constant 0 : i32
    return %c0_i32, %c0_i32_0 : i32, i32
  }
  func.func @transform_5(%arg0: i32) -> (i32, i32) {
    %c0_i32 = arith.constant 0 : i32
    %c0_i32_0 = arith.constant 0 : i32
    %c0_i32_1 = arith.constant 0 : i32
    return %c0_i32, %c0_i32_0 : i32, i32
  }
  func.func @transform_6(%arg0: i32) -> (i32, i32) {
    %c0_i32 = arith.constant 0 : i32
    %c0_i32_0 = arith.constant 0 : i32
    %c0_i32_1 = arith.constant 0 : i32
    return %c0_i32, %c0_i32_0 : i32, i32
  }
  func.func @transform_7(%arg0: i32) -> (i32, i32) {
    %c0_i32 = arith.constant 0 : i32
    %c0_i32_0 = arith.constant 0 : i32
    %c0_i32_1 = arith.constant 0 : i32
    return %c0_i32, %c0_i32_0 : i32, i32
  }
  func.func @transform_8(%arg0: i32) -> (i32, i32, i32) {
    %c0_i32 = arith.constant 0 : i32
    %c0_i32_0 = arith.constant 0 : i32
    %c0_i32_1 = arith.constant 0 : i32
    return %arg0, %c0_i32, %c0_i32_0 : i32, i32, i32
  }
  func.func @transform_9(%arg0: i32) -> (i32, i32, i32) {
    %c0_i32 = arith.constant 0 : i32
    %c0_i32_0 = arith.constant 0 : i32
    %c0_i32_1 = arith.constant 0 : i32
    %c0_i32_2 = arith.constant 0 : i32
    return %c0_i32, %c0_i32_0, %c0_i32_1 : i32, i32, i32
  }
  func.func @transform_10(%arg0: i32) -> (i32, i32, i32) {
    %c0_i32 = arith.constant 0 : i32
    %c0_i32_0 = arith.constant 0 : i32
    %c0_i32_1 = arith.constant 0 : i32
    %c0_i32_2 = arith.constant 0 : i32
    return %c0_i32, %c0_i32_0, %c0_i32_1 : i32, i32, i32
  }
}

</mosaic_0001>

<llo_original>
// kernel: tpu_custom_call.1
$region0: #{tpu_custom_call.1}
  #allocation0 [shape = 'u32[]', space=smem, size = 0x4, offset = 0x4, fixed_abs, tag = 'smem constant byte address 0x4 - core index']
  #allocation1 [shape = 'u32[72,128]{1,0:T(1,128)}', space=vmem, size = 0x9000, scoped, tag = 'internal scratch']
  #allocation2 [shape = 'f32[8,128]{1,0:T(8,128)}', space=vmem, size = 0x1000, scoped, tag = 'scratch operand']
  #allocation3 [shape = 'f32[8,128]{1,0:T(8,128)}', space=vmem, size = 0x1000, scoped, tag = 'scratch operand']
  #allocation4 [shape = 'f32[8,128]{1,0:T(8,128)}', space=vmem, size = 0x1000, scoped, tag = 'scratch operand']
  #allocation5 [shape = 'f32[8,128]{1,0:T(8,128)}', space=vmem, size = 0x1000, scoped, tag = 'scratch operand']
  #allocation6 [shape = 'f32[8,512]{1,0:T(8,128)}', space=vmem, size = 0x4000, scoped, tag = 'scratch operand']
  #allocation7 [shape = 'f32[8,8,512]{2,1,0:T(8,128)}', space=vmem, size = 0x20000, scoped, tag = 'scratch operand']
  %s0 = inlined_call_operand.hbm [shape: f32[24,8,128], index: 0, kind: input, shape index: {}]
  %s1 = inlined_call_operand.hbm [shape: bf16[128,512], index: 1, kind: input, shape index: {}]
  %s2 = inlined_call_operand.hbm [shape: f32[1,512], index: 2, kind: input, shape index: {}]
  %s3 = inlined_call_operand.hbm [shape: bf16[128,1024], index: 3, kind: input, shape index: {}]
  %s4 = inlined_call_operand.hbm [shape: bf16[128,512], index: 4, kind: input, shape index: {}]
  %s5 = inlined_call_operand.vmem [shape: f32[1,512], index: 5, kind: input, shape index: {}]
  %s6 = inlined_call_operand.hbm [shape: bf16[128,128], index: 6, kind: input, shape index: {}]
  %s7 = inlined_call_operand.vmem [shape: f32[1,128], index: 7, kind: input, shape index: {}]
  %s8 = inlined_call_operand.hbm [shape: f32[24,8,128], index: 8, kind: output, shape index: {0}]
  %s9 = inlined_call_operand.hbm [shape: f32[2,8,128], index: 9, kind: output, shape index: {1}]
  %s10 = inlined_call_operand.hbm [shape: f32[2,8,128], index: 10, kind: output, shape index: {2}]
  %11 = xla_tuple %s8, %s9, %s10
  %s12 = sld [smem:[#allocation0]]
  $region109: #{tpu_custom_call.1} parent=0
    _
  %s14 = ssub.s32 1, %s12
  %s15 = scalar_select 0, %s14, %s12
  $region1: #{tpu_custom_call.1} parent=0
    #allocation8 [shape = 'u8[65536]{0}', space=vmem, size = 0x10000, scoped, tag = 'input window, operand 0']
    #allocation9 [shape = 's32[2]{0}', space=sflag, size = 0x8, scoped, tag = 'scoped memory for tpu_custom_call.1']
    #allocation10 [shape = 's32[2]{0}', space=sflag, size = 0x8, scoped, tag = 'scoped memory for tpu_custom_call.1']
    #allocation11 [shape = 'u8[131072]{0}', space=vmem, size = 0x20000, scoped, tag = 'input window, operand 1, single buffered']
    #allocation12 [shape = 's32[1]{0}', space=sflag, size = 0x4, scoped, tag = 'scoped memory for tpu_custom_call.1']
    #allocation13 [shape = 'u8[2048]{0}', space=vmem, size = 0x800, scoped, tag = 'input window, operand 2, single buffered']
    #allocation14 [shape = 'u8[262144]{0}', space=vmem, size = 0x40000, scoped, tag = 'input window, operand 3, single buffered']
    #allocation15 [shape = 's32[1]{0}', space=sflag, size = 0x4, scoped, tag = 'scoped memory for tpu_custom_call.1']
    #allocation16 [shape = 'u8[131072]{0}', space=vmem, size = 0x20000, scoped, tag = 'input window, operand 4, single buffered']
    #allocation17 [shape = 'u8[32768]{0}', space=vmem, size = 0x8000, scoped, tag = 'input window, operand 6, single buffered']
    #allocation18 [shape = 's32[1]{0}', space=sflag, size = 0x4, scoped, tag = 'scoped memory for tpu_custom_call.1']
    #allocation19 [shape = 'u8[65536]{0}', space=vmem, size = 0x10000, scoped, tag = 'output window, operand 0']
    #allocation20 [shape = 'u8[8192]{0}', space=vmem, size = 0x2000, scoped, tag = 'output window, operand 1, single buffered']
    #allocation21 [shape = 's32[1]{0}', space=sflag, size = 0x4, scoped, tag = 'scoped memory for tpu_custom_call.1']
    #allocation22 [shape = 'u8[8192]{0}', space=vmem, size = 0x2000, scoped, tag = 'output window, operand 2, single buffered']
    %16 = vsyncpa [#allocation9], 0
    %s17 = scalar_lea.sflag [#allocation9], 1
    %18 = vsyncpa %s17, 0
    %19 = vsyncpa [#allocation12], 0
    %20 = vsyncpa [#allocation15], 0
    %21 = vsyncpa [#allocation18], 0
    %22 = vsyncpa [#allocation10], 0
    %s23 = scalar_lea.sflag [#allocation10], 1
    %24 = vsyncpa %s23, 0
    %25 = vsyncpa [#allocation21], 0
    loop: start=0, step=1, limit=5
    $region2: #{tpu_custom_call.1} parent=1 // loop_pre_header
      _
    $region3: #{tpu_custom_call.1} parent=1 // loop_header
      %s27 = sphi 0, %s31
      %p28 = scmp.ge.s32.totalorder %s27, 5
      %s37 = sphi 0, %s39
      %s40 = sphi 0, %s37
      %s41 = sphi 0, %s40
      %s57 = sphi 0, %s41
      %s61 = sphi 0, %s61
      %s63 = sphi 0, %s61
      %s64 = sphi 0, %s63
      %s78 = sphi 0, %s64
      %s82 = sphi 0, %s82
      %s84 = sphi 0, %s82
      %s85 = sphi 0, %s84
      %s99 = sphi 0, %s85
      %s103 = sphi 0, %s103
      %s105 = sphi 0, %s103
      %s106 = sphi 0, %s105
      %s120 = sphi 0, %s106
      %s124 = sphi 0, %s124
      %s126 = sphi 0, %s124
      %s127 = sphi 0, %s126
      %s141 = sphi 0, %s127
      %s145 = sphi 0, %s145
      %s147 = sphi 0, %s145
      %s148 = sphi 0, %s147
      %s162 = sphi 0, %s148
      %s166 = sphi 0, %s166
      %s168 = sphi 0, %s166
      %s169 = sphi 0, %s168
      %s183 = sphi 0, %s169
      %s187 = sphi 0, %s187
      %s189 = sphi 0, %s187
      %s190 = sphi 0, %s189
      %s204 = sphi 0, %s190
      %s210 = sphi 0, %s212
      %s213 = sphi 0, %s210
      %s214 = sphi 0, %s213
      %s230 = sphi 0, %s214
      %s234 = sphi 0, %s234
      %s236 = sphi 0, %s234
      %s237 = sphi 0, %s236
      %s251 = sphi 0, %s237
      %s255 = sphi 0, %s255
      %s257 = sphi 0, %s255
      %s258 = sphi 0, %s257
      %s272 = sphi 0, %s258
    $region4: #{tpu_custom_call.1} parent=1 // loop_header_branch
      %30 = sbr.rel (%p28) target = $region8
    $region5: #{tpu_custom_call.1} parent=1 // loop_body
      %s32 = ssub.s32 %s27, 1
      %s33 = ssub.s32 %s27, 2
      %s34 = sadd.s32 %s27, 1
      %s35 = ssub.s32 %s27, %s34
      %p36 = scmp.eq.s32.totalorder %s35, 0
      %s38 = sadd.s32 %s37, 1
      %s39 = scalar_select %p36, %s37, %s38
      %p42 = pneg %p36
      %p43 = scmp.eq.s32.totalorder %s27, 2
      %p44 = por %p42, %p43
      %p45 = scmp.ne.s32.totalorder %s37, %s40
      %p46 = scmp.eq.s32.totalorder %s27, 0
      %p47 = por %p45, %p46
      %p48 = scmp.ne.s32.totalorder %s37, %s40
      %p49 = scmp.eq.s32.totalorder %s32, 2
      %p50 = por %p48, %p49
      %p51 = scmp.ne.s32.totalorder %s40, %s41
      %p52 = scmp.eq.s32.totalorder %s32, 0
      %p53 = por %p51, %p52
      %p54 = scmp.ne.s32.totalorder %s40, %s41
      %p55 = scmp.eq.s32.totalorder %s33, 2
      %p56 = por %p54, %p55
      %p58 = scmp.ne.s32.totalorder %s41, %s57
      %p59 = scmp.eq.s32.totalorder %s33, 0
      %p60 = por %p58, %p59
      %s62 = sadd.s32 %s61, 1
      %p65 = scmp.eq.s32.totalorder %s27, 2
      %p66 = scmp.ne.s32.totalorder %s61, %s63
      %p67 = scmp.eq.s32.totalorder %s27, 0
      %p68 = por %p66, %p67
      %p69 = scmp.ne.s32.totalorder %s61, %s63
      %p70 = scmp.eq.s32.totalorder %s32, 2
      %p71 = por %p69, %p70
      %p72 = scmp.ne.s32.totalorder %s63, %s64
      %p73 = scmp.eq.s32.totalorder %s32, 0
      %p74 = por %p72, %p73
      %p75 = scmp.ne.s32.totalorder %s63, %s64
      %p76 = scmp.eq.s32.totalorder %s33, 2
      %p77 = por %p75, %p76
      %p79 = scmp.ne.s32.totalorder %s64, %s78
      %p80 = scmp.eq.s32.totalorder %s33, 0
      %p81 = por %p79, %p80
      %s83 = sadd.s32 %s82, 1
      %p86 = scmp.eq.s32.totalorder %s27, 2
      %p87 = scmp.ne.s32.totalorder %s82, %s84
      %p88 = scmp.eq.s32.totalorder %s27, 0
      %p89 = por %p87, %p88
      %p90 = scmp.ne.s32.totalorder %s82, %s84
      %p91 = scmp.eq.s32.totalorder %s32, 2
      %p92 = por %p90, %p91
      %p93 = scmp.ne.s32.totalorder %s84, %s85
      %p94 = scmp.eq.s32.totalorder %s32, 0
      %p95 = por %p93, %p94
      %p96 = scmp.ne.s32.totalorder %s84, %s85
      %p97 = scmp.eq.s32.totalorder %s33, 2
      %p98 = por %p96, %p97
      %p100 = scmp.ne.s32.totalorder %s85, %s99
      %p101 = scmp.eq.s32.totalorder %s33, 0
      %p102 = por %p100, %p101
      %s104 = sadd.s32 %s103, 1
      %p107 = scmp.eq.s32.totalorder %s27, 2
      %p108 = scmp.ne.s32.totalorder %s103, %s105
      %p109 = scmp.eq.s32.totalorder %s27, 0
      %p110 = por %p108, %p109
      %p111 = scmp.ne.s32.totalorder %s103, %s105
      %p112 = scmp.eq.s32.totalorder %s32, 2
      %p113 = por %p111, %p112
      %p114 = scmp.ne.s32.totalorder %s105, %s106
      %p115 = scmp.eq.s32.totalorder %s32, 0
      %p116 = por %p114, %p115
      %p117 = scmp.ne.s32.totalorder %s105, %s106
      %p118 = scmp.eq.s32.totalorder %s33, 2
      %p119 = por %p117, %p118
      %p121 = scmp.ne.s32.totalorder %s106, %s120
      %p122 = scmp.eq.s32.totalorder %s33, 0
      %p123 = por %p121, %p122
      %s125 = sadd.s32 %s124, 1
      %p128 = scmp.eq.s32.totalorder %s27, 2
      %p129 = scmp.ne.s32.totalorder %s124, %s126
      %p130 = scmp.eq.s32.totalorder %s27, 0
      %p131 = por %p129, %p130
      %p132 = scmp.ne.s32.totalorder %s124, %s126
      %p133 = scmp.eq.s32.totalorder %s32, 2
      %p134 = por %p132, %p133
      %p135 = scmp.ne.s32.totalorder %s126, %s127
      %p136 = scmp.eq.s32.totalorder %s32, 0
      %p137 = por %p135, %p136
      %p138 = scmp.ne.s32.totalorder %s126, %s127
      %p139 = scmp.eq.s32.totalorder %s33, 2
      %p140 = por %p138, %p139
      %p142 = scmp.ne.s32.totalorder %s127, %s141
      %p143 = scmp.eq.s32.totalorder %s33, 0
      %p144 = por %p142, %p143
      %s146 = sadd.s32 %s145, 1
      %p149 = scmp.eq.s32.totalorder %s27, 2
      %p150 = scmp.ne.s32.totalorder %s145, %s147
      %p151 = scmp.eq.s32.totalorder %s27, 0
      %p152 = por %p150, %p151
      %p153 = scmp.ne.s32.totalorder %s145, %s147
      %p154 = scmp.eq.s32.totalorder %s32, 2
      %p155 = por %p153, %p154
      %p156 = scmp.ne.s32.totalorder %s147, %s148
      %p157 = scmp.eq.s32.totalorder %s32, 0
      %p158 = por %p156, %p157
      %p159 = scmp.ne.s32.totalorder %s147, %s148
      %p160 = scmp.eq.s32.totalorder %s33, 2
      %p161 = por %p159, %p160
      %p163 = scmp.ne.s32.totalorder %s148, %s162
      %p164 = scmp.eq.s32.totalorder %s33, 0
      %p165 = por %p163, %p164
      %s167 = sadd.s32 %s166, 1
      %p170 = scmp.eq.s32.totalorder %s27, 2
      %p171 = scmp.ne.s32.totalorder %s166, %s168
      %p172 = scmp.eq.s32.totalorder %s27, 0
      %p173 = por %p171, %p172
      %p174 = scmp.ne.s32.totalorder %s166, %s168
      %p175 = scmp.eq.s32.totalorder %s32, 2
      %p176 = por %p174, %p175
      %p177 = scmp.ne.s32.totalorder %s168, %s169
      %p178 = scmp.eq.s32.totalorder %s32, 0
      %p179 = por %p177, %p178
      %p180 = scmp.ne.s32.totalorder %s168, %s169
      %p181 = scmp.eq.s32.totalorder %s33, 2
      %p182 = por %p180, %p181
      %p184 = scmp.ne.s32.totalorder %s169, %s183
      %p185 = scmp.eq.s32.totalorder %s33, 0
      %p186 = por %p184, %p185
      %s188 = sadd.s32 %s187, 1
      %p191 = scmp.eq.s32.totalorder %s27, 2
      %p192 = scmp.ne.s32.totalorder %s187, %s189
      %p193 = scmp.eq.s32.totalorder %s27, 0
      %p194 = por %p192, %p193
      %p195 = scmp.ne.s32.totalorder %s187, %s189
      %p196 = scmp.eq.s32.totalorder %s32, 2
      %p197 = por %p195, %p196
      %p198 = scmp.ne.s32.totalorder %s189, %s190
      %p199 = scmp.eq.s32.totalorder %s32, 0
      %p200 = por %p198, %p199
      %p201 = scmp.ne.s32.totalorder %s189, %s190
      %p202 = scmp.eq.s32.totalorder %s33, 2
      %p203 = por %p201, %p202
      %p205 = scmp.ne.s32.totalorder %s190, %s204
      %p206 = scmp.eq.s32.totalorder %s33, 0
      %p207 = por %p205, %p206
      %s208 = ssub.s32 %s27, %s34
      %p209 = scmp.eq.s32.totalorder %s208, 0
      %s211 = sadd.s32 %s210, 1
      %s212 = scalar_select %p209, %s210, %s211
      %p215 = pneg %p209
      %p216 = scmp.eq.s32.totalorder %s27, 2
      %p217 = por %p215, %p216
      %p218 = scmp.ne.s32.totalorder %s210, %s213
      %p219 = scmp.eq.s32.totalorder %s27, 0
      %p220 = por %p218, %p219
      %p221 = scmp.ne.s32.totalorder %s210, %s213
      %p222 = scmp.eq.s32.totalorder %s32, 2
      %p223 = por %p221, %p222
      %p224 = scmp.ne.s32.totalorder %s213, %s214
      %p225 = scmp.eq.s32.totalorder %s32, 0
      %p226 = por %p224, %p225
      %p227 = scmp.ne.s32.totalorder %s213, %s214
      %p228 = scmp.eq.s32.totalorder %s33, 2
      %p229 = por %p227, %p228
      %p231 = scmp.ne.s32.totalorder %s214, %s230
      %p232 = scmp.eq.s32.totalorder %s33, 0
      %p233 = por %p231, %p232
      %s235 = sadd.s32 %s234, 1
      %p238 = scmp.eq.s32.totalorder %s27, 2
      %p239 = scmp.ne.s32.totalorder %s234, %s236
      %p240 = scmp.eq.s32.totalorder %s27, 0
      %p241 = por %p239, %p240
      %p242 = scmp.ne.s32.totalorder %s234, %s236
      %p243 = scmp.eq.s32.totalorder %s32, 2
      %p244 = por %p242, %p243
      %p245 = scmp.ne.s32.totalorder %s236, %s237
      %p246 = scmp.eq.s32.totalorder %s32, 0
      %p247 = por %p245, %p246
      %p248 = scmp.ne.s32.totalorder %s236, %s237
      %p249 = scmp.eq.s32.totalorder %s33, 2
      %p250 = por %p248, %p249
      %p252 = scmp.ne.s32.totalorder %s237, %s251
      %p253 = scmp.eq.s32.totalorder %s33, 0
      %p254 = por %p252, %p253
      %s256 = sadd.s32 %s255, 1
      %p259 = scmp.eq.s32.totalorder %s27, 2
      %p260 = scmp.ne.s32.totalorder %s255, %s257
      %p261 = scmp.eq.s32.totalorder %s27, 0
      %p262 = por %p260, %p261
      %p263 = scmp.ne.s32.totalorder %s255, %s257
      %p264 = scmp.eq.s32.totalorder %s32, 2
      %p265 = por %p263, %p264
      %p266 = scmp.ne.s32.totalorder %s257, %s258
      %p267 = scmp.eq.s32.totalorder %s32, 0
      %p268 = por %p266, %p267
      %p269 = scmp.ne.s32.totalorder %s257, %s258
      %p270 = scmp.eq.s32.totalorder %s33, 2
      %p271 = por %p269, %p270
      %p273 = scmp.ne.s32.totalorder %s258, %s272
      %p274 = scmp.eq.s32.totalorder %s33, 0
      %p275 = por %p273, %p274
      %p276 = scmp.le.s32.totalorder 1, %s27
      %p277 = scmp.lt.s32.totalorder %s27, 4
      %p278 = pnand %p276, %p277
      %p279 = pneg %p278
      // Predicated region
      $region9: #{tpu_custom_call.1} parent=5 // pred_check
        _
      $region10: #{tpu_custom_call.1} parent=5 // pred_check_branch
        %281 = sbr.rel (%p278) target = $region12
      $region11: #{tpu_custom_call.1} parent=5 // pred_region
        %s282 = ssub.s32 %s27, 1
        // Predicated region
        $region13: #{tpu_custom_call.1} parent=11 // pred_check
          %p283 = pneg %p74
        $region14: #{tpu_custom_call.1} parent=11 // pred_check_branch
          %285 = sbr.rel (%p283) target = $region16
        $region15: #{tpu_custom_call.1} parent=11 // pred_region
          %287 = vsyncadd [#allocation12], 0
          %s288 = sshll.u32 %s1, 4
          %s289 = int_to_ptr.hbm [resolvable:$true] %s288
          %s290 = sshll.u32 [#allocation11], 4
          %s291 = int_to_ptr.vmem [resolvable:$true] %s290
          %296 = dma.hbm_to_vmem [thread:$0]  %s289, 4096, %s291, [#allocation12], 256, 256, 16
        $region16: #{tpu_custom_call.1} parent=11 // pred_fallthru
          _
        // Predicated region
        $region17: #{tpu_custom_call.1} parent=11 // pred_check
          %p297 = pneg %p95
        $region18: #{tpu_custom_call.1} parent=11 // pred_check_branch
          %299 = sbr.rel (%p297) target = $region20
        $region19: #{tpu_custom_call.1} parent=11 // pred_region
          %301 = vsyncadd [#allocation12], 0
          %s303 = sshll.u32 %s2, 4
          %s304 = int_to_ptr.hbm [resolvable:$true] %s303
          %s305 = sshll.u32 [#allocation13], 4
          %s306 = int_to_ptr.vmem [resolvable:$true] %s305
          %308 = dma.hbm_to_vmem [thread:$0]  %s304, 64, %s306, [#allocation12]
        $region20: #{tpu_custom_call.1} parent=11 // pred_fallthru
          _
        // Predicated region
        $region21: #{tpu_custom_call.1} parent=11 // pred_check
          %p309 = pneg %p116
        $region22: #{tpu_custom_call.1} parent=11 // pred_check_branch
          %311 = sbr.rel (%p309) target = $region24
        $region23: #{tpu_custom_call.1} parent=11 // pred_region
          %313 = vsyncadd [#allocation15], 0
          %s314 = sshll.u32 %s3, 4
          %s315 = int_to_ptr.hbm [resolvable:$true] %s314
          %s316 = sshll.u32 [#allocation14], 4
          %s317 = int_to_ptr.vmem [resolvable:$true] %s316
          %322 = dma.hbm_to_vmem [thread:$0]  %s315, 8192, %s317, [#allocation15], 512, 512, 32
        $region24: #{tpu_custom_call.1} parent=11 // pred_fallthru
          _
        // Predicated region
        $region25: #{tpu_custom_call.1} parent=11 // pred_check
          %p323 = pneg %p137
        $region26: #{tpu_custom_call.1} parent=11 // pred_check_branch
          %325 = sbr.rel (%p323) target = $region28
        $region27: #{tpu_custom_call.1} parent=11 // pred_region
          %327 = vsyncadd [#allocation15], 0
          %s328 = sshll.u32 %s4, 4
          %s329 = int_to_ptr.hbm [resolvable:$true] %s328
          %s330 = sshll.u32 [#allocation16], 4
          %s331 = int_to_ptr.vmem [resolvable:$true] %s330
          %336 = dma.hbm_to_vmem [thread:$0]  %s329, 4096, %s331, [#allocation15], 256, 256, 16
        $region28: #{tpu_custom_call.1} parent=11 // pred_fallthru
          _
        // Predicated region
        $region29: #{tpu_custom_call.1} parent=11 // pred_check
          %p337 = pneg %p158
        $region30: #{tpu_custom_call.1} parent=11 // pred_check_branch
          %339 = sbr.rel (%p337) target = $region32
        $region31: #{tpu_custom_call.1} parent=11 // pred_region
          _
        $region32: #{tpu_custom_call.1} parent=11 // pred_fallthru
          _
        // Predicated region
        $region33: #{tpu_custom_call.1} parent=11 // pred_check
          %p340 = pneg %p179
        $region34: #{tpu_custom_call.1} parent=11 // pred_check_branch
          %342 = sbr.rel (%p340) target = $region36
        $region35: #{tpu_custom_call.1} parent=11 // pred_region
          %344 = vsyncadd [#allocation18], 0
          %s345 = sshll.u32 %s6, 4
          %s346 = int_to_ptr.hbm [resolvable:$true] %s345
          %s347 = sshll.u32 [#allocation17], 4
          %s348 = int_to_ptr.vmem [resolvable:$true] %s347
          %353 = dma.hbm_to_vmem [thread:$0]  %s346, 1024, %s348, [#allocation18], 64, 64, 4
        $region36: #{tpu_custom_call.1} parent=11 // pred_fallthru
          _
        // Predicated region
        $region37: #{tpu_custom_call.1} parent=11 // pred_check
          %p354 = pneg %p200
        $region38: #{tpu_custom_call.1} parent=11 // pred_check_branch
          %356 = sbr.rel (%p354) target = $region40
        $region39: #{tpu_custom_call.1} parent=11 // pred_region
          _
        $region40: #{tpu_custom_call.1} parent=11 // pred_fallthru
          _
      $region12: #{tpu_custom_call.1} parent=5 // pred_fallthru
        _
      %p357 = scmp.lt.s32.totalorder %s27, 3
      // Predicated region
      $region41: #{tpu_custom_call.1} parent=5 // pred_check
        %p358 = pneg %p357
      $region42: #{tpu_custom_call.1} parent=5 // pred_check_branch
        %360 = sbr.rel (%p358) target = $region44
      $region43: #{tpu_custom_call.1} parent=5 // pred_region
        // Predicated region
        $region45: #{tpu_custom_call.1} parent=43 // pred_check
          %p361 = pneg %p47
        $region46: #{tpu_custom_call.1} parent=43 // pred_check_branch
          %363 = sbr.rel (%p361) target = $region48
        $region47: #{tpu_custom_call.1} parent=43 // pred_region
          %s364 = sand.u32 %s37, 1
          %s365 = scalar_lea.sflag [#allocation9], %s364
          %s366 = sand.u32 %s37, 1
          %s367 = smul.addr %s366, 64
          %s368 = scalar_lea.vmem [#allocation8], %s367
          %s369 = smul.u32 8, %s27
          %371 = vsyncadd %s365, 0
          %s372 = smul.addr %s369, 8
          %s373 = scalar_lea.hbm %s0, %s372
          %s374 = sshll.u32 %s373, 4
          %s375 = int_to_ptr.hbm [resolvable:$true] %s374
          %s376 = sshll.u32 %s368, 4
          %s377 = int_to_ptr.vmem [resolvable:$true] %s376
          %382 = dma.hbm_to_vmem [thread:$0]  %s375, 1024, %s377, %s365, 128, 128, 8
        $region48: #{tpu_custom_call.1} parent=43 // pred_fallthru
          _
      $region44: #{tpu_custom_call.1} parent=5 // pred_fallthru
        _
      %p383 = scmp.le.s32.totalorder 1, %s27
      %p384 = scmp.lt.s32.totalorder %s27, 4
      %p385 = pnand %p383, %p384
      %p386 = pneg %p385
      // Predicated region
      $region49: #{tpu_custom_call.1} parent=5 // pred_check
        _
      $region50: #{tpu_custom_call.1} parent=5 // pred_check_branch
        %388 = sbr.rel (%p385) target = $region52
      $region51: #{tpu_custom_call.1} parent=5 // pred_region
        %s389 = ssub.s32 %s27, 1
        %s390 = sand.u32 %s40, 1
        %s391 = scalar_lea.sflag [#allocation9], %s390
        %s392 = sand.u32 %s40, 1
        %s393 = smul.addr %s392, 64
        %s394 = scalar_lea.vmem [#allocation8], %s393
        // Predicated region
        $region53: #{tpu_custom_call.1} parent=51 // pred_check
          %p395 = pneg %p53
        $region54: #{tpu_custom_call.1} parent=51 // pred_check_branch
          %397 = sbr.rel (%p395) target = $region56
        $region55: #{tpu_custom_call.1} parent=51 // pred_region
          %399 = dma.done %s391, 1024
        $region56: #{tpu_custom_call.1} parent=51 // pred_fallthru
          _
        // Predicated region
        $region57: #{tpu_custom_call.1} parent=51 // pred_check
          %p400 = pneg %p74
        $region58: #{tpu_custom_call.1} parent=51 // pred_check_branch
          %402 = sbr.rel (%p400) target = $region60
        $region59: #{tpu_custom_call.1} parent=51 // pred_region
          %404 = dma.done [#allocation12], 4096
        $region60: #{tpu_custom_call.1} parent=51 // pred_fallthru
          _
        // Predicated region
        $region61: #{tpu_custom_call.1} parent=51 // pred_check
          %p405 = pneg %p95
        $region62: #{tpu_custom_call.1} parent=51 // pred_check_branch
          %407 = sbr.rel (%p405) target = $region64
        $region63: #{tpu_custom_call.1} parent=51 // pred_region
          %409 = dma.done [#allocation12], 64
        $region64: #{tpu_custom_call.1} parent=51 // pred_fallthru
          _
        // Predicated region
        $region65: #{tpu_custom_call.1} parent=51 // pred_check
          %p410 = pneg %p116
        $region66: #{tpu_custom_call.1} parent=51 // pred_check_branch
          %412 = sbr.rel (%p410) target = $region68
        $region67: #{tpu_custom_call.1} parent=51 // pred_region
          %414 = dma.done [#allocation15], 8192
        $region68: #{tpu_custom_call.1} parent=51 // pred_fallthru
          _
        // Predicated region
        $region69: #{tpu_custom_call.1} parent=51 // pred_check
          %p415 = pneg %p137
        $region70: #{tpu_custom_call.1} parent=51 // pred_check_branch
          %417 = sbr.rel (%p415) target = $region72
        $region71: #{tpu_custom_call.1} parent=51 // pred_region
          %419 = dma.done [#allocation15], 4096
        $region72: #{tpu_custom_call.1} parent=51 // pred_fallthru
          _
        // Predicated region
        $region73: #{tpu_custom_call.1} parent=51 // pred_check
          %p420 = pneg %p179
        $region74: #{tpu_custom_call.1} parent=51 // pred_check_branch
          %422 = sbr.rel (%p420) target = $region76
        $region75: #{tpu_custom_call.1} parent=51 // pred_region
          %424 = dma.done [#allocation18], 1024
        $region76: #{tpu_custom_call.1} parent=51 // pred_fallthru
          _
        %s425 = sand.u32 %s40, 1
        %s426 = scalar_lea.sflag [#allocation9], %s425
        %s427 = sand.u32 %s40, 1
        %s428 = smul.addr %s427, 64
        %s429 = scalar_lea.vmem [#allocation8], %s428
        %p430 = pneg %p53
        %p431 = pneg %p50
        %p432 = pneg %p74
        %p433 = pneg %p71
        %p434 = pneg %p95
        %p435 = pneg %p92
        %p436 = pneg %p116
        %p437 = pneg %p113
        %p438 = pneg %p137
        %p439 = pneg %p134
        %p440 = pneg %p158
        %p441 = pneg %p155
        %p442 = pneg %p179
        %p443 = pneg %p176
        %p444 = pneg %p200
        %p445 = pneg %p197
        %p446 = pneg %p226
        %p447 = pneg %p223
        %s448 = sand.u32 %s213, 1
        %s449 = scalar_lea.sflag [#allocation10], %s448
        %s450 = sand.u32 %s213, 1
        %s451 = smul.addr %s450, 64
        %s452 = scalar_lea.vmem [#allocation19], %s451
        %p453 = pneg %p247
        %p454 = pneg %p244
        %p455 = pneg %p268
        %p456 = pneg %p265
        %s457 = smul.u32 8, %s32
        %s458 = smul.u32 8, %s32
        %p459 = scmp.eq.s32.totalorder %s32, 0
        // Predicated region
        $region77: #{tpu_custom_call.1} parent=51 // pred_check
          %p460 = pneg %p459
        $region78: #{tpu_custom_call.1} parent=51 // pred_check_branch
          %462 = sbr.rel (%p460) target = $region80
        $region79: #{tpu_custom_call.1} parent=51 // pred_region
          %463 = vst [vmem:[#allocation2] sm:$0xff] 0.0
          %464 = vst [vmem:[#allocation3] sm:$0xff] 0.0
          %465 = vst [vmem:[#allocation4] sm:$0xff] 0.0
          %466 = vst [vmem:[#allocation5] sm:$0xff] 0.0
          %467 = vst [vmem:[#allocation6] sm:$0xff] 0.0
          %468 = vst [vmem:[#allocation6 + $0x8] sm:$0xff] 0.0
          %469 = vst [vmem:[#allocation6 + $0x10] sm:$0xff] 0.0
          %470 = vst [vmem:[#allocation6 + $0x18] sm:$0xff] 0.0
        $region80: #{tpu_custom_call.1} parent=51 // pred_fallthru
          _
        %v471 = vld [vmem:[%s394] sm:$0xff]
        %v472 = vld [vmem:[%s394 + $0x8] sm:$0xff]
        %v473 = vld [vmem:[%s394 + $0x10] sm:$0xff]
        %v474 = vld [vmem:[%s394 + $0x18] sm:$0xff]
        %v475 = vld [vmem:[%s394 + $0x20] sm:$0xff]
        %v476 = vld [vmem:[%s394 + $0x28] sm:$0xff]
        %v477 = vld [vmem:[%s394 + $0x30] sm:$0xff]
        %v478 = vld [vmem:[%s394 + $0x38] sm:$0xff]
        %v479 = vpack.c.bf16 %v472, %v471
        %v480 = vpack.c.bf16 %v474, %v473
        %v481 = vpack.c.bf16 %v476, %v475
        %v482 = vpack.c.bf16 %v478, %v477
        %v483 = vld [vmem:[#allocation11] sm:$0xff]
        %v484 = vld [vmem:[#allocation11 + $0x8] sm:$0xff]
        %v485 = vld [vmem:[#allocation11 + $0x10] sm:$0xff]
        %v486 = vld [vmem:[#allocation11 + $0x18] sm:$0xff]
        %v487 = vld [vmem:[#allocation11 + $0x20] sm:$0xff]
        %v488 = vld [vmem:[#allocation11 + $0x28] sm:$0xff]
        %v489 = vld [vmem:[#allocation11 + $0x30] sm:$0xff]
        %v490 = vld [vmem:[#allocation11 + $0x38] sm:$0xff]
        %v491 = vld [vmem:[#allocation11 + $0x40] sm:$0xff]
        %v492 = vld [vmem:[#allocation11 + $0x48] sm:$0xff]
        %v493 = vld [vmem:[#allocation11 + $0x50] sm:$0xff]
        %v494 = vld [vmem:[#allocation11 + $0x58] sm:$0xff]
        %v495 = vld [vmem:[#allocation11 + $0x60] sm:$0xff]
        %v496 = vld [vmem:[#allocation11 + $0x68] sm:$0xff]
        %v497 = vld [vmem:[#allocation11 + $0x70] sm:$0xff]
        %v498 = vld [vmem:[#allocation11 + $0x78] sm:$0xff]
        %v499 = vld [vmem:[#allocation11 + $0x80] sm:$0xff]
        %v500 = vld [vmem:[#allocation11 + $0x88] sm:$0xff]
        %v501 = vld [vmem:[#allocation11 + $0x90] sm:$0xff]
        %v502 = vld [vmem:[#allocation11 + $0x98] sm:$0xff]
        %v503 = vld [vmem:[#allocation11 + $0xa0] sm:$0xff]
        %v504 = vld [vmem:[#allocation11 + $0xa8] sm:$0xff]
        %v505 = vld [vmem:[#allocation11 + $0xb0] sm:$0xff]
        %v506 = vld [vmem:[#allocation11 + $0xb8] sm:$0xff]
        %v507 = vld [vmem:[#allocation11 + $0xc0] sm:$0xff]
        %v508 = vld [vmem:[#allocation11 + $0xc8] sm:$0xff]
        %v509 = vld [vmem:[#allocation11 + $0xd0] sm:$0xff]
        %v510 = vld [vmem:[#allocation11 + $0xd8] sm:$0xff]
        %v511 = vld [vmem:[#allocation11 + $0xe0] sm:$0xff]
        %v512 = vld [vmem:[#allocation11 + $0xe8] sm:$0xff]
        %v513 = vld [vmem:[#allocation11 + $0xf0] sm:$0xff]
        %v514 = vld [vmem:[#allocation11 + $0xf8] sm:$0xff]
        %v515 = vld [vmem:[#allocation13] sm:$0xf]
        %v517 = vperm.slane %v515, 0
        %v518 = vperm.slane %v515, 1
        %v519 = vperm.slane %v515, 2
        %v520 = vperm.slane %v515, 3
        %v557 = vunpack.c.l.b16 %v483
        %v558 = vunpack.c.h.b16 %v483
        %v559 = vunpack.c.l.b16 %v484
        %v560 = vunpack.c.h.b16 %v484
        %v561 = vunpack.c.l.b16 %v485
        %v562 = vunpack.c.h.b16 %v485
        %v563 = vunpack.c.l.b16 %v486
        %v564 = vunpack.c.h.b16 %v486
        %v565 = vunpack.c.l.b16 %v487
        %v566 = vunpack.c.h.b16 %v487
        %v567 = vunpack.c.l.b16 %v488
        %v568 = vunpack.c.h.b16 %v488
        %v569 = vunpack.c.l.b16 %v489
        %v570 = vunpack.c.h.b16 %v489
        %v571 = vunpack.c.l.b16 %v490
        %v572 = vunpack.c.h.b16 %v490
        %v573 = vunpack.c.l.b16 %v491
        %v574 = vunpack.c.h.b16 %v491
        %v575 = vunpack.c.l.b16 %v492
        %v576 = vunpack.c.h.b16 %v492
        %v577 = vunpack.c.l.b16 %v493
        %v578 = vunpack.c.h.b16 %v493
        %v579 = vunpack.c.l.b16 %v494
        %v580 = vunpack.c.h.b16 %v494
        %v581 = vunpack.c.l.b16 %v495
        %v582 = vunpack.c.h.b16 %v495
        %v583 = vunpack.c.l.b16 %v496
        %v584 = vunpack.c.h.b16 %v496
        %v585 = vunpack.c.l.b16 %v497
        %v586 = vunpack.c.h.b16 %v497
        %v587 = vunpack.c.l.b16 %v498
        %v588 = vunpack.c.h.b16 %v498
        %v589 = vunpack.c.l.b16 %v499
        %v590 = vunpack.c.h.b16 %v499
        %v591 = vunpack.c.l.b16 %v500
        %v592 = vunpack.c.h.b16 %v500
        %v593 = vunpack.c.l.b16 %v501
        %v594 = vunpack.c.h.b16 %v501
        %v595 = vunpack.c.l.b16 %v502
        %v596 = vunpack.c.h.b16 %v502
        %v597 = vunpack.c.l.b16 %v503
        %v598 = vunpack.c.h.b16 %v503
        %v599 = vunpack.c.l.b16 %v504
        %v600 = vunpack.c.h.b16 %v504
        %v601 = vunpack.c.l.b16 %v505
        %v602 = vunpack.c.h.b16 %v505
        %v603 = vunpack.c.l.b16 %v506
        %v604 = vunpack.c.h.b16 %v506
        %v605 = vunpack.c.l.b16 %v507
        %v606 = vunpack.c.h.b16 %v507
        %v607 = vunpack.c.l.b16 %v508
        %v608 = vunpack.c.h.b16 %v508
        %v609 = vunpack.c.l.b16 %v509
        %v610 = vunpack.c.h.b16 %v509
        %v611 = vunpack.c.l.b16 %v510
        %v612 = vunpack.c.h.b16 %v510
        %v613 = vunpack.c.l.b16 %v511
        %v614 = vunpack.c.h.b16 %v511
        %v615 = vunpack.c.l.b16 %v512
        %v616 = vunpack.c.h.b16 %v512
        %v617 = vunpack.c.l.b16 %v513
        %v618 = vunpack.c.h.b16 %v513
        %v619 = vunpack.c.l.b16 %v514
        %v620 = vunpack.c.h.b16 %v514
        %v621 = vpack.c.b16 %v561, %v557
        %v622 = vpack.c.b16 %v562, %v558
        %v623 = vpack.c.b16 %v563, %v559
        %v624 = vpack.c.b16 %v564, %v560
        %v625 = vpack.c.b16 %v569, %v565
        %v626 = vpack.c.b16 %v570, %v566
        %v627 = vpack.c.b16 %v571, %v567
        %v628 = vpack.c.b16 %v572, %v568
        %v629 = vpack.c.b16 %v577, %v573
        %v630 = vpack.c.b16 %v578, %v574
        %v631 = vpack.c.b16 %v579, %v575
        %v632 = vpack.c.b16 %v580, %v576
        %v633 = vpack.c.b16 %v585, %v581
        %v634 = vpack.c.b16 %v586, %v582
        %v635 = vpack.c.b16 %v587, %v583
        %v636 = vpack.c.b16 %v588, %v584
        %v637 = vpack.c.b16 %v593, %v589
        %v638 = vpack.c.b16 %v594, %v590
        %v639 = vpack.c.b16 %v595, %v591
        %v640 = vpack.c.b16 %v596, %v592
        %v641 = vpack.c.b16 %v601, %v597
        %v642 = vpack.c.b16 %v602, %v598
        %v643 = vpack.c.b16 %v603, %v599
        %v644 = vpack.c.b16 %v604, %v600
        %v645 = vpack.c.b16 %v609, %v605
        %v646 = vpack.c.b16 %v610, %v606
        %v647 = vpack.c.b16 %v611, %v607
        %v648 = vpack.c.b16 %v612, %v608
        %v649 = vpack.c.b16 %v617, %v613
        %v650 = vpack.c.b16 %v618, %v614
        %v651 = vpack.c.b16 %v619, %v615
        %v652 = vpack.c.b16 %v620, %v616
        %685 = vmatpush.bf16.msra.mxu0 %v649
        %686 = vmatpush.bf16.msra.mxu0 %v645
        %687 = vmatpush.bf16.msra.mxu0 %v641
        %688 = vmatpush.bf16.msra.mxu0 %v637
        %689 = vmatpush.bf16.msra.mxu0 %v633
        %690 = vmatpush.bf16.msra.mxu0 %v629
        %691 = vmatpush.bf16.msra.mxu0 %v625
        %692 = vmatpush.bf16.msra.mxu0 %v621
        %693 = vmatmul.bf16.gmra.mxu0 %v479
        %v694 = vpop.f32.mrf.mxu0
        %v695 = vadd.f32 %v517, %v694
        %v696 = vpop.f32.mrf.mxu0
        %v697 = vadd.f32 %v517, %v696
        %698 = vmatmul.bf16.gmra.mxu0 %v480
        %v699 = vpop.f32.mrf.mxu0
        %v700 = vadd.f32 %v517, %v699
        %v701 = vpop.f32.mrf.mxu0
        %v702 = vadd.f32 %v517, %v701
        %703 = vmatmul.bf16.gmra.mxu0 %v481
        %v704 = vpop.f32.mrf.mxu0
        %v705 = vadd.f32 %v517, %v704
        %v706 = vpop.f32.mrf.mxu0
        %v707 = vadd.f32 %v517, %v706
        %708 = vmatmul.bf16.gmra.mxu0 %v482
        %v709 = vpop.f32.mrf.mxu0
        %v710 = vadd.f32 %v517, %v709
        %v711 = vpop.f32.mrf.mxu0
        %v712 = vadd.f32 %v517, %v711
        %713 = vdwg.mxu0
        %714 = vmatpush.bf16.msra.mxu0 %v650
        %715 = vmatpush.bf16.msra.mxu0 %v646
        %716 = vmatpush.bf16.msra.mxu0 %v642
        %717 = vmatpush.bf16.msra.mxu0 %v638
        %718 = vmatpush.bf16.msra.mxu0 %v634
        %719 = vmatpush.bf16.msra.mxu0 %v630
        %720 = vmatpush.bf16.msra.mxu0 %v626
        %721 = vmatpush.bf16.msra.mxu0 %v622
        %722 = vmatmul.bf16.gmra.mxu0 %v479
        %v723 = vpop.f32.mrf.mxu0
        %v724 = vadd.f32 %v518, %v723
        %v725 = vpop.f32.mrf.mxu0
        %v726 = vadd.f32 %v518, %v725
        %727 = vmatmul.bf16.gmra.mxu0 %v480
        %v728 = vpop.f32.mrf.mxu0
        %v729 = vadd.f32 %v518, %v728
        %v730 = vpop.f32.mrf.mxu0
        %v731 = vadd.f32 %v518, %v730
        %732 = vmatmul.bf16.gmra.mxu0 %v481
        %v733 = vpop.f32.mrf.mxu0
        %v734 = vadd.f32 %v518, %v733
        %v735 = vpop.f32.mrf.mxu0
        %v736 = vadd.f32 %v518, %v735
        %737 = vmatmul.bf16.gmra.mxu0 %v482
        %v738 = vpop.f32.mrf.mxu0
        %v739 = vadd.f32 %v518, %v738
        %v740 = vpop.f32.mrf.mxu0
        %v741 = vadd.f32 %v518, %v740
        %742 = vdwg.mxu0
        %743 = vmatpush.bf16.msra.mxu0 %v651
        %744 = vmatpush.bf16.msra.mxu0 %v647
        %745 = vmatpush.bf16.msra.mxu0 %v643
        %746 = vmatpush.bf16.msra.mxu0 %v639
        %747 = vmatpush.bf16.msra.mxu0 %v635
        %748 = vmatpush.bf16.msra.mxu0 %v631
        %749 = vmatpush.bf16.msra.mxu0 %v627
        %750 = vmatpush.bf16.msra.mxu0 %v623
        %751 = vmatmul.bf16.gmra.mxu0 %v479
        %v752 = vpop.f32.mrf.mxu0
        %v753 = vadd.f32 %v519, %v752
        %v754 = vpop.f32.mrf.mxu0
        %v755 = vadd.f32 %v519, %v754
        %756 = vmatmul.bf16.gmra.mxu0 %v480
        %v757 = vpop.f32.mrf.mxu0
        %v758 = vadd.f32 %v519, %v757
        %v759 = vpop.f32.mrf.mxu0
        %v760 = vadd.f32 %v519, %v759
        %761 = vmatmul.bf16.gmra.mxu0 %v481
        %v762 = vpop.f32.mrf.mxu0
        %v763 = vadd.f32 %v519, %v762
        %v764 = vpop.f32.mrf.mxu0
        %v765 = vadd.f32 %v519, %v764
        %766 = vmatmul.bf16.gmra.mxu0 %v482
        %v767 = vpop.f32.mrf.mxu0
        %v768 = vadd.f32 %v519, %v767
        %v769 = vpop.f32.mrf.mxu0
        %v770 = vadd.f32 %v519, %v769
        %771 = vdwg.mxu0
        %772 = vmatpush.bf16.msra.mxu0 %v652
        %773 = vmatpush.bf16.msra.mxu0 %v648
        %774 = vmatpush.bf16.msra.mxu0 %v644
        %775 = vmatpush.bf16.msra.mxu0 %v640
        %776 = vmatpush.bf16.msra.mxu0 %v636
        %777 = vmatpush.bf16.msra.mxu0 %v632
        %778 = vmatpush.bf16.msra.mxu0 %v628
        %779 = vmatpush.bf16.msra.mxu0 %v624
        %780 = vmatmul.bf16.gmra.mxu0 %v479
        %v781 = vpop.f32.mrf.mxu0
        %v782 = vadd.f32 %v520, %v781
        %v783 = vpop.f32.mrf.mxu0
        %v784 = vadd.f32 %v520, %v783
        %785 = vmatmul.bf16.gmra.mxu0 %v480
        %v786 = vpop.f32.mrf.mxu0
        %v787 = vadd.f32 %v520, %v786
        %v788 = vpop.f32.mrf.mxu0
        %v789 = vadd.f32 %v520, %v788
        %790 = vmatmul.bf16.gmra.mxu0 %v481
        %v791 = vpop.f32.mrf.mxu0
        %v792 = vadd.f32 %v520, %v791
        %v793 = vpop.f32.mrf.mxu0
        %v794 = vadd.f32 %v520, %v793
        %795 = vmatmul.bf16.gmra.mxu0 %v482
        %v796 = vpop.f32.mrf.mxu0
        %v797 = vadd.f32 %v520, %v796
        %v798 = vpop.f32.mrf.mxu0
        %v799 = vadd.f32 %v520, %v798
        %800 = vdwg.mxu0
        %801 = vst [vmem:[#allocation7] sm:$0xff] %v695
        %802 = vst [vmem:[#allocation7 + $0x8] sm:$0xff] %v724
        %803 = vst [vmem:[#allocation7 + $0x10] sm:$0xff] %v753
        %804 = vst [vmem:[#allocation7 + $0x18] sm:$0xff] %v782
        %805 = vst [vmem:[#allocation7 + $0x20] sm:$0xff] %v697
        %806 = vst [vmem:[#allocation7 + $0x28] sm:$0xff] %v726
        %807 = vst [vmem:[#allocation7 + $0x30] sm:$0xff] %v755
        %808 = vst [vmem:[#allocation7 + $0x38] sm:$0xff] %v784
        %809 = vst [vmem:[#allocation7 + $0x40] sm:$0xff] %v700
        %810 = vst [vmem:[#allocation7 + $0x48] sm:$0xff] %v729
        %811 = vst [vmem:[#allocation7 + $0x50] sm:$0xff] %v758
        %812 = vst [vmem:[#allocation7 + $0x58] sm:$0xff] %v787
        %813 = vst [vmem:[#allocation7 + $0x60] sm:$0xff] %v702
        %814 = vst [vmem:[#allocation7 + $0x68] sm:$0xff] %v731
        %815 = vst [vmem:[#allocation7 + $0x70] sm:$0xff] %v760
        %816 = vst [vmem:[#allocation7 + $0x78] sm:$0xff] %v789
        %817 = vst [vmem:[#allocation7 + $0x80] sm:$0xff] %v705
        %818 = vst [vmem:[#allocation7 + $0x88] sm:$0xff] %v734
        %819 = vst [vmem:[#allocation7 + $0x90] sm:$0xff] %v763
        %820 = vst [vmem:[#allocation7 + $0x98] sm:$0xff] %v792
        %821 = vst [vmem:[#allocation7 + $0xa0] sm:$0xff] %v707
        %822 = vst [vmem:[#allocation7 + $0xa8] sm:$0xff] %v736
        %823 = vst [vmem:[#allocation7 + $0xb0] sm:$0xff] %v765
        %824 = vst [vmem:[#allocation7 + $0xb8] sm:$0xff] %v794
        %825 = vst [vmem:[#allocation7 + $0xc0] sm:$0xff] %v710
        %826 = vst [vmem:[#allocation7 + $0xc8] sm:$0xff] %v739
        %827 = vst [vmem:[#allocation7 + $0xd0] sm:$0xff] %v768
        %828 = vst [vmem:[#allocation7 + $0xd8] sm:$0xff] %v797
        %829 = vst [vmem:[#allocation7 + $0xe0] sm:$0xff] %v712
        %830 = vst [vmem:[#allocation7 + $0xe8] sm:$0xff] %v741
        %831 = vst [vmem:[#allocation7 + $0xf0] sm:$0xff] %v770
        %832 = vst [vmem:[#allocation7 + $0xf8] sm:$0xff] %v799
        %v833 = vld [vmem:[#allocation14] sm:$0xff]
        %v834 = vld [vmem:[#allocation14 + $0x8] sm:$0xff]
        %v835 = vld [vmem:[#allocation14 + $0x10] sm:$0xff]
        %v836 = vld [vmem:[#allocation14 + $0x18] sm:$0xff]
        %v837 = vld [vmem:[#allocation14 + $0x20] sm:$0xff]
        %v838 = vld [vmem:[#allocation14 + $0x28] sm:$0xff]
        %v839 = vld [vmem:[#allocation14 + $0x30] sm:$0xff]
        %v840 = vld [vmem:[#allocation14 + $0x38] sm:$0xff]
        %v841 = vld [vmem:[#allocation14 + $0x40] sm:$0xff]
        %v842 = vld [vmem:[#allocation14 + $0x48] sm:$0xff]
        %v843 = vld [vmem:[#allocation14 + $0x50] sm:$0xff]
        %v844 = vld [vmem:[#allocation14 + $0x58] sm:$0xff]
        %v845 = vld [vmem:[#allocation14 + $0x60] sm:$0xff]
        %v846 = vld [vmem:[#allocation14 + $0x68] sm:$0xff]
        %v847 = vld [vmem:[#allocation14 + $0x70] sm:$0xff]
        %v848 = vld [vmem:[#allocation14 + $0x78] sm:$0xff]
        %v849 = vld [vmem:[#allocation14 + $0x80] sm:$0xff]
        %v850 = vld [vmem:[#allocation14 + $0x88] sm:$0xff]
        %v851 = vld [vmem:[#allocation14 + $0x90] sm:$0xff]
        %v852 = vld [vmem:[#allocation14 + $0x98] sm:$0xff]
        %v853 = vld [vmem:[#allocation14 + $0xa0] sm:$0xff]
        %v854 = vld [vmem:[#allocation14 + $0xa8] sm:$0xff]
        %v855 = vld [vmem:[#allocation14 + $0xb0] sm:$0xff]
        %v856 = vld [vmem:[#allocation14 + $0xb8] sm:$0xff]
        %v857 = vld [vmem:[#allocation14 + $0xc0] sm:$0xff]
        %v858 = vld [vmem:[#allocation14 + $0xc8] sm:$0xff]
        %v859 = vld [vmem:[#allocation14 + $0xd0] sm:$0xff]
        %v860 = vld [vmem:[#allocation14 + $0xd8] sm:$0xff]
        %v861 = vld [vmem:[#allocation14 + $0xe0] sm:$0xff]
        %v862 = vld [vmem:[#allocation14 + $0xe8] sm:$0xff]
        %v863 = vld [vmem:[#allocation14 + $0xf0] sm:$0xff]
        %v864 = vld [vmem:[#allocation14 + $0xf8] sm:$0xff]
        %v865 = vld [vmem:[#allocation14 + $0x100] sm:$0xff]
        %v866 = vld [vmem:[#allocation14 + $0x108] sm:$0xff]
        %v867 = vld [vmem:[#allocation14 + $0x110] sm:$0xff]
        %v868 = vld [vmem:[#allocation14 + $0x118] sm:$0xff]
        %v869 = vld [vmem:[#allocation14 + $0x120] sm:$0xff]
        %v870 = vld [vmem:[#allocation14 + $0x128] sm:$0xff]
        %v871 = vld [vmem:[#allocation14 + $0x130] sm:$0xff]
        %v872 = vld [vmem:[#allocation14 + $0x138] sm:$0xff]
        %v873 = vld [vmem:[#allocation14 + $0x140] sm:$0xff]
        %v874 = vld [vmem:[#allocation14 + $0x148] sm:$0xff]
        %v875 = vld [vmem:[#allocation14 + $0x150] sm:$0xff]
        %v876 = vld [vmem:[#allocation14 + $0x158] sm:$0xff]
        %v877 = vld [vmem:[#allocation14 + $0x160] sm:$0xff]
        %v878 = vld [vmem:[#allocation14 + $0x168] sm:$0xff]
        %v879 = vld [vmem:[#allocation14 + $0x170] sm:$0xff]
        %v880 = vld [vmem:[#allocation14 + $0x178] sm:$0xff]
        %v881 = vld [vmem:[#allocation14 + $0x180] sm:$0xff]
        %v882 = vld [vmem:[#allocation14 + $0x188] sm:$0xff]
        %v883 = vld [vmem:[#allocation14 + $0x190] sm:$0xff]
        %v884 = vld [vmem:[#allocation14 + $0x198] sm:$0xff]
        %v885 = vld [vmem:[#allocation14 + $0x1a0] sm:$0xff]
        %v886 = vld [vmem:[#allocation14 + $0x1a8] sm:$0xff]
        %v887 = vld [vmem:[#allocation14 + $0x1b0] sm:$0xff]
        %v888 = vld [vmem:[#allocation14 + $0x1b8] sm:$0xff]
        %v889 = vld [vmem:[#allocation14 + $0x1c0] sm:$0xff]
        %v890 = vld [vmem:[#allocation14 + $0x1c8] sm:$0xff]
        %v891 = vld [vmem:[#allocation14 + $0x1d0] sm:$0xff]
        %v892 = vld [vmem:[#allocation14 + $0x1d8] sm:$0xff]
        %v893 = vld [vmem:[#allocation14 + $0x1e0] sm:$0xff]
        %v894 = vld [vmem:[#allocation14 + $0x1e8] sm:$0xff]
        %v895 = vld [vmem:[#allocation14 + $0x1f0] sm:$0xff]
        %v896 = vld [vmem:[#allocation14 + $0x1f8] sm:$0xff]
        %v897 = vld [vmem:[#allocation16] sm:$0xff]
        %v898 = vld [vmem:[#allocation16 + $0x8] sm:$0xff]
        %v899 = vld [vmem:[#allocation16 + $0x10] sm:$0xff]
        %v900 = vld [vmem:[#allocation16 + $0x18] sm:$0xff]
        %v901 = vld [vmem:[#allocation16 + $0x20] sm:$0xff]
        %v902 = vld [vmem:[#allocation16 + $0x28] sm:$0xff]
        %v903 = vld [vmem:[#allocation16 + $0x30] sm:$0xff]
        %v904 = vld [vmem:[#allocation16 + $0x38] sm:$0xff]
        %v905 = vld [vmem:[#allocation16 + $0x40] sm:$0xff]
        %v906 = vld [vmem:[#allocation16 + $0x48] sm:$0xff]
        %v907 = vld [vmem:[#allocation16 + $0x50] sm:$0xff]
        %v908 = vld [vmem:[#allocation16 + $0x58] sm:$0xff]
        %v909 = vld [vmem:[#allocation16 + $0x60] sm:$0xff]
        %v910 = vld [vmem:[#allocation16 + $0x68] sm:$0xff]
        %v911 = vld [vmem:[#allocation16 + $0x70] sm:$0xff]
        %v912 = vld [vmem:[#allocation16 + $0x78] sm:$0xff]
        %v913 = vld [vmem:[#allocation16 + $0x80] sm:$0xff]
        %v914 = vld [vmem:[#allocation16 + $0x88] sm:$0xff]
        %v915 = vld [vmem:[#allocation16 + $0x90] sm:$0xff]
        %v916 = vld [vmem:[#allocation16 + $0x98] sm:$0xff]
        %v917 = vld [vmem:[#allocation16 + $0xa0] sm:$0xff]
        %v918 = vld [vmem:[#allocation16 + $0xa8] sm:$0xff]
        %v919 = vld [vmem:[#allocation16 + $0xb0] sm:$0xff]
        %v920 = vld [vmem:[#allocation16 + $0xb8] sm:$0xff]
        %v921 = vld [vmem:[#allocation16 + $0xc0] sm:$0xff]
        %v922 = vld [vmem:[#allocation16 + $0xc8] sm:$0xff]
        %v923 = vld [vmem:[#allocation16 + $0xd0] sm:$0xff]
        %v924 = vld [vmem:[#allocation16 + $0xd8] sm:$0xff]
        %v925 = vld [vmem:[#allocation16 + $0xe0] sm:$0xff]
        %v926 = vld [vmem:[#allocation16 + $0xe8] sm:$0xff]
        %v927 = vld [vmem:[#allocation16 + $0xf0] sm:$0xff]
        %v928 = vld [vmem:[#allocation16 + $0xf8] sm:$0xff]
        %v929 = vld [vmem:[#allocation17] sm:$0xf]
        %v930 = vld [vmem:[#allocation17 + $0x4] sm:$0xf]
        %v931 = vld [vmem:[#allocation17 + $0x8] sm:$0xf]
        %v932 = vld [vmem:[#allocation17 + $0xc] sm:$0xf]
        %v933 = vld [vmem:[#allocation17 + $0x10] sm:$0xf]
        %v934 = vld [vmem:[#allocation17 + $0x14] sm:$0xf]
        %v935 = vld [vmem:[#allocation17 + $0x18] sm:$0xf]
        %v936 = vld [vmem:[#allocation17 + $0x1c] sm:$0xf]
        %v937 = vld [vmem:[#allocation17 + $0x20] sm:$0xf]
        %v938 = vld [vmem:[#allocation17 + $0x24] sm:$0xf]
        %v939 = vld [vmem:[#allocation17 + $0x28] sm:$0xf]
        %v940 = vld [vmem:[#allocation17 + $0x2c] sm:$0xf]
        %v941 = vld [vmem:[#allocation17 + $0x30] sm:$0xf]
        %v942 = vld [vmem:[#allocation17 + $0x34] sm:$0xf]
        %v943 = vld [vmem:[#allocation17 + $0x38] sm:$0xf]
        %v944 = vld [vmem:[#allocation17 + $0x3c] sm:$0xf]
        %v945 = vld [vmem:[%s5] sm:$0xf]
        %v947 = vperm.slane %v945, 0
        %v948 = vperm.slane %v945, 1
        %v949 = vperm.slane %v945, 2
        %v950 = vperm.slane %v945, 3
        %v955 = vld [vmem:[%s7] sm:$0x1]
        %v957 = vperm.slane %v955, 0
        %v959 = vld [vmem:[#allocation3] sm:$0xff]
        %v960 = vld [vmem:[#allocation4] sm:$0xff]
        %v961 = vld [vmem:[#allocation5] sm:$0xff]
        %v962 = vld [vmem:[#allocation6] sm:$0xff]
        %v963 = vld [vmem:[#allocation6 + $0x8] sm:$0xff]
        %v964 = vld [vmem:[#allocation6 + $0x10] sm:$0xff]
        %v965 = vld [vmem:[#allocation6 + $0x18] sm:$0xff]
        %v966 = vpack.c.bf16 %v960, %v960
        %v999 = vunpack.c.l.b16 %v897
        %v1000 = vunpack.c.h.b16 %v897
        %v1001 = vunpack.c.l.b16 %v898
        %v1002 = vunpack.c.h.b16 %v898
        %v1003 = vunpack.c.l.b16 %v899
        %v1004 = vunpack.c.h.b16 %v899
        %v1005 = vunpack.c.l.b16 %v900
        %v1006 = vunpack.c.h.b16 %v900
        %v1007 = vunpack.c.l.b16 %v901
        %v1008 = vunpack.c.h.b16 %v901
        %v1009 = vunpack.c.l.b16 %v902
        %v1010 = vunpack.c.h.b16 %v902
        %v1011 = vunpack.c.l.b16 %v903
        %v1012 = vunpack.c.h.b16 %v903
        %v1013 = vunpack.c.l.b16 %v904
        %v1014 = vunpack.c.h.b16 %v904
        %v1015 = vunpack.c.l.b16 %v905
        %v1016 = vunpack.c.h.b16 %v905
        %v1017 = vunpack.c.l.b16 %v906
        %v1018 = vunpack.c.h.b16 %v906
        %v1019 = vunpack.c.l.b16 %v907
        %v1020 = vunpack.c.h.b16 %v907
        %v1021 = vunpack.c.l.b16 %v908
        %v1022 = vunpack.c.h.b16 %v908
        %v1023 = vunpack.c.l.b16 %v909
        %v1024 = vunpack.c.h.b16 %v909
        %v1025 = vunpack.c.l.b16 %v910
        %v1026 = vunpack.c.h.b16 %v910
        %v1027 = vunpack.c.l.b16 %v911
        %v1028 = vunpack.c.h.b16 %v911
        %v1029 = vunpack.c.l.b16 %v912
        %v1030 = vunpack.c.h.b16 %v912
        %v1031 = vunpack.c.l.b16 %v913
        %v1032 = vunpack.c.h.b16 %v913
        %v1033 = vunpack.c.l.b16 %v914
        %v1034 = vunpack.c.h.b16 %v914
        %v1035 = vunpack.c.l.b16 %v915
        %v1036 = vunpack.c.h.b16 %v915
        %v1037 = vunpack.c.l.b16 %v916
        %v1038 = vunpack.c.h.b16 %v916
        %v1039 = vunpack.c.l.b16 %v917
        %v1040 = vunpack.c.h.b16 %v917
        %v1041 = vunpack.c.l.b16 %v918
        %v1042 = vunpack.c.h.b16 %v918
        %v1043 = vunpack.c.l.b16 %v919
        %v1044 = vunpack.c.h.b16 %v919
        %v1045 = vunpack.c.l.b16 %v920
        %v1046 = vunpack.c.h.b16 %v920
        %v1047 = vunpack.c.l.b16 %v921
        %v1048 = vunpack.c.h.b16 %v921
        %v1049 = vunpack.c.l.b16 %v922
        %v1050 = vunpack.c.h.b16 %v922
        %v1051 = vunpack.c.l.b16 %v923
        %v1052 = vunpack.c.h.b16 %v923
        %v1053 = vunpack.c.l.b16 %v924
        %v1054 = vunpack.c.h.b16 %v924
        %v1055 = vunpack.c.l.b16 %v925
        %v1056 = vunpack.c.h.b16 %v925
        %v1057 = vunpack.c.l.b16 %v926
        %v1058 = vunpack.c.h.b16 %v926
        %v1059 = vunpack.c.l.b16 %v927
        %v1060 = vunpack.c.h.b16 %v927
        %v1061 = vunpack.c.l.b16 %v928
        %v1062 = vunpack.c.h.b16 %v928
        %v1063 = vpack.c.b16 %v1003, %v999
        %v1064 = vpack.c.b16 %v1004, %v1000
        %v1065 = vpack.c.b16 %v1005, %v1001
        %v1066 = vpack.c.b16 %v1006, %v1002
        %v1067 = vpack.c.b16 %v1011, %v1007
        %v1068 = vpack.c.b16 %v1012, %v1008
        %v1069 = vpack.c.b16 %v1013, %v1009
        %v1070 = vpack.c.b16 %v1014, %v1010
        %v1071 = vpack.c.b16 %v1019, %v1015
        %v1072 = vpack.c.b16 %v1020, %v1016
        %v1073 = vpack.c.b16 %v1021, %v1017
        %v1074 = vpack.c.b16 %v1022, %v1018
        %v1075 = vpack.c.b16 %v1027, %v1023
        %v1076 = vpack.c.b16 %v1028, %v1024
        %v1077 = vpack.c.b16 %v1029, %v1025
        %v1078 = vpack.c.b16 %v1030, %v1026
        %v1079 = vpack.c.b16 %v1035, %v1031
        %v1080 = vpack.c.b16 %v1036, %v1032
        %v1081 = vpack.c.b16 %v1037, %v1033
        %v1082 = vpack.c.b16 %v1038, %v1034
        %v1083 = vpack.c.b16 %v1043, %v1039
        %v1084 = vpack.c.b16 %v1044, %v1040
        %v1085 = vpack.c.b16 %v1045, %v1041
        %v1086 = vpack.c.b16 %v1046, %v1042
        %v1087 = vpack.c.b16 %v1051, %v1047
        %v1088 = vpack.c.b16 %v1052, %v1048
        %v1089 = vpack.c.b16 %v1053, %v1049
        %v1090 = vpack.c.b16 %v1054, %v1050
        %v1091 = vpack.c.b16 %v1059, %v1055
        %v1092 = vpack.c.b16 %v1060, %v1056
        %v1093 = vpack.c.b16 %v1061, %v1057
        %v1094 = vpack.c.b16 %v1062, %v1058
        %1127 = vmatpush.bf16.msra.mxu0 %v1091
        %1128 = vmatpush.bf16.msra.mxu0 %v1087
        %1129 = vmatpush.bf16.msra.mxu0 %v1083
        %1130 = vmatpush.bf16.msra.mxu0 %v1079
        %1131 = vmatpush.bf16.msra.mxu0 %v1075
        %1132 = vmatpush.bf16.msra.mxu0 %v1071
        %1133 = vmatpush.bf16.msra.mxu0 %v1067
        %1134 = vmatpush.bf16.msra.mxu0 %v1063
        %1135 = vmatmul.bf16.gmra.mxu0 %v966
        %v1136 = vpop.f32.mrf.mxu0
        %v1137 = vadd.f32 0.0, %v1136
        %v1138 = vpop.f32.mrf.mxu0
        %1139 = vdwg.mxu0
        %1140 = vmatpush.bf16.msra.mxu0 %v1092
        %1141 = vmatpush.bf16.msra.mxu0 %v1088
        %1142 = vmatpush.bf16.msra.mxu0 %v1084
        %1143 = vmatpush.bf16.msra.mxu0 %v1080
        %1144 = vmatpush.bf16.msra.mxu0 %v1076
        %1145 = vmatpush.bf16.msra.mxu0 %v1072
        %1146 = vmatpush.bf16.msra.mxu0 %v1068
        %1147 = vmatpush.bf16.msra.mxu0 %v1064
        %1148 = vmatmul.bf16.gmra.mxu0 %v966
        %v1149 = vpop.f32.mrf.mxu0
        %v1150 = vadd.f32 0.0, %v1149
        %v1151 = vpop.f32.mrf.mxu0
        %1152 = vdwg.mxu0
        %1153 = vmatpush.bf16.msra.mxu0 %v1093
        %1154 = vmatpush.bf16.msra.mxu0 %v1089
        %1155 = vmatpush.bf16.msra.mxu0 %v1085
        %1156 = vmatpush.bf16.msra.mxu0 %v1081
        %1157 = vmatpush.bf16.msra.mxu0 %v1077
        %1158 = vmatpush.bf16.msra.mxu0 %v1073
        %1159 = vmatpush.bf16.msra.mxu0 %v1069
        %1160 = vmatpush.bf16.msra.mxu0 %v1065
        %1161 = vmatmul.bf16.gmra.mxu0 %v966
        %v1162 = vpop.f32.mrf.mxu0
        %v1163 = vadd.f32 0.0, %v1162
        %v1164 = vpop.f32.mrf.mxu0
        %1165 = vdwg.mxu0
        %1166 = vmatpush.bf16.msra.mxu0 %v1094
        %1167 = vmatpush.bf16.msra.mxu0 %v1090
        %1168 = vmatpush.bf16.msra.mxu0 %v1086
        %1169 = vmatpush.bf16.msra.mxu0 %v1082
        %1170 = vmatpush.bf16.msra.mxu0 %v1078
        %1171 = vmatpush.bf16.msra.mxu0 %v1074
        %1172 = vmatpush.bf16.msra.mxu0 %v1070
        %1173 = vmatpush.bf16.msra.mxu0 %v1066
        %1174 = vmatmul.bf16.gmra.mxu0 %v966
        %v1175 = vpop.f32.mrf.mxu0
        %v1176 = vadd.f32 0.0, %v1175
        %v1177 = vpop.f32.mrf.mxu0
        %1178 = vdwg.mxu0
        %v1179 = vld [vmem:[#allocation7] sm:$0xff]
        %v1180 = vld [vmem:[#allocation7 + $0x8] sm:$0xff]
        %v1181 = vld [vmem:[#allocation7 + $0x10] sm:$0xff]
        %v1182 = vld [vmem:[#allocation7 + $0x18] sm:$0xff]
        %v1183 = vadd.f32 %v1179, %v962
        %v1184 = vadd.f32 %v1180, %v963
        %v1185 = vadd.f32 %v1181, %v964
        %v1186 = vadd.f32 %v1182, %v965
        %v1187 = vxor.u32 %v1183, 2147483648
        %v1188 = vmul.f32 %v1187, 1.442695
        %v1189 = vpow.pop %v1188
        %v1190 = vadd.f32 %v1189, 1.0
        %v1191 = vrcp.pop %v1190
        %v1192 = vmul.f32 %v1190, %v1191
        %v1193 = vsub.f32 1.0, %v1192
        %v1194 = vmul.f32 %v1191, %v1193
        %v1195 = vadd.f32 %v1191, %v1194
        %vm1196 = vweird.f32 %v1190
        %vm1197 = vweird.f32 %v1191
        %vm1198 = vmor %vm1196, %vm1197
        %v1199 = vsel %vm1198, %v1191, %v1195
        %v1200 = vand.u32 2147483647, %v1190
        %vm1201 = vcmp.eq.f32.partialorder %v1200, 8.507059e+37
        %v1202 = vand.u32 %v1190, 2147483648
        %v1203 = vor.u32 1.1754944e-38, %v1202
        %v1204 = vsel %vm1201, %v1203, %v1199
        %v1205 = vmul.f32 1.0, %v1204
        %v1206 = vxor.u32 %v1184, 2147483648
        %v1207 = vmul.f32 %v1206, 1.442695
        %v1208 = vpow.pop %v1207
        %v1209 = vadd.f32 %v1208, 1.0
        %v1210 = vrcp.pop %v1209
        %v1211 = vmul.f32 %v1209, %v1210
        %v1212 = vsub.f32 1.0, %v1211
        %v1213 = vmul.f32 %v1210, %v1212
        %v1214 = vadd.f32 %v1210, %v1213
        %vm1215 = vweird.f32 %v1209
        %vm1216 = vweird.f32 %v1210
        %vm1217 = vmor %vm1215, %vm1216
        %v1218 = vsel %vm1217, %v1210, %v1214
        %v1219 = vand.u32 2147483647, %v1209
        %vm1220 = vcmp.eq.f32.partialorder %v1219, 8.507059e+37
        %v1221 = vand.u32 %v1209, 2147483648
        %v1222 = vor.u32 1.1754944e-38, %v1221
        %v1223 = vsel %vm1220, %v1222, %v1218
        %v1224 = vmul.f32 1.0, %v1223
        %v1225 = vtanh.pop %v1185
        %v1226 = vxor.u32 %v1186, 2147483648
        %v1227 = vmul.f32 %v1226, 1.442695
        %v1228 = vpow.pop %v1227
        %v1229 = vadd.f32 %v1228, 1.0
        %v1230 = vrcp.pop %v1229
        %v1231 = vmul.f32 %v1229, %v1230
        %v1232 = vsub.f32 1.0, %v1231
        %v1233 = vmul.f32 %v1230, %v1232
        %v1234 = vadd.f32 %v1230, %v1233
        %vm1235 = vweird.f32 %v1229
        %vm1236 = vweird.f32 %v1230
        %vm1237 = vmor %vm1235, %vm1236
        %v1238 = vsel %vm1237, %v1230, %v1234
        %v1239 = vand.u32 2147483647, %v1229
        %vm1240 = vcmp.eq.f32.partialorder %v1239, 8.507059e+37
        %v1241 = vand.u32 %v1229, 2147483648
        %v1242 = vor.u32 1.1754944e-38, %v1241
        %v1243 = vsel %vm1240, %v1242, %v1238
        %v1244 = vmul.f32 1.0, %v1243
        %v1245 = vmul.f32 %v1224, %v959
        %v1246 = vmul.f32 %v1205, %v1225
        %v1247 = vadd.f32 %v1245, %v1246
        %v1248 = vtanh.pop %v1247
        %v1249 = vmul.f32 %v1244, %v1248
        %v1250 = vpack.c.bf16 %v1249, %v1249
        %v1315 = vunpack.c.l.b16 %v833
        %v1316 = vunpack.c.h.b16 %v833
        %v1317 = vunpack.c.l.b16 %v834
        %v1318 = vunpack.c.h.b16 %v834
        %v1319 = vunpack.c.l.b16 %v835
        %v1320 = vunpack.c.h.b16 %v835
        %v1321 = vunpack.c.l.b16 %v836
        %v1322 = vunpack.c.h.b16 %v836
        %v1323 = vunpack.c.l.b16 %v837
        %v1324 = vunpack.c.h.b16 %v837
        %v1325 = vunpack.c.l.b16 %v838
        %v1326 = vunpack.c.h.b16 %v838
        %v1327 = vunpack.c.l.b16 %v839
        %v1328 = vunpack.c.h.b16 %v839
        %v1329 = vunpack.c.l.b16 %v840
        %v1330 = vunpack.c.h.b16 %v840
        %v1331 = vunpack.c.l.b16 %v841
        %v1332 = vunpack.c.h.b16 %v841
        %v1333 = vunpack.c.l.b16 %v842
        %v1334 = vunpack.c.h.b16 %v842
        %v1335 = vunpack.c.l.b16 %v843
        %v1336 = vunpack.c.h.b16 %v843
        %v1337 = vunpack.c.l.b16 %v844
        %v1338 = vunpack.c.h.b16 %v844
        %v1339 = vunpack.c.l.b16 %v845
        %v1340 = vunpack.c.h.b16 %v845
        %v1341 = vunpack.c.l.b16 %v846
        %v1342 = vunpack.c.h.b16 %v846
        %v1343 = vunpack.c.l.b16 %v847
        %v1344 = vunpack.c.h.b16 %v847
        %v1345 = vunpack.c.l.b16 %v848
        %v1346 = vunpack.c.h.b16 %v848
        %v1347 = vunpack.c.l.b16 %v849
        %v1348 = vunpack.c.h.b16 %v849
        %v1349 = vunpack.c.l.b16 %v850
        %v1350 = vunpack.c.h.b16 %v850
        %v1351 = vunpack.c.l.b16 %v851
        %v1352 = vunpack.c.h.b16 %v851
        %v1353 = vunpack.c.l.b16 %v852
        %v1354 = vunpack.c.h.b16 %v852
        %v1355 = vunpack.c.l.b16 %v853
        %v1356 = vunpack.c.h.b16 %v853
        %v1357 = vunpack.c.l.b16 %v854
        %v1358 = vunpack.c.h.b16 %v854
        %v1359 = vunpack.c.l.b16 %v855
        %v1360 = vunpack.c.h.b16 %v855
        %v1361 = vunpack.c.l.b16 %v856
        %v1362 = vunpack.c.h.b16 %v856
        %v1363 = vunpack.c.l.b16 %v857
        %v1364 = vunpack.c.h.b16 %v857
        %v1365 = vunpack.c.l.b16 %v858
        %v1366 = vunpack.c.h.b16 %v858
        %v1367 = vunpack.c.l.b16 %v859
        %v1368 = vunpack.c.h.b16 %v859
        %v1369 = vunpack.c.l.b16 %v860
        %v1370 = vunpack.c.h.b16 %v860
        %v1371 = vunpack.c.l.b16 %v861
        %v1372 = vunpack.c.h.b16 %v861
        %v1373 = vunpack.c.l.b16 %v862
        %v1374 = vunpack.c.h.b16 %v862
        %v1375 = vunpack.c.l.b16 %v863
        %v1376 = vunpack.c.h.b16 %v863
        %v1377 = vunpack.c.l.b16 %v864
        %v1378 = vunpack.c.h.b16 %v864
        %v1379 = vunpack.c.l.b16 %v865
        %v1380 = vunpack.c.h.b16 %v865
        %v1381 = vunpack.c.l.b16 %v866
        %v1382 = vunpack.c.h.b16 %v866
        %v1383 = vunpack.c.l.b16 %v867
        %v1384 = vunpack.c.h.b16 %v867
        %v1385 = vunpack.c.l.b16 %v868
        %v1386 = vunpack.c.h.b16 %v868
        %v1387 = vunpack.c.l.b16 %v869
        %v1388 = vunpack.c.h.b16 %v869
        %v1389 = vunpack.c.l.b16 %v870
        %v1390 = vunpack.c.h.b16 %v870
        %v1391 = vunpack.c.l.b16 %v871
        %v1392 = vunpack.c.h.b16 %v871
        %v1393 = vunpack.c.l.b16 %v872
        %v1394 = vunpack.c.h.b16 %v872
        %v1395 = vunpack.c.l.b16 %v873
        %v1396 = vunpack.c.h.b16 %v873
        %v1397 = vunpack.c.l.b16 %v874
        %v1398 = vunpack.c.h.b16 %v874
        %v1399 = vunpack.c.l.b16 %v875
        %v1400 = vunpack.c.h.b16 %v875
        %v1401 = vunpack.c.l.b16 %v876
        %v1402 = vunpack.c.h.b16 %v876
        %v1403 = vunpack.c.l.b16 %v877
        %v1404 = vunpack.c.h.b16 %v877
        %v1405 = vunpack.c.l.b16 %v878
        %v1406 = vunpack.c.h.b16 %v878
        %v1407 = vunpack.c.l.b16 %v879
        %v1408 = vunpack.c.h.b16 %v879
        %v1409 = vunpack.c.l.b16 %v880
        %v1410 = vunpack.c.h.b16 %v880
        %v1411 = vunpack.c.l.b16 %v881
        %v1412 = vunpack.c.h.b16 %v881
        %v1413 = vunpack.c.l.b16 %v882
        %v1414 = vunpack.c.h.b16 %v882
        %v1415 = vunpack.c.l.b16 %v883
        %v1416 = vunpack.c.h.b16 %v883
        %v1417 = vunpack.c.l.b16 %v884
        %v1418 = vunpack.c.h.b16 %v884
        %v1419 = vunpack.c.l.b16 %v885
        %v1420 = vunpack.c.h.b16 %v885
        %v1421 = vunpack.c.l.b16 %v886
        %v1422 = vunpack.c.h.b16 %v886
        %v1423 = vunpack.c.l.b16 %v887
        %v1424 = vunpack.c.h.b16 %v887
        %v1425 = vunpack.c.l.b16 %v888
        %v1426 = vunpack.c.h.b16 %v888
        %v1427 = vunpack.c.l.b16 %v889
        %v1428 = vunpack.c.h.b16 %v889
        %v1429 = vunpack.c.l.b16 %v890
        %v1430 = vunpack.c.h.b16 %v890
        %v1431 = vunpack.c.l.b16 %v891
        %v1432 = vunpack.c.h.b16 %v891
        %v1433 = vunpack.c.l.b16 %v892
        %v1434 = vunpack.c.h.b16 %v892
        %v1435 = vunpack.c.l.b16 %v893
        %v1436 = vunpack.c.h.b16 %v893
        %v1437 = vunpack.c.l.b16 %v894
        %v1438 = vunpack.c.h.b16 %v894
        %v1439 = vunpack.c.l.b16 %v895
        %v1440 = vunpack.c.h.b16 %v895
        %v1441 = vunpack.c.l.b16 %v896
        %v1442 = vunpack.c.h.b16 %v896
        %v1443 = vpack.c.b16 %v1323, %v1315
        %v1444 = vpack.c.b16 %v1324, %v1316
        %v1445 = vpack.c.b16 %v1325, %v1317
        %v1446 = vpack.c.b16 %v1326, %v1318
        %v1447 = vpack.c.b16 %v1327, %v1319
        %v1448 = vpack.c.b16 %v1328, %v1320
        %v1449 = vpack.c.b16 %v1329, %v1321
        %v1450 = vpack.c.b16 %v1330, %v1322
        %v1451 = vpack.c.b16 %v1339, %v1331
        %v1452 = vpack.c.b16 %v1340, %v1332
        %v1453 = vpack.c.b16 %v1341, %v1333
        %v1454 = vpack.c.b16 %v1342, %v1334
        %v1455 = vpack.c.b16 %v1343, %v1335
        %v1456 = vpack.c.b16 %v1344, %v1336
        %v1457 = vpack.c.b16 %v1345, %v1337
        %v1458 = vpack.c.b16 %v1346, %v1338
        %v1459 = vpack.c.b16 %v1355, %v1347
        %v1460 = vpack.c.b16 %v1356, %v1348
        %v1461 = vpack.c.b16 %v1357, %v1349
        %v1462 = vpack.c.b16 %v1358, %v1350
        %v1463 = vpack.c.b16 %v1359, %v1351
        %v1464 = vpack.c.b16 %v1360, %v1352
        %v1465 = vpack.c.b16 %v1361, %v1353
        %v1466 = vpack.c.b16 %v1362, %v1354
        %v1467 = vpack.c.b16 %v1371, %v1363
        %v1468 = vpack.c.b16 %v1372, %v1364
        %v1469 = vpack.c.b16 %v1373, %v1365
        %v1470 = vpack.c.b16 %v1374, %v1366
        %v1471 = vpack.c.b16 %v1375, %v1367
        %v1472 = vpack.c.b16 %v1376, %v1368
        %v1473 = vpack.c.b16 %v1377, %v1369
        %v1474 = vpack.c.b16 %v1378, %v1370
        %v1475 = vpack.c.b16 %v1387, %v1379
        %v1476 = vpack.c.b16 %v1388, %v1380
        %v1477 = vpack.c.b16 %v1389, %v1381
        %v1478 = vpack.c.b16 %v1390, %v1382
        %v1479 = vpack.c.b16 %v1391, %v1383
        %v1480 = vpack.c.b16 %v1392, %v1384
        %v1481 = vpack.c.b16 %v1393, %v1385
        %v1482 = vpack.c.b16 %v1394, %v1386
        %v1483 = vpack.c.b16 %v1403, %v1395
        %v1484 = vpack.c.b16 %v1404, %v1396
        %v1485 = vpack.c.b16 %v1405, %v1397
        %v1486 = vpack.c.b16 %v1406, %v1398
        %v1487 = vpack.c.b16 %v1407, %v1399
        %v1488 = vpack.c.b16 %v1408, %v1400
        %v1489 = vpack.c.b16 %v1409, %v1401
        %v1490 = vpack.c.b16 %v1410, %v1402
        %v1491 = vpack.c.b16 %v1419, %v1411
        %v1492 = vpack.c.b16 %v1420, %v1412
        %v1493 = vpack.c.b16 %v1421, %v1413
        %v1494 = vpack.c.b16 %v1422, %v1414
        %v1495 = vpack.c.b16 %v1423, %v1415
        %v1496 = vpack.c.b16 %v1424, %v1416
        %v1497 = vpack.c.b16 %v1425, %v1417
        %v1498 = vpack.c.b16 %v1426, %v1418
        %v1499 = vpack.c.b16 %v1435, %v1427
        %v1500 = vpack.c.b16 %v1436, %v1428
        %v1501 = vpack.c.b16 %v1437, %v1429
        %v1502 = vpack.c.b16 %v1438, %v1430
        %v1503 = vpack.c.b16 %v1439, %v1431
        %v1504 = vpack.c.b16 %v1440, %v1432
        %v1505 = vpack.c.b16 %v1441, %v1433
        %v1506 = vpack.c.b16 %v1442, %v1434
        %1571 = vmatpush.bf16.msra.mxu0 %v1499
        %1572 = vmatpush.bf16.msra.mxu0 %v1491
        %1573 = vmatpush.bf16.msra.mxu0 %v1483
        %1574 = vmatpush.bf16.msra.mxu0 %v1475
        %1575 = vmatpush.bf16.msra.mxu0 %v1467
        %1576 = vmatpush.bf16.msra.mxu0 %v1459
        %1577 = vmatpush.bf16.msra.mxu0 %v1451
        %1578 = vmatpush.bf16.msra.mxu0 %v1443
        %1579 = vmatmul.bf16.gmra.mxu0 %v1250
        %v1580 = vpop.f32.mrf.mxu0
        %v1581 = vadd.f32 0.0, %v1580
        %v1582 = vpop.f32.mrf.mxu0
        %1583 = vdwg.mxu0
        %1584 = vmatpush.bf16.msra.mxu0 %v1500
        %1585 = vmatpush.bf16.msra.mxu0 %v1492
        %1586 = vmatpush.bf16.msra.mxu0 %v1484
        %1587 = vmatpush.bf16.msra.mxu0 %v1476
        %1588 = vmatpush.bf16.msra.mxu0 %v1468
        %1589 = vmatpush.bf16.msra.mxu0 %v1460
        %1590 = vmatpush.bf16.msra.mxu0 %v1452
        %1591 = vmatpush.bf16.msra.mxu0 %v1444
        %1592 = vmatmul.bf16.gmra.mxu0 %v1250
        %v1593 = vpop.f32.mrf.mxu0
        %v1594 = vadd.f32 0.0, %v1593
        %v1595 = vpop.f32.mrf.mxu0
        %1596 = vdwg.mxu0
        %1597 = vmatpush.bf16.msra.mxu0 %v1501
        %1598 = vmatpush.bf16.msra.mxu0 %v1493
        %1599 = vmatpush.bf16.msra.mxu0 %v1485
        %1600 = vmatpush.bf16.msra.mxu0 %v1477
        %1601 = vmatpush.bf16.msra.mxu0 %v1469
        %1602 = vmatpush.bf16.msra.mxu0 %v1461
        %1603 = vmatpush.bf16.msra.mxu0 %v1453
        %1604 = vmatpush.bf16.msra.mxu0 %v1445
        %1605 = vmatmul.bf16.gmra.mxu0 %v1250
        %v1606 = vpop.f32.mrf.mxu0
        %v1607 = vadd.f32 0.0, %v1606
        %v1608 = vpop.f32.mrf.mxu0
        %1609 = vdwg.mxu0
        %1610 = vmatpush.bf16.msra.mxu0 %v1502
        %1611 = vmatpush.bf16.msra.mxu0 %v1494
        %1612 = vmatpush.bf16.msra.mxu0 %v1486
        %1613 = vmatpush.bf16.msra.mxu0 %v1478
        %1614 = vmatpush.bf16.msra.mxu0 %v1470
        %1615 = vmatpush.bf16.msra.mxu0 %v1462
        %1616 = vmatpush.bf16.msra.mxu0 %v1454
        %1617 = vmatpush.bf16.msra.mxu0 %v1446
        %1618 = vmatmul.bf16.gmra.mxu0 %v1250
        %v1619 = vpop.f32.mrf.mxu0
        %v1620 = vadd.f32 0.0, %v1619
        %v1621 = vpop.f32.mrf.mxu0
        %1622 = vdwg.mxu0
        %1623 = vmatpush.bf16.msra.mxu0 %v1503
        %1624 = vmatpush.bf16.msra.mxu0 %v1495
        %1625 = vmatpush.bf16.msra.mxu0 %v1487
        %1626 = vmatpush.bf16.msra.mxu0 %v1479
        %1627 = vmatpush.bf16.msra.mxu0 %v1471
        %1628 = vmatpush.bf16.msra.mxu0 %v1463
        %1629 = vmatpush.bf16.msra.mxu0 %v1455
        %1630 = vmatpush.bf16.msra.mxu0 %v1447
        %1631 = vmatmul.bf16.gmra.mxu0 %v1250
        %v1632 = vpop.f32.mrf.mxu0
        %v1633 = vadd.f32 0.0, %v1632
        %v1634 = vpop.f32.mrf.mxu0
        %1635 = vdwg.mxu0
        %1636 = vmatpush.bf16.msra.mxu0 %v1504
        %1637 = vmatpush.bf16.msra.mxu0 %v1496
        %1638 = vmatpush.bf16.msra.mxu0 %v1488
        %1639 = vmatpush.bf16.msra.mxu0 %v1480
        %1640 = vmatpush.bf16.msra.mxu0 %v1472
        %1641 = vmatpush.bf16.msra.mxu0 %v1464
        %1642 = vmatpush.bf16.msra.mxu0 %v1456
        %1643 = vmatpush.bf16.msra.mxu0 %v1448
        %1644 = vmatmul.bf16.gmra.mxu0 %v1250
        %v1645 = vpop.f32.mrf.mxu0
        %v1646 = vadd.f32 0.0, %v1645
        %v1647 = vpop.f32.mrf.mxu0
        %1648 = vdwg.mxu0
        %1649 = vmatpush.bf16.msra.mxu0 %v1505
        %1650 = vmatpush.bf16.msra.mxu0 %v1497
        %1651 = vmatpush.bf16.msra.mxu0 %v1489
        %1652 = vmatpush.bf16.msra.mxu0 %v1481
        %1653 = vmatpush.bf16.msra.mxu0 %v1473
        %1654 = vmatpush.bf16.msra.mxu0 %v1465
        %1655 = vmatpush.bf16.msra.mxu0 %v1457
        %1656 = vmatpush.bf16.msra.mxu0 %v1449
        %1657 = vmatmul.bf16.gmra.mxu0 %v1250
        %v1658 = vpop.f32.mrf.mxu0
        %v1659 = vadd.f32 0.0, %v1658
        %v1660 = vpop.f32.mrf.mxu0
        %1661 = vdwg.mxu0
        %1662 = vmatpush.bf16.msra.mxu0 %v1506
        %1663 = vmatpush.bf16.msra.mxu0 %v1498
        %1664 = vmatpush.bf16.msra.mxu0 %v1490
        %1665 = vmatpush.bf16.msra.mxu0 %v1482
        %1666 = vmatpush.bf16.msra.mxu0 %v1474
        %1667 = vmatpush.bf16.msra.mxu0 %v1466
        %1668 = vmatpush.bf16.msra.mxu0 %v1458
        %1669 = vmatpush.bf16.msra.mxu0 %v1450
        %1670 = vmatmul.bf16.gmra.mxu0 %v1250
        %v1671 = vpop.f32.mrf.mxu0
        %v1672 = vadd.f32 0.0, %v1671
        %v1673 = vpop.f32.mrf.mxu0
        %1674 = vdwg.mxu0
        %v1675 = vadd.f32 %v1633, %v1137
        %v1676 = vadd.f32 %v1646, %v1150
        %v1677 = vadd.f32 %v1659, %v1163
        %v1678 = vadd.f32 %v1672, %v1176
        %v1679 = vadd.f32 %v1675, %v947
        %v1680 = vadd.f32 %v1676, %v948
        %v1681 = vadd.f32 %v1677, %v949
        %v1682 = vadd.f32 %v1678, %v950
        %v1683 = vxor.u32 %v1679, 2147483648
        %v1684 = vmul.f32 %v1683, 1.442695
        %v1685 = vpow.pop %v1684
        %v1686 = vadd.f32 %v1685, 1.0
        %v1687 = vrcp.pop %v1686
        %v1688 = vmul.f32 %v1686, %v1687
        %v1689 = vsub.f32 1.0, %v1688
        %v1690 = vmul.f32 %v1687, %v1689
        %v1691 = vadd.f32 %v1687, %v1690
        %vm1692 = vweird.f32 %v1686
        %vm1693 = vweird.f32 %v1687
        %vm1694 = vmor %vm1692, %vm1693
        %v1695 = vsel %vm1694, %v1687, %v1691
        %v1696 = vand.u32 2147483647, %v1686
        %vm1697 = vcmp.eq.f32.partialorder %v1696, 8.507059e+37
        %v1698 = vand.u32 %v1686, 2147483648
        %v1699 = vor.u32 1.1754944e-38, %v1698
        %v1700 = vsel %vm1697, %v1699, %v1695
        %v1701 = vmul.f32 1.0, %v1700
        %v1702 = vxor.u32 %v1680, 2147483648
        %v1703 = vmul.f32 %v1702, 1.442695
        %v1704 = vpow.pop %v1703
        %v1705 = vadd.f32 %v1704, 1.0
        %v1706 = vrcp.pop %v1705
        %v1707 = vmul.f32 %v1705, %v1706
        %v1708 = vsub.f32 1.0, %v1707
        %v1709 = vmul.f32 %v1706, %v1708
        %v1710 = vadd.f32 %v1706, %v1709
        %vm1711 = vweird.f32 %v1705
        %vm1712 = vweird.f32 %v1706
        %vm1713 = vmor %vm1711, %vm1712
        %v1714 = vsel %vm1713, %v1706, %v1710
        %v1715 = vand.u32 2147483647, %v1705
        %vm1716 = vcmp.eq.f32.partialorder %v1715, 8.507059e+37
        %v1717 = vand.u32 %v1705, 2147483648
        %v1718 = vor.u32 1.1754944e-38, %v1717
        %v1719 = vsel %vm1716, %v1718, %v1714
        %v1720 = vmul.f32 1.0, %v1719
        %v1721 = vtanh.pop %v1681
        %v1722 = vxor.u32 %v1682, 2147483648
        %v1723 = vmul.f32 %v1722, 1.442695
        %v1724 = vpow.pop %v1723
        %v1725 = vadd.f32 %v1724, 1.0
        %v1726 = vrcp.pop %v1725
        %v1727 = vmul.f32 %v1725, %v1726
        %v1728 = vsub.f32 1.0, %v1727
        %v1729 = vmul.f32 %v1726, %v1728
        %v1730 = vadd.f32 %v1726, %v1729
        %vm1731 = vweird.f32 %v1725
        %vm1732 = vweird.f32 %v1726
        %vm1733 = vmor %vm1731, %vm1732
        %v1734 = vsel %vm1733, %v1726, %v1730
        %v1735 = vand.u32 2147483647, %v1725
        %vm1736 = vcmp.eq.f32.partialorder %v1735, 8.507059e+37
        %v1737 = vand.u32 %v1725, 2147483648
        %v1738 = vor.u32 1.1754944e-38, %v1737
        %v1739 = vsel %vm1736, %v1738, %v1734
        %v1740 = vmul.f32 1.0, %v1739
        %v1741 = vmul.f32 %v1720, %v961
        %v1742 = vmul.f32 %v1701, %v1721
        %v1743 = vadd.f32 %v1741, %v1742
        %v1744 = vtanh.pop %v1743
        %v1745 = vmul.f32 %v1740, %v1744
        %v1746 = vpack.c.bf16 %v1745, %v1745
        %v1763 = vunpack.c.l.b16 %v929
        %v1764 = vunpack.c.l.b16 %v930
        %v1765 = vunpack.c.l.b16 %v931
        %v1766 = vunpack.c.l.b16 %v932
        %v1767 = vunpack.c.l.b16 %v933
        %v1768 = vunpack.c.l.b16 %v934
        %v1769 = vunpack.c.l.b16 %v935
        %v1770 = vunpack.c.l.b16 %v936
        %v1771 = vunpack.c.l.b16 %v937
        %v1772 = vunpack.c.l.b16 %v938
        %v1773 = vunpack.c.l.b16 %v939
        %v1774 = vunpack.c.l.b16 %v940
        %v1775 = vunpack.c.l.b16 %v941
        %v1776 = vunpack.c.l.b16 %v942
        %v1777 = vunpack.c.l.b16 %v943
        %v1778 = vunpack.c.l.b16 %v944
        %v1779 = vpack.c.b16 %v1764, %v1763
        %v1780 = vpack.c.b16 %v1766, %v1765
        %v1781 = vpack.c.b16 %v1768, %v1767
        %v1782 = vpack.c.b16 %v1770, %v1769
        %v1783 = vpack.c.b16 %v1772, %v1771
        %v1784 = vpack.c.b16 %v1774, %v1773
        %v1785 = vpack.c.b16 %v1776, %v1775
        %v1786 = vpack.c.b16 %v1778, %v1777
        %1795 = vmatpush.bf16.msra.mxu0 %v1786
        %1796 = vmatpush.bf16.msra.mxu0 %v1785
        %1797 = vmatpush.bf16.msra.mxu0 %v1784
        %1798 = vmatpush.bf16.msra.mxu0 %v1783
        %1799 = vmatpush.bf16.msra.mxu0 %v1782
        %1800 = vmatpush.bf16.msra.mxu0 %v1781
        %1801 = vmatpush.bf16.msra.mxu0 %v1780
        %1802 = vmatpush.bf16.msra.mxu0 %v1779
        %1803 = vmatmul.bf16.gmra.mxu0 %v1746
        %v1804 = vpop.f32.mrf.mxu0
        %v1805 = vadd.f32 %v957, %v1804
        %v1806 = vpop.f32.mrf.mxu0
        %1807 = vdwg.mxu0
        %1808 = vst [vmem:[%s452] sm:$0xff] %v1805
        %1809 = vmatpush.bf16.msra.mxu0 %v1091
        %1810 = vmatpush.bf16.msra.mxu0 %v1087
        %1811 = vmatpush.bf16.msra.mxu0 %v1083
        %1812 = vmatpush.bf16.msra.mxu0 %v1079
        %1813 = vmatpush.bf16.msra.mxu0 %v1075
        %1814 = vmatpush.bf16.msra.mxu0 %v1071
        %1815 = vmatpush.bf16.msra.mxu0 %v1067
        %1816 = vmatpush.bf16.msra.mxu0 %v1063
        %1817 = vmatmul.bf16.gmra.mxu0 %v1746
        %v1818 = vpop.f32.mrf.mxu0
        %v1819 = vadd.f32 0.0, %v1818
        %v1820 = vpop.f32.mrf.mxu0
        %1821 = vdwg.mxu0
        %1822 = vmatpush.bf16.msra.mxu0 %v1092
        %1823 = vmatpush.bf16.msra.mxu0 %v1088
        %1824 = vmatpush.bf16.msra.mxu0 %v1084
        %1825 = vmatpush.bf16.msra.mxu0 %v1080
        %1826 = vmatpush.bf16.msra.mxu0 %v1076
        %1827 = vmatpush.bf16.msra.mxu0 %v1072
        %1828 = vmatpush.bf16.msra.mxu0 %v1068
        %1829 = vmatpush.bf16.msra.mxu0 %v1064
        %1830 = vmatmul.bf16.gmra.mxu0 %v1746
        %v1831 = vpop.f32.mrf.mxu0
        %v1832 = vadd.f32 0.0, %v1831
        %v1833 = vpop.f32.mrf.mxu0
        %1834 = vdwg.mxu0
        %1835 = vmatpush.bf16.msra.mxu0 %v1093
        %1836 = vmatpush.bf16.msra.mxu0 %v1089
        %1837 = vmatpush.bf16.msra.mxu0 %v1085
        %1838 = vmatpush.bf16.msra.mxu0 %v1081
        %1839 = vmatpush.bf16.msra.mxu0 %v1077
        %1840 = vmatpush.bf16.msra.mxu0 %v1073
        %1841 = vmatpush.bf16.msra.mxu0 %v1069
        %1842 = vmatpush.bf16.msra.mxu0 %v1065
        %1843 = vmatmul.bf16.gmra.mxu0 %v1746
        %v1844 = vpop.f32.mrf.mxu0
        %v1845 = vadd.f32 0.0, %v1844
        %v1846 = vpop.f32.mrf.mxu0
        %1847 = vdwg.mxu0
        %1848 = vmatpush.bf16.msra.mxu0 %v1094
        %1849 = vmatpush.bf16.msra.mxu0 %v1090
        %1850 = vmatpush.bf16.msra.mxu0 %v1086
        %1851 = vmatpush.bf16.msra.mxu0 %v1082
        %1852 = vmatpush.bf16.msra.mxu0 %v1078
        %1853 = vmatpush.bf16.msra.mxu0 %v1074
        %1854 = vmatpush.bf16.msra.mxu0 %v1070
        %1855 = vmatpush.bf16.msra.mxu0 %v1066
        %1856 = vmatmul.bf16.gmra.mxu0 %v1746
        %v1857 = vpop.f32.mrf.mxu0
        %v1858 = vadd.f32 0.0, %v1857
        %v1859 = vpop.f32.mrf.mxu0
        %1860 = vdwg.mxu0
        %s1861 = scalar_lea.vmem [#allocation7], 32
        %v1862 = vld [vmem:[%s1861] sm:$0xff]
        %v1863 = vld [vmem:[%s1861 + $0x8] sm:$0xff]
        %v1864 = vld [vmem:[%s1861 + $0x10] sm:$0xff]
        %v1865 = vld [vmem:[%s1861 + $0x18] sm:$0xff]
        %v1866 = vadd.f32 %v1862, %v1581
        %v1867 = vadd.f32 %v1863, %v1594
        %v1868 = vadd.f32 %v1864, %v1607
        %v1869 = vadd.f32 %v1865, %v1620
        %v1870 = vxor.u32 %v1866, 2147483648
        %v1871 = vmul.f32 %v1870, 1.442695
        %v1872 = vpow.pop %v1871
        %v1873 = vadd.f32 %v1872, 1.0
        %v1874 = vrcp.pop %v1873
        %v1875 = vmul.f32 %v1873, %v1874
        %v1876 = vsub.f32 1.0, %v1875
        %v1877 = vmul.f32 %v1874, %v1876
        %v1878 = vadd.f32 %v1874, %v1877
        %vm1879 = vweird.f32 %v1873
        %vm1880 = vweird.f32 %v1874
        %vm1881 = vmor %vm1879, %vm1880
        %v1882 = vsel %vm1881, %v1874, %v1878
        %v1883 = vand.u32 2147483647, %v1873
        %vm1884 = vcmp.eq.f32.partialorder %v1883, 8.507059e+37
        %v1885 = vand.u32 %v1873, 2147483648
        %v1886 = vor.u32 1.1754944e-38, %v1885
        %v1887 = vsel %vm1884, %v1886, %v1882
        %v1888 = vmul.f32 1.0, %v1887
        %v1889 = vxor.u32 %v1867, 2147483648
        %v1890 = vmul.f32 %v1889, 1.442695
        %v1891 = vpow.pop %v1890
        %v1892 = vadd.f32 %v1891, 1.0
        %v1893 = vrcp.pop %v1892
        %v1894 = vmul.f32 %v1892, %v1893
        %v1895 = vsub.f32 1.0, %v1894
        %v1896 = vmul.f32 %v1893, %v1895
        %v1897 = vadd.f32 %v1893, %v1896
        %vm1898 = vweird.f32 %v1892
        %vm1899 = vweird.f32 %v1893
        %vm1900 = vmor %vm1898, %vm1899
        %v1901 = vsel %vm1900, %v1893, %v1897
        %v1902 = vand.u32 2147483647, %v1892
        %vm1903 = vcmp.eq.f32.partialorder %v1902, 8.507059e+37
        %v1904 = vand.u32 %v1892, 2147483648
        %v1905 = vor.u32 1.1754944e-38, %v1904
        %v1906 = vsel %vm1903, %v1905, %v1901
        %v1907 = vmul.f32 1.0, %v1906
        %v1908 = vtanh.pop %v1868
        %v1909 = vxor.u32 %v1869, 2147483648
        %v1910 = vmul.f32 %v1909, 1.442695
        %v1911 = vpow.pop %v1910
        %v1912 = vadd.f32 %v1911, 1.0
        %v1913 = vrcp.pop %v1912
        %v1914 = vmul.f32 %v1912, %v1913
        %v1915 = vsub.f32 1.0, %v1914
        %v1916 = vmul.f32 %v1913, %v1915
        %v1917 = vadd.f32 %v1913, %v1916
        %vm1918 = vweird.f32 %v1912
        %vm1919 = vweird.f32 %v1913
        %vm1920 = vmor %vm1918, %vm1919
        %v1921 = vsel %vm1920, %v1913, %v1917
        %v1922 = vand.u32 2147483647, %v1912
        %vm1923 = vcmp.eq.f32.partialorder %v1922, 8.507059e+37
        %v1924 = vand.u32 %v1912, 2147483648
        %v1925 = vor.u32 1.1754944e-38, %v1924
        %v1926 = vsel %vm1923, %v1925, %v1921
        %v1927 = vmul.f32 1.0, %v1926
        %v1928 = vmul.f32 %v1907, %v1247
        %v1929 = vmul.f32 %v1888, %v1908
        %v1930 = vadd.f32 %v1928, %v1929
        %v1931 = vtanh.pop %v1930
        %v1932 = vmul.f32 %v1927, %v1931
        %v1933 = vpack.c.bf16 %v1932, %v1932
        %1934 = vmatpush.bf16.msra.mxu0 %v1499
        %1935 = vmatpush.bf16.msra.mxu0 %v1491
        %1936 = vmatpush.bf16.msra.mxu0 %v1483
        %1937 = vmatpush.bf16.msra.mxu0 %v1475
        %1938 = vmatpush.bf16.msra.mxu0 %v1467
        %1939 = vmatpush.bf16.msra.mxu0 %v1459
        %1940 = vmatpush.bf16.msra.mxu0 %v1451
        %1941 = vmatpush.bf16.msra.mxu0 %v1443
        %1942 = vmatmul.bf16.gmra.mxu0 %v1933
        %v1943 = vpop.f32.mrf.mxu0
        %v1944 = vadd.f32 0.0, %v1943
        %v1945 = vpop.f32.mrf.mxu0
        %1946 = vdwg.mxu0
        %1947 = vmatpush.bf16.msra.mxu0 %v1500
        %1948 = vmatpush.bf16.msra.mxu0 %v1492
        %1949 = vmatpush.bf16.msra.mxu0 %v1484
        %1950 = vmatpush.bf16.msra.mxu0 %v1476
        %1951 = vmatpush.bf16.msra.mxu0 %v1468
        %1952 = vmatpush.bf16.msra.mxu0 %v1460
        %1953 = vmatpush.bf16.msra.mxu0 %v1452
        %1954 = vmatpush.bf16.msra.mxu0 %v1444
        %1955 = vmatmul.bf16.gmra.mxu0 %v1933
        %v1956 = vpop.f32.mrf.mxu0
        %v1957 = vadd.f32 0.0, %v1956
        %v1958 = vpop.f32.mrf.mxu0
        %1959 = vdwg.mxu0
        %1960 = vmatpush.bf16.msra.mxu0 %v1501
        %1961 = vmatpush.bf16.msra.mxu0 %v1493
        %1962 = vmatpush.bf16.msra.mxu0 %v1485
        %1963 = vmatpush.bf16.msra.mxu0 %v1477
        %1964 = vmatpush.bf16.msra.mxu0 %v1469
        %1965 = vmatpush.bf16.msra.mxu0 %v1461
        %1966 = vmatpush.bf16.msra.mxu0 %v1453
        %1967 = vmatpush.bf16.msra.mxu0 %v1445
        %1968 = vmatmul.bf16.gmra.mxu0 %v1933
        %v1969 = vpop.f32.mrf.mxu0
        %v1970 = vadd.f32 0.0, %v1969
        %v1971 = vpop.f32.mrf.mxu0
        %1972 = vdwg.mxu0
        %1973 = vmatpush.bf16.msra.mxu0 %v1502
        %1974 = vmatpush.bf16.msra.mxu0 %v1494
        %1975 = vmatpush.bf16.msra.mxu0 %v1486
        %1976 = vmatpush.bf16.msra.mxu0 %v1478
        %1977 = vmatpush.bf16.msra.mxu0 %v1470
        %1978 = vmatpush.bf16.msra.mxu0 %v1462
        %1979 = vmatpush.bf16.msra.mxu0 %v1454
        %1980 = vmatpush.bf16.msra.mxu0 %v1446
        %1981 = vmatmul.bf16.gmra.mxu0 %v1933
        %v1982 = vpop.f32.mrf.mxu0
        %v1983 = vadd.f32 0.0, %v1982
        %v1984 = vpop.f32.mrf.mxu0
        %1985 = vdwg.mxu0
        %1986 = vmatpush.bf16.msra.mxu0 %v1503
        %1987 = vmatpush.bf16.msra.mxu0 %v1495
        %1988 = vmatpush.bf16.msra.mxu0 %v1487
        %1989 = vmatpush.bf16.msra.mxu0 %v1479
        %1990 = vmatpush.bf16.msra.mxu0 %v1471
        %1991 = vmatpush.bf16.msra.mxu0 %v1463
        %1992 = vmatpush.bf16.msra.mxu0 %v1455
        %1993 = vmatpush.bf16.msra.mxu0 %v1447
        %1994 = vmatmul.bf16.gmra.mxu0 %v1933
        %v1995 = vpop.f32.mrf.mxu0
        %v1996 = vadd.f32 0.0, %v1995
        %v1997 = vpop.f32.mrf.mxu0
        %1998 = vdwg.mxu0
        %1999 = vmatpush.bf16.msra.mxu0 %v1504
        %2000 = vmatpush.bf16.msra.mxu0 %v1496
        %2001 = vmatpush.bf16.msra.mxu0 %v1488
        %2002 = vmatpush.bf16.msra.mxu0 %v1480
        %2003 = vmatpush.bf16.msra.mxu0 %v1472
        %2004 = vmatpush.bf16.msra.mxu0 %v1464
        %2005 = vmatpush.bf16.msra.mxu0 %v1456
        %2006 = vmatpush.bf16.msra.mxu0 %v1448
        %2007 = vmatmul.bf16.gmra.mxu0 %v1933
        %v2008 = vpop.f32.mrf.mxu0
        %v2009 = vadd.f32 0.0, %v2008
        %v2010 = vpop.f32.mrf.mxu0
        %2011 = vdwg.mxu0
        %2012 = vmatpush.bf16.msra.mxu0 %v1505
        %2013 = vmatpush.bf16.msra.mxu0 %v1497
        %2014 = vmatpush.bf16.msra.mxu0 %v1489
        %2015 = vmatpush.bf16.msra.mxu0 %v1481
        %2016 = vmatpush.bf16.msra.mxu0 %v1473
        %2017 = vmatpush.bf16.msra.mxu0 %v1465
        %2018 = vmatpush.bf16.msra.mxu0 %v1457
        %2019 = vmatpush.bf16.msra.mxu0 %v1449
        %2020 = vmatmul.bf16.gmra.mxu0 %v1933
        %v2021 = vpop.f32.mrf.mxu0
        %v2022 = vadd.f32 0.0, %v2021
        %v2023 = vpop.f32.mrf.mxu0
        %2024 = vdwg.mxu0
        %2025 = vmatpush.bf16.msra.mxu0 %v1506
        %2026 = vmatpush.bf16.msra.mxu0 %v1498
        %2027 = vmatpush.bf16.msra.mxu0 %v1490
        %2028 = vmatpush.bf16.msra.mxu0 %v1482
        %2029 = vmatpush.bf16.msra.mxu0 %v1474
        %2030 = vmatpush.bf16.msra.mxu0 %v1466
        %2031 = vmatpush.bf16.msra.mxu0 %v1458
        %2032 = vmatpush.bf16.msra.mxu0 %v1450
        %2033 = vmatmul.bf16.gmra.mxu0 %v1933
        %v2034 = vpop.f32.mrf.mxu0
        %v2035 = vadd.f32 0.0, %v2034
        %v2036 = vpop.f32.mrf.mxu0
        %2037 = vdwg.mxu0
        %v2038 = vadd.f32 %v1996, %v1819
        %v2039 = vadd.f32 %v2009, %v1832
        %v2040 = vadd.f32 %v2022, %v1845
        %v2041 = vadd.f32 %v2035, %v1858
        %v2042 = vadd.f32 %v2038, %v947
        %v2043 = vadd.f32 %v2039, %v948
        %v2044 = vadd.f32 %v2040, %v949
        %v2045 = vadd.f32 %v2041, %v950
        %v2046 = vxor.u32 %v2042, 2147483648
        %v2047 = vmul.f32 %v2046, 1.442695
        %v2048 = vpow.pop %v2047
        %v2049 = vadd.f32 %v2048, 1.0
        %v2050 = vrcp.pop %v2049
        %v2051 = vmul.f32 %v2049, %v2050
        %v2052 = vsub.f32 1.0, %v2051
        %v2053 = vmul.f32 %v2050, %v2052
        %v2054 = vadd.f32 %v2050, %v2053
        %vm2055 = vweird.f32 %v2049
        %vm2056 = vweird.f32 %v2050
        %vm2057 = vmor %vm2055, %vm2056
        %v2058 = vsel %vm2057, %v2050, %v2054
        %v2059 = vand.u32 2147483647, %v2049
        %vm2060 = vcmp.eq.f32.partialorder %v2059, 8.507059e+37
        %v2061 = vand.u32 %v2049, 2147483648
        %v2062 = vor.u32 1.1754944e-38, %v2061
        %v2063 = vsel %vm2060, %v2062, %v2058
        %v2064 = vmul.f32 1.0, %v2063
        %v2065 = vxor.u32 %v2043, 2147483648
        %v2066 = vmul.f32 %v2065, 1.442695
        %v2067 = vpow.pop %v2066
        %v2068 = vadd.f32 %v2067, 1.0
        %v2069 = vrcp.pop %v2068
        %v2070 = vmul.f32 %v2068, %v2069
        %v2071 = vsub.f32 1.0, %v2070
        %v2072 = vmul.f32 %v2069, %v2071
        %v2073 = vadd.f32 %v2069, %v2072
        %vm2074 = vweird.f32 %v2068
        %vm2075 = vweird.f32 %v2069
        %vm2076 = vmor %vm2074, %vm2075
        %v2077 = vsel %vm2076, %v2069, %v2073
        %v2078 = vand.u32 2147483647, %v2068
        %vm2079 = vcmp.eq.f32.partialorder %v2078, 8.507059e+37
        %v2080 = vand.u32 %v2068, 2147483648
        %v2081 = vor.u32 1.1754944e-38, %v2080
        %v2082 = vsel %vm2079, %v2081, %v2077
        %v2083 = vmul.f32 1.0, %v2082
        %v2084 = vtanh.pop %v2044
        %v2085 = vxor.u32 %v2045, 2147483648
        %v2086 = vmul.f32 %v2085, 1.442695
        %v2087 = vpow.pop %v2086
        %v2088 = vadd.f32 %v2087, 1.0
        %v2089 = vrcp.pop %v2088
        %v2090 = vmul.f32 %v2088, %v2089
        %v2091 = vsub.f32 1.0, %v2090
        %v2092 = vmul.f32 %v2089, %v2091
        %v2093 = vadd.f32 %v2089, %v2092
        %vm2094 = vweird.f32 %v2088
        %vm2095 = vweird.f32 %v2089
        %vm2096 = vmor %vm2094, %vm2095
        %v2097 = vsel %vm2096, %v2089, %v2093
        %v2098 = vand.u32 2147483647, %v2088
        %vm2099 = vcmp.eq.f32.partialorder %v2098, 8.507059e+37
        %v2100 = vand.u32 %v2088, 2147483648
        %v2101 = vor.u32 1.1754944e-38, %v2100
        %v2102 = vsel %vm2099, %v2101, %v2097
        %v2103 = vmul.f32 1.0, %v2102
        %v2104 = vmul.f32 %v2083, %v1743
        %v2105 = vmul.f32 %v2064, %v2084
        %v2106 = vadd.f32 %v2104, %v2105
        %v2107 = vtanh.pop %v2106
        %v2108 = vmul.f32 %v2103, %v2107
        %v2109 = vpack.c.bf16 %v2108, %v2108
        %2110 = vmatpush.bf16.msra.mxu0 %v1786
        %2111 = vmatpush.bf16.msra.mxu0 %v1785
        %2112 = vmatpush.bf16.msra.mxu0 %v1784
        %2113 = vmatpush.bf16.msra.mxu0 %v1783
        %2114 = vmatpush.bf16.msra.mxu0 %v1782
        %2115 = vmatpush.bf16.msra.mxu0 %v1781
        %2116 = vmatpush.bf16.msra.mxu0 %v1780
        %2117 = vmatpush.bf16.msra.mxu0 %v1779
        %2118 = vmatmul.bf16.gmra.mxu0 %v2109
        %v2119 = vpop.f32.mrf.mxu0
        %v2120 = vadd.f32 %v957, %v2119
        %v2121 = vpop.f32.mrf.mxu0
        %2122 = vdwg.mxu0
        %s2123 = scalar_lea.vmem %s452, 8 [#allocation19]
        %2124 = vst [vmem:[%s2123] sm:$0xff] %v2120
        %2125 = vmatpush.bf16.msra.mxu0 %v1091
        %2126 = vmatpush.bf16.msra.mxu0 %v1087
        %2127 = vmatpush.bf16.msra.mxu0 %v1083
        %2128 = vmatpush.bf16.msra.mxu0 %v1079
        %2129 = vmatpush.bf16.msra.mxu0 %v1075
        %2130 = vmatpush.bf16.msra.mxu0 %v1071
        %2131 = vmatpush.bf16.msra.mxu0 %v1067
        %2132 = vmatpush.bf16.msra.mxu0 %v1063
        %2133 = vmatmul.bf16.gmra.mxu0 %v2109
        %v2134 = vpop.f32.mrf.mxu0
        %v2135 = vadd.f32 0.0, %v2134
        %v2136 = vpop.f32.mrf.mxu0
        %2137 = vdwg.mxu0
        %2138 = vmatpush.bf16.msra.mxu0 %v1092
        %2139 = vmatpush.bf16.msra.mxu0 %v1088
        %2140 = vmatpush.bf16.msra.mxu0 %v1084
        %2141 = vmatpush.bf16.msra.mxu0 %v1080
        %2142 = vmatpush.bf16.msra.mxu0 %v1076
        %2143 = vmatpush.bf16.msra.mxu0 %v1072
        %2144 = vmatpush.bf16.msra.mxu0 %v1068
        %2145 = vmatpush.bf16.msra.mxu0 %v1064
        %2146 = vmatmul.bf16.gmra.mxu0 %v2109
        %v2147 = vpop.f32.mrf.mxu0
        %v2148 = vadd.f32 0.0, %v2147
        %v2149 = vpop.f32.mrf.mxu0
        %2150 = vdwg.mxu0
        %2151 = vmatpush.bf16.msra.mxu0 %v1093
        %2152 = vmatpush.bf16.msra.mxu0 %v1089
        %2153 = vmatpush.bf16.msra.mxu0 %v1085
        %2154 = vmatpush.bf16.msra.mxu0 %v1081
        %2155 = vmatpush.bf16.msra.mxu0 %v1077
        %2156 = vmatpush.bf16.msra.mxu0 %v1073
        %2157 = vmatpush.bf16.msra.mxu0 %v1069
        %2158 = vmatpush.bf16.msra.mxu0 %v1065
        %2159 = vmatmul.bf16.gmra.mxu0 %v2109
        %v2160 = vpop.f32.mrf.mxu0
        %v2161 = vadd.f32 0.0, %v2160
        %v2162 = vpop.f32.mrf.mxu0
        %2163 = vdwg.mxu0
        %2164 = vmatpush.bf16.msra.mxu0 %v1094
        %2165 = vmatpush.bf16.msra.mxu0 %v1090
        %2166 = vmatpush.bf16.msra.mxu0 %v1086
        %2167 = vmatpush.bf16.msra.mxu0 %v1082
        %2168 = vmatpush.bf16.msra.mxu0 %v1078
        %2169 = vmatpush.bf16.msra.mxu0 %v1074
        %2170 = vmatpush.bf16.msra.mxu0 %v1070
        %2171 = vmatpush.bf16.msra.mxu0 %v1066
        %2172 = vmatmul.bf16.gmra.mxu0 %v2109
        %v2173 = vpop.f32.mrf.mxu0
        %v2174 = vadd.f32 0.0, %v2173
        %v2175 = vpop.f32.mrf.mxu0
        %2176 = vdwg.mxu0
        %s2177 = scalar_lea.vmem [#allocation7], 64
        %v2178 = vld [vmem:[%s2177] sm:$0xff]
        %v2179 = vld [vmem:[%s2177 + $0x8] sm:$0xff]
        %v2180 = vld [vmem:[%s2177 + $0x10] sm:$0xff]
        %v2181 = vld [vmem:[%s2177 + $0x18] sm:$0xff]
        %v2182 = vadd.f32 %v2178, %v1944
        %v2183 = vadd.f32 %v2179, %v1957
        %v2184 = vadd.f32 %v2180, %v1970
        %v2185 = vadd.f32 %v2181, %v1983
        %v2186 = vxor.u32 %v2182, 2147483648
        %v2187 = vmul.f32 %v2186, 1.442695
        %v2188 = vpow.pop %v2187
        %v2189 = vadd.f32 %v2188, 1.0
        %v2190 = vrcp.pop %v2189
        %v2191 = vmul.f32 %v2189, %v2190
        %v2192 = vsub.f32 1.0, %v2191
        %v2193 = vmul.f32 %v2190, %v2192
        %v2194 = vadd.f32 %v2190, %v2193
        %vm2195 = vweird.f32 %v2189
        %vm2196 = vweird.f32 %v2190
        %vm2197 = vmor %vm2195, %vm2196
        %v2198 = vsel %vm2197, %v2190, %v2194
        %v2199 = vand.u32 2147483647, %v2189
        %vm2200 = vcmp.eq.f32.partialorder %v2199, 8.507059e+37
        %v2201 = vand.u32 %v2189, 2147483648
        %v2202 = vor.u32 1.1754944e-38, %v2201
        %v2203 = vsel %vm2200, %v2202, %v2198
        %v2204 = vmul.f32 1.0, %v2203
        %v2205 = vxor.u32 %v2183, 2147483648
        %v2206 = vmul.f32 %v2205, 1.442695
        %v2207 = vpow.pop %v2206
        %v2208 = vadd.f32 %v2207, 1.0
        %v2209 = vrcp.pop %v2208
        %v2210 = vmul.f32 %v2208, %v2209
        %v2211 = vsub.f32 1.0, %v2210
        %v2212 = vmul.f32 %v2209, %v2211
        %v2213 = vadd.f32 %v2209, %v2212
        %vm2214 = vweird.f32 %v2208
        %vm2215 = vweird.f32 %v2209
        %vm2216 = vmor %vm2214, %vm2215
        %v2217 = vsel %vm2216, %v2209, %v2213
        %v2218 = vand.u32 2147483647, %v2208
        %vm2219 = vcmp.eq.f32.partialorder %v2218, 8.507059e+37
        %v2220 = vand.u32 %v2208, 2147483648
        %v2221 = vor.u32 1.1754944e-38, %v2220
        %v2222 = vsel %vm2219, %v2221, %v2217
        %v2223 = vmul.f32 1.0, %v2222
        %v2224 = vtanh.pop %v2184
        %v2225 = vxor.u32 %v2185, 2147483648
        %v2226 = vmul.f32 %v2225, 1.442695
        %v2227 = vpow.pop %v2226
        %v2228 = vadd.f32 %v2227, 1.0
        %v2229 = vrcp.pop %v2228
        %v2230 = vmul.f32 %v2228, %v2229
        %v2231 = vsub.f32 1.0, %v2230
        %v2232 = vmul.f32 %v2229, %v2231
        %v2233 = vadd.f32 %v2229, %v2232
        %vm2234 = vweird.f32 %v2228
        %vm2235 = vweird.f32 %v2229
        %vm2236 = vmor %vm2234, %vm2235
        %v2237 = vsel %vm2236, %v2229, %v2233
        %v2238 = vand.u32 2147483647, %v2228
        %vm2239 = vcmp.eq.f32.partialorder %v2238, 8.507059e+37
        %v2240 = vand.u32 %v2228, 2147483648
        %v2241 = vor.u32 1.1754944e-38, %v2240
        %v2242 = vsel %vm2239, %v2241, %v2237
        %v2243 = vmul.f32 1.0, %v2242
        %v2244 = vmul.f32 %v2223, %v1930
        %v2245 = vmul.f32 %v2204, %v2224
        %v2246 = vadd.f32 %v2244, %v2245
        %v2247 = vtanh.pop %v2246
        %v2248 = vmul.f32 %v2243, %v2247
        %v2249 = vpack.c.bf16 %v2248, %v2248
        %2250 = vmatpush.bf16.msra.mxu0 %v1499
        %2251 = vmatpush.bf16.msra.mxu0 %v1491
        %2252 = vmatpush.bf16.msra.mxu0 %v1483
        %2253 = vmatpush.bf16.msra.mxu0 %v1475
        %2254 = vmatpush.bf16.msra.mxu0 %v1467
        %2255 = vmatpush.bf16.msra.mxu0 %v1459
        %2256 = vmatpush.bf16.msra.mxu0 %v1451
        %2257 = vmatpush.bf16.msra.mxu0 %v1443
        %2258 = vmatmul.bf16.gmra.mxu0 %v2249
        %v2259 = vpop.f32.mrf.mxu0
        %v2260 = vadd.f32 0.0, %v2259
        %v2261 = vpop.f32.mrf.mxu0
        %2262 = vdwg.mxu0
        %2263 = vmatpush.bf16.msra.mxu0 %v1500
        %2264 = vmatpush.bf16.msra.mxu0 %v1492
        %2265 = vmatpush.bf16.msra.mxu0 %v1484
        %2266 = vmatpush.bf16.msra.mxu0 %v1476
        %2267 = vmatpush.bf16.msra.mxu0 %v1468
        %2268 = vmatpush.bf16.msra.mxu0 %v1460
        %2269 = vmatpush.bf16.msra.mxu0 %v1452
        %2270 = vmatpush.bf16.msra.mxu0 %v1444
        %2271 = vmatmul.bf16.gmra.mxu0 %v2249
        %v2272 = vpop.f32.mrf.mxu0
        %v2273 = vadd.f32 0.0, %v2272
        %v2274 = vpop.f32.mrf.mxu0
        %2275 = vdwg.mxu0
        %2276 = vmatpush.bf16.msra.mxu0 %v1501
        %2277 = vmatpush.bf16.msra.mxu0 %v1493
        %2278 = vmatpush.bf16.msra.mxu0 %v1485
        %2279 = vmatpush.bf16.msra.mxu0 %v1477
        %2280 = vmatpush.bf16.msra.mxu0 %v1469
        %2281 = vmatpush.bf16.msra.mxu0 %v1461
        %2282 = vmatpush.bf16.msra.mxu0 %v1453
        %2283 = vmatpush.bf16.msra.mxu0 %v1445
        %2284 = vmatmul.bf16.gmra.mxu0 %v2249
        %v2285 = vpop.f32.mrf.mxu0
        %v2286 = vadd.f32 0.0, %v2285
        %v2287 = vpop.f32.mrf.mxu0
        %2288 = vdwg.mxu0
        %2289 = vmatpush.bf16.msra.mxu0 %v1502
        %2290 = vmatpush.bf16.msra.mxu0 %v1494
        %2291 = vmatpush.bf16.msra.mxu0 %v1486
        %2292 = vmatpush.bf16.msra.mxu0 %v1478
        %2293 = vmatpush.bf16.msra.mxu0 %v1470
        %2294 = vmatpush.bf16.msra.mxu0 %v1462
        %2295 = vmatpush.bf16.msra.mxu0 %v1454
        %2296 = vmatpush.bf16.msra.mxu0 %v1446
        %2297 = vmatmul.bf16.gmra.mxu0 %v2249
        %v2298 = vpop.f32.mrf.mxu0
        %v2299 = vadd.f32 0.0, %v2298
        %v2300 = vpop.f32.mrf.mxu0
        %2301 = vdwg.mxu0
        %2302 = vmatpush.bf16.msra.mxu0 %v1503
        %2303 = vmatpush.bf16.msra.mxu0 %v1495
        %2304 = vmatpush.bf16.msra.mxu0 %v1487
        %2305 = vmatpush.bf16.msra.mxu0 %v1479
        %2306 = vmatpush.bf16.msra.mxu0 %v1471
        %2307 = vmatpush.bf16.msra.mxu0 %v1463
        %2308 = vmatpush.bf16.msra.mxu0 %v1455
        %2309 = vmatpush.bf16.msra.mxu0 %v1447
        %2310 = vmatmul.bf16.gmra.mxu0 %v2249
        %v2311 = vpop.f32.mrf.mxu0
        %v2312 = vadd.f32 0.0, %v2311
        %v2313 = vpop.f32.mrf.mxu0
        %2314 = vdwg.mxu0
        %2315 = vmatpush.bf16.msra.mxu0 %v1504
        %2316 = vmatpush.bf16.msra.mxu0 %v1496
        %2317 = vmatpush.bf16.msra.mxu0 %v1488
        %2318 = vmatpush.bf16.msra.mxu0 %v1480
        %2319 = vmatpush.bf16.msra.mxu0 %v1472
        %2320 = vmatpush.bf16.msra.mxu0 %v1464
        %2321 = vmatpush.bf16.msra.mxu0 %v1456
        %2322 = vmatpush.bf16.msra.mxu0 %v1448
        %2323 = vmatmul.bf16.gmra.mxu0 %v2249
        %v2324 = vpop.f32.mrf.mxu0
        %v2325 = vadd.f32 0.0, %v2324
        %v2326 = vpop.f32.mrf.mxu0
        %2327 = vdwg.mxu0
        %2328 = vmatpush.bf16.msra.mxu0 %v1505
        %2329 = vmatpush.bf16.msra.mxu0 %v1497
        %2330 = vmatpush.bf16.msra.mxu0 %v1489
        %2331 = vmatpush.bf16.msra.mxu0 %v1481
        %2332 = vmatpush.bf16.msra.mxu0 %v1473
        %2333 = vmatpush.bf16.msra.mxu0 %v1465
        %2334 = vmatpush.bf16.msra.mxu0 %v1457
        %2335 = vmatpush.bf16.msra.mxu0 %v1449
        %2336 = vmatmul.bf16.gmra.mxu0 %v2249
        %v2337 = vpop.f32.mrf.mxu0
        %v2338 = vadd.f32 0.0, %v2337
        %v2339 = vpop.f32.mrf.mxu0
        %2340 = vdwg.mxu0
        %2341 = vmatpush.bf16.msra.mxu0 %v1506
        %2342 = vmatpush.bf16.msra.mxu0 %v1498
        %2343 = vmatpush.bf16.msra.mxu0 %v1490
        %2344 = vmatpush.bf16.msra.mxu0 %v1482
        %2345 = vmatpush.bf16.msra.mxu0 %v1474
        %2346 = vmatpush.bf16.msra.mxu0 %v1466
        %2347 = vmatpush.bf16.msra.mxu0 %v1458
        %2348 = vmatpush.bf16.msra.mxu0 %v1450
        %2349 = vmatmul.bf16.gmra.mxu0 %v2249
        %v2350 = vpop.f32.mrf.mxu0
        %v2351 = vadd.f32 0.0, %v2350
        %v2352 = vpop.f32.mrf.mxu0
        %2353 = vdwg.mxu0
        %v2354 = vadd.f32 %v2312, %v2135
        %v2355 = vadd.f32 %v2325, %v2148
        %v2356 = vadd.f32 %v2338, %v2161
        %v2357 = vadd.f32 %v2351, %v2174
        %v2358 = vadd.f32 %v2354, %v947
        %v2359 = vadd.f32 %v2355, %v948
        %v2360 = vadd.f32 %v2356, %v949
        %v2361 = vadd.f32 %v2357, %v950
        %v2362 = vxor.u32 %v2358, 2147483648
        %v2363 = vmul.f32 %v2362, 1.442695
        %v2364 = vpow.pop %v2363
        %v2365 = vadd.f32 %v2364, 1.0
        %v2366 = vrcp.pop %v2365
        %v2367 = vmul.f32 %v2365, %v2366
        %v2368 = vsub.f32 1.0, %v2367
        %v2369 = vmul.f32 %v2366, %v2368
        %v2370 = vadd.f32 %v2366, %v2369
        %vm2371 = vweird.f32 %v2365
        %vm2372 = vweird.f32 %v2366
        %vm2373 = vmor %vm2371, %vm2372
        %v2374 = vsel %vm2373, %v2366, %v2370
        %v2375 = vand.u32 2147483647, %v2365
        %vm2376 = vcmp.eq.f32.partialorder %v2375, 8.507059e+37
        %v2377 = vand.u32 %v2365, 2147483648
        %v2378 = vor.u32 1.1754944e-38, %v2377
        %v2379 = vsel %vm2376, %v2378, %v2374
        %v2380 = vmul.f32 1.0, %v2379
        %v2381 = vxor.u32 %v2359, 2147483648
        %v2382 = vmul.f32 %v2381, 1.442695
        %v2383 = vpow.pop %v2382
        %v2384 = vadd.f32 %v2383, 1.0
        %v2385 = vrcp.pop %v2384
        %v2386 = vmul.f32 %v2384, %v2385
        %v2387 = vsub.f32 1.0, %v2386
        %v2388 = vmul.f32 %v2385, %v2387
        %v2389 = vadd.f32 %v2385, %v2388
        %vm2390 = vweird.f32 %v2384
        %vm2391 = vweird.f32 %v2385
        %vm2392 = vmor %vm2390, %vm2391
        %v2393 = vsel %vm2392, %v2385, %v2389
        %v2394 = vand.u32 2147483647, %v2384
        %vm2395 = vcmp.eq.f32.partialorder %v2394, 8.507059e+37
        %v2396 = vand.u32 %v2384, 2147483648
        %v2397 = vor.u32 1.1754944e-38, %v2396
        %v2398 = vsel %vm2395, %v2397, %v2393
        %v2399 = vmul.f32 1.0, %v2398
        %v2400 = vtanh.pop %v2360
        %v2401 = vxor.u32 %v2361, 2147483648
        %v2402 = vmul.f32 %v2401, 1.442695
        %v2403 = vpow.pop %v2402
        %v2404 = vadd.f32 %v2403, 1.0
        %v2405 = vrcp.pop %v2404
        %v2406 = vmul.f32 %v2404, %v2405
        %v2407 = vsub.f32 1.0, %v2406
        %v2408 = vmul.f32 %v2405, %v2407
        %v2409 = vadd.f32 %v2405, %v2408
        %vm2410 = vweird.f32 %v2404
        %vm2411 = vweird.f32 %v2405
        %vm2412 = vmor %vm2410, %vm2411
        %v2413 = vsel %vm2412, %v2405, %v2409
        %v2414 = vand.u32 2147483647, %v2404
        %vm2415 = vcmp.eq.f32.partialorder %v2414, 8.507059e+37
        %v2416 = vand.u32 %v2404, 2147483648
        %v2417 = vor.u32 1.1754944e-38, %v2416
        %v2418 = vsel %vm2415, %v2417, %v2413
        %v2419 = vmul.f32 1.0, %v2418
        %v2420 = vmul.f32 %v2399, %v2106
        %v2421 = vmul.f32 %v2380, %v2400
        %v2422 = vadd.f32 %v2420, %v2421
        %v2423 = vtanh.pop %v2422
        %v2424 = vmul.f32 %v2419, %v2423
        %v2425 = vpack.c.bf16 %v2424, %v2424
        %2426 = vmatpush.bf16.msra.mxu0 %v1786
        %2427 = vmatpush.bf16.msra.mxu0 %v1785
        %2428 = vmatpush.bf16.msra.mxu0 %v1784
        %2429 = vmatpush.bf16.msra.mxu0 %v1783
        %2430 = vmatpush.bf16.msra.mxu0 %v1782
        %2431 = vmatpush.bf16.msra.mxu0 %v1781
        %2432 = vmatpush.bf16.msra.mxu0 %v1780
        %2433 = vmatpush.bf16.msra.mxu0 %v1779
        %2434 = vmatmul.bf16.gmra.mxu0 %v2425
        %v2435 = vpop.f32.mrf.mxu0
        %v2436 = vadd.f32 %v957, %v2435
        %v2437 = vpop.f32.mrf.mxu0
        %2438 = vdwg.mxu0
        %s2439 = scalar_lea.vmem %s452, 16 [#allocation19]
        %2440 = vst [vmem:[%s2439] sm:$0xff] %v2436
        %2441 = vst [vmem:[#allocation20] sm:$0xff] %v2248
        %s2442 = scalar_lea.vmem [#allocation20], 8
        %2443 = vst [vmem:[%s2442] sm:$0xff] %v2424
        %2444 = vst [vmem:[#allocation22] sm:$0xff] %v2246
        %s2445 = scalar_lea.vmem [#allocation22], 8
        %2446 = vst [vmem:[%s2445] sm:$0xff] %v2422
        %2447 = vmatpush.bf16.msra.mxu0 %v1091
        %2448 = vmatpush.bf16.msra.mxu0 %v1087
        %2449 = vmatpush.bf16.msra.mxu0 %v1083
        %2450 = vmatpush.bf16.msra.mxu0 %v1079
        %2451 = vmatpush.bf16.msra.mxu0 %v1075
        %2452 = vmatpush.bf16.msra.mxu0 %v1071
        %2453 = vmatpush.bf16.msra.mxu0 %v1067
        %2454 = vmatpush.bf16.msra.mxu0 %v1063
        %2455 = vmatmul.bf16.gmra.mxu0 %v2425
        %v2456 = vpop.f32.mrf.mxu0
        %v2457 = vadd.f32 0.0, %v2456
        %v2458 = vpop.f32.mrf.mxu0
        %2459 = vdwg.mxu0
        %2460 = vmatpush.bf16.msra.mxu0 %v1092
        %2461 = vmatpush.bf16.msra.mxu0 %v1088
        %2462 = vmatpush.bf16.msra.mxu0 %v1084
        %2463 = vmatpush.bf16.msra.mxu0 %v1080
        %2464 = vmatpush.bf16.msra.mxu0 %v1076
        %2465 = vmatpush.bf16.msra.mxu0 %v1072
        %2466 = vmatpush.bf16.msra.mxu0 %v1068
        %2467 = vmatpush.bf16.msra.mxu0 %v1064
        %2468 = vmatmul.bf16.gmra.mxu0 %v2425
        %v2469 = vpop.f32.mrf.mxu0
        %v2470 = vadd.f32 0.0, %v2469
        %v2471 = vpop.f32.mrf.mxu0
        %2472 = vdwg.mxu0
        %2473 = vmatpush.bf16.msra.mxu0 %v1093
        %2474 = vmatpush.bf16.msra.mxu0 %v1089
        %2475 = vmatpush.bf16.msra.mxu0 %v1085
        %2476 = vmatpush.bf16.msra.mxu0 %v1081
        %2477 = vmatpush.bf16.msra.mxu0 %v1077
        %2478 = vmatpush.bf16.msra.mxu0 %v1073
        %2479 = vmatpush.bf16.msra.mxu0 %v1069
        %2480 = vmatpush.bf16.msra.mxu0 %v1065
        %2481 = vmatmul.bf16.gmra.mxu0 %v2425
        %v2482 = vpop.f32.mrf.mxu0
        %v2483 = vadd.f32 0.0, %v2482
        %v2484 = vpop.f32.mrf.mxu0
        %2485 = vdwg.mxu0
        %2486 = vmatpush.bf16.msra.mxu0 %v1094
        %2487 = vmatpush.bf16.msra.mxu0 %v1090
        %2488 = vmatpush.bf16.msra.mxu0 %v1086
        %2489 = vmatpush.bf16.msra.mxu0 %v1082
        %2490 = vmatpush.bf16.msra.mxu0 %v1078
        %2491 = vmatpush.bf16.msra.mxu0 %v1074
        %2492 = vmatpush.bf16.msra.mxu0 %v1070
        %2493 = vmatpush.bf16.msra.mxu0 %v1066
        %2494 = vmatmul.bf16.gmra.mxu0 %v2425
        %v2495 = vpop.f32.mrf.mxu0
        %v2496 = vadd.f32 0.0, %v2495
        %v2497 = vpop.f32.mrf.mxu0
        %2498 = vdwg.mxu0
        %s2499 = scalar_lea.vmem [#allocation7], 96
        %v2500 = vld [vmem:[%s2499] sm:$0xff]
        %v2501 = vld [vmem:[%s2499 + $0x8] sm:$0xff]
        %v2502 = vld [vmem:[%s2499 + $0x10] sm:$0xff]
        %v2503 = vld [vmem:[%s2499 + $0x18] sm:$0xff]
        %v2504 = vadd.f32 %v2500, %v2260
        %v2505 = vadd.f32 %v2501, %v2273
        %v2506 = vadd.f32 %v2502, %v2286
        %v2507 = vadd.f32 %v2503, %v2299
        %v2508 = vxor.u32 %v2504, 2147483648
        %v2509 = vmul.f32 %v2508, 1.442695
        %v2510 = vpow.pop %v2509
        %v2511 = vadd.f32 %v2510, 1.0
        %v2512 = vrcp.pop %v2511
        %v2513 = vmul.f32 %v2511, %v2512
        %v2514 = vsub.f32 1.0, %v2513
        %v2515 = vmul.f32 %v2512, %v2514
        %v2516 = vadd.f32 %v2512, %v2515
        %vm2517 = vweird.f32 %v2511
        %vm2518 = vweird.f32 %v2512
        %vm2519 = vmor %vm2517, %vm2518
        %v2520 = vsel %vm2519, %v2512, %v2516
        %v2521 = vand.u32 2147483647, %v2511
        %vm2522 = vcmp.eq.f32.partialorder %v2521, 8.507059e+37
        %v2523 = vand.u32 %v2511, 2147483648
        %v2524 = vor.u32 1.1754944e-38, %v2523
        %v2525 = vsel %vm2522, %v2524, %v2520
        %v2526 = vmul.f32 1.0, %v2525
        %v2527 = vxor.u32 %v2505, 2147483648
        %v2528 = vmul.f32 %v2527, 1.442695
        %v2529 = vpow.pop %v2528
        %v2530 = vadd.f32 %v2529, 1.0
        %v2531 = vrcp.pop %v2530
        %v2532 = vmul.f32 %v2530, %v2531
        %v2533 = vsub.f32 1.0, %v2532
        %v2534 = vmul.f32 %v2531, %v2533
        %v2535 = vadd.f32 %v2531, %v2534
        %vm2536 = vweird.f32 %v2530
        %vm2537 = vweird.f32 %v2531
        %vm2538 = vmor %vm2536, %vm2537
        %v2539 = vsel %vm2538, %v2531, %v2535
        %v2540 = vand.u32 2147483647, %v2530
        %vm2541 = vcmp.eq.f32.partialorder %v2540, 8.507059e+37
        %v2542 = vand.u32 %v2530, 2147483648
        %v2543 = vor.u32 1.1754944e-38, %v2542
        %v2544 = vsel %vm2541, %v2543, %v2539
        %v2545 = vmul.f32 1.0, %v2544
        %v2546 = vtanh.pop %v2506
        %v2547 = vxor.u32 %v2507, 2147483648
        %v2548 = vmul.f32 %v2547, 1.442695
        %v2549 = vpow.pop %v2548
        %v2550 = vadd.f32 %v2549, 1.0
        %v2551 = vrcp.pop %v2550
        %v2552 = vmul.f32 %v2550, %v2551
        %v2553 = vsub.f32 1.0, %v2552
        %v2554 = vmul.f32 %v2551, %v2553
        %v2555 = vadd.f32 %v2551, %v2554
        %vm2556 = vweird.f32 %v2550
        %vm2557 = vweird.f32 %v2551
        %vm2558 = vmor %vm2556, %vm2557
        %v2559 = vsel %vm2558, %v2551, %v2555
        %v2560 = vand.u32 2147483647, %v2550
        %vm2561 = vcmp.eq.f32.partialorder %v2560, 8.507059e+37
        %v2562 = vand.u32 %v2550, 2147483648
        %v2563 = vor.u32 1.1754944e-38, %v2562
        %v2564 = vsel %vm2561, %v2563, %v2559
        %v2565 = vmul.f32 1.0, %v2564
        %v2566 = vmul.f32 %v2545, %v2246
        %v2567 = vmul.f32 %v2526, %v2546
        %v2568 = vadd.f32 %v2566, %v2567
        %v2569 = vtanh.pop %v2568
        %v2570 = vmul.f32 %v2565, %v2569
        %v2571 = vpack.c.bf16 %v2570, %v2570
        %2572 = vmatpush.bf16.msra.mxu0 %v1499
        %2573 = vmatpush.bf16.msra.mxu0 %v1491
        %2574 = vmatpush.bf16.msra.mxu0 %v1483
        %2575 = vmatpush.bf16.msra.mxu0 %v1475
        %2576 = vmatpush.bf16.msra.mxu0 %v1467
        %2577 = vmatpush.bf16.msra.mxu0 %v1459
        %2578 = vmatpush.bf16.msra.mxu0 %v1451
        %2579 = vmatpush.bf16.msra.mxu0 %v1443
        %2580 = vmatmul.bf16.gmra.mxu0 %v2571
        %v2581 = vpop.f32.mrf.mxu0
        %v2582 = vadd.f32 0.0, %v2581
        %v2583 = vpop.f32.mrf.mxu0
        %2584 = vdwg.mxu0
        %2585 = vmatpush.bf16.msra.mxu0 %v1500
        %2586 = vmatpush.bf16.msra.mxu0 %v1492
        %2587 = vmatpush.bf16.msra.mxu0 %v1484
        %2588 = vmatpush.bf16.msra.mxu0 %v1476
        %2589 = vmatpush.bf16.msra.mxu0 %v1468
        %2590 = vmatpush.bf16.msra.mxu0 %v1460
        %2591 = vmatpush.bf16.msra.mxu0 %v1452
        %2592 = vmatpush.bf16.msra.mxu0 %v1444
        %2593 = vmatmul.bf16.gmra.mxu0 %v2571
        %v2594 = vpop.f32.mrf.mxu0
        %v2595 = vadd.f32 0.0, %v2594
        %v2596 = vpop.f32.mrf.mxu0
        %2597 = vdwg.mxu0
        %2598 = vmatpush.bf16.msra.mxu0 %v1501
        %2599 = vmatpush.bf16.msra.mxu0 %v1493
        %2600 = vmatpush.bf16.msra.mxu0 %v1485
        %2601 = vmatpush.bf16.msra.mxu0 %v1477
        %2602 = vmatpush.bf16.msra.mxu0 %v1469
        %2603 = vmatpush.bf16.msra.mxu0 %v1461
        %2604 = vmatpush.bf16.msra.mxu0 %v1453
        %2605 = vmatpush.bf16.msra.mxu0 %v1445
        %2606 = vmatmul.bf16.gmra.mxu0 %v2571
        %v2607 = vpop.f32.mrf.mxu0
        %v2608 = vadd.f32 0.0, %v2607
        %v2609 = vpop.f32.mrf.mxu0
        %2610 = vdwg.mxu0
        %2611 = vmatpush.bf16.msra.mxu0 %v1502
        %2612 = vmatpush.bf16.msra.mxu0 %v1494
        %2613 = vmatpush.bf16.msra.mxu0 %v1486
        %2614 = vmatpush.bf16.msra.mxu0 %v1478
        %2615 = vmatpush.bf16.msra.mxu0 %v1470
        %2616 = vmatpush.bf16.msra.mxu0 %v1462
        %2617 = vmatpush.bf16.msra.mxu0 %v1454
        %2618 = vmatpush.bf16.msra.mxu0 %v1446
        %2619 = vmatmul.bf16.gmra.mxu0 %v2571
        %v2620 = vpop.f32.mrf.mxu0
        %v2621 = vadd.f32 0.0, %v2620
        %v2622 = vpop.f32.mrf.mxu0
        %2623 = vdwg.mxu0
        %2624 = vmatpush.bf16.msra.mxu0 %v1503
        %2625 = vmatpush.bf16.msra.mxu0 %v1495
        %2626 = vmatpush.bf16.msra.mxu0 %v1487
        %2627 = vmatpush.bf16.msra.mxu0 %v1479
        %2628 = vmatpush.bf16.msra.mxu0 %v1471
        %2629 = vmatpush.bf16.msra.mxu0 %v1463
        %2630 = vmatpush.bf16.msra.mxu0 %v1455
        %2631 = vmatpush.bf16.msra.mxu0 %v1447
        %2632 = vmatmul.bf16.gmra.mxu0 %v2571
        %v2633 = vpop.f32.mrf.mxu0
        %v2634 = vadd.f32 0.0, %v2633
        %v2635 = vpop.f32.mrf.mxu0
        %2636 = vdwg.mxu0
        %2637 = vmatpush.bf16.msra.mxu0 %v1504
        %2638 = vmatpush.bf16.msra.mxu0 %v1496
        %2639 = vmatpush.bf16.msra.mxu0 %v1488
        %2640 = vmatpush.bf16.msra.mxu0 %v1480
        %2641 = vmatpush.bf16.msra.mxu0 %v1472
        %2642 = vmatpush.bf16.msra.mxu0 %v1464
        %2643 = vmatpush.bf16.msra.mxu0 %v1456
        %2644 = vmatpush.bf16.msra.mxu0 %v1448
        %2645 = vmatmul.bf16.gmra.mxu0 %v2571
        %v2646 = vpop.f32.mrf.mxu0
        %v2647 = vadd.f32 0.0, %v2646
        %v2648 = vpop.f32.mrf.mxu0
        %2649 = vdwg.mxu0
        %2650 = vmatpush.bf16.msra.mxu0 %v1505
        %2651 = vmatpush.bf16.msra.mxu0 %v1497
        %2652 = vmatpush.bf16.msra.mxu0 %v1489
        %2653 = vmatpush.bf16.msra.mxu0 %v1481
        %2654 = vmatpush.bf16.msra.mxu0 %v1473
        %2655 = vmatpush.bf16.msra.mxu0 %v1465
        %2656 = vmatpush.bf16.msra.mxu0 %v1457
        %2657 = vmatpush.bf16.msra.mxu0 %v1449
        %2658 = vmatmul.bf16.gmra.mxu0 %v2571
        %v2659 = vpop.f32.mrf.mxu0
        %v2660 = vadd.f32 0.0, %v2659
        %v2661 = vpop.f32.mrf.mxu0
        %2662 = vdwg.mxu0
        %2663 = vmatpush.bf16.msra.mxu0 %v1506
        %2664 = vmatpush.bf16.msra.mxu0 %v1498
        %2665 = vmatpush.bf16.msra.mxu0 %v1490
        %2666 = vmatpush.bf16.msra.mxu0 %v1482
        %2667 = vmatpush.bf16.msra.mxu0 %v1474
        %2668 = vmatpush.bf16.msra.mxu0 %v1466
        %2669 = vmatpush.bf16.msra.mxu0 %v1458
        %2670 = vmatpush.bf16.msra.mxu0 %v1450
        %2671 = vmatmul.bf16.gmra.mxu0 %v2571
        %v2672 = vpop.f32.mrf.mxu0
        %v2673 = vadd.f32 0.0, %v2672
        %v2674 = vpop.f32.mrf.mxu0
        %2675 = vdwg.mxu0
        %v2676 = vadd.f32 %v2634, %v2457
        %v2677 = vadd.f32 %v2647, %v2470
        %v2678 = vadd.f32 %v2660, %v2483
        %v2679 = vadd.f32 %v2673, %v2496
        %v2680 = vadd.f32 %v2676, %v947
        %v2681 = vadd.f32 %v2677, %v948
        %v2682 = vadd.f32 %v2678, %v949
        %v2683 = vadd.f32 %v2679, %v950
        %v2684 = vxor.u32 %v2680, 2147483648
        %v2685 = vmul.f32 %v2684, 1.442695
        %v2686 = vpow.pop %v2685
        %v2687 = vadd.f32 %v2686, 1.0
        %v2688 = vrcp.pop %v2687
        %v2689 = vmul.f32 %v2687, %v2688
        %v2690 = vsub.f32 1.0, %v2689
        %v2691 = vmul.f32 %v2688, %v2690
        %v2692 = vadd.f32 %v2688, %v2691
        %vm2693 = vweird.f32 %v2687
        %vm2694 = vweird.f32 %v2688
        %vm2695 = vmor %vm2693, %vm2694
        %v2696 = vsel %vm2695, %v2688, %v2692
        %v2697 = vand.u32 2147483647, %v2687
        %vm2698 = vcmp.eq.f32.partialorder %v2697, 8.507059e+37
        %v2699 = vand.u32 %v2687, 2147483648
        %v2700 = vor.u32 1.1754944e-38, %v2699
        %v2701 = vsel %vm2698, %v2700, %v2696
        %v2702 = vmul.f32 1.0, %v2701
        %v2703 = vxor.u32 %v2681, 2147483648
        %v2704 = vmul.f32 %v2703, 1.442695
        %v2705 = vpow.pop %v2704
        %v2706 = vadd.f32 %v2705, 1.0
        %v2707 = vrcp.pop %v2706
        %v2708 = vmul.f32 %v2706, %v2707
        %v2709 = vsub.f32 1.0, %v2708
        %v2710 = vmul.f32 %v2707, %v2709
        %v2711 = vadd.f32 %v2707, %v2710
        %vm2712 = vweird.f32 %v2706
        %vm2713 = vweird.f32 %v2707
        %vm2714 = vmor %vm2712, %vm2713
        %v2715 = vsel %vm2714, %v2707, %v2711
        %v2716 = vand.u32 2147483647, %v2706
        %vm2717 = vcmp.eq.f32.partialorder %v2716, 8.507059e+37
        %v2718 = vand.u32 %v2706, 2147483648
        %v2719 = vor.u32 1.1754944e-38, %v2718
        %v2720 = vsel %vm2717, %v2719, %v2715
        %v2721 = vmul.f32 1.0, %v2720
        %v2722 = vtanh.pop %v2682
        %v2723 = vxor.u32 %v2683, 2147483648
        %v2724 = vmul.f32 %v2723, 1.442695
        %v2725 = vpow.pop %v2724
        %v2726 = vadd.f32 %v2725, 1.0
        %v2727 = vrcp.pop %v2726
        %v2728 = vmul.f32 %v2726, %v2727
        %v2729 = vsub.f32 1.0, %v2728
        %v2730 = vmul.f32 %v2727, %v2729
        %v2731 = vadd.f32 %v2727, %v2730
        %vm2732 = vweird.f32 %v2726
        %vm2733 = vweird.f32 %v2727
        %vm2734 = vmor %vm2732, %vm2733
        %v2735 = vsel %vm2734, %v2727, %v2731
        %v2736 = vand.u32 2147483647, %v2726
        %vm2737 = vcmp.eq.f32.partialorder %v2736, 8.507059e+37
        %v2738 = vand.u32 %v2726, 2147483648
        %v2739 = vor.u32 1.1754944e-38, %v2738
        %v2740 = vsel %vm2737, %v2739, %v2735
        %v2741 = vmul.f32 1.0, %v2740
        %v2742 = vmul.f32 %v2721, %v2422
        %v2743 = vmul.f32 %v2702, %v2722
        %v2744 = vadd.f32 %v2742, %v2743
        %v2745 = vtanh.pop %v2744
        %v2746 = vmul.f32 %v2741, %v2745
        %v2747 = vpack.c.bf16 %v2746, %v2746
        %2748 = vmatpush.bf16.msra.mxu0 %v1786
        %2749 = vmatpush.bf16.msra.mxu0 %v1785
        %2750 = vmatpush.bf16.msra.mxu0 %v1784
        %2751 = vmatpush.bf16.msra.mxu0 %v1783
        %2752 = vmatpush.bf16.msra.mxu0 %v1782
        %2753 = vmatpush.bf16.msra.mxu0 %v1781
        %2754 = vmatpush.bf16.msra.mxu0 %v1780
        %2755 = vmatpush.bf16.msra.mxu0 %v1779
        %2756 = vmatmul.bf16.gmra.mxu0 %v2747
        %v2757 = vpop.f32.mrf.mxu0
        %v2758 = vadd.f32 %v957, %v2757
        %v2759 = vpop.f32.mrf.mxu0
        %2760 = vdwg.mxu0
        %s2761 = scalar_lea.vmem %s452, 24 [#allocation19]
        %2762 = vst [vmem:[%s2761] sm:$0xff] %v2758
        %2763 = vmatpush.bf16.msra.mxu0 %v1091
        %2764 = vmatpush.bf16.msra.mxu0 %v1087
        %2765 = vmatpush.bf16.msra.mxu0 %v1083
        %2766 = vmatpush.bf16.msra.mxu0 %v1079
        %2767 = vmatpush.bf16.msra.mxu0 %v1075
        %2768 = vmatpush.bf16.msra.mxu0 %v1071
        %2769 = vmatpush.bf16.msra.mxu0 %v1067
        %2770 = vmatpush.bf16.msra.mxu0 %v1063
        %2771 = vmatmul.bf16.gmra.mxu0 %v2747
        %v2772 = vpop.f32.mrf.mxu0
        %v2773 = vadd.f32 0.0, %v2772
        %v2774 = vpop.f32.mrf.mxu0
        %2775 = vdwg.mxu0
        %2776 = vmatpush.bf16.msra.mxu0 %v1092
        %2777 = vmatpush.bf16.msra.mxu0 %v1088
        %2778 = vmatpush.bf16.msra.mxu0 %v1084
        %2779 = vmatpush.bf16.msra.mxu0 %v1080
        %2780 = vmatpush.bf16.msra.mxu0 %v1076
        %2781 = vmatpush.bf16.msra.mxu0 %v1072
        %2782 = vmatpush.bf16.msra.mxu0 %v1068
        %2783 = vmatpush.bf16.msra.mxu0 %v1064
        %2784 = vmatmul.bf16.gmra.mxu0 %v2747
        %v2785 = vpop.f32.mrf.mxu0
        %v2786 = vadd.f32 0.0, %v2785
        %v2787 = vpop.f32.mrf.mxu0
        %2788 = vdwg.mxu0
        %2789 = vmatpush.bf16.msra.mxu0 %v1093
        %2790 = vmatpush.bf16.msra.mxu0 %v1089
        %2791 = vmatpush.bf16.msra.mxu0 %v1085
        %2792 = vmatpush.bf16.msra.mxu0 %v1081
        %2793 = vmatpush.bf16.msra.mxu0 %v1077
        %2794 = vmatpush.bf16.msra.mxu0 %v1073
        %2795 = vmatpush.bf16.msra.mxu0 %v1069
        %2796 = vmatpush.bf16.msra.mxu0 %v1065
        %2797 = vmatmul.bf16.gmra.mxu0 %v2747
        %v2798 = vpop.f32.mrf.mxu0
        %v2799 = vadd.f32 0.0, %v2798
        %v2800 = vpop.f32.mrf.mxu0
        %2801 = vdwg.mxu0
        %2802 = vmatpush.bf16.msra.mxu0 %v1094
        %2803 = vmatpush.bf16.msra.mxu0 %v1090
        %2804 = vmatpush.bf16.msra.mxu0 %v1086
        %2805 = vmatpush.bf16.msra.mxu0 %v1082
        %2806 = vmatpush.bf16.msra.mxu0 %v1078
        %2807 = vmatpush.bf16.msra.mxu0 %v1074
        %2808 = vmatpush.bf16.msra.mxu0 %v1070
        %2809 = vmatpush.bf16.msra.mxu0 %v1066
        %2810 = vmatmul.bf16.gmra.mxu0 %v2747
        %v2811 = vpop.f32.mrf.mxu0
        %v2812 = vadd.f32 0.0, %v2811
        %v2813 = vpop.f32.mrf.mxu0
        %2814 = vdwg.mxu0
        %s2815 = scalar_lea.vmem [#allocation7], 128
        %v2816 = vld [vmem:[%s2815] sm:$0xff]
        %v2817 = vld [vmem:[%s2815 + $0x8] sm:$0xff]
        %v2818 = vld [vmem:[%s2815 + $0x10] sm:$0xff]
        %v2819 = vld [vmem:[%s2815 + $0x18] sm:$0xff]
        %v2820 = vadd.f32 %v2816, %v2582
        %v2821 = vadd.f32 %v2817, %v2595
        %v2822 = vadd.f32 %v2818, %v2608
        %v2823 = vadd.f32 %v2819, %v2621
        %v2824 = vxor.u32 %v2820, 2147483648
        %v2825 = vmul.f32 %v2824, 1.442695
        %v2826 = vpow.pop %v2825
        %v2827 = vadd.f32 %v2826, 1.0
        %v2828 = vrcp.pop %v2827
        %v2829 = vmul.f32 %v2827, %v2828
        %v2830 = vsub.f32 1.0, %v2829
        %v2831 = vmul.f32 %v2828, %v2830
        %v2832 = vadd.f32 %v2828, %v2831
        %vm2833 = vweird.f32 %v2827
        %vm2834 = vweird.f32 %v2828
        %vm2835 = vmor %vm2833, %vm2834
        %v2836 = vsel %vm2835, %v2828, %v2832
        %v2837 = vand.u32 2147483647, %v2827
        %vm2838 = vcmp.eq.f32.partialorder %v2837, 8.507059e+37
        %v2839 = vand.u32 %v2827, 2147483648
        %v2840 = vor.u32 1.1754944e-38, %v2839
        %v2841 = vsel %vm2838, %v2840, %v2836
        %v2842 = vmul.f32 1.0, %v2841
        %v2843 = vxor.u32 %v2821, 2147483648
        %v2844 = vmul.f32 %v2843, 1.442695
        %v2845 = vpow.pop %v2844
        %v2846 = vadd.f32 %v2845, 1.0
        %v2847 = vrcp.pop %v2846
        %v2848 = vmul.f32 %v2846, %v2847
        %v2849 = vsub.f32 1.0, %v2848
        %v2850 = vmul.f32 %v2847, %v2849
        %v2851 = vadd.f32 %v2847, %v2850
        %vm2852 = vweird.f32 %v2846
        %vm2853 = vweird.f32 %v2847
        %vm2854 = vmor %vm2852, %vm2853
        %v2855 = vsel %vm2854, %v2847, %v2851
        %v2856 = vand.u32 2147483647, %v2846
        %vm2857 = vcmp.eq.f32.partialorder %v2856, 8.507059e+37
        %v2858 = vand.u32 %v2846, 2147483648
        %v2859 = vor.u32 1.1754944e-38, %v2858
        %v2860 = vsel %vm2857, %v2859, %v2855
        %v2861 = vmul.f32 1.0, %v2860
        %v2862 = vtanh.pop %v2822
        %v2863 = vxor.u32 %v2823, 2147483648
        %v2864 = vmul.f32 %v2863, 1.442695
        %v2865 = vpow.pop %v2864
        %v2866 = vadd.f32 %v2865, 1.0
        %v2867 = vrcp.pop %v2866
        %v2868 = vmul.f32 %v2866, %v2867
        %v2869 = vsub.f32 1.0, %v2868
        %v2870 = vmul.f32 %v2867, %v2869
        %v2871 = vadd.f32 %v2867, %v2870
        %vm2872 = vweird.f32 %v2866
        %vm2873 = vweird.f32 %v2867
        %vm2874 = vmor %vm2872, %vm2873
        %v2875 = vsel %vm2874, %v2867, %v2871
        %v2876 = vand.u32 2147483647, %v2866
        %vm2877 = vcmp.eq.f32.partialorder %v2876, 8.507059e+37
        %v2878 = vand.u32 %v2866, 2147483648
        %v2879 = vor.u32 1.1754944e-38, %v2878
        %v2880 = vsel %vm2877, %v2879, %v2875
        %v2881 = vmul.f32 1.0, %v2880
        %v2882 = vmul.f32 %v2861, %v2568
        %v2883 = vmul.f32 %v2842, %v2862
        %v2884 = vadd.f32 %v2882, %v2883
        %v2885 = vtanh.pop %v2884
        %v2886 = vmul.f32 %v2881, %v2885
        %v2887 = vpack.c.bf16 %v2886, %v2886
        %2888 = vmatpush.bf16.msra.mxu0 %v1499
        %2889 = vmatpush.bf16.msra.mxu0 %v1491
        %2890 = vmatpush.bf16.msra.mxu0 %v1483
        %2891 = vmatpush.bf16.msra.mxu0 %v1475
        %2892 = vmatpush.bf16.msra.mxu0 %v1467
        %2893 = vmatpush.bf16.msra.mxu0 %v1459
        %2894 = vmatpush.bf16.msra.mxu0 %v1451
        %2895 = vmatpush.bf16.msra.mxu0 %v1443
        %2896 = vmatmul.bf16.gmra.mxu0 %v2887
        %v2897 = vpop.f32.mrf.mxu0
        %v2898 = vadd.f32 0.0, %v2897
        %v2899 = vpop.f32.mrf.mxu0
        %2900 = vdwg.mxu0
        %2901 = vmatpush.bf16.msra.mxu0 %v1500
        %2902 = vmatpush.bf16.msra.mxu0 %v1492
        %2903 = vmatpush.bf16.msra.mxu0 %v1484
        %2904 = vmatpush.bf16.msra.mxu0 %v1476
        %2905 = vmatpush.bf16.msra.mxu0 %v1468
        %2906 = vmatpush.bf16.msra.mxu0 %v1460
        %2907 = vmatpush.bf16.msra.mxu0 %v1452
        %2908 = vmatpush.bf16.msra.mxu0 %v1444
        %2909 = vmatmul.bf16.gmra.mxu0 %v2887
        %v2910 = vpop.f32.mrf.mxu0
        %v2911 = vadd.f32 0.0, %v2910
        %v2912 = vpop.f32.mrf.mxu0
        %2913 = vdwg.mxu0
        %2914 = vmatpush.bf16.msra.mxu0 %v1501
        %2915 = vmatpush.bf16.msra.mxu0 %v1493
        %2916 = vmatpush.bf16.msra.mxu0 %v1485
        %2917 = vmatpush.bf16.msra.mxu0 %v1477
        %2918 = vmatpush.bf16.msra.mxu0 %v1469
        %2919 = vmatpush.bf16.msra.mxu0 %v1461
        %2920 = vmatpush.bf16.msra.mxu0 %v1453
        %2921 = vmatpush.bf16.msra.mxu0 %v1445
        %2922 = vmatmul.bf16.gmra.mxu0 %v2887
        %v2923 = vpop.f32.mrf.mxu0
        %v2924 = vadd.f32 0.0, %v2923
        %v2925 = vpop.f32.mrf.mxu0
        %2926 = vdwg.mxu0
        %2927 = vmatpush.bf16.msra.mxu0 %v1502
        %2928 = vmatpush.bf16.msra.mxu0 %v1494
        %2929 = vmatpush.bf16.msra.mxu0 %v1486
        %2930 = vmatpush.bf16.msra.mxu0 %v1478
        %2931 = vmatpush.bf16.msra.mxu0 %v1470
        %2932 = vmatpush.bf16.msra.mxu0 %v1462
        %2933 = vmatpush.bf16.msra.mxu0 %v1454
        %2934 = vmatpush.bf16.msra.mxu0 %v1446
        %2935 = vmatmul.bf16.gmra.mxu0 %v2887
        %v2936 = vpop.f32.mrf.mxu0
        %v2937 = vadd.f32 0.0, %v2936
        %v2938 = vpop.f32.mrf.mxu0
        %2939 = vdwg.mxu0
        %2940 = vmatpush.bf16.msra.mxu0 %v1503
        %2941 = vmatpush.bf16.msra.mxu0 %v1495
        %2942 = vmatpush.bf16.msra.mxu0 %v1487
        %2943 = vmatpush.bf16.msra.mxu0 %v1479
        %2944 = vmatpush.bf16.msra.mxu0 %v1471
        %2945 = vmatpush.bf16.msra.mxu0 %v1463
        %2946 = vmatpush.bf16.msra.mxu0 %v1455
        %2947 = vmatpush.bf16.msra.mxu0 %v1447
        %2948 = vmatmul.bf16.gmra.mxu0 %v2887
        %v2949 = vpop.f32.mrf.mxu0
        %v2950 = vadd.f32 0.0, %v2949
        %v2951 = vpop.f32.mrf.mxu0
        %2952 = vdwg.mxu0
        %2953 = vmatpush.bf16.msra.mxu0 %v1504
        %2954 = vmatpush.bf16.msra.mxu0 %v1496
        %2955 = vmatpush.bf16.msra.mxu0 %v1488
        %2956 = vmatpush.bf16.msra.mxu0 %v1480
        %2957 = vmatpush.bf16.msra.mxu0 %v1472
        %2958 = vmatpush.bf16.msra.mxu0 %v1464
        %2959 = vmatpush.bf16.msra.mxu0 %v1456
        %2960 = vmatpush.bf16.msra.mxu0 %v1448
        %2961 = vmatmul.bf16.gmra.mxu0 %v2887
        %v2962 = vpop.f32.mrf.mxu0
        %v2963 = vadd.f32 0.0, %v2962
        %v2964 = vpop.f32.mrf.mxu0
        %2965 = vdwg.mxu0
        %2966 = vmatpush.bf16.msra.mxu0 %v1505
        %2967 = vmatpush.bf16.msra.mxu0 %v1497
        %2968 = vmatpush.bf16.msra.mxu0 %v1489
        %2969 = vmatpush.bf16.msra.mxu0 %v1481
        %2970 = vmatpush.bf16.msra.mxu0 %v1473
        %2971 = vmatpush.bf16.msra.mxu0 %v1465
        %2972 = vmatpush.bf16.msra.mxu0 %v1457
        %2973 = vmatpush.bf16.msra.mxu0 %v1449
        %2974 = vmatmul.bf16.gmra.mxu0 %v2887
        %v2975 = vpop.f32.mrf.mxu0
        %v2976 = vadd.f32 0.0, %v2975
        %v2977 = vpop.f32.mrf.mxu0
        %2978 = vdwg.mxu0
        %2979 = vmatpush.bf16.msra.mxu0 %v1506
        %2980 = vmatpush.bf16.msra.mxu0 %v1498
        %2981 = vmatpush.bf16.msra.mxu0 %v1490
        %2982 = vmatpush.bf16.msra.mxu0 %v1482
        %2983 = vmatpush.bf16.msra.mxu0 %v1474
        %2984 = vmatpush.bf16.msra.mxu0 %v1466
        %2985 = vmatpush.bf16.msra.mxu0 %v1458
        %2986 = vmatpush.bf16.msra.mxu0 %v1450
        %2987 = vmatmul.bf16.gmra.mxu0 %v2887
        %v2988 = vpop.f32.mrf.mxu0
        %v2989 = vadd.f32 0.0, %v2988
        %v2990 = vpop.f32.mrf.mxu0
        %2991 = vdwg.mxu0
        %v2992 = vadd.f32 %v2950, %v2773
        %v2993 = vadd.f32 %v2963, %v2786
        %v2994 = vadd.f32 %v2976, %v2799
        %v2995 = vadd.f32 %v2989, %v2812
        %v2996 = vadd.f32 %v2992, %v947
        %v2997 = vadd.f32 %v2993, %v948
        %v2998 = vadd.f32 %v2994, %v949
        %v2999 = vadd.f32 %v2995, %v950
        %v3000 = vxor.u32 %v2996, 2147483648
        %v3001 = vmul.f32 %v3000, 1.442695
        %v3002 = vpow.pop %v3001
        %v3003 = vadd.f32 %v3002, 1.0
        %v3004 = vrcp.pop %v3003
        %v3005 = vmul.f32 %v3003, %v3004
        %v3006 = vsub.f32 1.0, %v3005
        %v3007 = vmul.f32 %v3004, %v3006
        %v3008 = vadd.f32 %v3004, %v3007
        %vm3009 = vweird.f32 %v3003
        %vm3010 = vweird.f32 %v3004
        %vm3011 = vmor %vm3009, %vm3010
        %v3012 = vsel %vm3011, %v3004, %v3008
        %v3013 = vand.u32 2147483647, %v3003
        %vm3014 = vcmp.eq.f32.partialorder %v3013, 8.507059e+37
        %v3015 = vand.u32 %v3003, 2147483648
        %v3016 = vor.u32 1.1754944e-38, %v3015
        %v3017 = vsel %vm3014, %v3016, %v3012
        %v3018 = vmul.f32 1.0, %v3017
        %v3019 = vxor.u32 %v2997, 2147483648
        %v3020 = vmul.f32 %v3019, 1.442695
        %v3021 = vpow.pop %v3020
        %v3022 = vadd.f32 %v3021, 1.0
        %v3023 = vrcp.pop %v3022
        %v3024 = vmul.f32 %v3022, %v3023
        %v3025 = vsub.f32 1.0, %v3024
        %v3026 = vmul.f32 %v3023, %v3025
        %v3027 = vadd.f32 %v3023, %v3026
        %vm3028 = vweird.f32 %v3022
        %vm3029 = vweird.f32 %v3023
        %vm3030 = vmor %vm3028, %vm3029
        %v3031 = vsel %vm3030, %v3023, %v3027
        %v3032 = vand.u32 2147483647, %v3022
        %vm3033 = vcmp.eq.f32.partialorder %v3032, 8.507059e+37
        %v3034 = vand.u32 %v3022, 2147483648
        %v3035 = vor.u32 1.1754944e-38, %v3034
        %v3036 = vsel %vm3033, %v3035, %v3031
        %v3037 = vmul.f32 1.0, %v3036
        %v3038 = vtanh.pop %v2998
        %v3039 = vxor.u32 %v2999, 2147483648
        %v3040 = vmul.f32 %v3039, 1.442695
        %v3041 = vpow.pop %v3040
        %v3042 = vadd.f32 %v3041, 1.0
        %v3043 = vrcp.pop %v3042
        %v3044 = vmul.f32 %v3042, %v3043
        %v3045 = vsub.f32 1.0, %v3044
        %v3046 = vmul.f32 %v3043, %v3045
        %v3047 = vadd.f32 %v3043, %v3046
        %vm3048 = vweird.f32 %v3042
        %vm3049 = vweird.f32 %v3043
        %vm3050 = vmor %vm3048, %vm3049
        %v3051 = vsel %vm3050, %v3043, %v3047
        %v3052 = vand.u32 2147483647, %v3042
        %vm3053 = vcmp.eq.f32.partialorder %v3052, 8.507059e+37
        %v3054 = vand.u32 %v3042, 2147483648
        %v3055 = vor.u32 1.1754944e-38, %v3054
        %v3056 = vsel %vm3053, %v3055, %v3051
        %v3057 = vmul.f32 1.0, %v3056
        %v3058 = vmul.f32 %v3037, %v2744
        %v3059 = vmul.f32 %v3018, %v3038
        %v3060 = vadd.f32 %v3058, %v3059
        %v3061 = vtanh.pop %v3060
        %v3062 = vmul.f32 %v3057, %v3061
        %v3063 = vpack.c.bf16 %v3062, %v3062
        %3064 = vmatpush.bf16.msra.mxu0 %v1786
        %3065 = vmatpush.bf16.msra.mxu0 %v1785
        %3066 = vmatpush.bf16.msra.mxu0 %v1784
        %3067 = vmatpush.bf16.msra.mxu0 %v1783
        %3068 = vmatpush.bf16.msra.mxu0 %v1782
        %3069 = vmatpush.bf16.msra.mxu0 %v1781
        %3070 = vmatpush.bf16.msra.mxu0 %v1780
        %3071 = vmatpush.bf16.msra.mxu0 %v1779
        %3072 = vmatmul.bf16.gmra.mxu0 %v3063
        %v3073 = vpop.f32.mrf.mxu0
        %v3074 = vadd.f32 %v957, %v3073
        %v3075 = vpop.f32.mrf.mxu0
        %3076 = vdwg.mxu0
        %s3077 = scalar_lea.vmem %s452, 32 [#allocation19]
        %3078 = vst [vmem:[%s3077] sm:$0xff] %v3074
        %3079 = vmatpush.bf16.msra.mxu0 %v1091
        %3080 = vmatpush.bf16.msra.mxu0 %v1087
        %3081 = vmatpush.bf16.msra.mxu0 %v1083
        %3082 = vmatpush.bf16.msra.mxu0 %v1079
        %3083 = vmatpush.bf16.msra.mxu0 %v1075
        %3084 = vmatpush.bf16.msra.mxu0 %v1071
        %3085 = vmatpush.bf16.msra.mxu0 %v1067
        %3086 = vmatpush.bf16.msra.mxu0 %v1063
        %3087 = vmatmul.bf16.gmra.mxu0 %v3063
        %v3088 = vpop.f32.mrf.mxu0
        %v3089 = vadd.f32 0.0, %v3088
        %v3090 = vpop.f32.mrf.mxu0
        %3091 = vdwg.mxu0
        %3092 = vmatpush.bf16.msra.mxu0 %v1092
        %3093 = vmatpush.bf16.msra.mxu0 %v1088
        %3094 = vmatpush.bf16.msra.mxu0 %v1084
        %3095 = vmatpush.bf16.msra.mxu0 %v1080
        %3096 = vmatpush.bf16.msra.mxu0 %v1076
        %3097 = vmatpush.bf16.msra.mxu0 %v1072
        %3098 = vmatpush.bf16.msra.mxu0 %v1068
        %3099 = vmatpush.bf16.msra.mxu0 %v1064
        %3100 = vmatmul.bf16.gmra.mxu0 %v3063
        %v3101 = vpop.f32.mrf.mxu0
        %v3102 = vadd.f32 0.0, %v3101
        %v3103 = vpop.f32.mrf.mxu0
        %3104 = vdwg.mxu0
        %3105 = vmatpush.bf16.msra.mxu0 %v1093
        %3106 = vmatpush.bf16.msra.mxu0 %v1089
        %3107 = vmatpush.bf16.msra.mxu0 %v1085
        %3108 = vmatpush.bf16.msra.mxu0 %v1081
        %3109 = vmatpush.bf16.msra.mxu0 %v1077
        %3110 = vmatpush.bf16.msra.mxu0 %v1073
        %3111 = vmatpush.bf16.msra.mxu0 %v1069
        %3112 = vmatpush.bf16.msra.mxu0 %v1065
        %3113 = vmatmul.bf16.gmra.mxu0 %v3063
        %v3114 = vpop.f32.mrf.mxu0
        %v3115 = vadd.f32 0.0, %v3114
        %v3116 = vpop.f32.mrf.mxu0
        %3117 = vdwg.mxu0
        %3118 = vmatpush.bf16.msra.mxu0 %v1094
        %3119 = vmatpush.bf16.msra.mxu0 %v1090
        %3120 = vmatpush.bf16.msra.mxu0 %v1086
        %3121 = vmatpush.bf16.msra.mxu0 %v1082
        %3122 = vmatpush.bf16.msra.mxu0 %v1078
        %3123 = vmatpush.bf16.msra.mxu0 %v1074
        %3124 = vmatpush.bf16.msra.mxu0 %v1070
        %3125 = vmatpush.bf16.msra.mxu0 %v1066
        %3126 = vmatmul.bf16.gmra.mxu0 %v3063
        %v3127 = vpop.f32.mrf.mxu0
        %v3128 = vadd.f32 0.0, %v3127
        %v3129 = vpop.f32.mrf.mxu0
        %3130 = vdwg.mxu0
        %s3131 = scalar_lea.vmem [#allocation7], 160
        %v3132 = vld [vmem:[%s3131] sm:$0xff]
        %v3133 = vld [vmem:[%s3131 + $0x8] sm:$0xff]
        %v3134 = vld [vmem:[%s3131 + $0x10] sm:$0xff]
        %v3135 = vld [vmem:[%s3131 + $0x18] sm:$0xff]
        %v3136 = vadd.f32 %v3132, %v2898
        %v3137 = vadd.f32 %v3133, %v2911
        %v3138 = vadd.f32 %v3134, %v2924
        %v3139 = vadd.f32 %v3135, %v2937
        %v3140 = vxor.u32 %v3136, 2147483648
        %v3141 = vmul.f32 %v3140, 1.442695
        %v3142 = vpow.pop %v3141
        %v3143 = vadd.f32 %v3142, 1.0
        %v3144 = vrcp.pop %v3143
        %v3145 = vmul.f32 %v3143, %v3144
        %v3146 = vsub.f32 1.0, %v3145
        %v3147 = vmul.f32 %v3144, %v3146
        %v3148 = vadd.f32 %v3144, %v3147
        %vm3149 = vweird.f32 %v3143
        %vm3150 = vweird.f32 %v3144
        %vm3151 = vmor %vm3149, %vm3150
        %v3152 = vsel %vm3151, %v3144, %v3148
        %v3153 = vand.u32 2147483647, %v3143
        %vm3154 = vcmp.eq.f32.partialorder %v3153, 8.507059e+37
        %v3155 = vand.u32 %v3143, 2147483648
        %v3156 = vor.u32 1.1754944e-38, %v3155
        %v3157 = vsel %vm3154, %v3156, %v3152
        %v3158 = vmul.f32 1.0, %v3157
        %v3159 = vxor.u32 %v3137, 2147483648
        %v3160 = vmul.f32 %v3159, 1.442695
        %v3161 = vpow.pop %v3160
        %v3162 = vadd.f32 %v3161, 1.0
        %v3163 = vrcp.pop %v3162
        %v3164 = vmul.f32 %v3162, %v3163
        %v3165 = vsub.f32 1.0, %v3164
        %v3166 = vmul.f32 %v3163, %v3165
        %v3167 = vadd.f32 %v3163, %v3166
        %vm3168 = vweird.f32 %v3162
        %vm3169 = vweird.f32 %v3163
        %vm3170 = vmor %vm3168, %vm3169
        %v3171 = vsel %vm3170, %v3163, %v3167
        %v3172 = vand.u32 2147483647, %v3162
        %vm3173 = vcmp.eq.f32.partialorder %v3172, 8.507059e+37
        %v3174 = vand.u32 %v3162, 2147483648
        %v3175 = vor.u32 1.1754944e-38, %v3174
        %v3176 = vsel %vm3173, %v3175, %v3171
        %v3177 = vmul.f32 1.0, %v3176
        %v3178 = vtanh.pop %v3138
        %v3179 = vxor.u32 %v3139, 2147483648
        %v3180 = vmul.f32 %v3179, 1.442695
        %v3181 = vpow.pop %v3180
        %v3182 = vadd.f32 %v3181, 1.0
        %v3183 = vrcp.pop %v3182
        %v3184 = vmul.f32 %v3182, %v3183
        %v3185 = vsub.f32 1.0, %v3184
        %v3186 = vmul.f32 %v3183, %v3185
        %v3187 = vadd.f32 %v3183, %v3186
        %vm3188 = vweird.f32 %v3182
        %vm3189 = vweird.f32 %v3183
        %vm3190 = vmor %vm3188, %vm3189
        %v3191 = vsel %vm3190, %v3183, %v3187
        %v3192 = vand.u32 2147483647, %v3182
        %vm3193 = vcmp.eq.f32.partialorder %v3192, 8.507059e+37
        %v3194 = vand.u32 %v3182, 2147483648
        %v3195 = vor.u32 1.1754944e-38, %v3194
        %v3196 = vsel %vm3193, %v3195, %v3191
        %v3197 = vmul.f32 1.0, %v3196
        %v3198 = vmul.f32 %v3177, %v2884
        %v3199 = vmul.f32 %v3158, %v3178
        %v3200 = vadd.f32 %v3198, %v3199
        %v3201 = vtanh.pop %v3200
        %v3202 = vmul.f32 %v3197, %v3201
        %v3203 = vpack.c.bf16 %v3202, %v3202
        %3204 = vmatpush.bf16.msra.mxu0 %v1499
        %3205 = vmatpush.bf16.msra.mxu0 %v1491
        %3206 = vmatpush.bf16.msra.mxu0 %v1483
        %3207 = vmatpush.bf16.msra.mxu0 %v1475
        %3208 = vmatpush.bf16.msra.mxu0 %v1467
        %3209 = vmatpush.bf16.msra.mxu0 %v1459
        %3210 = vmatpush.bf16.msra.mxu0 %v1451
        %3211 = vmatpush.bf16.msra.mxu0 %v1443
        %3212 = vmatmul.bf16.gmra.mxu0 %v3203
        %v3213 = vpop.f32.mrf.mxu0
        %v3214 = vadd.f32 0.0, %v3213
        %v3215 = vpop.f32.mrf.mxu0
        %3216 = vdwg.mxu0
        %3217 = vmatpush.bf16.msra.mxu0 %v1500
        %3218 = vmatpush.bf16.msra.mxu0 %v1492
        %3219 = vmatpush.bf16.msra.mxu0 %v1484
        %3220 = vmatpush.bf16.msra.mxu0 %v1476
        %3221 = vmatpush.bf16.msra.mxu0 %v1468
        %3222 = vmatpush.bf16.msra.mxu0 %v1460
        %3223 = vmatpush.bf16.msra.mxu0 %v1452
        %3224 = vmatpush.bf16.msra.mxu0 %v1444
        %3225 = vmatmul.bf16.gmra.mxu0 %v3203
        %v3226 = vpop.f32.mrf.mxu0
        %v3227 = vadd.f32 0.0, %v3226
        %v3228 = vpop.f32.mrf.mxu0
        %3229 = vdwg.mxu0
        %3230 = vmatpush.bf16.msra.mxu0 %v1501
        %3231 = vmatpush.bf16.msra.mxu0 %v1493
        %3232 = vmatpush.bf16.msra.mxu0 %v1485
        %3233 = vmatpush.bf16.msra.mxu0 %v1477
        %3234 = vmatpush.bf16.msra.mxu0 %v1469
        %3235 = vmatpush.bf16.msra.mxu0 %v1461
        %3236 = vmatpush.bf16.msra.mxu0 %v1453
        %3237 = vmatpush.bf16.msra.mxu0 %v1445
        %3238 = vmatmul.bf16.gmra.mxu0 %v3203
        %v3239 = vpop.f32.mrf.mxu0
        %v3240 = vadd.f32 0.0, %v3239
        %v3241 = vpop.f32.mrf.mxu0
        %3242 = vdwg.mxu0
        %3243 = vmatpush.bf16.msra.mxu0 %v1502
        %3244 = vmatpush.bf16.msra.mxu0 %v1494
        %3245 = vmatpush.bf16.msra.mxu0 %v1486
        %3246 = vmatpush.bf16.msra.mxu0 %v1478
        %3247 = vmatpush.bf16.msra.mxu0 %v1470
        %3248 = vmatpush.bf16.msra.mxu0 %v1462
        %3249 = vmatpush.bf16.msra.mxu0 %v1454
        %3250 = vmatpush.bf16.msra.mxu0 %v1446
        %3251 = vmatmul.bf16.gmra.mxu0 %v3203
        %v3252 = vpop.f32.mrf.mxu0
        %v3253 = vadd.f32 0.0, %v3252
        %v3254 = vpop.f32.mrf.mxu0
        %3255 = vdwg.mxu0
        %3256 = vmatpush.bf16.msra.mxu0 %v1503
        %3257 = vmatpush.bf16.msra.mxu0 %v1495
        %3258 = vmatpush.bf16.msra.mxu0 %v1487
        %3259 = vmatpush.bf16.msra.mxu0 %v1479
        %3260 = vmatpush.bf16.msra.mxu0 %v1471
        %3261 = vmatpush.bf16.msra.mxu0 %v1463
        %3262 = vmatpush.bf16.msra.mxu0 %v1455
        %3263 = vmatpush.bf16.msra.mxu0 %v1447
        %3264 = vmatmul.bf16.gmra.mxu0 %v3203
        %v3265 = vpop.f32.mrf.mxu0
        %v3266 = vadd.f32 0.0, %v3265
        %v3267 = vpop.f32.mrf.mxu0
        %3268 = vdwg.mxu0
        %3269 = vmatpush.bf16.msra.mxu0 %v1504
        %3270 = vmatpush.bf16.msra.mxu0 %v1496
        %3271 = vmatpush.bf16.msra.mxu0 %v1488
        %3272 = vmatpush.bf16.msra.mxu0 %v1480
        %3273 = vmatpush.bf16.msra.mxu0 %v1472
        %3274 = vmatpush.bf16.msra.mxu0 %v1464
        %3275 = vmatpush.bf16.msra.mxu0 %v1456
        %3276 = vmatpush.bf16.msra.mxu0 %v1448
        %3277 = vmatmul.bf16.gmra.mxu0 %v3203
        %v3278 = vpop.f32.mrf.mxu0
        %v3279 = vadd.f32 0.0, %v3278
        %v3280 = vpop.f32.mrf.mxu0
        %3281 = vdwg.mxu0
        %3282 = vmatpush.bf16.msra.mxu0 %v1505
        %3283 = vmatpush.bf16.msra.mxu0 %v1497
        %3284 = vmatpush.bf16.msra.mxu0 %v1489
        %3285 = vmatpush.bf16.msra.mxu0 %v1481
        %3286 = vmatpush.bf16.msra.mxu0 %v1473
        %3287 = vmatpush.bf16.msra.mxu0 %v1465
        %3288 = vmatpush.bf16.msra.mxu0 %v1457
        %3289 = vmatpush.bf16.msra.mxu0 %v1449
        %3290 = vmatmul.bf16.gmra.mxu0 %v3203
        %v3291 = vpop.f32.mrf.mxu0
        %v3292 = vadd.f32 0.0, %v3291
        %v3293 = vpop.f32.mrf.mxu0
        %3294 = vdwg.mxu0
        %3295 = vmatpush.bf16.msra.mxu0 %v1506
        %3296 = vmatpush.bf16.msra.mxu0 %v1498
        %3297 = vmatpush.bf16.msra.mxu0 %v1490
        %3298 = vmatpush.bf16.msra.mxu0 %v1482
        %3299 = vmatpush.bf16.msra.mxu0 %v1474
        %3300 = vmatpush.bf16.msra.mxu0 %v1466
        %3301 = vmatpush.bf16.msra.mxu0 %v1458
        %3302 = vmatpush.bf16.msra.mxu0 %v1450
        %3303 = vmatmul.bf16.gmra.mxu0 %v3203
        %v3304 = vpop.f32.mrf.mxu0
        %v3305 = vadd.f32 0.0, %v3304
        %v3306 = vpop.f32.mrf.mxu0
        %3307 = vdwg.mxu0
        %v3308 = vadd.f32 %v3266, %v3089
        %v3309 = vadd.f32 %v3279, %v3102
        %v3310 = vadd.f32 %v3292, %v3115
        %v3311 = vadd.f32 %v3305, %v3128
        %v3312 = vadd.f32 %v3308, %v947
        %v3313 = vadd.f32 %v3309, %v948
        %v3314 = vadd.f32 %v3310, %v949
        %v3315 = vadd.f32 %v3311, %v950
        %v3316 = vxor.u32 %v3312, 2147483648
        %v3317 = vmul.f32 %v3316, 1.442695
        %v3318 = vpow.pop %v3317
        %v3319 = vadd.f32 %v3318, 1.0
        %v3320 = vrcp.pop %v3319
        %v3321 = vmul.f32 %v3319, %v3320
        %v3322 = vsub.f32 1.0, %v3321
        %v3323 = vmul.f32 %v3320, %v3322
        %v3324 = vadd.f32 %v3320, %v3323
        %vm3325 = vweird.f32 %v3319
        %vm3326 = vweird.f32 %v3320
        %vm3327 = vmor %vm3325, %vm3326
        %v3328 = vsel %vm3327, %v3320, %v3324
        %v3329 = vand.u32 2147483647, %v3319
        %vm3330 = vcmp.eq.f32.partialorder %v3329, 8.507059e+37
        %v3331 = vand.u32 %v3319, 2147483648
        %v3332 = vor.u32 1.1754944e-38, %v3331
        %v3333 = vsel %vm3330, %v3332, %v3328
        %v3334 = vmul.f32 1.0, %v3333
        %v3335 = vxor.u32 %v3313, 2147483648
        %v3336 = vmul.f32 %v3335, 1.442695
        %v3337 = vpow.pop %v3336
        %v3338 = vadd.f32 %v3337, 1.0
        %v3339 = vrcp.pop %v3338
        %v3340 = vmul.f32 %v3338, %v3339
        %v3341 = vsub.f32 1.0, %v3340
        %v3342 = vmul.f32 %v3339, %v3341
        %v3343 = vadd.f32 %v3339, %v3342
        %vm3344 = vweird.f32 %v3338
        %vm3345 = vweird.f32 %v3339
        %vm3346 = vmor %vm3344, %vm3345
        %v3347 = vsel %vm3346, %v3339, %v3343
        %v3348 = vand.u32 2147483647, %v3338
        %vm3349 = vcmp.eq.f32.partialorder %v3348, 8.507059e+37
        %v3350 = vand.u32 %v3338, 2147483648
        %v3351 = vor.u32 1.1754944e-38, %v3350
        %v3352 = vsel %vm3349, %v3351, %v3347
        %v3353 = vmul.f32 1.0, %v3352
        %v3354 = vtanh.pop %v3314
        %v3355 = vxor.u32 %v3315, 2147483648
        %v3356 = vmul.f32 %v3355, 1.442695
        %v3357 = vpow.pop %v3356
        %v3358 = vadd.f32 %v3357, 1.0
        %v3359 = vrcp.pop %v3358
        %v3360 = vmul.f32 %v3358, %v3359
        %v3361 = vsub.f32 1.0, %v3360
        %v3362 = vmul.f32 %v3359, %v3361
        %v3363 = vadd.f32 %v3359, %v3362
        %vm3364 = vweird.f32 %v3358
        %vm3365 = vweird.f32 %v3359
        %vm3366 = vmor %vm3364, %vm3365
        %v3367 = vsel %vm3366, %v3359, %v3363
        %v3368 = vand.u32 2147483647, %v3358
        %vm3369 = vcmp.eq.f32.partialorder %v3368, 8.507059e+37
        %v3370 = vand.u32 %v3358, 2147483648
        %v3371 = vor.u32 1.1754944e-38, %v3370
        %v3372 = vsel %vm3369, %v3371, %v3367
        %v3373 = vmul.f32 1.0, %v3372
        %v3374 = vmul.f32 %v3353, %v3060
        %v3375 = vmul.f32 %v3334, %v3354
        %v3376 = vadd.f32 %v3374, %v3375
        %v3377 = vtanh.pop %v3376
        %v3378 = vmul.f32 %v3373, %v3377
        %v3379 = vpack.c.bf16 %v3378, %v3378
        %3380 = vmatpush.bf16.msra.mxu0 %v1786
        %3381 = vmatpush.bf16.msra.mxu0 %v1785
        %3382 = vmatpush.bf16.msra.mxu0 %v1784
        %3383 = vmatpush.bf16.msra.mxu0 %v1783
        %3384 = vmatpush.bf16.msra.mxu0 %v1782
        %3385 = vmatpush.bf16.msra.mxu0 %v1781
        %3386 = vmatpush.bf16.msra.mxu0 %v1780
        %3387 = vmatpush.bf16.msra.mxu0 %v1779
        %3388 = vmatmul.bf16.gmra.mxu0 %v3379
        %v3389 = vpop.f32.mrf.mxu0
        %v3390 = vadd.f32 %v957, %v3389
        %v3391 = vpop.f32.mrf.mxu0
        %3392 = vdwg.mxu0
        %s3393 = scalar_lea.vmem %s452, 40 [#allocation19]
        %3394 = vst [vmem:[%s3393] sm:$0xff] %v3390
        %3395 = vmatpush.bf16.msra.mxu0 %v1091
        %3396 = vmatpush.bf16.msra.mxu0 %v1087
        %3397 = vmatpush.bf16.msra.mxu0 %v1083
        %3398 = vmatpush.bf16.msra.mxu0 %v1079
        %3399 = vmatpush.bf16.msra.mxu0 %v1075
        %3400 = vmatpush.bf16.msra.mxu0 %v1071
        %3401 = vmatpush.bf16.msra.mxu0 %v1067
        %3402 = vmatpush.bf16.msra.mxu0 %v1063
        %3403 = vmatmul.bf16.gmra.mxu0 %v3379
        %v3404 = vpop.f32.mrf.mxu0
        %v3405 = vadd.f32 0.0, %v3404
        %v3406 = vpop.f32.mrf.mxu0
        %3407 = vdwg.mxu0
        %3408 = vmatpush.bf16.msra.mxu0 %v1092
        %3409 = vmatpush.bf16.msra.mxu0 %v1088
        %3410 = vmatpush.bf16.msra.mxu0 %v1084
        %3411 = vmatpush.bf16.msra.mxu0 %v1080
        %3412 = vmatpush.bf16.msra.mxu0 %v1076
        %3413 = vmatpush.bf16.msra.mxu0 %v1072
        %3414 = vmatpush.bf16.msra.mxu0 %v1068
        %3415 = vmatpush.bf16.msra.mxu0 %v1064
        %3416 = vmatmul.bf16.gmra.mxu0 %v3379
        %v3417 = vpop.f32.mrf.mxu0
        %v3418 = vadd.f32 0.0, %v3417
        %v3419 = vpop.f32.mrf.mxu0
        %3420 = vdwg.mxu0
        %3421 = vmatpush.bf16.msra.mxu0 %v1093
        %3422 = vmatpush.bf16.msra.mxu0 %v1089
        %3423 = vmatpush.bf16.msra.mxu0 %v1085
        %3424 = vmatpush.bf16.msra.mxu0 %v1081
        %3425 = vmatpush.bf16.msra.mxu0 %v1077
        %3426 = vmatpush.bf16.msra.mxu0 %v1073
        %3427 = vmatpush.bf16.msra.mxu0 %v1069
        %3428 = vmatpush.bf16.msra.mxu0 %v1065
        %3429 = vmatmul.bf16.gmra.mxu0 %v3379
        %v3430 = vpop.f32.mrf.mxu0
        %v3431 = vadd.f32 0.0, %v3430
        %v3432 = vpop.f32.mrf.mxu0
        %3433 = vdwg.mxu0
        %3434 = vmatpush.bf16.msra.mxu0 %v1094
        %3435 = vmatpush.bf16.msra.mxu0 %v1090
        %3436 = vmatpush.bf16.msra.mxu0 %v1086
        %3437 = vmatpush.bf16.msra.mxu0 %v1082
        %3438 = vmatpush.bf16.msra.mxu0 %v1078
        %3439 = vmatpush.bf16.msra.mxu0 %v1074
        %3440 = vmatpush.bf16.msra.mxu0 %v1070
        %3441 = vmatpush.bf16.msra.mxu0 %v1066
        %3442 = vmatmul.bf16.gmra.mxu0 %v3379
        %v3443 = vpop.f32.mrf.mxu0
        %v3444 = vadd.f32 0.0, %v3443
        %v3445 = vpop.f32.mrf.mxu0
        %3446 = vdwg.mxu0
        %s3447 = scalar_lea.vmem [#allocation7], 192
        %v3448 = vld [vmem:[%s3447] sm:$0xff]
        %v3449 = vld [vmem:[%s3447 + $0x8] sm:$0xff]
        %v3450 = vld [vmem:[%s3447 + $0x10] sm:$0xff]
        %v3451 = vld [vmem:[%s3447 + $0x18] sm:$0xff]
        %v3452 = vadd.f32 %v3448, %v3214
        %v3453 = vadd.f32 %v3449, %v3227
        %v3454 = vadd.f32 %v3450, %v3240
        %v3455 = vadd.f32 %v3451, %v3253
        %v3456 = vxor.u32 %v3452, 2147483648
        %v3457 = vmul.f32 %v3456, 1.442695
        %v3458 = vpow.pop %v3457
        %v3459 = vadd.f32 %v3458, 1.0
        %v3460 = vrcp.pop %v3459
        %v3461 = vmul.f32 %v3459, %v3460
        %v3462 = vsub.f32 1.0, %v3461
        %v3463 = vmul.f32 %v3460, %v3462
        %v3464 = vadd.f32 %v3460, %v3463
        %vm3465 = vweird.f32 %v3459
        %vm3466 = vweird.f32 %v3460
        %vm3467 = vmor %vm3465, %vm3466
        %v3468 = vsel %vm3467, %v3460, %v3464
        %v3469 = vand.u32 2147483647, %v3459
        %vm3470 = vcmp.eq.f32.partialorder %v3469, 8.507059e+37
        %v3471 = vand.u32 %v3459, 2147483648
        %v3472 = vor.u32 1.1754944e-38, %v3471
        %v3473 = vsel %vm3470, %v3472, %v3468
        %v3474 = vmul.f32 1.0, %v3473
        %v3475 = vxor.u32 %v3453, 2147483648
        %v3476 = vmul.f32 %v3475, 1.442695
        %v3477 = vpow.pop %v3476
        %v3478 = vadd.f32 %v3477, 1.0
        %v3479 = vrcp.pop %v3478
        %v3480 = vmul.f32 %v3478, %v3479
        %v3481 = vsub.f32 1.0, %v3480
        %v3482 = vmul.f32 %v3479, %v3481
        %v3483 = vadd.f32 %v3479, %v3482
        %vm3484 = vweird.f32 %v3478
        %vm3485 = vweird.f32 %v3479
        %vm3486 = vmor %vm3484, %vm3485
        %v3487 = vsel %vm3486, %v3479, %v3483
        %v3488 = vand.u32 2147483647, %v3478
        %vm3489 = vcmp.eq.f32.partialorder %v3488, 8.507059e+37
        %v3490 = vand.u32 %v3478, 2147483648
        %v3491 = vor.u32 1.1754944e-38, %v3490
        %v3492 = vsel %vm3489, %v3491, %v3487
        %v3493 = vmul.f32 1.0, %v3492
        %v3494 = vtanh.pop %v3454
        %v3495 = vxor.u32 %v3455, 2147483648
        %v3496 = vmul.f32 %v3495, 1.442695
        %v3497 = vpow.pop %v3496
        %v3498 = vadd.f32 %v3497, 1.0
        %v3499 = vrcp.pop %v3498
        %v3500 = vmul.f32 %v3498, %v3499
        %v3501 = vsub.f32 1.0, %v3500
        %v3502 = vmul.f32 %v3499, %v3501
        %v3503 = vadd.f32 %v3499, %v3502
        %vm3504 = vweird.f32 %v3498
        %vm3505 = vweird.f32 %v3499
        %vm3506 = vmor %vm3504, %vm3505
        %v3507 = vsel %vm3506, %v3499, %v3503
        %v3508 = vand.u32 2147483647, %v3498
        %vm3509 = vcmp.eq.f32.partialorder %v3508, 8.507059e+37
        %v3510 = vand.u32 %v3498, 2147483648
        %v3511 = vor.u32 1.1754944e-38, %v3510
        %v3512 = vsel %vm3509, %v3511, %v3507
        %v3513 = vmul.f32 1.0, %v3512
        %v3514 = vmul.f32 %v3493, %v3200
        %v3515 = vmul.f32 %v3474, %v3494
        %v3516 = vadd.f32 %v3514, %v3515
        %v3517 = vtanh.pop %v3516
        %v3518 = vmul.f32 %v3513, %v3517
        %v3519 = vpack.c.bf16 %v3518, %v3518
        %3520 = vmatpush.bf16.msra.mxu0 %v1499
        %3521 = vmatpush.bf16.msra.mxu0 %v1491
        %3522 = vmatpush.bf16.msra.mxu0 %v1483
        %3523 = vmatpush.bf16.msra.mxu0 %v1475
        %3524 = vmatpush.bf16.msra.mxu0 %v1467
        %3525 = vmatpush.bf16.msra.mxu0 %v1459
        %3526 = vmatpush.bf16.msra.mxu0 %v1451
        %3527 = vmatpush.bf16.msra.mxu0 %v1443
        %3528 = vmatmul.bf16.gmra.mxu0 %v3519
        %v3529 = vpop.f32.mrf.mxu0
        %v3530 = vadd.f32 0.0, %v3529
        %v3531 = vpop.f32.mrf.mxu0
        %3532 = vdwg.mxu0
        %3533 = vmatpush.bf16.msra.mxu0 %v1500
        %3534 = vmatpush.bf16.msra.mxu0 %v1492
        %3535 = vmatpush.bf16.msra.mxu0 %v1484
        %3536 = vmatpush.bf16.msra.mxu0 %v1476
        %3537 = vmatpush.bf16.msra.mxu0 %v1468
        %3538 = vmatpush.bf16.msra.mxu0 %v1460
        %3539 = vmatpush.bf16.msra.mxu0 %v1452
        %3540 = vmatpush.bf16.msra.mxu0 %v1444
        %3541 = vmatmul.bf16.gmra.mxu0 %v3519
        %v3542 = vpop.f32.mrf.mxu0
        %v3543 = vadd.f32 0.0, %v3542
        %v3544 = vpop.f32.mrf.mxu0
        %3545 = vdwg.mxu0
        %3546 = vmatpush.bf16.msra.mxu0 %v1501
        %3547 = vmatpush.bf16.msra.mxu0 %v1493
        %3548 = vmatpush.bf16.msra.mxu0 %v1485
        %3549 = vmatpush.bf16.msra.mxu0 %v1477
        %3550 = vmatpush.bf16.msra.mxu0 %v1469
        %3551 = vmatpush.bf16.msra.mxu0 %v1461
        %3552 = vmatpush.bf16.msra.mxu0 %v1453
        %3553 = vmatpush.bf16.msra.mxu0 %v1445
        %3554 = vmatmul.bf16.gmra.mxu0 %v3519
        %v3555 = vpop.f32.mrf.mxu0
        %v3556 = vadd.f32 0.0, %v3555
        %v3557 = vpop.f32.mrf.mxu0
        %3558 = vdwg.mxu0
        %3559 = vmatpush.bf16.msra.mxu0 %v1502
        %3560 = vmatpush.bf16.msra.mxu0 %v1494
        %3561 = vmatpush.bf16.msra.mxu0 %v1486
        %3562 = vmatpush.bf16.msra.mxu0 %v1478
        %3563 = vmatpush.bf16.msra.mxu0 %v1470
        %3564 = vmatpush.bf16.msra.mxu0 %v1462
        %3565 = vmatpush.bf16.msra.mxu0 %v1454
        %3566 = vmatpush.bf16.msra.mxu0 %v1446
        %3567 = vmatmul.bf16.gmra.mxu0 %v3519
        %v3568 = vpop.f32.mrf.mxu0
        %v3569 = vadd.f32 0.0, %v3568
        %v3570 = vpop.f32.mrf.mxu0
        %3571 = vdwg.mxu0
        %3572 = vmatpush.bf16.msra.mxu0 %v1503
        %3573 = vmatpush.bf16.msra.mxu0 %v1495
        %3574 = vmatpush.bf16.msra.mxu0 %v1487
        %3575 = vmatpush.bf16.msra.mxu0 %v1479
        %3576 = vmatpush.bf16.msra.mxu0 %v1471
        %3577 = vmatpush.bf16.msra.mxu0 %v1463
        %3578 = vmatpush.bf16.msra.mxu0 %v1455
        %3579 = vmatpush.bf16.msra.mxu0 %v1447
        %3580 = vmatmul.bf16.gmra.mxu0 %v3519
        %v3581 = vpop.f32.mrf.mxu0
        %v3582 = vadd.f32 0.0, %v3581
        %v3583 = vpop.f32.mrf.mxu0
        %3584 = vdwg.mxu0
        %3585 = vmatpush.bf16.msra.mxu0 %v1504
        %3586 = vmatpush.bf16.msra.mxu0 %v1496
        %3587 = vmatpush.bf16.msra.mxu0 %v1488
        %3588 = vmatpush.bf16.msra.mxu0 %v1480
        %3589 = vmatpush.bf16.msra.mxu0 %v1472
        %3590 = vmatpush.bf16.msra.mxu0 %v1464
        %3591 = vmatpush.bf16.msra.mxu0 %v1456
        %3592 = vmatpush.bf16.msra.mxu0 %v1448
        %3593 = vmatmul.bf16.gmra.mxu0 %v3519
        %v3594 = vpop.f32.mrf.mxu0
        %v3595 = vadd.f32 0.0, %v3594
        %v3596 = vpop.f32.mrf.mxu0
        %3597 = vdwg.mxu0
        %3598 = vmatpush.bf16.msra.mxu0 %v1505
        %3599 = vmatpush.bf16.msra.mxu0 %v1497
        %3600 = vmatpush.bf16.msra.mxu0 %v1489
        %3601 = vmatpush.bf16.msra.mxu0 %v1481
        %3602 = vmatpush.bf16.msra.mxu0 %v1473
        %3603 = vmatpush.bf16.msra.mxu0 %v1465
        %3604 = vmatpush.bf16.msra.mxu0 %v1457
        %3605 = vmatpush.bf16.msra.mxu0 %v1449
        %3606 = vmatmul.bf16.gmra.mxu0 %v3519
        %v3607 = vpop.f32.mrf.mxu0
        %v3608 = vadd.f32 0.0, %v3607
        %v3609 = vpop.f32.mrf.mxu0
        %3610 = vdwg.mxu0
        %3611 = vmatpush.bf16.msra.mxu0 %v1506
        %3612 = vmatpush.bf16.msra.mxu0 %v1498
        %3613 = vmatpush.bf16.msra.mxu0 %v1490
        %3614 = vmatpush.bf16.msra.mxu0 %v1482
        %3615 = vmatpush.bf16.msra.mxu0 %v1474
        %3616 = vmatpush.bf16.msra.mxu0 %v1466
        %3617 = vmatpush.bf16.msra.mxu0 %v1458
        %3618 = vmatpush.bf16.msra.mxu0 %v1450
        %3619 = vmatmul.bf16.gmra.mxu0 %v3519
        %v3620 = vpop.f32.mrf.mxu0
        %v3621 = vadd.f32 0.0, %v3620
        %v3622 = vpop.f32.mrf.mxu0
        %3623 = vdwg.mxu0
        %v3624 = vadd.f32 %v3582, %v3405
        %v3625 = vadd.f32 %v3595, %v3418
        %v3626 = vadd.f32 %v3608, %v3431
        %v3627 = vadd.f32 %v3621, %v3444
        %v3628 = vadd.f32 %v3624, %v947
        %v3629 = vadd.f32 %v3625, %v948
        %v3630 = vadd.f32 %v3626, %v949
        %v3631 = vadd.f32 %v3627, %v950
        %v3632 = vxor.u32 %v3628, 2147483648
        %v3633 = vmul.f32 %v3632, 1.442695
        %v3634 = vpow.pop %v3633
        %v3635 = vadd.f32 %v3634, 1.0
        %v3636 = vrcp.pop %v3635
        %v3637 = vmul.f32 %v3635, %v3636
        %v3638 = vsub.f32 1.0, %v3637
        %v3639 = vmul.f32 %v3636, %v3638
        %v3640 = vadd.f32 %v3636, %v3639
        %vm3641 = vweird.f32 %v3635
        %vm3642 = vweird.f32 %v3636
        %vm3643 = vmor %vm3641, %vm3642
        %v3644 = vsel %vm3643, %v3636, %v3640
        %v3645 = vand.u32 2147483647, %v3635
        %vm3646 = vcmp.eq.f32.partialorder %v3645, 8.507059e+37
        %v3647 = vand.u32 %v3635, 2147483648
        %v3648 = vor.u32 1.1754944e-38, %v3647
        %v3649 = vsel %vm3646, %v3648, %v3644
        %v3650 = vmul.f32 1.0, %v3649
        %v3651 = vxor.u32 %v3629, 2147483648
        %v3652 = vmul.f32 %v3651, 1.442695
        %v3653 = vpow.pop %v3652
        %v3654 = vadd.f32 %v3653, 1.0
        %v3655 = vrcp.pop %v3654
        %v3656 = vmul.f32 %v3654, %v3655
        %v3657 = vsub.f32 1.0, %v3656
        %v3658 = vmul.f32 %v3655, %v3657
        %v3659 = vadd.f32 %v3655, %v3658
        %vm3660 = vweird.f32 %v3654
        %vm3661 = vweird.f32 %v3655
        %vm3662 = vmor %vm3660, %vm3661
        %v3663 = vsel %vm3662, %v3655, %v3659
        %v3664 = vand.u32 2147483647, %v3654
        %vm3665 = vcmp.eq.f32.partialorder %v3664, 8.507059e+37
        %v3666 = vand.u32 %v3654, 2147483648
        %v3667 = vor.u32 1.1754944e-38, %v3666
        %v3668 = vsel %vm3665, %v3667, %v3663
        %v3669 = vmul.f32 1.0, %v3668
        %v3670 = vtanh.pop %v3630
        %v3671 = vxor.u32 %v3631, 2147483648
        %v3672 = vmul.f32 %v3671, 1.442695
        %v3673 = vpow.pop %v3672
        %v3674 = vadd.f32 %v3673, 1.0
        %v3675 = vrcp.pop %v3674
        %v3676 = vmul.f32 %v3674, %v3675
        %v3677 = vsub.f32 1.0, %v3676
        %v3678 = vmul.f32 %v3675, %v3677
        %v3679 = vadd.f32 %v3675, %v3678
        %vm3680 = vweird.f32 %v3674
        %vm3681 = vweird.f32 %v3675
        %vm3682 = vmor %vm3680, %vm3681
        %v3683 = vsel %vm3682, %v3675, %v3679
        %v3684 = vand.u32 2147483647, %v3674
        %vm3685 = vcmp.eq.f32.partialorder %v3684, 8.507059e+37
        %v3686 = vand.u32 %v3674, 2147483648
        %v3687 = vor.u32 1.1754944e-38, %v3686
        %v3688 = vsel %vm3685, %v3687, %v3683
        %v3689 = vmul.f32 1.0, %v3688
        %v3690 = vmul.f32 %v3669, %v3376
        %v3691 = vmul.f32 %v3650, %v3670
        %v3692 = vadd.f32 %v3690, %v3691
        %v3693 = vtanh.pop %v3692
        %v3694 = vmul.f32 %v3689, %v3693
        %v3695 = vpack.c.bf16 %v3694, %v3694
        %3696 = vmatpush.bf16.msra.mxu0 %v1786
        %3697 = vmatpush.bf16.msra.mxu0 %v1785
        %3698 = vmatpush.bf16.msra.mxu0 %v1784
        %3699 = vmatpush.bf16.msra.mxu0 %v1783
        %3700 = vmatpush.bf16.msra.mxu0 %v1782
        %3701 = vmatpush.bf16.msra.mxu0 %v1781
        %3702 = vmatpush.bf16.msra.mxu0 %v1780
        %3703 = vmatpush.bf16.msra.mxu0 %v1779
        %3704 = vmatmul.bf16.gmra.mxu0 %v3695
        %v3705 = vpop.f32.mrf.mxu0
        %v3706 = vadd.f32 %v957, %v3705
        %v3707 = vpop.f32.mrf.mxu0
        %3708 = vdwg.mxu0
        %s3709 = scalar_lea.vmem %s452, 48 [#allocation19]
        %3710 = vst [vmem:[%s3709] sm:$0xff] %v3706
        %3711 = vmatpush.bf16.msra.mxu0 %v1091
        %3712 = vmatpush.bf16.msra.mxu0 %v1087
        %3713 = vmatpush.bf16.msra.mxu0 %v1083
        %3714 = vmatpush.bf16.msra.mxu0 %v1079
        %3715 = vmatpush.bf16.msra.mxu0 %v1075
        %3716 = vmatpush.bf16.msra.mxu0 %v1071
        %3717 = vmatpush.bf16.msra.mxu0 %v1067
        %3718 = vmatpush.bf16.msra.mxu0 %v1063
        %3719 = vmatmul.bf16.gmra.mxu0 %v3695
        %v3720 = vpop.f32.mrf.mxu0
        %v3721 = vadd.f32 0.0, %v3720
        %v3722 = vpop.f32.mrf.mxu0
        %3723 = vdwg.mxu0
        %3724 = vmatpush.bf16.msra.mxu0 %v1092
        %3725 = vmatpush.bf16.msra.mxu0 %v1088
        %3726 = vmatpush.bf16.msra.mxu0 %v1084
        %3727 = vmatpush.bf16.msra.mxu0 %v1080
        %3728 = vmatpush.bf16.msra.mxu0 %v1076
        %3729 = vmatpush.bf16.msra.mxu0 %v1072
        %3730 = vmatpush.bf16.msra.mxu0 %v1068
        %3731 = vmatpush.bf16.msra.mxu0 %v1064
        %3732 = vmatmul.bf16.gmra.mxu0 %v3695
        %v3733 = vpop.f32.mrf.mxu0
        %v3734 = vadd.f32 0.0, %v3733
        %v3735 = vpop.f32.mrf.mxu0
        %3736 = vdwg.mxu0
        %3737 = vmatpush.bf16.msra.mxu0 %v1093
        %3738 = vmatpush.bf16.msra.mxu0 %v1089
        %3739 = vmatpush.bf16.msra.mxu0 %v1085
        %3740 = vmatpush.bf16.msra.mxu0 %v1081
        %3741 = vmatpush.bf16.msra.mxu0 %v1077
        %3742 = vmatpush.bf16.msra.mxu0 %v1073
        %3743 = vmatpush.bf16.msra.mxu0 %v1069
        %3744 = vmatpush.bf16.msra.mxu0 %v1065
        %3745 = vmatmul.bf16.gmra.mxu0 %v3695
        %v3746 = vpop.f32.mrf.mxu0
        %v3747 = vadd.f32 0.0, %v3746
        %v3748 = vpop.f32.mrf.mxu0
        %3749 = vdwg.mxu0
        %3750 = vmatpush.bf16.msra.mxu0 %v1094
        %3751 = vmatpush.bf16.msra.mxu0 %v1090
        %3752 = vmatpush.bf16.msra.mxu0 %v1086
        %3753 = vmatpush.bf16.msra.mxu0 %v1082
        %3754 = vmatpush.bf16.msra.mxu0 %v1078
        %3755 = vmatpush.bf16.msra.mxu0 %v1074
        %3756 = vmatpush.bf16.msra.mxu0 %v1070
        %3757 = vmatpush.bf16.msra.mxu0 %v1066
        %3758 = vmatmul.bf16.gmra.mxu0 %v3695
        %v3759 = vpop.f32.mrf.mxu0
        %v3760 = vadd.f32 0.0, %v3759
        %v3761 = vpop.f32.mrf.mxu0
        %3762 = vdwg.mxu0
        %s3763 = scalar_lea.vmem [#allocation7], 224
        %v3764 = vld [vmem:[%s3763] sm:$0xff]
        %v3765 = vld [vmem:[%s3763 + $0x8] sm:$0xff]
        %v3766 = vld [vmem:[%s3763 + $0x10] sm:$0xff]
        %v3767 = vld [vmem:[%s3763 + $0x18] sm:$0xff]
        %v3768 = vadd.f32 %v3764, %v3530
        %v3769 = vadd.f32 %v3765, %v3543
        %v3770 = vadd.f32 %v3766, %v3556
        %v3771 = vadd.f32 %v3767, %v3569
        %v3772 = vxor.u32 %v3768, 2147483648
        %v3773 = vmul.f32 %v3772, 1.442695
        %v3774 = vpow.pop %v3773
        %v3775 = vadd.f32 %v3774, 1.0
        %v3776 = vrcp.pop %v3775
        %v3777 = vmul.f32 %v3775, %v3776
        %v3778 = vsub.f32 1.0, %v3777
        %v3779 = vmul.f32 %v3776, %v3778
        %v3780 = vadd.f32 %v3776, %v3779
        %vm3781 = vweird.f32 %v3775
        %vm3782 = vweird.f32 %v3776
        %vm3783 = vmor %vm3781, %vm3782
        %v3784 = vsel %vm3783, %v3776, %v3780
        %v3785 = vand.u32 2147483647, %v3775
        %vm3786 = vcmp.eq.f32.partialorder %v3785, 8.507059e+37
        %v3787 = vand.u32 %v3775, 2147483648
        %v3788 = vor.u32 1.1754944e-38, %v3787
        %v3789 = vsel %vm3786, %v3788, %v3784
        %v3790 = vmul.f32 1.0, %v3789
        %v3791 = vxor.u32 %v3769, 2147483648
        %v3792 = vmul.f32 %v3791, 1.442695
        %v3793 = vpow.pop %v3792
        %v3794 = vadd.f32 %v3793, 1.0
        %v3795 = vrcp.pop %v3794
        %v3796 = vmul.f32 %v3794, %v3795
        %v3797 = vsub.f32 1.0, %v3796
        %v3798 = vmul.f32 %v3795, %v3797
        %v3799 = vadd.f32 %v3795, %v3798
        %vm3800 = vweird.f32 %v3794
        %vm3801 = vweird.f32 %v3795
        %vm3802 = vmor %vm3800, %vm3801
        %v3803 = vsel %vm3802, %v3795, %v3799
        %v3804 = vand.u32 2147483647, %v3794
        %vm3805 = vcmp.eq.f32.partialorder %v3804, 8.507059e+37
        %v3806 = vand.u32 %v3794, 2147483648
        %v3807 = vor.u32 1.1754944e-38, %v3806
        %v3808 = vsel %vm3805, %v3807, %v3803
        %v3809 = vmul.f32 1.0, %v3808
        %v3810 = vtanh.pop %v3770
        %v3811 = vxor.u32 %v3771, 2147483648
        %v3812 = vmul.f32 %v3811, 1.442695
        %v3813 = vpow.pop %v3812
        %v3814 = vadd.f32 %v3813, 1.0
        %v3815 = vrcp.pop %v3814
        %v3816 = vmul.f32 %v3814, %v3815
        %v3817 = vsub.f32 1.0, %v3816
        %v3818 = vmul.f32 %v3815, %v3817
        %v3819 = vadd.f32 %v3815, %v3818
        %vm3820 = vweird.f32 %v3814
        %vm3821 = vweird.f32 %v3815
        %vm3822 = vmor %vm3820, %vm3821
        %v3823 = vsel %vm3822, %v3815, %v3819
        %v3824 = vand.u32 2147483647, %v3814
        %vm3825 = vcmp.eq.f32.partialorder %v3824, 8.507059e+37
        %v3826 = vand.u32 %v3814, 2147483648
        %v3827 = vor.u32 1.1754944e-38, %v3826
        %v3828 = vsel %vm3825, %v3827, %v3823
        %v3829 = vmul.f32 1.0, %v3828
        %v3830 = vmul.f32 %v3809, %v3516
        %v3831 = vmul.f32 %v3790, %v3810
        %v3832 = vadd.f32 %v3830, %v3831
        %v3833 = vtanh.pop %v3832
        %v3834 = vmul.f32 %v3829, %v3833
        %v3835 = vpack.c.bf16 %v3834, %v3834
        %3836 = vmatpush.bf16.msra.mxu0 %v1499
        %3837 = vmatpush.bf16.msra.mxu0 %v1491
        %3838 = vmatpush.bf16.msra.mxu0 %v1483
        %3839 = vmatpush.bf16.msra.mxu0 %v1475
        %3840 = vmatpush.bf16.msra.mxu0 %v1467
        %3841 = vmatpush.bf16.msra.mxu0 %v1459
        %3842 = vmatpush.bf16.msra.mxu0 %v1451
        %3843 = vmatpush.bf16.msra.mxu0 %v1443
        %3844 = vmatmul.bf16.gmra.mxu0 %v3835
        %v3845 = vpop.f32.mrf.mxu0
        %v3846 = vadd.f32 0.0, %v3845
        %v3847 = vpop.f32.mrf.mxu0
        %3848 = vdwg.mxu0
        %3849 = vmatpush.bf16.msra.mxu0 %v1500
        %3850 = vmatpush.bf16.msra.mxu0 %v1492
        %3851 = vmatpush.bf16.msra.mxu0 %v1484
        %3852 = vmatpush.bf16.msra.mxu0 %v1476
        %3853 = vmatpush.bf16.msra.mxu0 %v1468
        %3854 = vmatpush.bf16.msra.mxu0 %v1460
        %3855 = vmatpush.bf16.msra.mxu0 %v1452
        %3856 = vmatpush.bf16.msra.mxu0 %v1444
        %3857 = vmatmul.bf16.gmra.mxu0 %v3835
        %v3858 = vpop.f32.mrf.mxu0
        %v3859 = vadd.f32 0.0, %v3858
        %v3860 = vpop.f32.mrf.mxu0
        %3861 = vdwg.mxu0
        %3862 = vmatpush.bf16.msra.mxu0 %v1501
        %3863 = vmatpush.bf16.msra.mxu0 %v1493
        %3864 = vmatpush.bf16.msra.mxu0 %v1485
        %3865 = vmatpush.bf16.msra.mxu0 %v1477
        %3866 = vmatpush.bf16.msra.mxu0 %v1469
        %3867 = vmatpush.bf16.msra.mxu0 %v1461
        %3868 = vmatpush.bf16.msra.mxu0 %v1453
        %3869 = vmatpush.bf16.msra.mxu0 %v1445
        %3870 = vmatmul.bf16.gmra.mxu0 %v3835
        %v3871 = vpop.f32.mrf.mxu0
        %v3872 = vadd.f32 0.0, %v3871
        %v3873 = vpop.f32.mrf.mxu0
        %3874 = vdwg.mxu0
        %3875 = vmatpush.bf16.msra.mxu0 %v1502
        %3876 = vmatpush.bf16.msra.mxu0 %v1494
        %3877 = vmatpush.bf16.msra.mxu0 %v1486
        %3878 = vmatpush.bf16.msra.mxu0 %v1478
        %3879 = vmatpush.bf16.msra.mxu0 %v1470
        %3880 = vmatpush.bf16.msra.mxu0 %v1462
        %3881 = vmatpush.bf16.msra.mxu0 %v1454
        %3882 = vmatpush.bf16.msra.mxu0 %v1446
        %3883 = vmatmul.bf16.gmra.mxu0 %v3835
        %v3884 = vpop.f32.mrf.mxu0
        %v3885 = vadd.f32 0.0, %v3884
        %v3886 = vpop.f32.mrf.mxu0
        %3887 = vdwg.mxu0
        %3888 = vmatpush.bf16.msra.mxu0 %v1503
        %3889 = vmatpush.bf16.msra.mxu0 %v1495
        %3890 = vmatpush.bf16.msra.mxu0 %v1487
        %3891 = vmatpush.bf16.msra.mxu0 %v1479
        %3892 = vmatpush.bf16.msra.mxu0 %v1471
        %3893 = vmatpush.bf16.msra.mxu0 %v1463
        %3894 = vmatpush.bf16.msra.mxu0 %v1455
        %3895 = vmatpush.bf16.msra.mxu0 %v1447
        %3896 = vmatmul.bf16.gmra.mxu0 %v3835
        %v3897 = vpop.f32.mrf.mxu0
        %v3898 = vadd.f32 0.0, %v3897
        %v3899 = vpop.f32.mrf.mxu0
        %3900 = vdwg.mxu0
        %3901 = vmatpush.bf16.msra.mxu0 %v1504
        %3902 = vmatpush.bf16.msra.mxu0 %v1496
        %3903 = vmatpush.bf16.msra.mxu0 %v1488
        %3904 = vmatpush.bf16.msra.mxu0 %v1480
        %3905 = vmatpush.bf16.msra.mxu0 %v1472
        %3906 = vmatpush.bf16.msra.mxu0 %v1464
        %3907 = vmatpush.bf16.msra.mxu0 %v1456
        %3908 = vmatpush.bf16.msra.mxu0 %v1448
        %3909 = vmatmul.bf16.gmra.mxu0 %v3835
        %v3910 = vpop.f32.mrf.mxu0
        %v3911 = vadd.f32 0.0, %v3910
        %v3912 = vpop.f32.mrf.mxu0
        %3913 = vdwg.mxu0
        %3914 = vmatpush.bf16.msra.mxu0 %v1505
        %3915 = vmatpush.bf16.msra.mxu0 %v1497
        %3916 = vmatpush.bf16.msra.mxu0 %v1489
        %3917 = vmatpush.bf16.msra.mxu0 %v1481
        %3918 = vmatpush.bf16.msra.mxu0 %v1473
        %3919 = vmatpush.bf16.msra.mxu0 %v1465
        %3920 = vmatpush.bf16.msra.mxu0 %v1457
        %3921 = vmatpush.bf16.msra.mxu0 %v1449
        %3922 = vmatmul.bf16.gmra.mxu0 %v3835
        %v3923 = vpop.f32.mrf.mxu0
        %v3924 = vadd.f32 0.0, %v3923
        %v3925 = vpop.f32.mrf.mxu0
        %3926 = vdwg.mxu0
        %3927 = vmatpush.bf16.msra.mxu0 %v1506
        %3928 = vmatpush.bf16.msra.mxu0 %v1498
        %3929 = vmatpush.bf16.msra.mxu0 %v1490
        %3930 = vmatpush.bf16.msra.mxu0 %v1482
        %3931 = vmatpush.bf16.msra.mxu0 %v1474
        %3932 = vmatpush.bf16.msra.mxu0 %v1466
        %3933 = vmatpush.bf16.msra.mxu0 %v1458
        %3934 = vmatpush.bf16.msra.mxu0 %v1450
        %3935 = vmatmul.bf16.gmra.mxu0 %v3835
        %v3936 = vpop.f32.mrf.mxu0
        %v3937 = vadd.f32 0.0, %v3936
        %v3938 = vpop.f32.mrf.mxu0
        %3939 = vdwg.mxu0
        %v3940 = vadd.f32 %v3898, %v3721
        %v3941 = vadd.f32 %v3911, %v3734
        %v3942 = vadd.f32 %v3924, %v3747
        %v3943 = vadd.f32 %v3937, %v3760
        %v3944 = vadd.f32 %v3940, %v947
        %v3945 = vadd.f32 %v3941, %v948
        %v3946 = vadd.f32 %v3942, %v949
        %v3947 = vadd.f32 %v3943, %v950
        %v3948 = vxor.u32 %v3944, 2147483648
        %v3949 = vmul.f32 %v3948, 1.442695
        %v3950 = vpow.pop %v3949
        %v3951 = vadd.f32 %v3950, 1.0
        %v3952 = vrcp.pop %v3951
        %v3953 = vmul.f32 %v3951, %v3952
        %v3954 = vsub.f32 1.0, %v3953
        %v3955 = vmul.f32 %v3952, %v3954
        %v3956 = vadd.f32 %v3952, %v3955
        %vm3957 = vweird.f32 %v3951
        %vm3958 = vweird.f32 %v3952
        %vm3959 = vmor %vm3957, %vm3958
        %v3960 = vsel %vm3959, %v3952, %v3956
        %v3961 = vand.u32 2147483647, %v3951
        %vm3962 = vcmp.eq.f32.partialorder %v3961, 8.507059e+37
        %v3963 = vand.u32 %v3951, 2147483648
        %v3964 = vor.u32 1.1754944e-38, %v3963
        %v3965 = vsel %vm3962, %v3964, %v3960
        %v3966 = vmul.f32 1.0, %v3965
        %v3967 = vxor.u32 %v3945, 2147483648
        %v3968 = vmul.f32 %v3967, 1.442695
        %v3969 = vpow.pop %v3968
        %v3970 = vadd.f32 %v3969, 1.0
        %v3971 = vrcp.pop %v3970
        %v3972 = vmul.f32 %v3970, %v3971
        %v3973 = vsub.f32 1.0, %v3972
        %v3974 = vmul.f32 %v3971, %v3973
        %v3975 = vadd.f32 %v3971, %v3974
        %vm3976 = vweird.f32 %v3970
        %vm3977 = vweird.f32 %v3971
        %vm3978 = vmor %vm3976, %vm3977
        %v3979 = vsel %vm3978, %v3971, %v3975
        %v3980 = vand.u32 2147483647, %v3970
        %vm3981 = vcmp.eq.f32.partialorder %v3980, 8.507059e+37
        %v3982 = vand.u32 %v3970, 2147483648
        %v3983 = vor.u32 1.1754944e-38, %v3982
        %v3984 = vsel %vm3981, %v3983, %v3979
        %v3985 = vmul.f32 1.0, %v3984
        %v3986 = vtanh.pop %v3946
        %v3987 = vxor.u32 %v3947, 2147483648
        %v3988 = vmul.f32 %v3987, 1.442695
        %v3989 = vpow.pop %v3988
        %v3990 = vadd.f32 %v3989, 1.0
        %v3991 = vrcp.pop %v3990
        %v3992 = vmul.f32 %v3990, %v3991
        %v3993 = vsub.f32 1.0, %v3992
        %v3994 = vmul.f32 %v3991, %v3993
        %v3995 = vadd.f32 %v3991, %v3994
        %vm3996 = vweird.f32 %v3990
        %vm3997 = vweird.f32 %v3991
        %vm3998 = vmor %vm3996, %vm3997
        %v3999 = vsel %vm3998, %v3991, %v3995
        %v4000 = vand.u32 2147483647, %v3990
        %vm4001 = vcmp.eq.f32.partialorder %v4000, 8.507059e+37
        %v4002 = vand.u32 %v3990, 2147483648
        %v4003 = vor.u32 1.1754944e-38, %v4002
        %v4004 = vsel %vm4001, %v4003, %v3999
        %v4005 = vmul.f32 1.0, %v4004
        %v4006 = vmul.f32 %v3985, %v3692
        %v4007 = vmul.f32 %v3966, %v3986
        %v4008 = vadd.f32 %v4006, %v4007
        %v4009 = vtanh.pop %v4008
        %v4010 = vmul.f32 %v4005, %v4009
        %v4011 = vpack.c.bf16 %v4010, %v4010
        %4012 = vmatpush.bf16.msra.mxu0 %v1786
        %4013 = vmatpush.bf16.msra.mxu0 %v1785
        %4014 = vmatpush.bf16.msra.mxu0 %v1784
        %4015 = vmatpush.bf16.msra.mxu0 %v1783
        %4016 = vmatpush.bf16.msra.mxu0 %v1782
        %4017 = vmatpush.bf16.msra.mxu0 %v1781
        %4018 = vmatpush.bf16.msra.mxu0 %v1780
        %4019 = vmatpush.bf16.msra.mxu0 %v1779
        %4020 = vmatmul.bf16.gmra.mxu0 %v4011
        %v4021 = vpop.f32.mrf.mxu0
        %v4022 = vadd.f32 %v957, %v4021
        %v4023 = vpop.f32.mrf.mxu0
        %4024 = vdwg.mxu0
        %s4025 = scalar_lea.vmem %s452, 56 [#allocation19]
        %4026 = vst [vmem:[%s4025] sm:$0xff] %v4022
        %4027 = vst [vmem:[#allocation2] sm:$0xff] %v3834
        %4028 = vst [vmem:[#allocation3] sm:$0xff] %v3832
        %4029 = vst [vmem:[#allocation4] sm:$0xff] %v4010
        %4030 = vst [vmem:[#allocation5] sm:$0xff] %v4008
        %4031 = vst [vmem:[#allocation6] sm:$0xff] %v3846
        %4032 = vst [vmem:[#allocation6 + $0x8] sm:$0xff] %v3859
        %4033 = vst [vmem:[#allocation6 + $0x10] sm:$0xff] %v3872
        %4034 = vst [vmem:[#allocation6 + $0x18] sm:$0xff] %v3885
        %s4035 = sand.u32 %s213, 1
        %s4036 = scalar_lea.sflag [#allocation10], %s4035
        %s4037 = sand.u32 %s213, 1
        %s4038 = smul.addr %s4037, 64
        %s4039 = scalar_lea.vmem [#allocation19], %s4038
        // Predicated region
        $region81: #{tpu_custom_call.1} parent=51 // pred_check
          %p4040 = pneg %p223
        $region82: #{tpu_custom_call.1} parent=51 // pred_check_branch
          %4042 = sbr.rel (%p4040) target = $region84
        $region83: #{tpu_custom_call.1} parent=51 // pred_region
          %s4043 = smul.u32 8, %s32
          %4045 = vsyncadd %s4036, 0
          %s4046 = smul.addr %s4043, 8
          %s4047 = scalar_lea.hbm %s8, %s4046
          %s4048 = sshll.u32 %s4039, 4
          %s4049 = int_to_ptr.vmem [resolvable:$true] %s4048
          %s4050 = sshll.u32 %s4047, 4
          %s4051 = int_to_ptr.hbm [resolvable:$true] %s4050
          %4056 = dma.vmem_to_hbm [thread:$0]  %s4049, 1024, %s4051, %s4036, 128, 128, 8
        $region84: #{tpu_custom_call.1} parent=51 // pred_fallthru
          _
        // Predicated region
        $region85: #{tpu_custom_call.1} parent=51 // pred_check
          %p4057 = pneg %p244
        $region86: #{tpu_custom_call.1} parent=51 // pred_check_branch
          %4059 = sbr.rel (%p4057) target = $region88
        $region87: #{tpu_custom_call.1} parent=51 // pred_region
          %4061 = vsyncadd [#allocation21], 0
          %s4062 = sshll.u32 [#allocation20], 4
          %s4063 = int_to_ptr.vmem [resolvable:$true] %s4062
          %s4064 = sshll.u32 %s9, 4
          %s4065 = int_to_ptr.hbm [resolvable:$true] %s4064
          %4070 = dma.vmem_to_hbm [thread:$0]  %s4063, 256, %s4065, [#allocation21], 128, 128, 8
        $region88: #{tpu_custom_call.1} parent=51 // pred_fallthru
          _
        // Predicated region
        $region89: #{tpu_custom_call.1} parent=51 // pred_check
          %p4071 = pneg %p265
        $region90: #{tpu_custom_call.1} parent=51 // pred_check_branch
          %4073 = sbr.rel (%p4071) target = $region92
        $region91: #{tpu_custom_call.1} parent=51 // pred_region
          %4075 = vsyncadd [#allocation21], 0
          %s4076 = sshll.u32 [#allocation22], 4
          %s4077 = int_to_ptr.vmem [resolvable:$true] %s4076
          %s4078 = sshll.u32 %s10, 4
          %s4079 = int_to_ptr.hbm [resolvable:$true] %s4078
          %4084 = dma.vmem_to_hbm [thread:$0]  %s4077, 256, %s4079, [#allocation21], 128, 128, 8
        $region92: #{tpu_custom_call.1} parent=51 // pred_fallthru
          _
        // Predicated region
        $region93: #{tpu_custom_call.1} parent=51 // pred_check
          %p4085 = pneg %p244
        $region94: #{tpu_custom_call.1} parent=51 // pred_check_branch
          %4087 = sbr.rel (%p4085) target = $region96
        $region95: #{tpu_custom_call.1} parent=51 // pred_region
          %4089 = dma.done [#allocation21], 256
        $region96: #{tpu_custom_call.1} parent=51 // pred_fallthru
          _
        // Predicated region
        $region97: #{tpu_custom_call.1} parent=51 // pred_check
          %p4090 = pneg %p265
        $region98: #{tpu_custom_call.1} parent=51 // pred_check_branch
          %4092 = sbr.rel (%p4090) target = $region100
        $region99: #{tpu_custom_call.1} parent=51 // pred_region
          %4094 = dma.done [#allocation21], 256
        $region100: #{tpu_custom_call.1} parent=51 // pred_fallthru
          _
      $region52: #{tpu_custom_call.1} parent=5 // pred_fallthru
        _
      %p4095 = scmp.le.s32.totalorder 2, %s27
      // Predicated region
      $region101: #{tpu_custom_call.1} parent=5 // pred_check
        %p4096 = pneg %p4095
      $region102: #{tpu_custom_call.1} parent=5 // pred_check_branch
        %4098 = sbr.rel (%p4096) target = $region104
      $region103: #{tpu_custom_call.1} parent=5 // pred_region
        %s4099 = ssub.s32 %s27, 2
        // Predicated region
        $region105: #{tpu_custom_call.1} parent=103 // pred_check
          %p4100 = pneg %p229
        $region106: #{tpu_custom_call.1} parent=103 // pred_check_branch
          %4102 = sbr.rel (%p4100) target = $region108
        $region107: #{tpu_custom_call.1} parent=103 // pred_region
          %s4103 = sand.u32 %s214, 1
          %s4104 = scalar_lea.sflag [#allocation10], %s4103
          %s4105 = sand.u32 %s214, 1
          %s4106 = smul.addr %s4105, 64
          %s4107 = scalar_lea.vmem [#allocation19], %s4106
          %4109 = dma.done %s4104, 1024
        $region108: #{tpu_custom_call.1} parent=103 // pred_fallthru
          _
      $region104: #{tpu_custom_call.1} parent=5 // pred_fallthru
        _
    $region6: #{tpu_custom_call.1} parent=1 // loop_footer
      %s31 = sadd.s32 1, %s27
    $region7: #{tpu_custom_call.1} parent=1 // loop_footer_branch
      %26 = sbr.rel target = $region3
    $region8: #{tpu_custom_call.1} parent=1 // loop_exit
      _
    %4110 = vsyncpa [#allocation9], 1
    %s4111 = scalar_lea.sflag [#allocation9], 1
    %4112 = vsyncpa %s4111, 1
    %4113 = vsyncpa [#allocation12], 1
    %4114 = vsyncpa [#allocation15], 1
    %4115 = vsyncpa [#allocation18], 1
    %4116 = vsyncpa [#allocation10], 1
    %s4117 = scalar_lea.sflag [#allocation10], 1
    %4118 = vsyncpa %s4117, 1
    %4119 = vsyncpa [#allocation21], 1

// kernel: tpu_custom_call.1
$region0: #{tpu_custom_call.1}
  #allocation0 [shape = 'u32[]', space=smem, size = 0x4, offset = 0x4, fixed_abs, tag = 'smem constant byte address 0x4 - core index']
  #allocation1 [shape = 'u32[72,128]{1,0:T(1,128)}', space=vmem, size = 0x9000, scoped, tag = 'internal scratch']
  #allocation2 [shape = 'f32[8,128]{1,0:T(8,128)}', space=vmem, size = 0x1000, scoped, tag = 'scratch operand']
  #allocation3 [shape = 'f32[8,128]{1,0:T(8,128)}', space=vmem, size = 0x1000, scoped, tag = 'scratch operand']
  #allocation4 [shape = 'f32[8,128]{1,0:T(8,128)}', space=vmem, size = 0x1000, scoped, tag = 'scratch operand']
  #allocation5 [shape = 'f32[8,128]{1,0:T(8,128)}', space=vmem, size = 0x1000, scoped, tag = 'scratch operand']
  #allocation6 [shape = 'f32[8,512]{1,0:T(8,128)}', space=vmem, size = 0x4000, scoped, tag = 'scratch operand']
  #allocation7 [shape = 'f32[8,8,512]{2,1,0:T(8,128)}', space=vmem, size = 0x20000, scoped, tag = 'scratch operand']
  %s0 = inlined_call_operand.hbm [shape: f32[24,8,128], index: 0, kind: input, shape index: {}]
  %s1 = inlined_call_operand.hbm [shape: bf16[128,512], index: 1, kind: input, shape index: {}]
  %s2 = inlined_call_operand.hbm [shape: f32[1,512], index: 2, kind: input, shape index: {}]
  %s3 = inlined_call_operand.hbm [shape: bf16[128,1024], index: 3, kind: input, shape index: {}]
  %s4 = inlined_call_operand.hbm [shape: bf16[128,512], index: 4, kind: input, shape index: {}]
  %s5 = inlined_call_operand.vmem [shape: f32[1,512], index: 5, kind: input, shape index: {}]
  %s6 = inlined_call_operand.hbm [shape: bf16[128,128], index: 6, kind: input, shape index: {}]
  %s7 = inlined_call_operand.vmem [shape: f32[1,128], index: 7, kind: input, shape index: {}]
  %s8 = inlined_call_operand.hbm [shape: f32[24,8,128], index: 8, kind: output, shape index: {0}]
  %s9 = inlined_call_operand.hbm [shape: f32[2,8,128], index: 9, kind: output, shape index: {1}]
  %s10 = inlined_call_operand.hbm [shape: f32[2,8,128], index: 10, kind: output, shape index: {2}]
  %11 = xla_tuple %s8, %s9, %s10
  %s12 = sld [smem:[#allocation0]]
  $region109: #{tpu_custom_call.1} parent=0
    _
  %s14 = ssub.s32 1, %s12
  %s15 = scalar_select 0, %s14, %s12
  $region1: #{tpu_custom_call.1} parent=0
    #allocation8 [shape = 'u8[65536]{0}', space=vmem, size = 0x10000, scoped, tag = 'input window, operand 0']
    #allocation9 [shape = 's32[2]{0}', space=sflag, size = 0x8, scoped, tag = 'scoped memory for tpu_custom_call.1']
    #allocation10 [shape = 's32[2]{0}', space=sflag, size = 0x8, scoped, tag = 'scoped memory for tpu_custom_call.1']
    #allocation11 [shape = 'u8[131072]{0}', space=vmem, size = 0x20000, scoped, tag = 'input window, operand 1, single buffered']
    #allocation12 [shape = 's32[1]{0}', space=sflag, size = 0x4, scoped, tag = 'scoped memory for tpu_custom_call.1']
    #allocation13 [shape = 'u8[2048]{0}', space=vmem, size = 0x800, scoped, tag = 'input window, operand 2, single buffered']
    #allocation14 [shape = 'u8[262144]{0}', space=vmem, size = 0x40000, scoped, tag = 'input window, operand 3, single buffered']
    #allocation15 [shape = 's32[1]{0}', space=sflag, size = 0x4, scoped, tag = 'scoped memory for tpu_custom_call.1']
    #allocation16 [shape = 'u8[131072]{0}', space=vmem, size = 0x20000, scoped, tag = 'input window, operand 4, single buffered']
    #allocation17 [shape = 'u8[32768]{0}', space=vmem, size = 0x8000, scoped, tag = 'input window, operand 6, single buffered']
    #allocation18 [shape = 's32[1]{0}', space=sflag, size = 0x4, scoped, tag = 'scoped memory for tpu_custom_call.1']
    #allocation19 [shape = 'u8[65536]{0}', space=vmem, size = 0x10000, scoped, tag = 'output window, operand 0']
    #allocation20 [shape = 'u8[8192]{0}', space=vmem, size = 0x2000, scoped, tag = 'output window, operand 1, single buffered']
    #allocation21 [shape = 's32[1]{0}', space=sflag, size = 0x4, scoped, tag = 'scoped memory for tpu_custom_call.1']
    #allocation22 [shape = 'u8[8192]{0}', space=vmem, size = 0x2000, scoped, tag = 'output window, operand 2, single buffered']
    %16 = vsyncpa [#allocation9], 0
    %s17 = scalar_lea.sflag [#allocation9], 1
    %18 = vsyncpa %s17, 0
    %19 = vsyncpa [#allocation12], 0
    %20 = vsyncpa [#allocation15], 0
    %21 = vsyncpa [#allocation18], 0
    %22 = vsyncpa [#allocation10], 0
    %s23 = scalar_lea.sflag [#allocation10], 1
    %24 = vsyncpa %s23, 0
    %25 = vsyncpa [#allocation21], 0
    loop: start=0, step=1, limit=5
    $region2: #{tpu_custom_call.1} parent=1 // loop_pre_header
      _
    $region3: #{tpu_custom_call.1} parent=1 // loop_header
      %s27 = sphi 0, %s31
      %p28 = scmp.ge.s32.totalorder %s27, 5
      %s37 = sphi 0, %s39
      %s40 = sphi 0, %s37
      %s41 = sphi 0, %s40
      %s57 = sphi 0, %s41
      %s61 = sphi 0, %s61
      %s63 = sphi 0, %s61
      %s64 = sphi 0, %s63
      %s78 = sphi 0, %s64
      %s82 = sphi 0, %s82
      %s84 = sphi 0, %s82
      %s85 = sphi 0, %s84
      %s99 = sphi 0, %s85
      %s103 = sphi 0, %s103
      %s105 = sphi 0, %s103
      %s106 = sphi 0, %s105
      %s120 = sphi 0, %s106
      %s124 = sphi 0, %s124
      %s126 = sphi 0, %s124
      %s127 = sphi 0, %s126
      %s141 = sphi 0, %s127
      %s145 = sphi 0, %s145
      %s147 = sphi 0, %s145
      %s148 = sphi 0, %s147
      %s162 = sphi 0, %s148
      %s166 = sphi 0, %s166
      %s168 = sphi 0, %s166
      %s169 = sphi 0, %s168
      %s183 = sphi 0, %s169
      %s187 = sphi 0, %s187
      %s189 = sphi 0, %s187
      %s190 = sphi 0, %s189
      %s204 = sphi 0, %s190
      %s210 = sphi 0, %s212
      %s213 = sphi 0, %s210
      %s214 = sphi 0, %s213
      %s230 = sphi 0, %s214
      %s234 = sphi 0, %s234
      %s236 = sphi 0, %s234
      %s237 = sphi 0, %s236
      %s251 = sphi 0, %s237
      %s255 = sphi 0, %s255
      %s257 = sphi 0, %s255
      %s258 = sphi 0, %s257
      %s272 = sphi 0, %s258
    $region4: #{tpu_custom_call.1} parent=1 // loop_header_branch
      %30 = sbr.rel (%p28) target = $region8
    $region5: #{tpu_custom_call.1} parent=1 // loop_body
      %s32 = ssub.s32 %s27, 1
      %s33 = ssub.s32 %s27, 2
      %s34 = sadd.s32 %s27, 1
      %s35 = ssub.s32 %s27, %s34
      %p36 = scmp.eq.s32.totalorder %s35, 0
      %s38 = sadd.s32 %s37, 1
      %s39 = scalar_select %p36, %s37, %s38
      %p42 = pneg %p36
      %p43 = scmp.eq.s32.totalorder %s27, 2
      %p44 = por %p42, %p43
      %p45 = scmp.ne.s32.totalorder %s37, %s40
      %p46 = scmp.eq.s32.totalorder %s27, 0
      %p47 = por %p45, %p46
      %p48 = scmp.ne.s32.totalorder %s37, %s40
      %p49 = scmp.eq.s32.totalorder %s32, 2
      %p50 = por %p48, %p49
      %p51 = scmp.ne.s32.totalorder %s40, %s41
      %p52 = scmp.eq.s32.totalorder %s32, 0
      %p53 = por %p51, %p52
      %p54 = scmp.ne.s32.totalorder %s40, %s41
      %p55 = scmp.eq.s32.totalorder %s33, 2
      %p56 = por %p54, %p55
      %p58 = scmp.ne.s32.totalorder %s41, %s57
      %p59 = scmp.eq.s32.totalorder %s33, 0
      %p60 = por %p58, %p59
      %s62 = sadd.s32 %s61, 1
      %p65 = scmp.eq.s32.totalorder %s27, 2
      %p66 = scmp.ne.s32.totalorder %s61, %s63
      %p67 = scmp.eq.s32.totalorder %s27, 0
      %p68 = por %p66, %p67
      %p69 = scmp.ne.s32.totalorder %s61, %s63
      %p70 = scmp.eq.s32.totalorder %s32, 2
      %p71 = por %p69, %p70
      %p72 = scmp.ne.s32.totalorder %s63, %s64
      %p73 = scmp.eq.s32.totalorder %s32, 0
      %p74 = por %p72, %p73
      %p75 = scmp.ne.s32.totalorder %s63, %s64
      %p76 = scmp.eq.s32.totalorder %s33, 2
      %p77 = por %p75, %p76
      %p79 = scmp.ne.s32.totalorder %s64, %s78
      %p80 = scmp.eq.s32.totalorder %s33, 0
      %p81 = por %p79, %p80
      %s83 = sadd.s32 %s82, 1
      %p86 = scmp.eq.s32.totalorder %s27, 2
      %p87 = scmp.ne.s32.totalorder %s82, %s84
      %p88 = scmp.eq.s32.totalorder %s27, 0
      %p89 = por %p87, %p88
      %p90 = scmp.ne.s32.totalorder %s82, %s84
      %p91 = scmp.eq.s32.totalorder %s32, 2
      %p92 = por %p90, %p91
      %p93 = scmp.ne.s32.totalorder %s84, %s85
      %p94 = scmp.eq.s32.totalorder %s32, 0
      %p95 = por %p93, %p94
      %p96 = scmp.ne.s32.totalorder %s84, %s85
      %p97 = scmp.eq.s32.totalorder %s33, 2
      %p98 = por %p96, %p97
      %p100 = scmp.ne.s32.totalorder %s85, %s99
      %p101 = scmp.eq.s32.totalorder %s33, 0
      %p102 = por %p100, %p101
      %s104 = sadd.s32 %s103, 1
      %p107 = scmp.eq.s32.totalorder %s27, 2
      %p108 = scmp.ne.s32.totalorder %s103, %s105
      %p109 = scmp.eq.s32.totalorder %s27, 0
      %p110 = por %p108, %p109
      %p111 = scmp.ne.s32.totalorder %s103, %s105
      %p112 = scmp.eq.s32.totalorder %s32, 2
      %p113 = por %p111, %p112
      %p114 = scmp.ne.s32.totalorder %s105, %s106
      %p115 = scmp.eq.s32.totalorder %s32, 0
      %p116 = por %p114, %p115
      %p117 = scmp.ne.s32.totalorder %s105, %s106
      %p118 = scmp.eq.s32.totalorder %s33, 2
      %p119 = por %p117, %p118
      %p121 = scmp.ne.s32.totalorder %s106, %s120
      %p122 = scmp.eq.s32.totalorder %s33, 0
      %p123 = por %p121, %p122
      %s125 = sadd.s32 %s124, 1
      %p128 = scmp.eq.s32.totalorder %s27, 2
      %p129 = scmp.ne.s32.totalorder %s124, %s126
      %p130 = scmp.eq.s32.totalorder %s27, 0
      %p131 = por %p129, %p130
      %p132 = scmp.ne.s32.totalorder %s124, %s126
      %p133 = scmp.eq.s32.totalorder %s32, 2
      %p134 = por %p132, %p133
      %p135 = scmp.ne.s32.totalorder %s126, %s127
      %p136 = scmp.eq.s32.totalorder %s32, 0
      %p137 = por %p135, %p136
      %p138 = scmp.ne.s32.totalorder %s126, %s127
      %p139 = scmp.eq.s32.totalorder %s33, 2
      %p140 = por %p138, %p139
      %p142 = scmp.ne.s32.totalorder %s127, %s141
      %p143 = scmp.eq.s32.totalorder %s33, 0
      %p144 = por %p142, %p143
      %s146 = sadd.s32 %s145, 1
      %p149 = scmp.eq.s32.totalorder %s27, 2
      %p150 = scmp.ne.s32.totalorder %s145, %s147
      %p151 = scmp.eq.s32.totalorder %s27, 0
      %p152 = por %p150, %p151
      %p153 = scmp.ne.s32.totalorder %s145, %s147
      %p154 = scmp.eq.s32.totalorder %s32, 2
      %p155 = por %p153, %p154
      %p156 = scmp.ne.s32.totalorder %s147, %s148
      %p157 = scmp.eq.s32.totalorder %s32, 0
      %p158 = por %p156, %p157
      %p159 = scmp.ne.s32.totalorder %s147, %s148
      %p160 = scmp.eq.s32.totalorder %s33, 2
      %p161 = por %p159, %p160
      %p163 = scmp.ne.s32.totalorder %s148, %s162
      %p164 = scmp.eq.s32.totalorder %s33, 0
      %p165 = por %p163, %p164
      %s167 = sadd.s32 %s166, 1
      %p170 = scmp.eq.s32.totalorder %s27, 2
      %p171 = scmp.ne.s32.totalorder %s166, %s168
      %p172 = scmp.eq.s32.totalorder %s27, 0
      %p173 = por %p171, %p172
      %p174 = scmp.ne.s32.totalorder %s166, %s168
      %p175 = scmp.eq.s32.totalorder %s32, 2
      %p176 = por %p174, %p175
      %p177 = scmp.ne.s32.totalorder %s168, %s169
      %p178 = scmp.eq.s32.totalorder %s32, 0
      %p179 = por %p177, %p178
      %p180 = scmp.ne.s32.totalorder %s168, %s169
      %p181 = scmp.eq.s32.totalorder %s33, 2
      %p182 = por %p180, %p181
      %p184 = scmp.ne.s32.totalorder %s169, %s183
      %p185 = scmp.eq.s32.totalorder %s33, 0
      %p186 = por %p184, %p185
      %s188 = sadd.s32 %s187, 1
      %p191 = scmp.eq.s32.totalorder %s27, 2
      %p192 = scmp.ne.s32.totalorder %s187, %s189
      %p193 = scmp.eq.s32.totalorder %s27, 0
      %p194 = por %p192, %p193
      %p195 = scmp.ne.s32.totalorder %s187, %s189
      %p196 = scmp.eq.s32.totalorder %s32, 2
      %p197 = por %p195, %p196
      %p198 = scmp.ne.s32.totalorder %s189, %s190
      %p199 = scmp.eq.s32.totalorder %s32, 0
      %p200 = por %p198, %p199
      %p201 = scmp.ne.s32.totalorder %s189, %s190
      %p202 = scmp.eq.s32.totalorder %s33, 2
      %p203 = por %p201, %p202
      %p205 = scmp.ne.s32.totalorder %s190, %s204
      %p206 = scmp.eq.s32.totalorder %s33, 0
      %p207 = por %p205, %p206
      %s208 = ssub.s32 %s27, %s34
      %p209 = scmp.eq.s32.totalorder %s208, 0
      %s211 = sadd.s32 %s210, 1
      %s212 = scalar_select %p209, %s210, %s211
      %p215 = pneg %p209
      %p216 = scmp.eq.s32.totalorder %s27, 2
      %p217 = por %p215, %p216
      %p218 = scmp.ne.s32.totalorder %s210, %s213
      %p219 = scmp.eq.s32.totalorder %s27, 0
      %p220 = por %p218, %p219
      %p221 = scmp.ne.s32.totalorder %s210, %s213
      %p222 = scmp.eq.s32.totalorder %s32, 2
      %p223 = por %p221, %p222
      %p224 = scmp.ne.s32.totalorder %s213, %s214
      %p225 = scmp.eq.s32.totalorder %s32, 0
      %p226 = por %p224, %p225
      %p227 = scmp.ne.s32.totalorder %s213, %s214
      %p228 = scmp.eq.s32.totalorder %s33, 2
      %p229 = por %p227, %p228
      %p231 = scmp.ne.s32.totalorder %s214, %s230
      %p232 = scmp.eq.s32.totalorder %s33, 0
      %p233 = por %p231, %p232
      %s235 = sadd.s32 %s234, 1
      %p238 = scmp.eq.s32.totalorder %s27, 2
      %p239 = scmp.ne.s32.totalorder %s234, %s236
      %p240 = scmp.eq.s32.totalorder %s27, 0
      %p241 = por %p239, %p240
      %p242 = scmp.ne.s32.totalorder %s234, %s236
      %p243 = scmp.eq.s32.totalorder %s32, 2
      %p244 = por %p242, %p243
      %p245 = scmp.ne.s32.totalorder %s236, %s237
      %p246 = scmp.eq.s32.totalorder %s32, 0
      %p247 = por %p245, %p246
      %p248 = scmp.ne.s32.totalorder %s236, %s237
      %p249 = scmp.eq.s32.totalorder %s33, 2
      %p250 = por %p248, %p249
      %p252 = scmp.ne.s32.totalorder %s237, %s251
      %p253 = scmp.eq.s32.totalorder %s33, 0
      %p254 = por %p252, %p253
      %s256 = sadd.s32 %s255, 1
      %p259 = scmp.eq.s32.totalorder %s27, 2
      %p260 = scmp.ne.s32.totalorder %s255, %s257
      %p261 = scmp.eq.s32.totalorder %s27, 0
      %p262 = por %p260, %p261
      %p263 = scmp.ne.s32.totalorder %s255, %s257
      %p264 = scmp.eq.s32.totalorder %s32, 2
      %p265 = por %p263, %p264
      %p266 = scmp.ne.s32.totalorder %s257, %s258
      %p267 = scmp.eq.s32.totalorder %s32, 0
      %p268 = por %p266, %p267
      %p269 = scmp.ne.s32.totalorder %s257, %s258
      %p270 = scmp.eq.s32.totalorder %s33, 2
      %p271 = por %p269, %p270
      %p273 = scmp.ne.s32.totalorder %s258, %s272
      %p274 = scmp.eq.s32.totalorder %s33, 0
      %p275 = por %p273, %p274
      %p276 = scmp.le.s32.totalorder 1, %s27
      %p277 = scmp.lt.s32.totalorder %s27, 4
      %p278 = pnand %p276, %p277
      %p279 = pneg %p278
      // Predicated region
      $region9: #{tpu_custom_call.1} parent=5 // pred_check
        _
      $region10: #{tpu_custom_call.1} parent=5 // pred_check_branch
        %281 = sbr.rel (%p278) target = $region12
      $region11: #{tpu_custom_call.1} parent=5 // pred_region
        %s282 = ssub.s32 %s27, 1
        // Predicated region
        $region13: #{tpu_custom_call.1} parent=11 // pred_check
          %p283 = pneg %p74
        $region14: #{tpu_custom_call.1} parent=11 // pred_check_branch
          %285 = sbr.rel (%p283) target = $region16
        $region15: #{tpu_custom_call.1} parent=11 // pred_region
          %287 = vsyncadd [#allocation12], 0
          %s288 = sshll.u32 %s1, 4
          %s289 = int_to_ptr.hbm [resolvable:$true] %s288
          %s290 = sshll.u32 [#allocation11], 4
          %s291 = int_to_ptr.vmem [resolvable:$true] %s290
          %296 = dma.hbm_to_vmem [thread:$0]  %s289, 4096, %s291, [#allocation12], 256, 256, 16
        $region16: #{tpu_custom_call.1} parent=11 // pred_fallthru
          _
        // Predicated region
        $region17: #{tpu_custom_call.1} parent=11 // pred_check
          %p297 = pneg %p95
        $region18: #{tpu_custom_call.1} parent=11 // pred_check_branch
          %299 = sbr.rel (%p297) target = $region20
        $region19: #{tpu_custom_call.1} parent=11 // pred_region
          %301 = vsyncadd [#allocation12], 0
          %s303 = sshll.u32 %s2, 4
          %s304 = int_to_ptr.hbm [resolvable:$true] %s303
          %s305 = sshll.u32 [#allocation13], 4
          %s306 = int_to_ptr.vmem [resolvable:$true] %s305
          %308 = dma.hbm_to_vmem [thread:$0]  %s304, 64, %s306, [#allocation12]
        $region20: #{tpu_custom_call.1} parent=11 // pred_fallthru
          _
        // Predicated region
        $region21: #{tpu_custom_call.1} parent=11 // pred_check
          %p309 = pneg %p116
        $region22: #{tpu_custom_call.1} parent=11 // pred_check_branch
          %311 = sbr.rel (%p309) target = $region24
        $region23: #{tpu_custom_call.1} parent=11 // pred_region
          %313 = vsyncadd [#allocation15], 0
          %s314 = sshll.u32 %s3, 4
          %s315 = int_to_ptr.hbm [resolvable:$true] %s314
          %s316 = sshll.u32 [#allocation14], 4
          %s317 = int_to_ptr.vmem [resolvable:$true] %s316
          %322 = dma.hbm_to_vmem [thread:$0]  %s315, 8192, %s317, [#allocation15], 512, 512, 32
        $region24: #{tpu_custom_call.1} parent=11 // pred_fallthru
          _
        // Predicated region
        $region25: #{tpu_custom_call.1} parent=11 // pred_check
          %p323 = pneg %p137
        $region26: #{tpu_custom_call.1} parent=11 // pred_check_branch
          %325 = sbr.rel (%p323) target = $region28
        $region27: #{tpu_custom_call.1} parent=11 // pred_region
          %327 = vsyncadd [#allocation15], 0
          %s328 = sshll.u32 %s4, 4
          %s329 = int_to_ptr.hbm [resolvable:$true] %s328
          %s330 = sshll.u32 [#allocation16], 4
          %s331 = int_to_ptr.vmem [resolvable:$true] %s330
          %336 = dma.hbm_to_vmem [thread:$0]  %s329, 4096, %s331, [#allocation15], 256, 256, 16
        $region28: #{tpu_custom_call.1} parent=11 // pred_fallthru
          _
        // Predicated region
        $region29: #{tpu_custom_call.1} parent=11 // pred_check
          %p337 = pneg %p158
        $region30: #{tpu_custom_call.1} parent=11 // pred_check_branch
          %339 = sbr.rel (%p337) target = $region32
        $region31: #{tpu_custom_call.1} parent=11 // pred_region
          _
        $region32: #{tpu_custom_call.1} parent=11 // pred_fallthru
          _
        // Predicated region
        $region33: #{tpu_custom_call.1} parent=11 // pred_check
          %p340 = pneg %p179
        $region34: #{tpu_custom_call.1} parent=11 // pred_check_branch
          %342 = sbr.rel (%p340) target = $region36
        $region35: #{tpu_custom_call.1} parent=11 // pred_region
          %344 = vsyncadd [#allocation18], 0
          %s345 = sshll.u32 %s6, 4
          %s346 = int_to_ptr.hbm [resolvable:$true] %s345
          %s347 = sshll.u32 [#allocation17], 4
          %s348 = int_to_ptr.vmem [resolvable:$true] %s347
          %353 = dma.hbm_to_vmem [thread:$0]  %s346, 1024, %s348, [#allocation18], 64, 64, 4
        $region36: #{tpu_custom_call.1} parent=11 // pred_fallthru
          _
        // Predicated region
        $region37: #{tpu_custom_call.1} parent=11 // pred_check
          %p354 = pneg %p200
        $region38: #{tpu_custom_call.1} parent=11 // pred_check_branch
          %356 = sbr.rel (%p354) target = $region40
        $region39: #{tpu_custom_call.1} parent=11 // pred_region
          _
        $region40: #{tpu_custom_call.1} parent=11 // pred_fallthru
          _
      $region12: #{tpu_custom_call.1} parent=5 // pred_fallthru
        _
      %p357 = scmp.lt.s32.totalorder %s27, 3
      // Predicated region
      $region41: #{tpu_custom_call.1} parent=5 // pred_check
        %p358 = pneg %p357
      $region42: #{tpu_custom_call.1} parent=5 // pred_check_branch
        %360 = sbr.rel (%p358) target = $region44
      $region43: #{tpu_custom_call.1} parent=5 // pred_region
        // Predicated region
        $region45: #{tpu_custom_call.1} parent=43 // pred_check
          %p361 = pneg %p47
        $region46: #{tpu_custom_call.1} parent=43 // pred_check_branch
          %363 = sbr.rel (%p361) target = $region48
        $region47: #{tpu_custom_call.1} parent=43 // pred_region
          %s364 = sand.u32 %s37, 1
          %s365 = scalar_lea.sflag [#allocation9], %s364
          %s366 = sand.u32 %s37, 1
          %s367 = smul.addr %s366, 64
          %s368 = scalar_lea.vmem [#allocation8], %s367
          %s369 = smul.u32 8, %s27
          %371 = vsyncadd %s365, 0
          %s372 = smul.addr %s369, 8
          %s373 = scalar_lea.hbm %s0, %s372
          %s374 = sshll.u32 %s373, 4
          %s375 = int_to_ptr.hbm [resolvable:$true] %s374
          %s376 = sshll.u32 %s368, 4
          %s377 = int_to_ptr.vmem [resolvable:$true] %s376
          %382 = dma.hbm_to_vmem [thread:$0]  %s375, 1024, %s377, %s365, 128, 128, 8
        $region48: #{tpu_custom_call.1} parent=43 // pred_fallthru
          _
      $region44: #{tpu_custom_call.1} parent=5 // pred_fallthru
        _
      %p383 = scmp.le.s32.totalorder 1, %s27
      %p384 = scmp.lt.s32.totalorder %s27, 4
      %p385 = pnand %p383, %p384
      %p386 = pneg %p385
      // Predicated region
      $region49: #{tpu_custom_call.1} parent=5 // pred_check
        _
      $region50: #{tpu_custom_call.1} parent=5 // pred_check_branch
        %388 = sbr.rel (%p385) target = $region52
      $region51: #{tpu_custom_call.1} parent=5 // pred_region
        %s389 = ssub.s32 %s27, 1
        %s390 = sand.u32 %s40, 1
        %s391 = scalar_lea.sflag [#allocation9], %s390
        %s392 = sand.u32 %s40, 1
        %s393 = smul.addr %s392, 64
        %s394 = scalar_lea.vmem [#allocation8], %s393
        // Predicated region
        $region53: #{tpu_custom_call.1} parent=51 // pred_check
          %p395 = pneg %p53
        $region54: #{tpu_custom_call.1} parent=51 // pred_check_branch
          %397 = sbr.rel (%p395) target = $region56
        $region55: #{tpu_custom_call.1} parent=51 // pred_region
          %399 = dma.done %s391, 1024
        $region56: #{tpu_custom_call.1} parent=51 // pred_fallthru
          _
        // Predicated region
        $region57: #{tpu_custom_call.1} parent=51 // pred_check
          %p400 = pneg %p74
        $region58: #{tpu_custom_call.1} parent=51 // pred_check_branch
          %402 = sbr.rel (%p400) target = $region60
        $region59: #{tpu_custom_call.1} parent=51 // pred_region
          %404 = dma.done [#allocation12], 4096
        $region60: #{tpu_custom_call.1} parent=51 // pred_fallthru
          _
        // Predicated region
        $region61: #{tpu_custom_call.1} parent=51 // pred_check
          %p405 = pneg %p95
        $region62: #{tpu_custom_call.1} parent=51 // pred_check_branch
          %407 = sbr.rel (%p405) target = $region64
        $region63: #{tpu_custom_call.1} parent=51 // pred_region
          %409 = dma.done [#allocation12], 64
        $region64: #{tpu_custom_call.1} parent=51 // pred_fallthru
          _
        // Predicated region
        $region65: #{tpu_custom_call.1} parent=51 // pred_check
          %p410 = pneg %p116
        $region66: #{tpu_custom_call.1} parent=51 // pred_check_branch
          %412 = sbr.rel (%p410) target = $region68
        $region67: #{tpu_custom_call.1} parent=51 // pred_region
          %414 = dma.done [#allocation15], 8192
        $region68: #{tpu_custom_call.1} parent=51 // pred_fallthru
          _
        // Predicated region
        $region69: #{tpu_custom_call.1} parent=51 // pred_check
          %p415 = pneg %p137
        $region70: #{tpu_custom_call.1} parent=51 // pred_check_branch
          %417 = sbr.rel (%p415) target = $region72
        $region71: #{tpu_custom_call.1} parent=51 // pred_region
          %419 = dma.done [#allocation15], 4096
        $region72: #{tpu_custom_call.1} parent=51 // pred_fallthru
          _
        // Predicated region
        $region73: #{tpu_custom_call.1} parent=51 // pred_check
          %p420 = pneg %p179
        $region74: #{tpu_custom_call.1} parent=51 // pred_check_branch
          %422 = sbr.rel (%p420) target = $region76
        $region75: #{tpu_custom_call.1} parent=51 // pred_region
          %424 = dma.done [#allocation18], 1024
        $region76: #{tpu_custom_call.1} parent=51 // pred_fallthru
          _
        %s425 = sand.u32 %s40, 1
        %s426 = scalar_lea.sflag [#allocation9], %s425
        %s427 = sand.u32 %s40, 1
        %s428 = smul.addr %s427, 64
        %s429 = scalar_lea.vmem [#allocation8], %s428
        %p430 = pneg %p53
        %p431 = pneg %p50
        %p432 = pneg %p74
        %p433 = pneg %p71
        %p434 = pneg %p95
        %p435 = pneg %p92
        %p436 = pneg %p116
        %p437 = pneg %p113
        %p438 = pneg %p137
        %p439 = pneg %p134
        %p440 = pneg %p158
        %p441 = pneg %p155
        %p442 = pneg %p179
        %p443 = pneg %p176
        %p444 = pneg %p200
        %p445 = pneg %p197
        %p446 = pneg %p226
        %p447 = pneg %p223
        %s448 = sand.u32 %s213, 1
        %s449 = scalar_lea.sflag [#allocation10], %s448
        %s450 = sand.u32 %s213, 1
        %s451 = smul.addr %s450, 64
        %s452 = scalar_lea.vmem [#allocation19], %s451
        %p453 = pneg %p247
        %p454 = pneg %p244
        %p455 = pneg %p268
        %p456 = pneg %p265
        %s457 = smul.u32 8, %s32
        %s458 = smul.u32 8, %s32
        %p459 = scmp.eq.s32.totalorder %s32, 0
        // Predicated region
        $region77: #{tpu_custom_call.1} parent=51 // pred_check
          %p460 = pneg %p459
        $region78: #{tpu_custom_call.1} parent=51 // pred_check_branch
          %462 = sbr.rel (%p460) target = $region80
        $region79: #{tpu_custom_call.1} parent=51 // pred_region
          %463 = vst [vmem:[#allocation2] sm:$0xff] 0.0
          %464 = vst [vmem:[#allocation3] sm:$0xff] 0.0
          %465 = vst [vmem:[#allocation4] sm:$0xff] 0.0
          %466 = vst [vmem:[#allocation5] sm:$0xff] 0.0
          %467 = vst [vmem:[#allocation6] sm:$0xff] 0.0
          %468 = vst [vmem:[#allocation6 + $0x8] sm:$0xff] 0.0
          %469 = vst [vmem:[#allocation6 + $0x10] sm:$0xff] 0.0
          %470 = vst [vmem:[#allocation6 + $0x18] sm:$0xff] 0.0
        $region80: #{tpu_custom_call.1} parent=51 // pred_fallthru
          _
        %v471 = vld [vmem:[%s394] sm:$0xff]
        %v472 = vld [vmem:[%s394 + $0x8] sm:$0xff]
        %v473 = vld [vmem:[%s394 + $0x10] sm:$0xff]
        %v474 = vld [vmem:[%s394 + $0x18] sm:$0xff]
        %v475 = vld [vmem:[%s394 + $0x20] sm:$0xff]
        %v476 = vld [vmem:[%s394 + $0x28] sm:$0xff]
        %v477 = vld [vmem:[%s394 + $0x30] sm:$0xff]
        %v478 = vld [vmem:[%s394 + $0x38] sm:$0xff]
        %v479 = vpack.c.bf16 %v472, %v471
        %v480 = vpack.c.bf16 %v474, %v473
        %v481 = vpack.c.bf16 %v476, %v475
        %v482 = vpack.c.bf16 %v478, %v477
        %v483 = vld [vmem:[#allocation11] sm:$0xff]
        %v484 = vld [vmem:[#allocation11 + $0x8] sm:$0xff]
        %v485 = vld [vmem:[#allocation11 + $0x10] sm:$0xff]
        %v486 = vld [vmem:[#allocation11 + $0x18] sm:$0xff]
        %v487 = vld [vmem:[#allocation11 + $0x20] sm:$0xff]
        %v488 = vld [vmem:[#allocation11 + $0x28] sm:$0xff]
        %v489 = vld [vmem:[#allocation11 + $0x30] sm:$0xff]
        %v490 = vld [vmem:[#allocation11 + $0x38] sm:$0xff]
        %v491 = vld [vmem:[#allocation11 + $0x40] sm:$0xff]
        %v492 = vld [vmem:[#allocation11 + $0x48] sm:$0xff]
        %v493 = vld [vmem:[#allocation11 + $0x50] sm:$0xff]
        %v494 = vld [vmem:[#allocation11 + $0x58] sm:$0xff]
        %v495 = vld [vmem:[#allocation11 + $0x60] sm:$0xff]
        %v496 = vld [vmem:[#allocation11 + $0x68] sm:$0xff]
        %v497 = vld [vmem:[#allocation11 + $0x70] sm:$0xff]
        %v498 = vld [vmem:[#allocation11 + $0x78] sm:$0xff]
        %v499 = vld [vmem:[#allocation11 + $0x80] sm:$0xff]
        %v500 = vld [vmem:[#allocation11 + $0x88] sm:$0xff]
        %v501 = vld [vmem:[#allocation11 + $0x90] sm:$0xff]
        %v502 = vld [vmem:[#allocation11 + $0x98] sm:$0xff]
        %v503 = vld [vmem:[#allocation11 + $0xa0] sm:$0xff]
        %v504 = vld [vmem:[#allocation11 + $0xa8] sm:$0xff]
        %v505 = vld [vmem:[#allocation11 + $0xb0] sm:$0xff]
        %v506 = vld [vmem:[#allocation11 + $0xb8] sm:$0xff]
        %v507 = vld [vmem:[#allocation11 + $0xc0] sm:$0xff]
        %v508 = vld [vmem:[#allocation11 + $0xc8] sm:$0xff]
        %v509 = vld [vmem:[#allocation11 + $0xd0] sm:$0xff]
        %v510 = vld [vmem:[#allocation11 + $0xd8] sm:$0xff]
        %v511 = vld [vmem:[#allocation11 + $0xe0] sm:$0xff]
        %v512 = vld [vmem:[#allocation11 + $0xe8] sm:$0xff]
        %v513 = vld [vmem:[#allocation11 + $0xf0] sm:$0xff]
        %v514 = vld [vmem:[#allocation11 + $0xf8] sm:$0xff]
        %v515 = vld [vmem:[#allocation13] sm:$0xf]
        %v517 = vperm.slane %v515, 0
        %v518 = vperm.slane %v515, 1
        %v519 = vperm.slane %v515, 2
        %v520 = vperm.slane %v515, 3
        %v557 = vunpack.c.l.b16 %v483
        %v558 = vunpack.c.h.b16 %v483
        %v559 = vunpack.c.l.b16 %v484
        %v560 = vunpack.c.h.b16 %v484
        %v561 = vunpack.c.l.b16 %v485
        %v562 = vunpack.c.h.b16 %v485
        %v563 = vunpack.c.l.b16 %v486
        %v564 = vunpack.c.h.b16 %v486
        %v565 = vunpack.c.l.b16 %v487
        %v566 = vunpack.c.h.b16 %v487
        %v567 = vunpack.c.l.b16 %v488
        %v568 = vunpack.c.h.b16 %v488
        %v569 = vunpack.c.l.b16 %v489
        %v570 = vunpack.c.h.b16 %v489
        %v571 = vunpack.c.l.b16 %v490
        %v572 = vunpack.c.h.b16 %v490
        %v573 = vunpack.c.l.b16 %v491
        %v574 = vunpack.c.h.b16 %v491
        %v575 = vunpack.c.l.b16 %v492
        %v576 = vunpack.c.h.b16 %v492
        %v577 = vunpack.c.l.b16 %v493
        %v578 = vunpack.c.h.b16 %v493
        %v579 = vunpack.c.l.b16 %v494
        %v580 = vunpack.c.h.b16 %v494
        %v581 = vunpack.c.l.b16 %v495
        %v582 = vunpack.c.h.b16 %v495
        %v583 = vunpack.c.l.b16 %v496
        %v584 = vunpack.c.h.b16 %v496
        %v585 = vunpack.c.l.b16 %v497
        %v586 = vunpack.c.h.b16 %v497
        %v587 = vunpack.c.l.b16 %v498
        %v588 = vunpack.c.h.b16 %v498
        %v589 = vunpack.c.l.b16 %v499
        %v590 = vunpack.c.h.b16 %v499
        %v591 = vunpack.c.l.b16 %v500
        %v592 = vunpack.c.h.b16 %v500
        %v593 = vunpack.c.l.b16 %v501
        %v594 = vunpack.c.h.b16 %v501
        %v595 = vunpack.c.l.b16 %v502
        %v596 = vunpack.c.h.b16 %v502
        %v597 = vunpack.c.l.b16 %v503
        %v598 = vunpack.c.h.b16 %v503
        %v599 = vunpack.c.l.b16 %v504
        %v600 = vunpack.c.h.b16 %v504
        %v601 = vunpack.c.l.b16 %v505
        %v602 = vunpack.c.h.b16 %v505
        %v603 = vunpack.c.l.b16 %v506
        %v604 = vunpack.c.h.b16 %v506
        %v605 = vunpack.c.l.b16 %v507
        %v606 = vunpack.c.h.b16 %v507
        %v607 = vunpack.c.l.b16 %v508
        %v608 = vunpack.c.h.b16 %v508
        %v609 = vunpack.c.l.b16 %v509
        %v610 = vunpack.c.h.b16 %v509
        %v611 = vunpack.c.l.b16 %v510
        %v612 = vunpack.c.h.b16 %v510
        %v613 = vunpack.c.l.b16 %v511
        %v614 = vunpack.c.h.b16 %v511
        %v615 = vunpack.c.l.b16 %v512
        %v616 = vunpack.c.h.b16 %v512
        %v617 = vunpack.c.l.b16 %v513
        %v618 = vunpack.c.h.b16 %v513
        %v619 = vunpack.c.l.b16 %v514
        %v620 = vunpack.c.h.b16 %v514
        %v621 = vpack.c.b16 %v561, %v557
        %v622 = vpack.c.b16 %v562, %v558
        %v623 = vpack.c.b16 %v563, %v559
        %v624 = vpack.c.b16 %v564, %v560
        %v625 = vpack.c.b16 %v569, %v565
        %v626 = vpack.c.b16 %v570, %v566
        %v627 = vpack.c.b16 %v571, %v567
        %v628 = vpack.c.b16 %v572, %v568
        %v629 = vpack.c.b16 %v577, %v573
        %v630 = vpack.c.b16 %v578, %v574
        %v631 = vpack.c.b16 %v579, %v575
        %v632 = vpack.c.b16 %v580, %v576
        %v633 = vpack.c.b16 %v585, %v581
        %v634 = vpack.c.b16 %v586, %v582
        %v635 = vpack.c.b16 %v587, %v583
        %v636 = vpack.c.b16 %v588, %v584
        %v637 = vpack.c.b16 %v593, %v589
        %v638 = vpack.c.b16 %v594, %v590
        %v639 = vpack.c.b16 %v595, %v591
        %v640 = vpack.c.b16 %v596, %v592
        %v641 = vpack.c.b16 %v601, %v597
        %v642 = vpack.c.b16 %v602, %v598
        %v643 = vpack.c.b16 %v603, %v599
        %v644 = vpack.c.b16 %v604, %v600
        %v645 = vpack.c.b16 %v609, %v605
        %v646 = vpack.c.b16 %v610, %v606
        %v647 = vpack.c.b16 %v611, %v607
        %v648 = vpack.c.b16 %v612, %v608
        %v649 = vpack.c.b16 %v617, %v613
        %v650 = vpack.c.b16 %v618, %v614
        %v651 = vpack.c.b16 %v619, %v615
        %v652 = vpack.c.b16 %v620, %v616
        %685 = vmatpush.bf16.msra.mxu0 %v649
        %686 = vmatpush.bf16.msra.mxu0 %v645
        %687 = vmatpush.bf16.msra.mxu0 %v641
        %688 = vmatpush.bf16.msra.mxu0 %v637
        %689 = vmatpush.bf16.msra.mxu0 %v633
        %690 = vmatpush.bf16.msra.mxu0 %v629
        %691 = vmatpush.bf16.msra.mxu0 %v625
        %692 = vmatpush.bf16.msra.mxu0 %v621
        %693 = vmatmul.bf16.gmra.mxu0 %v479
        %v694 = vpop.f32.mrf.mxu0
        %v695 = vadd.f32 %v517, %v694
        %v696 = vpop.f32.mrf.mxu0
        %v697 = vadd.f32 %v517, %v696
        %698 = vmatmul.bf16.gmra.mxu0 %v480
        %v699 = vpop.f32.mrf.mxu0
        %v700 = vadd.f32 %v517, %v699
        %v701 = vpop.f32.mrf.mxu0
        %v702 = vadd.f32 %v517, %v701
        %703 = vmatmul.bf16.gmra.mxu0 %v481
        %v704 = vpop.f32.mrf.mxu0
        %v705 = vadd.f32 %v517, %v704
        %v706 = vpop.f32.mrf.mxu0
        %v707 = vadd.f32 %v517, %v706
        %708 = vmatmul.bf16.gmra.mxu0 %v482
        %v709 = vpop.f32.mrf.mxu0
        %v710 = vadd.f32 %v517, %v709
        %v711 = vpop.f32.mrf.mxu0
        %v712 = vadd.f32 %v517, %v711
        %713 = vdwg.mxu0
        %714 = vmatpush.bf16.msra.mxu0 %v650
        %715 = vmatpush.bf16.msra.mxu0 %v646
        %716 = vmatpush.bf16.msra.mxu0 %v642
        %717 = vmatpush.bf16.msra.mxu0 %v638
        %718 = vmatpush.bf16.msra.mxu0 %v634
        %719 = vmatpush.bf16.msra.mxu0 %v630
        %720 = vmatpush.bf16.msra.mxu0 %v626
        %721 = vmatpush.bf16.msra.mxu0 %v622
        %722 = vmatmul.bf16.gmra.mxu0 %v479
        %v723 = vpop.f32.mrf.mxu0
        %v724 = vadd.f32 %v518, %v723
        %v725 = vpop.f32.mrf.mxu0
        %v726 = vadd.f32 %v518, %v725
        %727 = vmatmul.bf16.gmra.mxu0 %v480
        %v728 = vpop.f32.mrf.mxu0
        %v729 = vadd.f32 %v518, %v728
        %v730 = vpop.f32.mrf.mxu0
        %v731 = vadd.f32 %v518, %v730
        %732 = vmatmul.bf16.gmra.mxu0 %v481
        %v733 = vpop.f32.mrf.mxu0
        %v734 = vadd.f32 %v518, %v733
        %v735 = vpop.f32.mrf.mxu0
        %v736 = vadd.f32 %v518, %v735
        %737 = vmatmul.bf16.gmra.mxu0 %v482
        %v738 = vpop.f32.mrf.mxu0
        %v739 = vadd.f32 %v518, %v738
        %v740 = vpop.f32.mrf.mxu0
        %v741 = vadd.f32 %v518, %v740
        %742 = vdwg.mxu0
        %743 = vmatpush.bf16.msra.mxu0 %v651
        %744 = vmatpush.bf16.msra.mxu0 %v647
        %745 = vmatpush.bf16.msra.mxu0 %v643
        %746 = vmatpush.bf16.msra.mxu0 %v639
        %747 = vmatpush.bf16.msra.mxu0 %v635
        %748 = vmatpush.bf16.msra.mxu0 %v631
        %749 = vmatpush.bf16.msra.mxu0 %v627
        %750 = vmatpush.bf16.msra.mxu0 %v623
        %751 = vmatmul.bf16.gmra.mxu0 %v479
        %v752 = vpop.f32.mrf.mxu0
        %v753 = vadd.f32 %v519, %v752
        %v754 = vpop.f32.mrf.mxu0
        %v755 = vadd.f32 %v519, %v754
        %756 = vmatmul.bf16.gmra.mxu0 %v480
        %v757 = vpop.f32.mrf.mxu0
        %v758 = vadd.f32 %v519, %v757
        %v759 = vpop.f32.mrf.mxu0
        %v760 = vadd.f32 %v519, %v759
        %761 = vmatmul.bf16.gmra.mxu0 %v481
        %v762 = vpop.f32.mrf.mxu0
        %v763 = vadd.f32 %v519, %v762
        %v764 = vpop.f32.mrf.mxu0
        %v765 = vadd.f32 %v519, %v764
        %766 = vmatmul.bf16.gmra.mxu0 %v482
        %v767 = vpop.f32.mrf.mxu0
        %v768 = vadd.f32 %v519, %v767
        %v769 = vpop.f32.mrf.mxu0
        %v770 = vadd.f32 %v519, %v769
        %771 = vdwg.mxu0
        %772 = vmatpush.bf16.msra.mxu0 %v652
        %773 = vmatpush.bf16.msra.mxu0 %v648
        %774 = vmatpush.bf16.msra.mxu0 %v644
        %775 = vmatpush.bf16.msra.mxu0 %v640
        %776 = vmatpush.bf16.msra.mxu0 %v636
        %777 = vmatpush.bf16.msra.mxu0 %v632
        %778 = vmatpush.bf16.msra.mxu0 %v628
        %779 = vmatpush.bf16.msra.mxu0 %v624
        %780 = vmatmul.bf16.gmra.mxu0 %v479
        %v781 = vpop.f32.mrf.mxu0
        %v782 = vadd.f32 %v520, %v781
        %v783 = vpop.f32.mrf.mxu0
        %v784 = vadd.f32 %v520, %v783
        %785 = vmatmul.bf16.gmra.mxu0 %v480
        %v786 = vpop.f32.mrf.mxu0
        %v787 = vadd.f32 %v520, %v786
        %v788 = vpop.f32.mrf.mxu0
        %v789 = vadd.f32 %v520, %v788
        %790 = vmatmul.bf16.gmra.mxu0 %v481
        %v791 = vpop.f32.mrf.mxu0
        %v792 = vadd.f32 %v520, %v791
        %v793 = vpop.f32.mrf.mxu0
        %v794 = vadd.f32 %v520, %v793
        %795 = vmatmul.bf16.gmra.mxu0 %v482
        %v796 = vpop.f32.mrf.mxu0
        %v797 = vadd.f32 %v520, %v796
        %v798 = vpop.f32.mrf.mxu0
        %v799 = vadd.f32 %v520, %v798
        %800 = vdwg.mxu0
        %801 = vst [vmem:[#allocation7] sm:$0xff] %v695
        %802 = vst [vmem:[#allocation7 + $0x8] sm:$0xff] %v724
        %803 = vst [vmem:[#allocation7 + $0x10] sm:$0xff] %v753
        %804 = vst [vmem:[#allocation7 + $0x18] sm:$0xff] %v782
        %805 = vst [vmem:[#allocation7 + $0x20] sm:$0xff] %v697
        %806 = vst [vmem:[#allocation7 + $0x28] sm:$0xff] %v726
        %807 = vst [vmem:[#allocation7 + $0x30] sm:$0xff] %v755
        %808 = vst [vmem:[#allocation7 + $0x38] sm:$0xff] %v784
        %809 = vst [vmem:[#allocation7 + $0x40] sm:$0xff] %v700
        %810 = vst [vmem:[#allocation7 + $0x48] sm:$0xff] %v729
        %811 = vst [vmem:[#allocation7 + $0x50] sm:$0xff] %v758
        %812 = vst [vmem:[#allocation7 + $0x58] sm:$0xff] %v787
        %813 = vst [vmem:[#allocation7 + $0x60] sm:$0xff] %v702
        %814 = vst [vmem:[#allocation7 + $0x68] sm:$0xff] %v731
        %815 = vst [vmem:[#allocation7 + $0x70] sm:$0xff] %v760
        %816 = vst [vmem:[#allocation7 + $0x78] sm:$0xff] %v789
        %817 = vst [vmem:[#allocation7 + $0x80] sm:$0xff] %v705
        %818 = vst [vmem:[#allocation7 + $0x88] sm:$0xff] %v734
        %819 = vst [vmem:[#allocation7 + $0x90] sm:$0xff] %v763
        %820 = vst [vmem:[#allocation7 + $0x98] sm:$0xff] %v792
        %821 = vst [vmem:[#allocation7 + $0xa0] sm:$0xff] %v707
        %822 = vst [vmem:[#allocation7 + $0xa8] sm:$0xff] %v736
        %823 = vst [vmem:[#allocation7 + $0xb0] sm:$0xff] %v765
        %824 = vst [vmem:[#allocation7 + $0xb8] sm:$0xff] %v794
        %825 = vst [vmem:[#allocation7 + $0xc0] sm:$0xff] %v710
        %826 = vst [vmem:[#allocation7 + $0xc8] sm:$0xff] %v739
        %827 = vst [vmem:[#allocation7 + $0xd0] sm:$0xff] %v768
        %828 = vst [vmem:[#allocation7 + $0xd8] sm:$0xff] %v797
        %829 = vst [vmem:[#allocation7 + $0xe0] sm:$0xff] %v712
        %830 = vst [vmem:[#allocation7 + $0xe8] sm:$0xff] %v741
        %831 = vst [vmem:[#allocation7 + $0xf0] sm:$0xff] %v770
        %832 = vst [vmem:[#allocation7 + $0xf8] sm:$0xff] %v799
        %v833 = vld [vmem:[#allocation14] sm:$0xff]
        %v834 = vld [vmem:[#allocation14 + $0x8] sm:$0xff]
        %v835 = vld [vmem:[#allocation14 + $0x10] sm:$0xff]
        %v836 = vld [vmem:[#allocation14 + $0x18] sm:$0xff]
        %v837 = vld [vmem:[#allocation14 + $0x20] sm:$0xff]
        %v838 = vld [vmem:[#allocation14 + $0x28] sm:$0xff]
        %v839 = vld [vmem:[#allocation14 + $0x30] sm:$0xff]
        %v840 = vld [vmem:[#allocation14 + $0x38] sm:$0xff]
        %v841 = vld [vmem:[#allocation14 + $0x40] sm:$0xff]
        %v842 = vld [vmem:[#allocation14 + $0x48] sm:$0xff]
        %v843 = vld [vmem:[#allocation14 + $0x50] sm:$0xff]
        %v844 = vld [vmem:[#allocation14 + $0x58] sm:$0xff]
        %v845 = vld [vmem:[#allocation14 + $0x60] sm:$0xff]
        %v846 = vld [vmem:[#allocation14 + $0x68] sm:$0xff]
        %v847 = vld [vmem:[#allocation14 + $0x70] sm:$0xff]
        %v848 = vld [vmem:[#allocation14 + $0x78] sm:$0xff]
        %v849 = vld [vmem:[#allocation14 + $0x80] sm:$0xff]
        %v850 = vld [vmem:[#allocation14 + $0x88] sm:$0xff]
        %v851 = vld [vmem:[#allocation14 + $0x90] sm:$0xff]
        %v852 = vld [vmem:[#allocation14 + $0x98] sm:$0xff]
        %v853 = vld [vmem:[#allocation14 + $0xa0] sm:$0xff]
        %v854 = vld [vmem:[#allocation14 + $0xa8] sm:$0xff]
        %v855 = vld [vmem:[#allocation14 + $0xb0] sm:$0xff]
        %v856 = vld [vmem:[#allocation14 + $0xb8] sm:$0xff]
        %v857 = vld [vmem:[#allocation14 + $0xc0] sm:$0xff]
        %v858 = vld [vmem:[#allocation14 + $0xc8] sm:$0xff]
        %v859 = vld [vmem:[#allocation14 + $0xd0] sm:$0xff]
        %v860 = vld [vmem:[#allocation14 + $0xd8] sm:$0xff]
        %v861 = vld [vmem:[#allocation14 + $0xe0] sm:$0xff]
        %v862 = vld [vmem:[#allocation14 + $0xe8] sm:$0xff]
        %v863 = vld [vmem:[#allocation14 + $0xf0] sm:$0xff]
        %v864 = vld [vmem:[#allocation14 + $0xf8] sm:$0xff]
        %v865 = vld [vmem:[#allocation14 + $0x100] sm:$0xff]
        %v866 = vld [vmem:[#allocation14 + $0x108] sm:$0xff]
        %v867 = vld [vmem:[#allocation14 + $0x110] sm:$0xff]
        %v868 = vld [vmem:[#allocation14 + $0x118] sm:$0xff]
        %v869 = vld [vmem:[#allocation14 + $0x120] sm:$0xff]
        %v870 = vld [vmem:[#allocation14 + $0x128] sm:$0xff]
        %v871 = vld [vmem:[#allocation14 + $0x130] sm:$0xff]
        %v872 = vld [vmem:[#allocation14 + $0x138] sm:$0xff]
        %v873 = vld [vmem:[#allocation14 + $0x140] sm:$0xff]
        %v874 = vld [vmem:[#allocation14 + $0x148] sm:$0xff]
        %v875 = vld [vmem:[#allocation14 + $0x150] sm:$0xff]
        %v876 = vld [vmem:[#allocation14 + $0x158] sm:$0xff]
        %v877 = vld [vmem:[#allocation14 + $0x160] sm:$0xff]
        %v878 = vld [vmem:[#allocation14 + $0x168] sm:$0xff]
        %v879 = vld [vmem:[#allocation14 + $0x170] sm:$0xff]
        %v880 = vld [vmem:[#allocation14 + $0x178] sm:$0xff]
        %v881 = vld [vmem:[#allocation14 + $0x180] sm:$0xff]
        %v882 = vld [vmem:[#allocation14 + $0x188] sm:$0xff]
        %v883 = vld [vmem:[#allocation14 + $0x190] sm:$0xff]
        %v884 = vld [vmem:[#allocation14 + $0x198] sm:$0xff]
        %v885 = vld [vmem:[#allocation14 + $0x1a0] sm:$0xff]
        %v886 = vld [vmem:[#allocation14 + $0x1a8] sm:$0xff]
        %v887 = vld [vmem:[#allocation14 + $0x1b0] sm:$0xff]
        %v888 = vld [vmem:[#allocation14 + $0x1b8] sm:$0xff]
        %v889 = vld [vmem:[#allocation14 + $0x1c0] sm:$0xff]
        %v890 = vld [vmem:[#allocation14 + $0x1c8] sm:$0xff]
        %v891 = vld [vmem:[#allocation14 + $0x1d0] sm:$0xff]
        %v892 = vld [vmem:[#allocation14 + $0x1d8] sm:$0xff]
        %v893 = vld [vmem:[#allocation14 + $0x1e0] sm:$0xff]
        %v894 = vld [vmem:[#allocation14 + $0x1e8] sm:$0xff]
        %v895 = vld [vmem:[#allocation14 + $0x1f0] sm:$0xff]
        %v896 = vld [vmem:[#allocation14 + $0x1f8] sm:$0xff]
        %v897 = vld [vmem:[#allocation16] sm:$0xff]
        %v898 = vld [vmem:[#allocation16 + $0x8] sm:$0xff]
        %v899 = vld [vmem:[#allocation16 + $0x10] sm:$0xff]
        %v900 = vld [vmem:[#allocation16 + $0x18] sm:$0xff]
        %v901 = vld [vmem:[#allocation16 + $0x20] sm:$0xff]
        %v902 = vld [vmem:[#allocation16 + $0x28] sm:$0xff]
        %v903 = vld [vmem:[#allocation16 + $0x30] sm:$0xff]
        %v904 = vld [vmem:[#allocation16 + $0x38] sm:$0xff]
        %v905 = vld [vmem:[#allocation16 + $0x40] sm:$0xff]
        %v906 = vld [vmem:[#allocation16 + $0x48] sm:$0xff]
        %v907 = vld [vmem:[#allocation16 + $0x50] sm:$0xff]
        %v908 = vld [vmem:[#allocation16 + $0x58] sm:$0xff]
        %v909 = vld [vmem:[#allocation16 + $0x60] sm:$0xff]
        %v910 = vld [vmem:[#allocation16 + $0x68] sm:$0xff]
        %v911 = vld [vmem:[#allocation16 + $0x70] sm:$0xff]
        %v912 = vld [vmem:[#allocation16 + $0x78] sm:$0xff]
        %v913 = vld [vmem:[#allocation16 + $0x80] sm:$0xff]
        %v914 = vld [vmem:[#allocation16 + $0x88] sm:$0xff]
        %v915 = vld [vmem:[#allocation16 + $0x90] sm:$0xff]
        %v916 = vld [vmem:[#allocation16 + $0x98] sm:$0xff]
        %v917 = vld [vmem:[#allocation16 + $0xa0] sm:$0xff]
        %v918 = vld [vmem:[#allocation16 + $0xa8] sm:$0xff]
        %v919 = vld [vmem:[#allocation16 + $0xb0] sm:$0xff]
        %v920 = vld [vmem:[#allocation16 + $0xb8] sm:$0xff]
        %v921 = vld [vmem:[#allocation16 + $0xc0] sm:$0xff]
        %v922 = vld [vmem:[#allocation16 + $0xc8] sm:$0xff]
        %v923 = vld [vmem:[#allocation16 + $0xd0] sm:$0xff]
        %v924 = vld [vmem:[#allocation16 + $0xd8] sm:$0xff]
        %v925 = vld [vmem:[#allocation16 + $0xe0] sm:$0xff]
        %v926 = vld [vmem:[#allocation16 + $0xe8] sm:$0xff]
        %v927 = vld [vmem:[#allocation16 + $0xf0] sm:$0xff]
        %v928 = vld [vmem:[#allocation16 + $0xf8] sm:$0xff]
        %v929 = vld [vmem:[#allocation17] sm:$0xf]
        %v930 = vld [vmem:[#allocation17 + $0x4] sm:$0xf]
        %v931 = vld [vmem:[#allocation17 + $0x8] sm:$0xf]
        %v932 = vld [vmem:[#allocation17 + $0xc] sm:$0xf]
        %v933 = vld [vmem:[#allocation17 + $0x10] sm:$0xf]
        %v934 = vld [vmem:[#allocation17 + $0x14] sm:$0xf]
        %v935 = vld [vmem:[#allocation17 + $0x18] sm:$0xf]
        %v936 = vld [vmem:[#allocation17 + $0x1c] sm:$0xf]
        %v937 = vld [vmem:[#allocation17 + $0x20] sm:$0xf]
        %v938 = vld [vmem:[#allocation17 + $0x24] sm:$0xf]
        %v939 = vld [vmem:[#allocation17 + $0x28] sm:$0xf]
        %v940 = vld [vmem:[#allocation17 + $0x2c] sm:$0xf]
        %v941 = vld [vmem:[#allocation17 + $0x30] sm:$0xf]
        %v942 = vld [vmem:[#allocation17 + $0x34] sm:$0xf]
        %v943 = vld [vmem:[#allocation17 + $0x38] sm:$0xf]
        %v944 = vld [vmem:[#allocation17 + $0x3c] sm:$0xf]
        %v945 = vld [vmem:[%s5] sm:$0xf]
        %v947 = vperm.slane %v945, 0
        %v948 = vperm.slane %v945, 1
        %v949 = vperm.slane %v945, 2
        %v950 = vperm.slane %v945, 3
        %v955 = vld [vmem:[%s7] sm:$0x1]
        %v957 = vperm.slane %v955, 0
        %v959 = vld [vmem:[#allocation3] sm:$0xff]
        %v960 = vld [vmem:[#allocation4] sm:$0xff]
        %v961 = vld [vmem:[#allocation5] sm:$0xff]
        %v962 = vld [vmem:[#allocation6] sm:$0xff]
        %v963 = vld [vmem:[#allocation6 + $0x8] sm:$0xff]
        %v964 = vld [vmem:[#allocation6 + $0x10] sm:$0xff]
        %v965 = vld [vmem:[#allocation6 + $0x18] sm:$0xff]
        %v966 = vpack.c.bf16 %v960, %v960
        %v999 = vunpack.c.l.b16 %v897
        %v1000 = vunpack.c.h.b16 %v897
        %v1001 = vunpack.c.l.b16 %v898
        %v1002 = vunpack.c.h.b16 %v898
        %v1003 = vunpack.c.l.b16 %v899
        %v1004 = vunpack.c.h.b16 %v899
        %v1005 = vunpack.c.l.b16 %v900
        %v1006 = vunpack.c.h.b16 %v900
        %v1007 = vunpack.c.l.b16 %v901
        %v1008 = vunpack.c.h.b16 %v901
        %v1009 = vunpack.c.l.b16 %v902
        %v1010 = vunpack.c.h.b16 %v902
        %v1011 = vunpack.c.l.b16 %v903
        %v1012 = vunpack.c.h.b16 %v903
        %v1013 = vunpack.c.l.b16 %v904
        %v1014 = vunpack.c.h.b16 %v904
        %v1015 = vunpack.c.l.b16 %v905
        %v1016 = vunpack.c.h.b16 %v905
        %v1017 = vunpack.c.l.b16 %v906
        %v1018 = vunpack.c.h.b16 %v906
        %v1019 = vunpack.c.l.b16 %v907
        %v1020 = vunpack.c.h.b16 %v907
        %v1021 = vunpack.c.l.b16 %v908
        %v1022 = vunpack.c.h.b16 %v908
        %v1023 = vunpack.c.l.b16 %v909
        %v1024 = vunpack.c.h.b16 %v909
        %v1025 = vunpack.c.l.b16 %v910
        %v1026 = vunpack.c.h.b16 %v910
        %v1027 = vunpack.c.l.b16 %v911
        %v1028 = vunpack.c.h.b16 %v911
        %v1029 = vunpack.c.l.b16 %v912
        %v1030 = vunpack.c.h.b16 %v912
        %v1031 = vunpack.c.l.b16 %v913
        %v1032 = vunpack.c.h.b16 %v913
        %v1033 = vunpack.c.l.b16 %v914
        %v1034 = vunpack.c.h.b16 %v914
        %v1035 = vunpack.c.l.b16 %v915
        %v1036 = vunpack.c.h.b16 %v915
        %v1037 = vunpack.c.l.b16 %v916
        %v1038 = vunpack.c.h.b16 %v916
        %v1039 = vunpack.c.l.b16 %v917
        %v1040 = vunpack.c.h.b16 %v917
        %v1041 = vunpack.c.l.b16 %v918
        %v1042 = vunpack.c.h.b16 %v918
        %v1043 = vunpack.c.l.b16 %v919
        %v1044 = vunpack.c.h.b16 %v919
        %v1045 = vunpack.c.l.b16 %v920
        %v1046 = vunpack.c.h.b16 %v920
        %v1047 = vunpack.c.l.b16 %v921
        %v1048 = vunpack.c.h.b16 %v921
        %v1049 = vunpack.c.l.b16 %v922
        %v1050 = vunpack.c.h.b16 %v922
        %v1051 = vunpack.c.l.b16 %v923
        %v1052 = vunpack.c.h.b16 %v923
        %v1053 = vunpack.c.l.b16 %v924
        %v1054 = vunpack.c.h.b16 %v924
        %v1055 = vunpack.c.l.b16 %v925
        %v1056 = vunpack.c.h.b16 %v925
        %v1057 = vunpack.c.l.b16 %v926
        %v1058 = vunpack.c.h.b16 %v926
        %v1059 = vunpack.c.l.b16 %v927
        %v1060 = vunpack.c.h.b16 %v927
        %v1061 = vunpack.c.l.b16 %v928
        %v1062 = vunpack.c.h.b16 %v928
        %v1063 = vpack.c.b16 %v1003, %v999
        %v1064 = vpack.c.b16 %v1004, %v1000
        %v1065 = vpack.c.b16 %v1005, %v1001
        %v1066 = vpack.c.b16 %v1006, %v1002
        %v1067 = vpack.c.b16 %v1011, %v1007
        %v1068 = vpack.c.b16 %v1012, %v1008
        %v1069 = vpack.c.b16 %v1013, %v1009
        %v1070 = vpack.c.b16 %v1014, %v1010
        %v1071 = vpack.c.b16 %v1019, %v1015
        %v1072 = vpack.c.b16 %v1020, %v1016
        %v1073 = vpack.c.b16 %v1021, %v1017
        %v1074 = vpack.c.b16 %v1022, %v1018
        %v1075 = vpack.c.b16 %v1027, %v1023
        %v1076 = vpack.c.b16 %v1028, %v1024
        %v1077 = vpack.c.b16 %v1029, %v1025
        %v1078 = vpack.c.b16 %v1030, %v1026
        %v1079 = vpack.c.b16 %v1035, %v1031
        %v1080 = vpack.c.b16 %v1036, %v1032
        %v1081 = vpack.c.b16 %v1037, %v1033
        %v1082 = vpack.c.b16 %v1038, %v1034
        %v1083 = vpack.c.b16 %v1043, %v1039
        %v1084 = vpack.c.b16 %v1044, %v1040
        %v1085 = vpack.c.b16 %v1045, %v1041
        %v1086 = vpack.c.b16 %v1046, %v1042
        %v1087 = vpack.c.b16 %v1051, %v1047
        %v1088 = vpack.c.b16 %v1052, %v1048
        %v1089 = vpack.c.b16 %v1053, %v1049
        %v1090 = vpack.c.b16 %v1054, %v1050
        %v1091 = vpack.c.b16 %v1059, %v1055
        %v1092 = vpack.c.b16 %v1060, %v1056
        %v1093 = vpack.c.b16 %v1061, %v1057
        %v1094 = vpack.c.b16 %v1062, %v1058
        %1127 = vmatpush.bf16.msra.mxu0 %v1091
        %1128 = vmatpush.bf16.msra.mxu0 %v1087
        %1129 = vmatpush.bf16.msra.mxu0 %v1083
        %1130 = vmatpush.bf16.msra.mxu0 %v1079
        %1131 = vmatpush.bf16.msra.mxu0 %v1075
        %1132 = vmatpush.bf16.msra.mxu0 %v1071
        %1133 = vmatpush.bf16.msra.mxu0 %v1067
        %1134 = vmatpush.bf16.msra.mxu0 %v1063
        %1135 = vmatmul.bf16.gmra.mxu0 %v966
        %v1136 = vpop.f32.mrf.mxu0
        %v1137 = vadd.f32 0.0, %v1136
        %v1138 = vpop.f32.mrf.mxu0
        %1139 = vdwg.mxu0
        %1140 = vmatpush.bf16.msra.mxu0 %v1092
        %1141 = vmatpush.bf16.msra.mxu0 %v1088
        %1142 = vmatpush.bf16.msra.mxu0 %v1084
        %1143 = vmatpush.bf16.msra.mxu0 %v1080
        %1144 = vmatpush.bf16.msra.mxu0 %v1076
        %1145 = vmatpush.bf16.msra.mxu0 %v1072
        %1146 = vmatpush.bf16.msra.mxu0 %v1068
        %1147 = vmatpush.bf16.msra.mxu0 %v1064
        %1148 = vmatmul.bf16.gmra.mxu0 %v966
        %v1149 = vpop.f32.mrf.mxu0
        %v1150 = vadd.f32 0.0, %v1149
        %v1151 = vpop.f32.mrf.mxu0
        %1152 = vdwg.mxu0
        %1153 = vmatpush.bf16.msra.mxu0 %v1093
        %1154 = vmatpush.bf16.msra.mxu0 %v1089
        %1155 = vmatpush.bf16.msra.mxu0 %v1085
        %1156 = vmatpush.bf16.msra.mxu0 %v1081
        %1157 = vmatpush.bf16.msra.mxu0 %v1077
        %1158 = vmatpush.bf16.msra.mxu0 %v1073
        %1159 = vmatpush.bf16.msra.mxu0 %v1069
        %1160 = vmatpush.bf16.msra.mxu0 %v1065
        %1161 = vmatmul.bf16.gmra.mxu0 %v966
        %v1162 = vpop.f32.mrf.mxu0
        %v1163 = vadd.f32 0.0, %v1162
        %v1164 = vpop.f32.mrf.mxu0
        %1165 = vdwg.mxu0
        %1166 = vmatpush.bf16.msra.mxu0 %v1094
        %1167 = vmatpush.bf16.msra.mxu0 %v1090
        %1168 = vmatpush.bf16.msra.mxu0 %v1086
        %1169 = vmatpush.bf16.msra.mxu0 %v1082
        %1170 = vmatpush.bf16.msra.mxu0 %v1078
        %1171 = vmatpush.bf16.msra.mxu0 %v1074
        %1172 = vmatpush.bf16.msra.mxu0 %v1070
        %1173 = vmatpush.bf16.msra.mxu0 %v1066
        %1174 = vmatmul.bf16.gmra.mxu0 %v966
        %v1175 = vpop.f32.mrf.mxu0
        %v1176 = vadd.f32 0.0, %v1175
        %v1177 = vpop.f32.mrf.mxu0
        %1178 = vdwg.mxu0
        %v1179 = vld [vmem:[#allocation7] sm:$0xff]
        %v1180 = vld [vmem:[#allocation7 + $0x8] sm:$0xff]
        %v1181 = vld [vmem:[#allocation7 + $0x10] sm:$0xff]
        %v1182 = vld [vmem:[#allocation7 + $0x18] sm:$0xff]
        %v1183 = vadd.f32 %v1179, %v962
        %v1184 = vadd.f32 %v1180, %v963
        %v1185 = vadd.f32 %v1181, %v964
        %v1186 = vadd.f32 %v1182, %v965
        %v1187 = vxor.u32 %v1183, 2147483648
        %v1188 = vmul.f32 %v1187, 1.442695
        %v1189 = vpow.pop %v1188
        %v1190 = vadd.f32 %v1189, 1.0
        %v1191 = vrcp.pop %v1190
        %v1192 = vmul.f32 %v1190, %v1191
        %v1193 = vsub.f32 1.0, %v1192
        %v1194 = vmul.f32 %v1191, %v1193
        %v1195 = vadd.f32 %v1191, %v1194
        %vm1196 = vweird.f32 %v1190
        %vm1197 = vweird.f32 %v1191
        %vm1198 = vmor %vm1196, %vm1197
        %v1199 = vsel %vm1198, %v1191, %v1195
        %v1200 = vand.u32 2147483647, %v1190
        %vm1201 = vcmp.eq.f32.partialorder %v1200, 8.507059e+37
        %v1202 = vand.u32 %v1190, 2147483648
        %v1203 = vor.u32 1.1754944e-38, %v1202
        %v1204 = vsel %vm1201, %v1203, %v1199
        %v1205 = vmul.f32 1.0, %v1204
        %v1206 = vxor.u32 %v1184, 2147483648
        %v1207 = vmul.f32 %v1206, 1.442695
        %v1208 = vpow.pop %v1207
        %v1209 = vadd.f32 %v1208, 1.0
        %v1210 = vrcp.pop %v1209
        %v1211 = vmul.f32 %v1209, %v1210
        %v1212 = vsub.f32 1.0, %v1211
        %v1213 = vmul.f32 %v1210, %v1212
        %v1214 = vadd.f32 %v1210, %v1213
        %vm1215 = vweird.f32 %v1209
        %vm1216 = vweird.f32 %v1210
        %vm1217 = vmor %vm1215, %vm1216
        %v1218 = vsel %vm1217, %v1210, %v1214
        %v1219 = vand.u32 2147483647, %v1209
        %vm1220 = vcmp.eq.f32.partialorder %v1219, 8.507059e+37
        %v1221 = vand.u32 %v1209, 2147483648
        %v1222 = vor.u32 1.1754944e-38, %v1221
        %v1223 = vsel %vm1220, %v1222, %v1218
        %v1224 = vmul.f32 1.0, %v1223
        %v1225 = vtanh.pop %v1185
        %v1226 = vxor.u32 %v1186, 2147483648
        %v1227 = vmul.f32 %v1226, 1.442695
        %v1228 = vpow.pop %v1227
        %v1229 = vadd.f32 %v1228, 1.0
        %v1230 = vrcp.pop %v1229
        %v1231 = vmul.f32 %v1229, %v1230
        %v1232 = vsub.f32 1.0, %v1231
        %v1233 = vmul.f32 %v1230, %v1232
        %v1234 = vadd.f32 %v1230, %v1233
        %vm1235 = vweird.f32 %v1229
        %vm1236 = vweird.f32 %v1230
        %vm1237 = vmor %vm1235, %vm1236
        %v1238 = vsel %vm1237, %v1230, %v1234
        %v1239 = vand.u32 2147483647, %v1229
        %vm1240 = vcmp.eq.f32.partialorder %v1239, 8.507059e+37
        %v1241 = vand.u32 %v1229, 2147483648
        %v1242 = vor.u32 1.1754944e-38, %v1241
        %v1243 = vsel %vm1240, %v1242, %v1238
        %v1244 = vmul.f32 1.0, %v1243
        %v1245 = vmul.f32 %v1224, %v959
        %v1246 = vmul.f32 %v1205, %v1225
        %v1247 = vadd.f32 %v1245, %v1246
        %v1248 = vtanh.pop %v1247
        %v1249 = vmul.f32 %v1244, %v1248
        %v1250 = vpack.c.bf16 %v1249, %v1249
        %v1315 = vunpack.c.l.b16 %v833
        %v1316 = vunpack.c.h.b16 %v833
        %v1317 = vunpack.c.l.b16 %v834
        %v1318 = vunpack.c.h.b16 %v834
        %v1319 = vunpack.c.l.b16 %v835
        %v1320 = vunpack.c.h.b16 %v835
        %v1321 = vunpack.c.l.b16 %v836
        %v1322 = vunpack.c.h.b16 %v836
        %v1323 = vunpack.c.l.b16 %v837
        %v1324 = vunpack.c.h.b16 %v837
        %v1325 = vunpack.c.l.b16 %v838
        %v1326 = vunpack.c.h.b16 %v838
        %v1327 = vunpack.c.l.b16 %v839
        %v1328 = vunpack.c.h.b16 %v839
        %v1329 = vunpack.c.l.b16 %v840
        %v1330 = vunpack.c.h.b16 %v840
        %v1331 = vunpack.c.l.b16 %v841
        %v1332 = vunpack.c.h.b16 %v841
        %v1333 = vunpack.c.l.b16 %v842
        %v1334 = vunpack.c.h.b16 %v842
        %v1335 = vunpack.c.l.b16 %v843
        %v1336 = vunpack.c.h.b16 %v843
        %v1337 = vunpack.c.l.b16 %v844
        %v1338 = vunpack.c.h.b16 %v844
        %v1339 = vunpack.c.l.b16 %v845
        %v1340 = vunpack.c.h.b16 %v845
        %v1341 = vunpack.c.l.b16 %v846
        %v1342 = vunpack.c.h.b16 %v846
        %v1343 = vunpack.c.l.b16 %v847
        %v1344 = vunpack.c.h.b16 %v847
        %v1345 = vunpack.c.l.b16 %v848
        %v1346 = vunpack.c.h.b16 %v848
        %v1347 = vunpack.c.l.b16 %v849
        %v1348 = vunpack.c.h.b16 %v849
        %v1349 = vunpack.c.l.b16 %v850
        %v1350 = vunpack.c.h.b16 %v850
        %v1351 = vunpack.c.l.b16 %v851
        %v1352 = vunpack.c.h.b16 %v851
        %v1353 = vunpack.c.l.b16 %v852
        %v1354 = vunpack.c.h.b16 %v852
        %v1355 = vunpack.c.l.b16 %v853
        %v1356 = vunpack.c.h.b16 %v853
        %v1357 = vunpack.c.l.b16 %v854
        %v1358 = vunpack.c.h.b16 %v854
        %v1359 = vunpack.c.l.b16 %v855
        %v1360 = vunpack.c.h.b16 %v855
        %v1361 = vunpack.c.l.b16 %v856
        %v1362 = vunpack.c.h.b16 %v856
        %v1363 = vunpack.c.l.b16 %v857
        %v1364 = vunpack.c.h.b16 %v857
        %v1365 = vunpack.c.l.b16 %v858
        %v1366 = vunpack.c.h.b16 %v858
        %v1367 = vunpack.c.l.b16 %v859
        %v1368 = vunpack.c.h.b16 %v859
        %v1369 = vunpack.c.l.b16 %v860
        %v1370 = vunpack.c.h.b16 %v860
        %v1371 = vunpack.c.l.b16 %v861
        %v1372 = vunpack.c.h.b16 %v861
        %v1373 = vunpack.c.l.b16 %v862
        %v1374 = vunpack.c.h.b16 %v862
        %v1375 = vunpack.c.l.b16 %v863
        %v1376 = vunpack.c.h.b16 %v863
        %v1377 = vunpack.c.l.b16 %v864
        %v1378 = vunpack.c.h.b16 %v864
        %v1379 = vunpack.c.l.b16 %v865
        %v1380 = vunpack.c.h.b16 %v865
        %v1381 = vunpack.c.l.b16 %v866
        %v1382 = vunpack.c.h.b16 %v866
        %v1383 = vunpack.c.l.b16 %v867
        %v1384 = vunpack.c.h.b16 %v867
        %v1385 = vunpack.c.l.b16 %v868
        %v1386 = vunpack.c.h.b16 %v868
        %v1387 = vunpack.c.l.b16 %v869
        %v1388 = vunpack.c.h.b16 %v869
        %v1389 = vunpack.c.l.b16 %v870
        %v1390 = vunpack.c.h.b16 %v870
        %v1391 = vunpack.c.l.b16 %v871
        %v1392 = vunpack.c.h.b16 %v871
        %v1393 = vunpack.c.l.b16 %v872
        %v1394 = vunpack.c.h.b16 %v872
        %v1395 = vunpack.c.l.b16 %v873
        %v1396 = vunpack.c.h.b16 %v873
        %v1397 = vunpack.c.l.b16 %v874
        %v1398 = vunpack.c.h.b16 %v874
        %v1399 = vunpack.c.l.b16 %v875
        %v1400 = vunpack.c.h.b16 %v875
        %v1401 = vunpack.c.l.b16 %v876
        %v1402 = vunpack.c.h.b16 %v876
        %v1403 = vunpack.c.l.b16 %v877
        %v1404 = vunpack.c.h.b16 %v877
        %v1405 = vunpack.c.l.b16 %v878
        %v1406 = vunpack.c.h.b16 %v878
        %v1407 = vunpack.c.l.b16 %v879
        %v1408 = vunpack.c.h.b16 %v879
        %v1409 = vunpack.c.l.b16 %v880
        %v1410 = vunpack.c.h.b16 %v880
        %v1411 = vunpack.c.l.b16 %v881
        %v1412 = vunpack.c.h.b16 %v881
        %v1413 = vunpack.c.l.b16 %v882
        %v1414 = vunpack.c.h.b16 %v882
        %v1415 = vunpack.c.l.b16 %v883
        %v1416 = vunpack.c.h.b16 %v883
        %v1417 = vunpack.c.l.b16 %v884
        %v1418 = vunpack.c.h.b16 %v884
        %v1419 = vunpack.c.l.b16 %v885
        %v1420 = vunpack.c.h.b16 %v885
        %v1421 = vunpack.c.l.b16 %v886
        %v1422 = vunpack.c.h.b16 %v886
        %v1423 = vunpack.c.l.b16 %v887
        %v1424 = vunpack.c.h.b16 %v887
        %v1425 = vunpack.c.l.b16 %v888
        %v1426 = vunpack.c.h.b16 %v888
        %v1427 = vunpack.c.l.b16 %v889
        %v1428 = vunpack.c.h.b16 %v889
        %v1429 = vunpack.c.l.b16 %v890
        %v1430 = vunpack.c.h.b16 %v890
        %v1431 = vunpack.c.l.b16 %v891
        %v1432 = vunpack.c.h.b16 %v891
        %v1433 = vunpack.c.l.b16 %v892
        %v1434 = vunpack.c.h.b16 %v892
        %v1435 = vunpack.c.l.b16 %v893
        %v1436 = vunpack.c.h.b16 %v893
        %v1437 = vunpack.c.l.b16 %v894
        %v1438 = vunpack.c.h.b16 %v894
        %v1439 = vunpack.c.l.b16 %v895
        %v1440 = vunpack.c.h.b16 %v895
        %v1441 = vunpack.c.l.b16 %v896
        %v1442 = vunpack.c.h.b16 %v896
        %v1443 = vpack.c.b16 %v1323, %v1315
        %v1444 = vpack.c.b16 %v1324, %v1316
        %v1445 = vpack.c.b16 %v1325, %v1317
        %v1446 = vpack.c.b16 %v1326, %v1318
        %v1447 = vpack.c.b16 %v1327, %v1319
        %v1448 = vpack.c.b16 %v1328, %v1320
        %v1449 = vpack.c.b16 %v1329, %v1321
        %v1450 = vpack.c.b16 %v1330, %v1322
        %v1451 = vpack.c.b16 %v1339, %v1331
        %v1452 = vpack.c.b16 %v1340, %v1332
        %v1453 = vpack.c.b16 %v1341, %v1333
        %v1454 = vpack.c.b16 %v1342, %v1334
        %v1455 = vpack.c.b16 %v1343, %v1335
        %v1456 = vpack.c.b16 %v1344, %v1336
        %v1457 = vpack.c.b16 %v1345, %v1337
        %v1458 = vpack.c.b16 %v1346, %v1338
        %v1459 = vpack.c.b16 %v1355, %v1347
        %v1460 = vpack.c.b16 %v1356, %v1348
        %v1461 = vpack.c.b16 %v1357, %v1349
        %v1462 = vpack.c.b16 %v1358, %v1350
        %v1463 = vpack.c.b16 %v1359, %v1351
        %v1464 = vpack.c.b16 %v1360, %v1352
        %v1465 = vpack.c.b16 %v1361, %v1353
        %v1466 = vpack.c.b16 %v1362, %v1354
        %v1467 = vpack.c.b16 %v1371, %v1363
        %v1468 = vpack.c.b16 %v1372, %v1364
        %v1469 = vpack.c.b16 %v1373, %v1365
        %v1470 = vpack.c.b16 %v1374, %v1366
        %v1471 = vpack.c.b16 %v1375, %v1367
        %v1472 = vpack.c.b16 %v1376, %v1368
        %v1473 = vpack.c.b16 %v1377, %v1369
        %v1474 = vpack.c.b16 %v1378, %v1370
        %v1475 = vpack.c.b16 %v1387, %v1379
        %v1476 = vpack.c.b16 %v1388, %v1380
        %v1477 = vpack.c.b16 %v1389, %v1381
        %v1478 = vpack.c.b16 %v1390, %v1382
        %v1479 = vpack.c.b16 %v1391, %v1383
        %v1480 = vpack.c.b16 %v1392, %v1384
        %v1481 = vpack.c.b16 %v1393, %v1385
        %v1482 = vpack.c.b16 %v1394, %v1386
        %v1483 = vpack.c.b16 %v1403, %v1395
        %v1484 = vpack.c.b16 %v1404, %v1396
        %v1485 = vpack.c.b16 %v1405, %v1397
        %v1486 = vpack.c.b16 %v1406, %v1398
        %v1487 = vpack.c.b16 %v1407, %v1399
        %v1488 = vpack.c.b16 %v1408, %v1400
        %v1489 = vpack.c.b16 %v1409, %v1401
        %v1490 = vpack.c.b16 %v1410, %v1402
        %v1491 = vpack.c.b16 %v1419, %v1411
        %v1492 = vpack.c.b16 %v1420, %v1412
        %v1493 = vpack.c.b16 %v1421, %v1413
        %v1494 = vpack.c.b16 %v1422, %v1414
        %v1495 = vpack.c.b16 %v1423, %v1415
        %v1496 = vpack.c.b16 %v1424, %v1416
        %v1497 = vpack.c.b16 %v1425, %v1417
        %v1498 = vpack.c.b16 %v1426, %v1418
        %v1499 = vpack.c.b16 %v1435, %v1427
        %v1500 = vpack.c.b16 %v1436, %v1428
        %v1501 = vpack.c.b16 %v1437, %v1429
        %v1502 = vpack.c.b16 %v1438, %v1430
        %v1503 = vpack.c.b16 %v1439, %v1431
        %v1504 = vpack.c.b16 %v1440, %v1432
        %v1505 = vpack.c.b16 %v1441, %v1433
        %v1506 = vpack.c.b16 %v1442, %v1434
        %1571 = vmatpush.bf16.msra.mxu0 %v1499
        %1572 = vmatpush.bf16.msra.mxu0 %v1491
        %1573 = vmatpush.bf16.msra.mxu0 %v1483
        %1574 = vmatpush.bf16.msra.mxu0 %v1475
        %1575 = vmatpush.bf16.msra.mxu0 %v1467
        %1576 = vmatpush.bf16.msra.mxu0 %v1459
        %1577 = vmatpush.bf16.msra.mxu0 %v1451
        %1578 = vmatpush.bf16.msra.mxu0 %v1443
        %1579 = vmatmul.bf16.gmra.mxu0 %v1250
        %v1580 = vpop.f32.mrf.mxu0
        %v1581 = vadd.f32 0.0, %v1580
        %v1582 = vpop.f32.mrf.mxu0
        %1583 = vdwg.mxu0
        %1584 = vmatpush.bf16.msra.mxu0 %v1500
        %1585 = vmatpush.bf16.msra.mxu0 %v1492
        %1586 = vmatpush.bf16.msra.mxu0 %v1484
        %1587 = vmatpush.bf16.msra.mxu0 %v1476
        %1588 = vmatpush.bf16.msra.mxu0 %v1468
        %1589 = vmatpush.bf16.msra.mxu0 %v1460
        %1590 = vmatpush.bf16.msra.mxu0 %v1452
        %1591 = vmatpush.bf16.msra.mxu0 %v1444
        %1592 = vmatmul.bf16.gmra.mxu0 %v1250
        %v1593 = vpop.f32.mrf.mxu0
        %v1594 = vadd.f32 0.0, %v1593
        %v1595 = vpop.f32.mrf.mxu0
        %1596 = vdwg.mxu0
        %1597 = vmatpush.bf16.msra.mxu0 %v1501
        %1598 = vmatpush.bf16.msra.mxu0 %v1493
        %1599 = vmatpush.bf16.msra.mxu0 %v1485
        %1600 = vmatpush.bf16.msra.mxu0 %v1477
        %1601 = vmatpush.bf16.msra.mxu0 %v1469
        %1602 = vmatpush.bf16.msra.mxu0 %v1461
        %1603 = vmatpush.bf16.msra.mxu0 %v1453
        %1604 = vmatpush.bf16.msra.mxu0 %v1445
        %1605 = vmatmul.bf16.gmra.mxu0 %v1250
        %v1606 = vpop.f32.mrf.mxu0
        %v1607 = vadd.f32 0.0, %v1606
        %v1608 = vpop.f32.mrf.mxu0
        %1609 = vdwg.mxu0
        %1610 = vmatpush.bf16.msra.mxu0 %v1502
        %1611 = vmatpush.bf16.msra.mxu0 %v1494
        %1612 = vmatpush.bf16.msra.mxu0 %v1486
        %1613 = vmatpush.bf16.msra.mxu0 %v1478
        %1614 = vmatpush.bf16.msra.mxu0 %v1470
        %1615 = vmatpush.bf16.msra.mxu0 %v1462
        %1616 = vmatpush.bf16.msra.mxu0 %v1454
        %1617 = vmatpush.bf16.msra.mxu0 %v1446
        %1618 = vmatmul.bf16.gmra.mxu0 %v1250
        %v1619 = vpop.f32.mrf.mxu0
        %v1620 = vadd.f32 0.0, %v1619
        %v1621 = vpop.f32.mrf.mxu0
        %1622 = vdwg.mxu0
        %1623 = vmatpush.bf16.msra.mxu0 %v1503
        %1624 = vmatpush.bf16.msra.mxu0 %v1495
        %1625 = vmatpush.bf16.msra.mxu0 %v1487
        %1626 = vmatpush.bf16.msra.mxu0 %v1479
        %1627 = vmatpush.bf16.msra.mxu0 %v1471
        %1628 = vmatpush.bf16.msra.mxu0 %v1463
        %1629 = vmatpush.bf16.msra.mxu0 %v1455
        %1630 = vmatpush.bf16.msra.mxu0 %v1447
        %1631 = vmatmul.bf16.gmra.mxu0 %v1250
        %v1632 = vpop.f32.mrf.mxu0
        %v1633 = vadd.f32 0.0, %v1632
        %v1634 = vpop.f32.mrf.mxu0
        %1635 = vdwg.mxu0
        %1636 = vmatpush.bf16.msra.mxu0 %v1504
        %1637 = vmatpush.bf16.msra.mxu0 %v1496
        %1638 = vmatpush.bf16.msra.mxu0 %v1488
        %1639 = vmatpush.bf16.msra.mxu0 %v1480
        %1640 = vmatpush.bf16.msra.mxu0 %v1472
        %1641 = vmatpush.bf16.msra.mxu0 %v1464
        %1642 = vmatpush.bf16.msra.mxu0 %v1456
        %1643 = vmatpush.bf16.msra.mxu0 %v1448
        %1644 = vmatmul.bf16.gmra.mxu0 %v1250
        %v1645 = vpop.f32.mrf.mxu0
        %v1646 = vadd.f32 0.0, %v1645
        %v1647 = vpop.f32.mrf.mxu0
        %1648 = vdwg.mxu0
        %1649 = vmatpush.bf16.msra.mxu0 %v1505
        %1650 = vmatpush.bf16.msra.mxu0 %v1497
        %1651 = vmatpush.bf16.msra.mxu0 %v1489
        %1652 = vmatpush.bf16.msra.mxu0 %v1481
        %1653 = vmatpush.bf16.msra.mxu0 %v1473
        %1654 = vmatpush.bf16.msra.mxu0 %v1465
        %1655 = vmatpush.bf16.msra.mxu0 %v1457
        %1656 = vmatpush.bf16.msra.mxu0 %v1449
        %1657 = vmatmul.bf16.gmra.mxu0 %v1250
        %v1658 = vpop.f32.mrf.mxu0
        %v1659 = vadd.f32 0.0, %v1658
        %v1660 = vpop.f32.mrf.mxu0
        %1661 = vdwg.mxu0
        %1662 = vmatpush.bf16.msra.mxu0 %v1506
        %1663 = vmatpush.bf16.msra.mxu0 %v1498
        %1664 = vmatpush.bf16.msra.mxu0 %v1490
        %1665 = vmatpush.bf16.msra.mxu0 %v1482
        %1666 = vmatpush.bf16.msra.mxu0 %v1474
        %1667 = vmatpush.bf16.msra.mxu0 %v1466
        %1668 = vmatpush.bf16.msra.mxu0 %v1458
        %1669 = vmatpush.bf16.msra.mxu0 %v1450
        %1670 = vmatmul.bf16.gmra.mxu0 %v1250
        %v1671 = vpop.f32.mrf.mxu0
        %v1672 = vadd.f32 0.0, %v1671
        %v1673 = vpop.f32.mrf.mxu0
        %1674 = vdwg.mxu0
        %v1675 = vadd.f32 %v1633, %v1137
        %v1676 = vadd.f32 %v1646, %v1150
        %v1677 = vadd.f32 %v1659, %v1163
        %v1678 = vadd.f32 %v1672, %v1176
        %v1679 = vadd.f32 %v1675, %v947
        %v1680 = vadd.f32 %v1676, %v948
        %v1681 = vadd.f32 %v1677, %v949
        %v1682 = vadd.f32 %v1678, %v950
        %v1683 = vxor.u32 %v1679, 2147483648
        %v1684 = vmul.f32 %v1683, 1.442695
        %v1685 = vpow.pop %v1684
        %v1686 = vadd.f32 %v1685, 1.0
        %v1687 = vrcp.pop %v1686
        %v1688 = vmul.f32 %v1686, %v1687
        %v1689 = vsub.f32 1.0, %v1688
        %v1690 = vmul.f32 %v1687, %v1689
        %v1691 = vadd.f32 %v1687, %v1690
        %vm1692 = vweird.f32 %v1686
        %vm1693 = vweird.f32 %v1687
        %vm1694 = vmor %vm1692, %vm1693
        %v1695 = vsel %vm1694, %v1687, %v1691
        %v1696 = vand.u32 2147483647, %v1686
        %vm1697 = vcmp.eq.f32.partialorder %v1696, 8.507059e+37
        %v1698 = vand.u32 %v1686, 2147483648
        %v1699 = vor.u32 1.1754944e-38, %v1698
        %v1700 = vsel %vm1697, %v1699, %v1695
        %v1701 = vmul.f32 1.0, %v1700
        %v1702 = vxor.u32 %v1680, 2147483648
        %v1703 = vmul.f32 %v1702, 1.442695
        %v1704 = vpow.pop %v1703
        %v1705 = vadd.f32 %v1704, 1.0
        %v1706 = vrcp.pop %v1705
        %v1707 = vmul.f32 %v1705, %v1706
        %v1708 = vsub.f32 1.0, %v1707
        %v1709 = vmul.f32 %v1706, %v1708
        %v1710 = vadd.f32 %v1706, %v1709
        %vm1711 = vweird.f32 %v1705
        %vm1712 = vweird.f32 %v1706
        %vm1713 = vmor %vm1711, %vm1712
        %v1714 = vsel %vm1713, %v1706, %v1710
        %v1715 = vand.u32 2147483647, %v1705
        %vm1716 = vcmp.eq.f32.partialorder %v1715, 8.507059e+37
        %v1717 = vand.u32 %v1705, 2147483648
        %v1718 = vor.u32 1.1754944e-38, %v1717
        %v1719 = vsel %vm1716, %v1718, %v1714
        %v1720 = vmul.f32 1.0, %v1719
        %v1721 = vtanh.pop %v1681
        %v1722 = vxor.u32 %v1682, 2147483648
        %v1723 = vmul.f32 %v1722, 1.442695
        %v1724 = vpow.pop %v1723
        %v1725 = vadd.f32 %v1724, 1.0
        %v1726 = vrcp.pop %v1725
        %v1727 = vmul.f32 %v1725, %v1726
        %v1728 = vsub.f32 1.0, %v1727
        %v1729 = vmul.f32 %v1726, %v1728
        %v1730 = vadd.f32 %v1726, %v1729
        %vm1731 = vweird.f32 %v1725
        %vm1732 = vweird.f32 %v1726
        %vm1733 = vmor %vm1731, %vm1732
        %v1734 = vsel %vm1733, %v1726, %v1730
        %v1735 = vand.u32 2147483647, %v1725
        %vm1736 = vcmp.eq.f32.partialorder %v1735, 8.507059e+37
        %v1737 = vand.u32 %v1725, 2147483648
        %v1738 = vor.u32 1.1754944e-38, %v1737
        %v1739 = vsel %vm1736, %v1738, %v1734
        %v1740 = vmul.f32 1.0, %v1739
        %v1741 = vmul.f32 %v1720, %v961
        %v1742 = vmul.f32 %v1701, %v1721
        %v1743 = vadd.f32 %v1741, %v1742
        %v1744 = vtanh.pop %v1743
        %v1745 = vmul.f32 %v1740, %v1744
        %v1746 = vpack.c.bf16 %v1745, %v1745
        %v1763 = vunpack.c.l.b16 %v929
        %v1764 = vunpack.c.l.b16 %v930
        %v1765 = vunpack.c.l.b16 %v931
        %v1766 = vunpack.c.l.b16 %v932
        %v1767 = vunpack.c.l.b16 %v933
        %v1768 = vunpack.c.l.b16 %v934
        %v1769 = vunpack.c.l.b16 %v935
        %v1770 = vunpack.c.l.b16 %v936
        %v1771 = vunpack.c.l.b16 %v937
        %v1772 = vunpack.c.l.b16 %v938
        %v1773 = vunpack.c.l.b16 %v939
        %v1774 = vunpack.c.l.b16 %v940
        %v1775 = vunpack.c.l.b16 %v941
        %v1776 = vunpack.c.l.b16 %v942
        %v1777 = vunpack.c.l.b16 %v943
        %v1778 = vunpack.c.l.b16 %v944
        %v1779 = vpack.c.b16 %v1764, %v1763
        %v1780 = vpack.c.b16 %v1766, %v1765
        %v1781 = vpack.c.b16 %v1768, %v1767
        %v1782 = vpack.c.b16 %v1770, %v1769
        %v1783 = vpack.c.b16 %v1772, %v1771
        %v1784 = vpack.c.b16 %v1774, %v1773
        %v1785 = vpack.c.b16 %v1776, %v1775
        %v1786 = vpack.c.b16 %v1778, %v1777
        %1795 = vmatpush.bf16.msra.mxu0 %v1786
        %1796 = vmatpush.bf16.msra.mxu0 %v1785
        %1797 = vmatpush.bf16.msra.mxu0 %v1784
        %1798 = vmatpush.bf16.msra.mxu0 %v1783
        %1799 = vmatpush.bf16.msra.mxu0 %v1782
        %1800 = vmatpush.bf16.msra.mxu0 %v1781
        %1801 = vmatpush.bf16.msra.mxu0 %v1780
        %1802 = vmatpush.bf16.msra.mxu0 %v1779
        %1803 = vmatmul.bf16.gmra.mxu0 %v1746
        %v1804 = vpop.f32.mrf.mxu0
        %v1805 = vadd.f32 %v957, %v1804
        %v1806 = vpop.f32.mrf.mxu0
        %1807 = vdwg.mxu0
        %1808 = vst [vmem:[%s452] sm:$0xff] %v1805
        %1809 = vmatpush.bf16.msra.mxu0 %v1091
        %1810 = vmatpush.bf16.msra.mxu0 %v1087
        %1811 = vmatpush.bf16.msra.mxu0 %v1083
        %1812 = vmatpush.bf16.msra.mxu0 %v1079
        %1813 = vmatpush.bf16.msra.mxu0 %v1075
        %1814 = vmatpush.bf16.msra.mxu0 %v1071
        %1815 = vmatpush.bf16.msra.mxu0 %v1067
        %1816 = vmatpush.bf16.msra.mxu0 %v1063
        %1817 = vmatmul.bf16.gmra.mxu0 %v1746
        %v1818 = vpop.f32.mrf.mxu0
        %v1819 = vadd.f32 0.0, %v1818
        %v1820 = vpop.f32.mrf.mxu0
        %1821 = vdwg.mxu0
        %1822 = vmatpush.bf16.msra.mxu0 %v1092
        %1823 = vmatpush.bf16.msra.mxu0 %v1088
        %1824 = vmatpush.bf16.msra.mxu0 %v1084
        %1825 = vmatpush.bf16.msra.mxu0 %v1080
        %1826 = vmatpush.bf16.msra.mxu0 %v1076
        %1827 = vmatpush.bf16.msra.mxu0 %v1072
        %1828 = vmatpush.bf16.msra.mxu0 %v1068
        %1829 = vmatpush.bf16.msra.mxu0 %v1064
        %1830 = vmatmul.bf16.gmra.mxu0 %v1746
        %v1831 = vpop.f32.mrf.mxu0
        %v1832 = vadd.f32 0.0, %v1831
        %v1833 = vpop.f32.mrf.mxu0
        %1834 = vdwg.mxu0
        %1835 = vmatpush.bf16.msra.mxu0 %v1093
        %1836 = vmatpush.bf16.msra.mxu0 %v1089
        %1837 = vmatpush.bf16.msra.mxu0 %v1085
        %1838 = vmatpush.bf16.msra.mxu0 %v1081
        %1839 = vmatpush.bf16.msra.mxu0 %v1077
        %1840 = vmatpush.bf16.msra.mxu0 %v1073
        %1841 = vmatpush.bf16.msra.mxu0 %v1069
        %1842 = vmatpush.bf16.msra.mxu0 %v1065
        %1843 = vmatmul.bf16.gmra.mxu0 %v1746
        %v1844 = vpop.f32.mrf.mxu0
        %v1845 = vadd.f32 0.0, %v1844
        %v1846 = vpop.f32.mrf.mxu0
        %1847 = vdwg.mxu0
        %1848 = vmatpush.bf16.msra.mxu0 %v1094
        %1849 = vmatpush.bf16.msra.mxu0 %v1090
        %1850 = vmatpush.bf16.msra.mxu0 %v1086
        %1851 = vmatpush.bf16.msra.mxu0 %v1082
        %1852 = vmatpush.bf16.msra.mxu0 %v1078
        %1853 = vmatpush.bf16.msra.mxu0 %v1074
        %1854 = vmatpush.bf16.msra.mxu0 %v1070
        %1855 = vmatpush.bf16.msra.mxu0 %v1066
        %1856 = vmatmul.bf16.gmra.mxu0 %v1746
        %v1857 = vpop.f32.mrf.mxu0
        %v1858 = vadd.f32 0.0, %v1857
        %v1859 = vpop.f32.mrf.mxu0
        %1860 = vdwg.mxu0
        %s1861 = scalar_lea.vmem [#allocation7], 32
        %v1862 = vld [vmem:[%s1861] sm:$0xff]
        %v1863 = vld [vmem:[%s1861 + $0x8] sm:$0xff]
        %v1864 = vld [vmem:[%s1861 + $0x10] sm:$0xff]
        %v1865 = vld [vmem:[%s1861 + $0x18] sm:$0xff]
        %v1866 = vadd.f32 %v1862, %v1581
        %v1867 = vadd.f32 %v1863, %v1594
        %v1868 = vadd.f32 %v1864, %v1607
        %v1869 = vadd.f32 %v1865, %v1620
        %v1870 = vxor.u32 %v1866, 2147483648
        %v1871 = vmul.f32 %v1870, 1.442695
        %v1872 = vpow.pop %v1871
        %v1873 = vadd.f32 %v1872, 1.0
        %v1874 = vrcp.pop %v1873
        %v1875 = vmul.f32 %v1873, %v1874
        %v1876 = vsub.f32 1.0, %v1875
        %v1877 = vmul.f32 %v1874, %v1876
        %v1878 = vadd.f32 %v1874, %v1877
        %vm1879 = vweird.f32 %v1873
        %vm1880 = vweird.f32 %v1874
        %vm1881 = vmor %vm1879, %vm1880
        %v1882 = vsel %vm1881, %v1874, %v1878
        %v1883 = vand.u32 2147483647, %v1873
        %vm1884 = vcmp.eq.f32.partialorder %v1883, 8.507059e+37
        %v1885 = vand.u32 %v1873, 2147483648
        %v1886 = vor.u32 1.1754944e-38, %v1885
        %v1887 = vsel %vm1884, %v1886, %v1882
        %v1888 = vmul.f32 1.0, %v1887
        %v1889 = vxor.u32 %v1867, 2147483648
        %v1890 = vmul.f32 %v1889, 1.442695
        %v1891 = vpow.pop %v1890
        %v1892 = vadd.f32 %v1891, 1.0
        %v1893 = vrcp.pop %v1892
        %v1894 = vmul.f32 %v1892, %v1893
        %v1895 = vsub.f32 1.0, %v1894
        %v1896 = vmul.f32 %v1893, %v1895
        %v1897 = vadd.f32 %v1893, %v1896
        %vm1898 = vweird.f32 %v1892
        %vm1899 = vweird.f32 %v1893
        %vm1900 = vmor %vm1898, %vm1899
        %v1901 = vsel %vm1900, %v1893, %v1897
        %v1902 = vand.u32 2147483647, %v1892
        %vm1903 = vcmp.eq.f32.partialorder %v1902, 8.507059e+37
        %v1904 = vand.u32 %v1892, 2147483648
        %v1905 = vor.u32 1.1754944e-38, %v1904
        %v1906 = vsel %vm1903, %v1905, %v1901
        %v1907 = vmul.f32 1.0, %v1906
        %v1908 = vtanh.pop %v1868
        %v1909 = vxor.u32 %v1869, 2147483648
        %v1910 = vmul.f32 %v1909, 1.442695
        %v1911 = vpow.pop %v1910
        %v1912 = vadd.f32 %v1911, 1.0
        %v1913 = vrcp.pop %v1912
        %v1914 = vmul.f32 %v1912, %v1913
        %v1915 = vsub.f32 1.0, %v1914
        %v1916 = vmul.f32 %v1913, %v1915
        %v1917 = vadd.f32 %v1913, %v1916
        %vm1918 = vweird.f32 %v1912
        %vm1919 = vweird.f32 %v1913
        %vm1920 = vmor %vm1918, %vm1919
        %v1921 = vsel %vm1920, %v1913, %v1917
        %v1922 = vand.u32 2147483647, %v1912
        %vm1923 = vcmp.eq.f32.partialorder %v1922, 8.507059e+37
        %v1924 = vand.u32 %v1912, 2147483648
        %v1925 = vor.u32 1.1754944e-38, %v1924
        %v1926 = vsel %vm1923, %v1925, %v1921
        %v1927 = vmul.f32 1.0, %v1926
        %v1928 = vmul.f32 %v1907, %v1247
        %v1929 = vmul.f32 %v1888, %v1908
        %v1930 = vadd.f32 %v1928, %v1929
        %v1931 = vtanh.pop %v1930
        %v1932 = vmul.f32 %v1927, %v1931
        %v1933 = vpack.c.bf16 %v1932, %v1932
        %1934 = vmatpush.bf16.msra.mxu0 %v1499
        %1935 = vmatpush.bf16.msra.mxu0 %v1491
        %1936 = vmatpush.bf16.msra.mxu0 %v1483
        %1937 = vmatpush.bf16.msra.mxu0 %v1475
        %1938 = vmatpush.bf16.msra.mxu0 %v1467
        %1939 = vmatpush.bf16.msra.mxu0 %v1459
        %1940 = vmatpush.bf16.msra.mxu0 %v1451
        %1941 = vmatpush.bf16.msra.mxu0 %v1443
        %1942 = vmatmul.bf16.gmra.mxu0 %v1933
        %v1943 = vpop.f32.mrf.mxu0
        %v1944 = vadd.f32 0.0, %v1943
        %v1945 = vpop.f32.mrf.mxu0
        %1946 = vdwg.mxu0
        %1947 = vmatpush.bf16.msra.mxu0 %v1500
        %1948 = vmatpush.bf16.msra.mxu0 %v1492
        %1949 = vmatpush.bf16.msra.mxu0 %v1484
        %1950 = vmatpush.bf16.msra.mxu0 %v1476
        %1951 = vmatpush.bf16.msra.mxu0 %v1468
        %1952 = vmatpush.bf16.msra.mxu0 %v1460
        %1953 = vmatpush.bf16.msra.mxu0 %v1452
        %1954 = vmatpush.bf16.msra.mxu0 %v1444
        %1955 = vmatmul.bf16.gmra.mxu0 %v1933
        %v1956 = vpop.f32.mrf.mxu0
        %v1957 = vadd.f32 0.0, %v1956
        %v1958 = vpop.f32.mrf.mxu0
        %1959 = vdwg.mxu0
        %1960 = vmatpush.bf16.msra.mxu0 %v1501
        %1961 = vmatpush.bf16.msra.mxu0 %v1493
        %1962 = vmatpush.bf16.msra.mxu0 %v1485
        %1963 = vmatpush.bf16.msra.mxu0 %v1477
        %1964 = vmatpush.bf16.msra.mxu0 %v1469
        %1965 = vmatpush.bf16.msra.mxu0 %v1461
        %1966 = vmatpush.bf16.msra.mxu0 %v1453
        %1967 = vmatpush.bf16.msra.mxu0 %v1445
        %1968 = vmatmul.bf16.gmra.mxu0 %v1933
        %v1969 = vpop.f32.mrf.mxu0
        %v1970 = vadd.f32 0.0, %v1969
        %v1971 = vpop.f32.mrf.mxu0
        %1972 = vdwg.mxu0
        %1973 = vmatpush.bf16.msra.mxu0 %v1502
        %1974 = vmatpush.bf16.msra.mxu0 %v1494
        %1975 = vmatpush.bf16.msra.mxu0 %v1486
        %1976 = vmatpush.bf16.msra.mxu0 %v1478
        %1977 = vmatpush.bf16.msra.mxu0 %v1470
        %1978 = vmatpush.bf16.msra.mxu0 %v1462
        %1979 = vmatpush.bf16.msra.mxu0 %v1454
        %1980 = vmatpush.bf16.msra.mxu0 %v1446
        %1981 = vmatmul.bf16.gmra.mxu0 %v1933
        %v1982 = vpop.f32.mrf.mxu0
        %v1983 = vadd.f32 0.0, %v1982
        %v1984 = vpop.f32.mrf.mxu0
        %1985 = vdwg.mxu0
        %1986 = vmatpush.bf16.msra.mxu0 %v1503
        %1987 = vmatpush.bf16.msra.mxu0 %v1495
        %1988 = vmatpush.bf16.msra.mxu0 %v1487
        %1989 = vmatpush.bf16.msra.mxu0 %v1479
        %1990 = vmatpush.bf16.msra.mxu0 %v1471
        %1991 = vmatpush.bf16.msra.mxu0 %v1463
        %1992 = vmatpush.bf16.msra.mxu0 %v1455
        %1993 = vmatpush.bf16.msra.mxu0 %v1447
        %1994 = vmatmul.bf16.gmra.mxu0 %v1933
        %v1995 = vpop.f32.mrf.mxu0
        %v1996 = vadd.f32 0.0, %v1995
        %v1997 = vpop.f32.mrf.mxu0
        %1998 = vdwg.mxu0
        %1999 = vmatpush.bf16.msra.mxu0 %v1504
        %2000 = vmatpush.bf16.msra.mxu0 %v1496
        %2001 = vmatpush.bf16.msra.mxu0 %v1488
        %2002 = vmatpush.bf16.msra.mxu0 %v1480
        %2003 = vmatpush.bf16.msra.mxu0 %v1472
        %2004 = vmatpush.bf16.msra.mxu0 %v1464
        %2005 = vmatpush.bf16.msra.mxu0 %v1456
        %2006 = vmatpush.bf16.msra.mxu0 %v1448
        %2007 = vmatmul.bf16.gmra.mxu0 %v1933
        %v2008 = vpop.f32.mrf.mxu0
        %v2009 = vadd.f32 0.0, %v2008
        %v2010 = vpop.f32.mrf.mxu0
        %2011 = vdwg.mxu0
        %2012 = vmatpush.bf16.msra.mxu0 %v1505
        %2013 = vmatpush.bf16.msra.mxu0 %v1497
        %2014 = vmatpush.bf16.msra.mxu0 %v1489
        %2015 = vmatpush.bf16.msra.mxu0 %v1481
        %2016 = vmatpush.bf16.msra.mxu0 %v1473
        %2017 = vmatpush.bf16.msra.mxu0 %v1465
        %2018 = vmatpush.bf16.msra.mxu0 %v1457
        %2019 = vmatpush.bf16.msra.mxu0 %v1449
        %2020 = vmatmul.bf16.gmra.mxu0 %v1933
        %v2021 = vpop.f32.mrf.mxu0
        %v2022 = vadd.f32 0.0, %v2021
        %v2023 = vpop.f32.mrf.mxu0
        %2024 = vdwg.mxu0
        %2025 = vmatpush.bf16.msra.mxu0 %v1506
        %2026 = vmatpush.bf16.msra.mxu0 %v1498
        %2027 = vmatpush.bf16.msra.mxu0 %v1490
        %2028 = vmatpush.bf16.msra.mxu0 %v1482
        %2029 = vmatpush.bf16.msra.mxu0 %v1474
        %2030 = vmatpush.bf16.msra.mxu0 %v1466
        %2031 = vmatpush.bf16.msra.mxu0 %v1458
        %2032 = vmatpush.bf16.msra.mxu0 %v1450
        %2033 = vmatmul.bf16.gmra.mxu0 %v1933
        %v2034 = vpop.f32.mrf.mxu0
        %v2035 = vadd.f32 0.0, %v2034
        %v2036 = vpop.f32.mrf.mxu0
        %2037 = vdwg.mxu0
        %v2038 = vadd.f32 %v1996, %v1819
        %v2039 = vadd.f32 %v2009, %v1832
        %v2040 = vadd.f32 %v2022, %v1845
        %v2041 = vadd.f32 %v2035, %v1858
        %v2042 = vadd.f32 %v2038, %v947
        %v2043 = vadd.f32 %v2039, %v948
        %v2044 = vadd.f32 %v2040, %v949
        %v2045 = vadd.f32 %v2041, %v950
        %v2046 = vxor.u32 %v2042, 2147483648
        %v2047 = vmul.f32 %v2046, 1.442695
        %v2048 = vpow.pop %v2047
        %v2049 = vadd.f32 %v2048, 1.0
        %v2050 = vrcp.pop %v2049
        %v2051 = vmul.f32 %v2049, %v2050
        %v2052 = vsub.f32 1.0, %v2051
        %v2053 = vmul.f32 %v2050, %v2052
        %v2054 = vadd.f32 %v2050, %v2053
        %vm2055 = vweird.f32 %v2049
        %vm2056 = vweird.f32 %v2050
        %vm2057 = vmor %vm2055, %vm2056
        %v2058 = vsel %vm2057, %v2050, %v2054
        %v2059 = vand.u32 2147483647, %v2049
        %vm2060 = vcmp.eq.f32.partialorder %v2059, 8.507059e+37
        %v2061 = vand.u32 %v2049, 2147483648
        %v2062 = vor.u32 1.1754944e-38, %v2061
        %v2063 = vsel %vm2060, %v2062, %v2058
        %v2064 = vmul.f32 1.0, %v2063
        %v2065 = vxor.u32 %v2043, 2147483648
        %v2066 = vmul.f32 %v2065, 1.442695
        %v2067 = vpow.pop %v2066
        %v2068 = vadd.f32 %v2067, 1.0
        %v2069 = vrcp.pop %v2068
        %v2070 = vmul.f32 %v2068, %v2069
        %v2071 = vsub.f32 1.0, %v2070
        %v2072 = vmul.f32 %v2069, %v2071
        %v2073 = vadd.f32 %v2069, %v2072
        %vm2074 = vweird.f32 %v2068
        %vm2075 = vweird.f32 %v2069
        %vm2076 = vmor %vm2074, %vm2075
        %v2077 = vsel %vm2076, %v2069, %v2073
        %v2078 = vand.u32 2147483647, %v2068
        %vm2079 = vcmp.eq.f32.partialorder %v2078, 8.507059e+37
        %v2080 = vand.u32 %v2068, 2147483648
        %v2081 = vor.u32 1.1754944e-38, %v2080
        %v2082 = vsel %vm2079, %v2081, %v2077
        %v2083 = vmul.f32 1.0, %v2082
        %v2084 = vtanh.pop %v2044
        %v2085 = vxor.u32 %v2045, 2147483648
        %v2086 = vmul.f32 %v2085, 1.442695
        %v2087 = vpow.pop %v2086
        %v2088 = vadd.f32 %v2087, 1.0
        %v2089 = vrcp.pop %v2088
        %v2090 = vmul.f32 %v2088, %v2089
        %v2091 = vsub.f32 1.0, %v2090
        %v2092 = vmul.f32 %v2089, %v2091
        %v2093 = vadd.f32 %v2089, %v2092
        %vm2094 = vweird.f32 %v2088
        %vm2095 = vweird.f32 %v2089
        %vm2096 = vmor %vm2094, %vm2095
        %v2097 = vsel %vm2096, %v2089, %v2093
        %v2098 = vand.u32 2147483647, %v2088
        %vm2099 = vcmp.eq.f32.partialorder %v2098, 8.507059e+37
        %v2100 = vand.u32 %v2088, 2147483648
        %v2101 = vor.u32 1.1754944e-38, %v2100
        %v2102 = vsel %vm2099, %v2101, %v2097
        %v2103 = vmul.f32 1.0, %v2102
        %v2104 = vmul.f32 %v2083, %v1743
        %v2105 = vmul.f32 %v2064, %v2084
        %v2106 = vadd.f32 %v2104, %v2105
        %v2107 = vtanh.pop %v2106
        %v2108 = vmul.f32 %v2103, %v2107
        %v2109 = vpack.c.bf16 %v2108, %v2108
        %2110 = vmatpush.bf16.msra.mxu0 %v1786
        %2111 = vmatpush.bf16.msra.mxu0 %v1785
        %2112 = vmatpush.bf16.msra.mxu0 %v1784
        %2113 = vmatpush.bf16.msra.mxu0 %v1783
        %2114 = vmatpush.bf16.msra.mxu0 %v1782
        %2115 = vmatpush.bf16.msra.mxu0 %v1781
        %2116 = vmatpush.bf16.msra.mxu0 %v1780
        %2117 = vmatpush.bf16.msra.mxu0 %v1779
        %2118 = vmatmul.bf16.gmra.mxu0 %v2109
        %v2119 = vpop.f32.mrf.mxu0
        %v2120 = vadd.f32 %v957, %v2119
        %v2121 = vpop.f32.mrf.mxu0
        %2122 = vdwg.mxu0
        %s2123 = scalar_lea.vmem %s452, 8 [#allocation19]
        %2124 = vst [vmem:[%s2123] sm:$0xff] %v2120
        %2125 = vmatpush.bf16.msra.mxu0 %v1091
        %2126 = vmatpush.bf16.msra.mxu0 %v1087
        %2127 = vmatpush.bf16.msra.mxu0 %v1083
        %2128 = vmatpush.bf16.msra.mxu0 %v1079
        %2129 = vmatpush.bf16.msra.mxu0 %v1075
        %2130 = vmatpush.bf16.msra.mxu0 %v1071
        %2131 = vmatpush.bf16.msra.mxu0 %v1067
        %2132 = vmatpush.bf16.msra.mxu0 %v1063
        %2133 = vmatmul.bf16.gmra.mxu0 %v2109
        %v2134 = vpop.f32.mrf.mxu0
        %v2135 = vadd.f32 0.0, %v2134
        %v2136 = vpop.f32.mrf.mxu0
        %2137 = vdwg.mxu0
        %2138 = vmatpush.bf16.msra.mxu0 %v1092
        %2139 = vmatpush.bf16.msra.mxu0 %v1088
        %2140 = vmatpush.bf16.msra.mxu0 %v1084
        %2141 = vmatpush.bf16.msra.mxu0 %v1080
        %2142 = vmatpush.bf16.msra.mxu0 %v1076
        %2143 = vmatpush.bf16.msra.mxu0 %v1072
        %2144 = vmatpush.bf16.msra.mxu0 %v1068
        %2145 = vmatpush.bf16.msra.mxu0 %v1064
        %2146 = vmatmul.bf16.gmra.mxu0 %v2109
        %v2147 = vpop.f32.mrf.mxu0
        %v2148 = vadd.f32 0.0, %v2147
        %v2149 = vpop.f32.mrf.mxu0
        %2150 = vdwg.mxu0
        %2151 = vmatpush.bf16.msra.mxu0 %v1093
        %2152 = vmatpush.bf16.msra.mxu0 %v1089
        %2153 = vmatpush.bf16.msra.mxu0 %v1085
        %2154 = vmatpush.bf16.msra.mxu0 %v1081
        %2155 = vmatpush.bf16.msra.mxu0 %v1077
        %2156 = vmatpush.bf16.msra.mxu0 %v1073
        %2157 = vmatpush.bf16.msra.mxu0 %v1069
        %2158 = vmatpush.bf16.msra.mxu0 %v1065
        %2159 = vmatmul.bf16.gmra.mxu0 %v2109
        %v2160 = vpop.f32.mrf.mxu0
        %v2161 = vadd.f32 0.0, %v2160
        %v2162 = vpop.f32.mrf.mxu0
        %2163 = vdwg.mxu0
        %2164 = vmatpush.bf16.msra.mxu0 %v1094
        %2165 = vmatpush.bf16.msra.mxu0 %v1090
        %2166 = vmatpush.bf16.msra.mxu0 %v1086
        %2167 = vmatpush.bf16.msra.mxu0 %v1082
        %2168 = vmatpush.bf16.msra.mxu0 %v1078
        %2169 = vmatpush.bf16.msra.mxu0 %v1074
        %2170 = vmatpush.bf16.msra.mxu0 %v1070
        %2171 = vmatpush.bf16.msra.mxu0 %v1066
        %2172 = vmatmul.bf16.gmra.mxu0 %v2109
        %v2173 = vpop.f32.mrf.mxu0
        %v2174 = vadd.f32 0.0, %v2173
        %v2175 = vpop.f32.mrf.mxu0
        %2176 = vdwg.mxu0
        %s2177 = scalar_lea.vmem [#allocation7], 64
        %v2178 = vld [vmem:[%s2177] sm:$0xff]
        %v2179 = vld [vmem:[%s2177 + $0x8] sm:$0xff]
        %v2180 = vld [vmem:[%s2177 + $0x10] sm:$0xff]
        %v2181 = vld [vmem:[%s2177 + $0x18] sm:$0xff]
        %v2182 = vadd.f32 %v2178, %v1944
        %v2183 = vadd.f32 %v2179, %v1957
        %v2184 = vadd.f32 %v2180, %v1970
        %v2185 = vadd.f32 %v2181, %v1983
        %v2186 = vxor.u32 %v2182, 2147483648
        %v2187 = vmul.f32 %v2186, 1.442695
        %v2188 = vpow.pop %v2187
        %v2189 = vadd.f32 %v2188, 1.0
        %v2190 = vrcp.pop %v2189
        %v2191 = vmul.f32 %v2189, %v2190
        %v2192 = vsub.f32 1.0, %v2191
        %v2193 = vmul.f32 %v2190, %v2192
        %v2194 = vadd.f32 %v2190, %v2193
        %vm2195 = vweird.f32 %v2189
        %vm2196 = vweird.f32 %v2190
        %vm2197 = vmor %vm2195, %vm2196
        %v2198 = vsel %vm2197, %v2190, %v2194
        %v2199 = vand.u32 2147483647, %v2189
        %vm2200 = vcmp.eq.f32.partialorder %v2199, 8.507059e+37
        %v2201 = vand.u32 %v2189, 2147483648
        %v2202 = vor.u32 1.1754944e-38, %v2201
        %v2203 = vsel %vm2200, %v2202, %v2198
        %v2204 = vmul.f32 1.0, %v2203
        %v2205 = vxor.u32 %v2183, 2147483648
        %v2206 = vmul.f32 %v2205, 1.442695
        %v2207 = vpow.pop %v2206
        %v2208 = vadd.f32 %v2207, 1.0
        %v2209 = vrcp.pop %v2208
        %v2210 = vmul.f32 %v2208, %v2209
        %v2211 = vsub.f32 1.0, %v2210
        %v2212 = vmul.f32 %v2209, %v2211
        %v2213 = vadd.f32 %v2209, %v2212
        %vm2214 = vweird.f32 %v2208
        %vm2215 = vweird.f32 %v2209
        %vm2216 = vmor %vm2214, %vm2215
        %v2217 = vsel %vm2216, %v2209, %v2213
        %v2218 = vand.u32 2147483647, %v2208
        %vm2219 = vcmp.eq.f32.partialorder %v2218, 8.507059e+37
        %v2220 = vand.u32 %v2208, 2147483648
        %v2221 = vor.u32 1.1754944e-38, %v2220
        %v2222 = vsel %vm2219, %v2221, %v2217
        %v2223 = vmul.f32 1.0, %v2222
        %v2224 = vtanh.pop %v2184
        %v2225 = vxor.u32 %v2185, 2147483648
        %v2226 = vmul.f32 %v2225, 1.442695
        %v2227 = vpow.pop %v2226
        %v2228 = vadd.f32 %v2227, 1.0
        %v2229 = vrcp.pop %v2228
        %v2230 = vmul.f32 %v2228, %v2229
        %v2231 = vsub.f32 1.0, %v2230
        %v2232 = vmul.f32 %v2229, %v2231
        %v2233 = vadd.f32 %v2229, %v2232
        %vm2234 = vweird.f32 %v2228
        %vm2235 = vweird.f32 %v2229
        %vm2236 = vmor %vm2234, %vm2235
        %v2237 = vsel %vm2236, %v2229, %v2233
        %v2238 = vand.u32 2147483647, %v2228
        %vm2239 = vcmp.eq.f32.partialorder %v2238, 8.507059e+37
        %v2240 = vand.u32 %v2228, 2147483648
        %v2241 = vor.u32 1.1754944e-38, %v2240
        %v2242 = vsel %vm2239, %v2241, %v2237
        %v2243 = vmul.f32 1.0, %v2242
        %v2244 = vmul.f32 %v2223, %v1930
        %v2245 = vmul.f32 %v2204, %v2224
        %v2246 = vadd.f32 %v2244, %v2245
        %v2247 = vtanh.pop %v2246
        %v2248 = vmul.f32 %v2243, %v2247
        %v2249 = vpack.c.bf16 %v2248, %v2248
        %2250 = vmatpush.bf16.msra.mxu0 %v1499
        %2251 = vmatpush.bf16.msra.mxu0 %v1491
        %2252 = vmatpush.bf16.msra.mxu0 %v1483
        %2253 = vmatpush.bf16.msra.mxu0 %v1475
        %2254 = vmatpush.bf16.msra.mxu0 %v1467
        %2255 = vmatpush.bf16.msra.mxu0 %v1459
        %2256 = vmatpush.bf16.msra.mxu0 %v1451
        %2257 = vmatpush.bf16.msra.mxu0 %v1443
        %2258 = vmatmul.bf16.gmra.mxu0 %v2249
        %v2259 = vpop.f32.mrf.mxu0
        %v2260 = vadd.f32 0.0, %v2259
        %v2261 = vpop.f32.mrf.mxu0
        %2262 = vdwg.mxu0
        %2263 = vmatpush.bf16.msra.mxu0 %v1500
        %2264 = vmatpush.bf16.msra.mxu0 %v1492
        %2265 = vmatpush.bf16.msra.mxu0 %v1484
        %2266 = vmatpush.bf16.msra.mxu0 %v1476
        %2267 = vmatpush.bf16.msra.mxu0 %v1468
        %2268 = vmatpush.bf16.msra.mxu0 %v1460
        %2269 = vmatpush.bf16.msra.mxu0 %v1452
        %2270 = vmatpush.bf16.msra.mxu0 %v1444
        %2271 = vmatmul.bf16.gmra.mxu0 %v2249
        %v2272 = vpop.f32.mrf.mxu0
        %v2273 = vadd.f32 0.0, %v2272
        %v2274 = vpop.f32.mrf.mxu0
        %2275 = vdwg.mxu0
        %2276 = vmatpush.bf16.msra.mxu0 %v1501
        %2277 = vmatpush.bf16.msra.mxu0 %v1493
        %2278 = vmatpush.bf16.msra.mxu0 %v1485
        %2279 = vmatpush.bf16.msra.mxu0 %v1477
        %2280 = vmatpush.bf16.msra.mxu0 %v1469
        %2281 = vmatpush.bf16.msra.mxu0 %v1461
        %2282 = vmatpush.bf16.msra.mxu0 %v1453
        %2283 = vmatpush.bf16.msra.mxu0 %v1445
        %2284 = vmatmul.bf16.gmra.mxu0 %v2249
        %v2285 = vpop.f32.mrf.mxu0
        %v2286 = vadd.f32 0.0, %v2285
        %v2287 = vpop.f32.mrf.mxu0
        %2288 = vdwg.mxu0
        %2289 = vmatpush.bf16.msra.mxu0 %v1502
        %2290 = vmatpush.bf16.msra.mxu0 %v1494
        %2291 = vmatpush.bf16.msra.mxu0 %v1486
        %2292 = vmatpush.bf16.msra.mxu0 %v1478
        %2293 = vmatpush.bf16.msra.mxu0 %v1470
        %2294 = vmatpush.bf16.msra.mxu0 %v1462
        %2295 = vmatpush.bf16.msra.mxu0 %v1454
        %2296 = vmatpush.bf16.msra.mxu0 %v1446
        %2297 = vmatmul.bf16.gmra.mxu0 %v2249
        %v2298 = vpop.f32.mrf.mxu0
        %v2299 = vadd.f32 0.0, %v2298
        %v2300 = vpop.f32.mrf.mxu0
        %2301 = vdwg.mxu0
        %2302 = vmatpush.bf16.msra.mxu0 %v1503
        %2303 = vmatpush.bf16.msra.mxu0 %v1495
        %2304 = vmatpush.bf16.msra.mxu0 %v1487
        %2305 = vmatpush.bf16.msra.mxu0 %v1479
        %2306 = vmatpush.bf16.msra.mxu0 %v1471
        %2307 = vmatpush.bf16.msra.mxu0 %v1463
        %2308 = vmatpush.bf16.msra.mxu0 %v1455
        %2309 = vmatpush.bf16.msra.mxu0 %v1447
        %2310 = vmatmul.bf16.gmra.mxu0 %v2249
        %v2311 = vpop.f32.mrf.mxu0
        %v2312 = vadd.f32 0.0, %v2311
        %v2313 = vpop.f32.mrf.mxu0
        %2314 = vdwg.mxu0
        %2315 = vmatpush.bf16.msra.mxu0 %v1504
        %2316 = vmatpush.bf16.msra.mxu0 %v1496
        %2317 = vmatpush.bf16.msra.mxu0 %v1488
        %2318 = vmatpush.bf16.msra.mxu0 %v1480
        %2319 = vmatpush.bf16.msra.mxu0 %v1472
        %2320 = vmatpush.bf16.msra.mxu0 %v1464
        %2321 = vmatpush.bf16.msra.mxu0 %v1456
        %2322 = vmatpush.bf16.msra.mxu0 %v1448
        %2323 = vmatmul.bf16.gmra.mxu0 %v2249
        %v2324 = vpop.f32.mrf.mxu0
        %v2325 = vadd.f32 0.0, %v2324
        %v2326 = vpop.f32.mrf.mxu0
        %2327 = vdwg.mxu0
        %2328 = vmatpush.bf16.msra.mxu0 %v1505
        %2329 = vmatpush.bf16.msra.mxu0 %v1497
        %2330 = vmatpush.bf16.msra.mxu0 %v1489
        %2331 = vmatpush.bf16.msra.mxu0 %v1481
        %2332 = vmatpush.bf16.msra.mxu0 %v1473
        %2333 = vmatpush.bf16.msra.mxu0 %v1465
        %2334 = vmatpush.bf16.msra.mxu0 %v1457
        %2335 = vmatpush.bf16.msra.mxu0 %v1449
        %2336 = vmatmul.bf16.gmra.mxu0 %v2249
        %v2337 = vpop.f32.mrf.mxu0
        %v2338 = vadd.f32 0.0, %v2337
        %v2339 = vpop.f32.mrf.mxu0
        %2340 = vdwg.mxu0
        %2341 = vmatpush.bf16.msra.mxu0 %v1506
        %2342 = vmatpush.bf16.msra.mxu0 %v1498
        %2343 = vmatpush.bf16.msra.mxu0 %v1490
        %2344 = vmatpush.bf16.msra.mxu0 %v1482
        %2345 = vmatpush.bf16.msra.mxu0 %v1474
        %2346 = vmatpush.bf16.msra.mxu0 %v1466
        %2347 = vmatpush.bf16.msra.mxu0 %v1458
        %2348 = vmatpush.bf16.msra.mxu0 %v1450
        %2349 = vmatmul.bf16.gmra.mxu0 %v2249
        %v2350 = vpop.f32.mrf.mxu0
        %v2351 = vadd.f32 0.0, %v2350
        %v2352 = vpop.f32.mrf.mxu0
        %2353 = vdwg.mxu0
        %v2354 = vadd.f32 %v2312, %v2135
        %v2355 = vadd.f32 %v2325, %v2148
        %v2356 = vadd.f32 %v2338, %v2161
        %v2357 = vadd.f32 %v2351, %v2174
        %v2358 = vadd.f32 %v2354, %v947
        %v2359 = vadd.f32 %v2355, %v948
        %v2360 = vadd.f32 %v2356, %v949
        %v2361 = vadd.f32 %v2357, %v950
        %v2362 = vxor.u32 %v2358, 2147483648
        %v2363 = vmul.f32 %v2362, 1.442695
        %v2364 = vpow.pop %v2363
        %v2365 = vadd.f32 %v2364, 1.0
        %v2366 = vrcp.pop %v2365
        %v2367 = vmul.f32 %v2365, %v2366
        %v2368 = vsub.f32 1.0, %v2367
        %v2369 = vmul.f32 %v2366, %v2368
        %v2370 = vadd.f32 %v2366, %v2369
        %vm2371 = vweird.f32 %v2365
        %vm2372 = vweird.f32 %v2366
        %vm2373 = vmor %vm2371, %vm2372
        %v2374 = vsel %vm2373, %v2366, %v2370
        %v2375 = vand.u32 2147483647, %v2365
        %vm2376 = vcmp.eq.f32.partialorder %v2375, 8.507059e+37
        %v2377 = vand.u32 %v2365, 2147483648
        %v2378 = vor.u32 1.1754944e-38, %v2377
        %v2379 = vsel %vm2376, %v2378, %v2374
        %v2380 = vmul.f32 1.0, %v2379
        %v2381 = vxor.u32 %v2359, 2147483648
        %v2382 = vmul.f32 %v2381, 1.442695
        %v2383 = vpow.pop %v2382
        %v2384 = vadd.f32 %v2383, 1.0
        %v2385 = vrcp.pop %v2384
        %v2386 = vmul.f32 %v2384, %v2385
        %v2387 = vsub.f32 1.0, %v2386
        %v2388 = vmul.f32 %v2385, %v2387
        %v2389 = vadd.f32 %v2385, %v2388
        %vm2390 = vweird.f32 %v2384
        %vm2391 = vweird.f32 %v2385
        %vm2392 = vmor %vm2390, %vm2391
        %v2393 = vsel %vm2392, %v2385, %v2389
        %v2394 = vand.u32 2147483647, %v2384
        %vm2395 = vcmp.eq.f32.partialorder %v2394, 8.507059e+37
        %v2396 = vand.u32 %v2384, 2147483648
        %v2397 = vor.u32 1.1754944e-38, %v2396
        %v2398 = vsel %vm2395, %v2397, %v2393
        %v2399 = vmul.f32 1.0, %v2398
        %v2400 = vtanh.pop %v2360
        %v2401 = vxor.u32 %v2361, 2147483648
        %v2402 = vmul.f32 %v2401, 1.442695
        %v2403 = vpow.pop %v2402
        %v2404 = vadd.f32 %v2403, 1.0
        %v2405 = vrcp.pop %v2404
        %v2406 = vmul.f32 %v2404, %v2405
        %v2407 = vsub.f32 1.0, %v2406
        %v2408 = vmul.f32 %v2405, %v2407
        %v2409 = vadd.f32 %v2405, %v2408
        %vm2410 = vweird.f32 %v2404
        %vm2411 = vweird.f32 %v2405
        %vm2412 = vmor %vm2410, %vm2411
        %v2413 = vsel %vm2412, %v2405, %v2409
        %v2414 = vand.u32 2147483647, %v2404
        %vm2415 = vcmp.eq.f32.partialorder %v2414, 8.507059e+37
        %v2416 = vand.u32 %v2404, 2147483648
        %v2417 = vor.u32 1.1754944e-38, %v2416
        %v2418 = vsel %vm2415, %v2417, %v2413
        %v2419 = vmul.f32 1.0, %v2418
        %v2420 = vmul.f32 %v2399, %v2106
        %v2421 = vmul.f32 %v2380, %v2400
        %v2422 = vadd.f32 %v2420, %v2421
        %v2423 = vtanh.pop %v2422
        %v2424 = vmul.f32 %v2419, %v2423
        %v2425 = vpack.c.bf16 %v2424, %v2424
        %2426 = vmatpush.bf16.msra.mxu0 %v1786
        %2427 = vmatpush.bf16.msra.mxu0 %v1785
        %2428 = vmatpush.bf16.msra.mxu0 %v1784
        %2429 = vmatpush.bf16.msra.mxu0 %v1783
        %2430 = vmatpush.bf16.msra.mxu0 %v1782
        %2431 = vmatpush.bf16.msra.mxu0 %v1781
        %2432 = vmatpush.bf16.msra.mxu0 %v1780
        %2433 = vmatpush.bf16.msra.mxu0 %v1779
        %2434 = vmatmul.bf16.gmra.mxu0 %v2425
        %v2435 = vpop.f32.mrf.mxu0
        %v2436 = vadd.f32 %v957, %v2435
        %v2437 = vpop.f32.mrf.mxu0
        %2438 = vdwg.mxu0
        %s2439 = scalar_lea.vmem %s452, 16 [#allocation19]
        %2440 = vst [vmem:[%s2439] sm:$0xff] %v2436
        %2441 = vst [vmem:[#allocation20] sm:$0xff] %v2248
        %s2442 = scalar_lea.vmem [#allocation20], 8
        %2443 = vst [vmem:[%s2442] sm:$0xff] %v2424
        %2444 = vst [vmem:[#allocation22] sm:$0xff] %v2246
        %s2445 = scalar_lea.vmem [#allocation22], 8
        %2446 = vst [vmem:[%s2445] sm:$0xff] %v2422
        %2447 = vmatpush.bf16.msra.mxu0 %v1091
        %2448 = vmatpush.bf16.msra.mxu0 %v1087
        %2449 = vmatpush.bf16.msra.mxu0 %v1083
        %2450 = vmatpush.bf16.msra.mxu0 %v1079
        %2451 = vmatpush.bf16.msra.mxu0 %v1075
        %2452 = vmatpush.bf16.msra.mxu0 %v1071
        %2453 = vmatpush.bf16.msra.mxu0 %v1067
        %2454 = vmatpush.bf16.msra.mxu0 %v1063
        %2455 = vmatmul.bf16.gmra.mxu0 %v2425
        %v2456 = vpop.f32.mrf.mxu0
        %v2457 = vadd.f32 0.0, %v2456
        %v2458 = vpop.f32.mrf.mxu0
        %2459 = vdwg.mxu0
        %2460 = vmatpush.bf16.msra.mxu0 %v1092
        %2461 = vmatpush.bf16.msra.mxu0 %v1088
        %2462 = vmatpush.bf16.msra.mxu0 %v1084
        %2463 = vmatpush.bf16.msra.mxu0 %v1080
        %2464 = vmatpush.bf16.msra.mxu0 %v1076
        %2465 = vmatpush.bf16.msra.mxu0 %v1072
        %2466 = vmatpush.bf16.msra.mxu0 %v1068
        %2467 = vmatpush.bf16.msra.mxu0 %v1064
        %2468 = vmatmul.bf16.gmra.mxu0 %v2425
        %v2469 = vpop.f32.mrf.mxu0
        %v2470 = vadd.f32 0.0, %v2469
        %v2471 = vpop.f32.mrf.mxu0
        %2472 = vdwg.mxu0
        %2473 = vmatpush.bf16.msra.mxu0 %v1093
        %2474 = vmatpush.bf16.msra.mxu0 %v1089
        %2475 = vmatpush.bf16.msra.mxu0 %v1085
        %2476 = vmatpush.bf16.msra.mxu0 %v1081
        %2477 = vmatpush.bf16.msra.mxu0 %v1077
        %2478 = vmatpush.bf16.msra.mxu0 %v1073
        %2479 = vmatpush.bf16.msra.mxu0 %v1069
        %2480 = vmatpush.bf16.msra.mxu0 %v1065
        %2481 = vmatmul.bf16.gmra.mxu0 %v2425
        %v2482 = vpop.f32.mrf.mxu0
        %v2483 = vadd.f32 0.0, %v2482
        %v2484 = vpop.f32.mrf.mxu0
        %2485 = vdwg.mxu0
        %2486 = vmatpush.bf16.msra.mxu0 %v1094
        %2487 = vmatpush.bf16.msra.mxu0 %v1090
        %2488 = vmatpush.bf16.msra.mxu0 %v1086
        %2489 = vmatpush.bf16.msra.mxu0 %v1082
        %2490 = vmatpush.bf16.msra.mxu0 %v1078
        %2491 = vmatpush.bf16.msra.mxu0 %v1074
        %2492 = vmatpush.bf16.msra.mxu0 %v1070
        %2493 = vmatpush.bf16.msra.mxu0 %v1066
        %2494 = vmatmul.bf16.gmra.mxu0 %v2425
        %v2495 = vpop.f32.mrf.mxu0
        %v2496 = vadd.f32 0.0, %v2495
        %v2497 = vpop.f32.mrf.mxu0
        %2498 = vdwg.mxu0
        %s2499 = scalar_lea.vmem [#allocation7], 96
        %v2500 = vld [vmem:[%s2499] sm:$0xff]
        %v2501 = vld [vmem:[%s2499 + $0x8] sm:$0xff]
        %v2502 = vld [vmem:[%s2499 + $0x10] sm:$0xff]
        %v2503 = vld [vmem:[%s2499 + $0x18] sm:$0xff]
        %v2504 = vadd.f32 %v2500, %v2260
        %v2505 = vadd.f32 %v2501, %v2273
        %v2506 = vadd.f32 %v2502, %v2286
        %v2507 = vadd.f32 %v2503, %v2299
        %v2508 = vxor.u32 %v2504, 2147483648
        %v2509 = vmul.f32 %v2508, 1.442695
        %v2510 = vpow.pop %v2509
        %v2511 = vadd.f32 %v2510, 1.0
        %v2512 = vrcp.pop %v2511
        %v2513 = vmul.f32 %v2511, %v2512
        %v2514 = vsub.f32 1.0, %v2513
        %v2515 = vmul.f32 %v2512, %v2514
        %v2516 = vadd.f32 %v2512, %v2515
        %vm2517 = vweird.f32 %v2511
        %vm2518 = vweird.f32 %v2512
        %vm2519 = vmor %vm2517, %vm2518
        %v2520 = vsel %vm2519, %v2512, %v2516
        %v2521 = vand.u32 2147483647, %v2511
        %vm2522 = vcmp.eq.f32.partialorder %v2521, 8.507059e+37
        %v2523 = vand.u32 %v2511, 2147483648
        %v2524 = vor.u32 1.1754944e-38, %v2523
        %v2525 = vsel %vm2522, %v2524, %v2520
        %v2526 = vmul.f32 1.0, %v2525
        %v2527 = vxor.u32 %v2505, 2147483648
        %v2528 = vmul.f32 %v2527, 1.442695
        %v2529 = vpow.pop %v2528
        %v2530 = vadd.f32 %v2529, 1.0
        %v2531 = vrcp.pop %v2530
        %v2532 = vmul.f32 %v2530, %v2531
        %v2533 = vsub.f32 1.0, %v2532
        %v2534 = vmul.f32 %v2531, %v2533
        %v2535 = vadd.f32 %v2531, %v2534
        %vm2536 = vweird.f32 %v2530
        %vm2537 = vweird.f32 %v2531
        %vm2538 = vmor %vm2536, %vm2537
        %v2539 = vsel %vm2538, %v2531, %v2535
        %v2540 = vand.u32 2147483647, %v2530
        %vm2541 = vcmp.eq.f32.partialorder %v2540, 8.507059e+37
        %v2542 = vand.u32 %v2530, 2147483648
        %v2543 = vor.u32 1.1754944e-38, %v2542
        %v2544 = vsel %vm2541, %v2543, %v2539
        %v2545 = vmul.f32 1.0, %v2544
        %v2546 = vtanh.pop %v2506
        %v2547 = vxor.u32 %v2507, 2147483648
        %v2548 = vmul.f32 %v2547, 1.442695
        %v2549 = vpow.pop %v2548
        %v2550 = vadd.f32 %v2549, 1.0
        %v2551 = vrcp.pop %v2550
        %v2552 = vmul.f32 %v2550, %v2551
        %v2553 = vsub.f32 1.0, %v2552
        %v2554 = vmul.f32 %v2551, %v2553
        %v2555 = vadd.f32 %v2551, %v2554
        %vm2556 = vweird.f32 %v2550
        %vm2557 = vweird.f32 %v2551
        %vm2558 = vmor %vm2556, %vm2557
        %v2559 = vsel %vm2558, %v2551, %v2555
        %v2560 = vand.u32 2147483647, %v2550
        %vm2561 = vcmp.eq.f32.partialorder %v2560, 8.507059e+37
        %v2562 = vand.u32 %v2550, 2147483648
        %v2563 = vor.u32 1.1754944e-38, %v2562
        %v2564 = vsel %vm2561, %v2563, %v2559
        %v2565 = vmul.f32 1.0, %v2564
        %v2566 = vmul.f32 %v2545, %v2246
        %v2567 = vmul.f32 %v2526, %v2546
        %v2568 = vadd.f32 %v2566, %v2567
        %v2569 = vtanh.pop %v2568
        %v2570 = vmul.f32 %v2565, %v2569
        %v2571 = vpack.c.bf16 %v2570, %v2570
        %2572 = vmatpush.bf16.msra.mxu0 %v1499
        %2573 = vmatpush.bf16.msra.mxu0 %v1491
        %2574 = vmatpush.bf16.msra.mxu0 %v1483
        %2575 = vmatpush.bf16.msra.mxu0 %v1475
        %2576 = vmatpush.bf16.msra.mxu0 %v1467
        %2577 = vmatpush.bf16.msra.mxu0 %v1459
        %2578 = vmatpush.bf16.msra.mxu0 %v1451
        %2579 = vmatpush.bf16.msra.mxu0 %v1443
        %2580 = vmatmul.bf16.gmra.mxu0 %v2571
        %v2581 = vpop.f32.mrf.mxu0
        %v2582 = vadd.f32 0.0, %v2581
        %v2583 = vpop.f32.mrf.mxu0
        %2584 = vdwg.mxu0
        %2585 = vmatpush.bf16.msra.mxu0 %v1500
        %2586 = vmatpush.bf16.msra.mxu0 %v1492
        %2587 = vmatpush.bf16.msra.mxu0 %v1484
        %2588 = vmatpush.bf16.msra.mxu0 %v1476
        %2589 = vmatpush.bf16.msra.mxu0 %v1468
        %2590 = vmatpush.bf16.msra.mxu0 %v1460
        %2591 = vmatpush.bf16.msra.mxu0 %v1452
        %2592 = vmatpush.bf16.msra.mxu0 %v1444
        %2593 = vmatmul.bf16.gmra.mxu0 %v2571
        %v2594 = vpop.f32.mrf.mxu0
        %v2595 = vadd.f32 0.0, %v2594
        %v2596 = vpop.f32.mrf.mxu0
        %2597 = vdwg.mxu0
        %2598 = vmatpush.bf16.msra.mxu0 %v1501
        %2599 = vmatpush.bf16.msra.mxu0 %v1493
        %2600 = vmatpush.bf16.msra.mxu0 %v1485
        %2601 = vmatpush.bf16.msra.mxu0 %v1477
        %2602 = vmatpush.bf16.msra.mxu0 %v1469
        %2603 = vmatpush.bf16.msra.mxu0 %v1461
        %2604 = vmatpush.bf16.msra.mxu0 %v1453
        %2605 = vmatpush.bf16.msra.mxu0 %v1445
        %2606 = vmatmul.bf16.gmra.mxu0 %v2571
        %v2607 = vpop.f32.mrf.mxu0
        %v2608 = vadd.f32 0.0, %v2607
        %v2609 = vpop.f32.mrf.mxu0
        %2610 = vdwg.mxu0
        %2611 = vmatpush.bf16.msra.mxu0 %v1502
        %2612 = vmatpush.bf16.msra.mxu0 %v1494
        %2613 = vmatpush.bf16.msra.mxu0 %v1486
        %2614 = vmatpush.bf16.msra.mxu0 %v1478
        %2615 = vmatpush.bf16.msra.mxu0 %v1470
        %2616 = vmatpush.bf16.msra.mxu0 %v1462
        %2617 = vmatpush.bf16.msra.mxu0 %v1454
        %2618 = vmatpush.bf16.msra.mxu0 %v1446
        %2619 = vmatmul.bf16.gmra.mxu0 %v2571
        %v2620 = vpop.f32.mrf.mxu0
        %v2621 = vadd.f32 0.0, %v2620
        %v2622 = vpop.f32.mrf.mxu0
        %2623 = vdwg.mxu0
        %2624 = vmatpush.bf16.msra.mxu0 %v1503
        %2625 = vmatpush.bf16.msra.mxu0 %v1495
        %2626 = vmatpush.bf16.msra.mxu0 %v1487
        %2627 = vmatpush.bf16.msra.mxu0 %v1479
        %2628 = vmatpush.bf16.msra.mxu0 %v1471
        %2629 = vmatpush.bf16.msra.mxu0 %v1463
        %2630 = vmatpush.bf16.msra.mxu0 %v1455
        %2631 = vmatpush.bf16.msra.mxu0 %v1447
        %2632 = vmatmul.bf16.gmra.mxu0 %v2571
        %v2633 = vpop.f32.mrf.mxu0
        %v2634 = vadd.f32 0.0, %v2633
        %v2635 = vpop.f32.mrf.mxu0
        %2636 = vdwg.mxu0
        %2637 = vmatpush.bf16.msra.mxu0 %v1504
        %2638 = vmatpush.bf16.msra.mxu0 %v1496
        %2639 = vmatpush.bf16.msra.mxu0 %v1488
        %2640 = vmatpush.bf16.msra.mxu0 %v1480
        %2641 = vmatpush.bf16.msra.mxu0 %v1472
        %2642 = vmatpush.bf16.msra.mxu0 %v1464
        %2643 = vmatpush.bf16.msra.mxu0 %v1456
        %2644 = vmatpush.bf16.msra.mxu0 %v1448
        %2645 = vmatmul.bf16.gmra.mxu0 %v2571
        %v2646 = vpop.f32.mrf.mxu0
        %v2647 = vadd.f32 0.0, %v2646
        %v2648 = vpop.f32.mrf.mxu0
        %2649 = vdwg.mxu0
        %2650 = vmatpush.bf16.msra.mxu0 %v1505
        %2651 = vmatpush.bf16.msra.mxu0 %v1497
        %2652 = vmatpush.bf16.msra.mxu0 %v1489
        %2653 = vmatpush.bf16.msra.mxu0 %v1481
        %2654 = vmatpush.bf16.msra.mxu0 %v1473
        %2655 = vmatpush.bf16.msra.mxu0 %v1465
        %2656 = vmatpush.bf16.msra.mxu0 %v1457
        %2657 = vmatpush.bf16.msra.mxu0 %v1449
        %2658 = vmatmul.bf16.gmra.mxu0 %v2571
        %v2659 = vpop.f32.mrf.mxu0
        %v2660 = vadd.f32 0.0, %v2659
        %v2661 = vpop.f32.mrf.mxu0
        %2662 = vdwg.mxu0
        %2663 = vmatpush.bf16.msra.mxu0 %v1506
        %2664 = vmatpush.bf16.msra.mxu0 %v1498
        %2665 = vmatpush.bf16.msra.mxu0 %v1490
        %2666 = vmatpush.bf16.msra.mxu0 %v1482
        %2667 = vmatpush.bf16.msra.mxu0 %v1474
        %2668 = vmatpush.bf16.msra.mxu0 %v1466
        %2669 = vmatpush.bf16.msra.mxu0 %v1458
        %2670 = vmatpush.bf16.msra.mxu0 %v1450
        %2671 = vmatmul.bf16.gmra.mxu0 %v2571
        %v2672 = vpop.f32.mrf.mxu0
        %v2673 = vadd.f32 0.0, %v2672
        %v2674 = vpop.f32.mrf.mxu0
        %2675 = vdwg.mxu0
        %v2676 = vadd.f32 %v2634, %v2457
        %v2677 = vadd.f32 %v2647, %v2470
        %v2678 = vadd.f32 %v2660, %v2483
        %v2679 = vadd.f32 %v2673, %v2496
        %v2680 = vadd.f32 %v2676, %v947
        %v2681 = vadd.f32 %v2677, %v948
        %v2682 = vadd.f32 %v2678, %v949
        %v2683 = vadd.f32 %v2679, %v950
        %v2684 = vxor.u32 %v2680, 2147483648
        %v2685 = vmul.f32 %v2684, 1.442695
        %v2686 = vpow.pop %v2685
        %v2687 = vadd.f32 %v2686, 1.0
        %v2688 = vrcp.pop %v2687
        %v2689 = vmul.f32 %v2687, %v2688
        %v2690 = vsub.f32 1.0, %v2689
        %v2691 = vmul.f32 %v2688, %v2690
        %v2692 = vadd.f32 %v2688, %v2691
        %vm2693 = vweird.f32 %v2687
        %vm2694 = vweird.f32 %v2688
        %vm2695 = vmor %vm2693, %vm2694
        %v2696 = vsel %vm2695, %v2688, %v2692
        %v2697 = vand.u32 2147483647, %v2687
        %vm2698 = vcmp.eq.f32.partialorder %v2697, 8.507059e+37
        %v2699 = vand.u32 %v2687, 2147483648
        %v2700 = vor.u32 1.1754944e-38, %v2699
        %v2701 = vsel %vm2698, %v2700, %v2696
        %v2702 = vmul.f32 1.0, %v2701
        %v2703 = vxor.u32 %v2681, 2147483648
        %v2704 = vmul.f32 %v2703, 1.442695
        %v2705 = vpow.pop %v2704
        %v2706 = vadd.f32 %v2705, 1.0
        %v2707 = vrcp.pop %v2706
        %v2708 = vmul.f32 %v2706, %v2707
        %v2709 = vsub.f32 1.0, %v2708
        %v2710 = vmul.f32 %v2707, %v2709
        %v2711 = vadd.f32 %v2707, %v2710
        %vm2712 = vweird.f32 %v2706
        %vm2713 = vweird.f32 %v2707
        %vm2714 = vmor %vm2712, %vm2713
        %v2715 = vsel %vm2714, %v2707, %v2711
        %v2716 = vand.u32 2147483647, %v2706
        %vm2717 = vcmp.eq.f32.partialorder %v2716, 8.507059e+37
        %v2718 = vand.u32 %v2706, 2147483648
        %v2719 = vor.u32 1.1754944e-38, %v2718
        %v2720 = vsel %vm2717, %v2719, %v2715
        %v2721 = vmul.f32 1.0, %v2720
        %v2722 = vtanh.pop %v2682
        %v2723 = vxor.u32 %v2683, 2147483648
        %v2724 = vmul.f32 %v2723, 1.442695
        %v2725 = vpow.pop %v2724
        %v2726 = vadd.f32 %v2725, 1.0
        %v2727 = vrcp.pop %v2726
        %v2728 = vmul.f32 %v2726, %v2727
        %v2729 = vsub.f32 1.0, %v2728
        %v2730 = vmul.f32 %v2727, %v2729
        %v2731 = vadd.f32 %v2727, %v2730
        %vm2732 = vweird.f32 %v2726
        %vm2733 = vweird.f32 %v2727
        %vm2734 = vmor %vm2732, %vm2733
        %v2735 = vsel %vm2734, %v2727, %v2731
        %v2736 = vand.u32 2147483647, %v2726
        %vm2737 = vcmp.eq.f32.partialorder %v2736, 8.507059e+37
        %v2738 = vand.u32 %v2726, 2147483648
        %v2739 = vor.u32 1.1754944e-38, %v2738
        %v2740 = vsel %vm2737, %v2739, %v2735
        %v2741 = vmul.f32 1.0, %v2740
        %v2742 = vmul.f32 %v2721, %v2422
        %v2743 = vmul.f32 %v2702, %v2722
        %v2744 = vadd.f32 %v2742, %v2743
        %v2745 = vtanh.pop %v2744
        %v2746 = vmul.f32 %v2741, %v2745
        %v2747 = vpack.c.bf16 %v2746, %v2746
        %2748 = vmatpush.bf16.msra.mxu0 %v1786
        %2749 = vmatpush.bf16.msra.mxu0 %v1785
        %2750 = vmatpush.bf16.msra.mxu0 %v1784
        %2751 = vmatpush.bf16.msra.mxu0 %v1783
        %2752 = vmatpush.bf16.msra.mxu0 %v1782
        %2753 = vmatpush.bf16.msra.mxu0 %v1781
        %2754 = vmatpush.bf16.msra.mxu0 %v1780
        %2755 = vmatpush.bf16.msra.mxu0 %v1779
        %2756 = vmatmul.bf16.gmra.mxu0 %v2747
        %v2757 = vpop.f32.mrf.mxu0
        %v2758 = vadd.f32 %v957, %v2757
        %v2759 = vpop.f32.mrf.mxu0
        %2760 = vdwg.mxu0
        %s2761 = scalar_lea.vmem %s452, 24 [#allocation19]
        %2762 = vst [vmem:[%s2761] sm:$0xff] %v2758
        %2763 = vmatpush.bf16.msra.mxu0 %v1091
        %2764 = vmatpush.bf16.msra.mxu0 %v1087
        %2765 = vmatpush.bf16.msra.mxu0 %v1083
        %2766 = vmatpush.bf16.msra.mxu0 %v1079
        %2767 = vmatpush.bf16.msra.mxu0 %v1075
        %2768 = vmatpush.bf16.msra.mxu0 %v1071
        %2769 = vmatpush.bf16.msra.mxu0 %v1067
        %2770 = vmatpush.bf16.msra.mxu0 %v1063
        %2771 = vmatmul.bf16.gmra.mxu0 %v2747
        %v2772 = vpop.f32.mrf.mxu0
        %v2773 = vadd.f32 0.0, %v2772
        %v2774 = vpop.f32.mrf.mxu0
        %2775 = vdwg.mxu0
        %2776 = vmatpush.bf16.msra.mxu0 %v1092
        %2777 = vmatpush.bf16.msra.mxu0 %v1088
        %2778 = vmatpush.bf16.msra.mxu0 %v1084
        %2779 = vmatpush.bf16.msra.mxu0 %v1080
        %2780 = vmatpush.bf16.msra.mxu0 %v1076
        %2781 = vmatpush.bf16.msra.mxu0 %v1072
        %2782 = vmatpush.bf16.msra.mxu0 %v1068
        %2783 = vmatpush.bf16.msra.mxu0 %v1064
        %2784 = vmatmul.bf16.gmra.mxu0 %v2747
        %v2785 = vpop.f32.mrf.mxu0
        %v2786 = vadd.f32 0.0, %v2785
        %v2787 = vpop.f32.mrf.mxu0
        %2788 = vdwg.mxu0
        %2789 = vmatpush.bf16.msra.mxu0 %v1093
        %2790 = vmatpush.bf16.msra.mxu0 %v1089
        %2791 = vmatpush.bf16.msra.mxu0 %v1085
        %2792 = vmatpush.bf16.msra.mxu0 %v1081
        %2793 = vmatpush.bf16.msra.mxu0 %v1077
        %2794 = vmatpush.bf16.msra.mxu0 %v1073
        %2795 = vmatpush.bf16.msra.mxu0 %v1069
        %2796 = vmatpush.bf16.msra.mxu0 %v1065
        %2797 = vmatmul.bf16.gmra.mxu0 %v2747
        %v2798 = vpop.f32.mrf.mxu0
        %v2799 = vadd.f32 0.0, %v2798
        %v2800 = vpop.f32.mrf.mxu0
        %2801 = vdwg.mxu0
        %2802 = vmatpush.bf16.msra.mxu0 %v1094
        %2803 = vmatpush.bf16.msra.mxu0 %v1090
        %2804 = vmatpush.bf16.msra.mxu0 %v1086
        %2805 = vmatpush.bf16.msra.mxu0 %v1082
        %2806 = vmatpush.bf16.msra.mxu0 %v1078
        %2807 = vmatpush.bf16.msra.mxu0 %v1074
        %2808 = vmatpush.bf16.msra.mxu0 %v1070
        %2809 = vmatpush.bf16.msra.mxu0 %v1066
        %2810 = vmatmul.bf16.gmra.mxu0 %v2747
        %v2811 = vpop.f32.mrf.mxu0
        %v2812 = vadd.f32 0.0, %v2811
        %v2813 = vpop.f32.mrf.mxu0
        %2814 = vdwg.mxu0
        %s2815 = scalar_lea.vmem [#allocation7], 128
        %v2816 = vld [vmem:[%s2815] sm:$0xff]
        %v2817 = vld [vmem:[%s2815 + $0x8] sm:$0xff]
        %v2818 = vld [vmem:[%s2815 + $0x10] sm:$0xff]
        %v2819 = vld [vmem:[%s2815 + $0x18] sm:$0xff]
        %v2820 = vadd.f32 %v2816, %v2582
        %v2821 = vadd.f32 %v2817, %v2595
        %v2822 = vadd.f32 %v2818, %v2608
        %v2823 = vadd.f32 %v2819, %v2621
        %v2824 = vxor.u32 %v2820, 2147483648
        %v2825 = vmul.f32 %v2824, 1.442695
        %v2826 = vpow.pop %v2825
        %v2827 = vadd.f32 %v2826, 1.0
        %v2828 = vrcp.pop %v2827
        %v2829 = vmul.f32 %v2827, %v2828
        %v2830 = vsub.f32 1.0, %v2829
        %v2831 = vmul.f32 %v2828, %v2830
        %v2832 = vadd.f32 %v2828, %v2831
        %vm2833 = vweird.f32 %v2827
        %vm2834 = vweird.f32 %v2828
        %vm2835 = vmor %vm2833, %vm2834
        %v2836 = vsel %vm2835, %v2828, %v2832
        %v2837 = vand.u32 2147483647, %v2827
        %vm2838 = vcmp.eq.f32.partialorder %v2837, 8.507059e+37
        %v2839 = vand.u32 %v2827, 2147483648
        %v2840 = vor.u32 1.1754944e-38, %v2839
        %v2841 = vsel %vm2838, %v2840, %v2836
        %v2842 = vmul.f32 1.0, %v2841
        %v2843 = vxor.u32 %v2821, 2147483648
        %v2844 = vmul.f32 %v2843, 1.442695
        %v2845 = vpow.pop %v2844
        %v2846 = vadd.f32 %v2845, 1.0
        %v2847 = vrcp.pop %v2846
        %v2848 = vmul.f32 %v2846, %v2847
        %v2849 = vsub.f32 1.0, %v2848
        %v2850 = vmul.f32 %v2847, %v2849
        %v2851 = vadd.f32 %v2847, %v2850
        %vm2852 = vweird.f32 %v2846
        %vm2853 = vweird.f32 %v2847
        %vm2854 = vmor %vm2852, %vm2853
        %v2855 = vsel %vm2854, %v2847, %v2851
        %v2856 = vand.u32 2147483647, %v2846
        %vm2857 = vcmp.eq.f32.partialorder %v2856, 8.507059e+37
        %v2858 = vand.u32 %v2846, 2147483648
        %v2859 = vor.u32 1.1754944e-38, %v2858
        %v2860 = vsel %vm2857, %v2859, %v2855
        %v2861 = vmul.f32 1.0, %v2860
        %v2862 = vtanh.pop %v2822
        %v2863 = vxor.u32 %v2823, 2147483648
        %v2864 = vmul.f32 %v2863, 1.442695
        %v2865 = vpow.pop %v2864
        %v2866 = vadd.f32 %v2865, 1.0
        %v2867 = vrcp.pop %v2866
        %v2868 = vmul.f32 %v2866, %v2867
        %v2869 = vsub.f32 1.0, %v2868
        %v2870 = vmul.f32 %v2867, %v2869
        %v2871 = vadd.f32 %v2867, %v2870
        %vm2872 = vweird.f32 %v2866
        %vm2873 = vweird.f32 %v2867
        %vm2874 = vmor %vm2872, %vm2873
        %v2875 = vsel %vm2874, %v2867, %v2871
        %v2876 = vand.u32 2147483647, %v2866
        %vm2877 = vcmp.eq.f32.partialorder %v2876, 8.507059e+37
        %v2878 = vand.u32 %v2866, 2147483648
        %v2879 = vor.u32 1.1754944e-38, %v2878
        %v2880 = vsel %vm2877, %v2879, %v2875
        %v2881 = vmul.f32 1.0, %v2880
        %v2882 = vmul.f32 %v2861, %v2568
        %v2883 = vmul.f32 %v2842, %v2862
        %v2884 = vadd.f32 %v2882, %v2883
        %v2885 = vtanh.pop %v2884
        %v2886 = vmul.f32 %v2881, %v2885
        %v2887 = vpack.c.bf16 %v2886, %v2886
        %2888 = vmatpush.bf16.msra.mxu0 %v1499
        %2889 = vmatpush.bf16.msra.mxu0 %v1491
        %2890 = vmatpush.bf16.msra.mxu0 %v1483
        %2891 = vmatpush.bf16.msra.mxu0 %v1475
        %2892 = vmatpush.bf16.msra.mxu0 %v1467
        %2893 = vmatpush.bf16.msra.mxu0 %v1459
        %2894 = vmatpush.bf16.msra.mxu0 %v1451
        %2895 = vmatpush.bf16.msra.mxu0 %v1443
        %2896 = vmatmul.bf16.gmra.mxu0 %v2887
        %v2897 = vpop.f32.mrf.mxu0
        %v2898 = vadd.f32 0.0, %v2897
        %v2899 = vpop.f32.mrf.mxu0
        %2900 = vdwg.mxu0
        %2901 = vmatpush.bf16.msra.mxu0 %v1500
        %2902 = vmatpush.bf16.msra.mxu0 %v1492
        %2903 = vmatpush.bf16.msra.mxu0 %v1484
        %2904 = vmatpush.bf16.msra.mxu0 %v1476
        %2905 = vmatpush.bf16.msra.mxu0 %v1468
        %2906 = vmatpush.bf16.msra.mxu0 %v1460
        %2907 = vmatpush.bf16.msra.mxu0 %v1452
        %2908 = vmatpush.bf16.msra.mxu0 %v1444
        %2909 = vmatmul.bf16.gmra.mxu0 %v2887
        %v2910 = vpop.f32.mrf.mxu0
        %v2911 = vadd.f32 0.0, %v2910
        %v2912 = vpop.f32.mrf.mxu0
        %2913 = vdwg.mxu0
        %2914 = vmatpush.bf16.msra.mxu0 %v1501
        %2915 = vmatpush.bf16.msra.mxu0 %v1493
        %2916 = vmatpush.bf16.msra.mxu0 %v1485
        %2917 = vmatpush.bf16.msra.mxu0 %v1477
        %2918 = vmatpush.bf16.msra.mxu0 %v1469
        %2919 = vmatpush.bf16.msra.mxu0 %v1461
        %2920 = vmatpush.bf16.msra.mxu0 %v1453
        %2921 = vmatpush.bf16.msra.mxu0 %v1445
        %2922 = vmatmul.bf16.gmra.mxu0 %v2887
        %v2923 = vpop.f32.mrf.mxu0
        %v2924 = vadd.f32 0.0, %v2923
        %v2925 = vpop.f32.mrf.mxu0
        %2926 = vdwg.mxu0
        %2927 = vmatpush.bf16.msra.mxu0 %v1502
        %2928 = vmatpush.bf16.msra.mxu0 %v1494
        %2929 = vmatpush.bf16.msra.mxu0 %v1486
        %2930 = vmatpush.bf16.msra.mxu0 %v1478
        %2931 = vmatpush.bf16.msra.mxu0 %v1470
        %2932 = vmatpush.bf16.msra.mxu0 %v1462
        %2933 = vmatpush.bf16.msra.mxu0 %v1454
        %2934 = vmatpush.bf16.msra.mxu0 %v1446
        %2935 = vmatmul.bf16.gmra.mxu0 %v2887
        %v2936 = vpop.f32.mrf.mxu0
        %v2937 = vadd.f32 0.0, %v2936
        %v2938 = vpop.f32.mrf.mxu0
        %2939 = vdwg.mxu0
        %2940 = vmatpush.bf16.msra.mxu0 %v1503
        %2941 = vmatpush.bf16.msra.mxu0 %v1495
        %2942 = vmatpush.bf16.msra.mxu0 %v1487
        %2943 = vmatpush.bf16.msra.mxu0 %v1479
        %2944 = vmatpush.bf16.msra.mxu0 %v1471
        %2945 = vmatpush.bf16.msra.mxu0 %v1463
        %2946 = vmatpush.bf16.msra.mxu0 %v1455
        %2947 = vmatpush.bf16.msra.mxu0 %v1447
        %2948 = vmatmul.bf16.gmra.mxu0 %v2887
        %v2949 = vpop.f32.mrf.mxu0
        %v2950 = vadd.f32 0.0, %v2949
        %v2951 = vpop.f32.mrf.mxu0
        %2952 = vdwg.mxu0
        %2953 = vmatpush.bf16.msra.mxu0 %v1504
        %2954 = vmatpush.bf16.msra.mxu0 %v1496
        %2955 = vmatpush.bf16.msra.mxu0 %v1488
        %2956 = vmatpush.bf16.msra.mxu0 %v1480
        %2957 = vmatpush.bf16.msra.mxu0 %v1472
        %2958 = vmatpush.bf16.msra.mxu0 %v1464
        %2959 = vmatpush.bf16.msra.mxu0 %v1456
        %2960 = vmatpush.bf16.msra.mxu0 %v1448
        %2961 = vmatmul.bf16.gmra.mxu0 %v2887
        %v2962 = vpop.f32.mrf.mxu0
        %v2963 = vadd.f32 0.0, %v2962
        %v2964 = vpop.f32.mrf.mxu0
        %2965 = vdwg.mxu0
        %2966 = vmatpush.bf16.msra.mxu0 %v1505
        %2967 = vmatpush.bf16.msra.mxu0 %v1497
        %2968 = vmatpush.bf16.msra.mxu0 %v1489
        %2969 = vmatpush.bf16.msra.mxu0 %v1481
        %2970 = vmatpush.bf16.msra.mxu0 %v1473
        %2971 = vmatpush.bf16.msra.mxu0 %v1465
        %2972 = vmatpush.bf16.msra.mxu0 %v1457
        %2973 = vmatpush.bf16.msra.mxu0 %v1449
        %2974 = vmatmul.bf16.gmra.mxu0 %v2887
        %v2975 = vpop.f32.mrf.mxu0
        %v2976 = vadd.f32 0.0, %v2975
        %v2977 = vpop.f32.mrf.mxu0
        %2978 = vdwg.mxu0
        %2979 = vmatpush.bf16.msra.mxu0 %v1506
        %2980 = vmatpush.bf16.msra.mxu0 %v1498
        %2981 = vmatpush.bf16.msra.mxu0 %v1490
        %2982 = vmatpush.bf16.msra.mxu0 %v1482
        %2983 = vmatpush.bf16.msra.mxu0 %v1474
        %2984 = vmatpush.bf16.msra.mxu0 %v1466
        %2985 = vmatpush.bf16.msra.mxu0 %v1458
        %2986 = vmatpush.bf16.msra.mxu0 %v1450
        %2987 = vmatmul.bf16.gmra.mxu0 %v2887
        %v2988 = vpop.f32.mrf.mxu0
        %v2989 = vadd.f32 0.0, %v2988
        %v2990 = vpop.f32.mrf.mxu0
        %2991 = vdwg.mxu0
        %v2992 = vadd.f32 %v2950, %v2773
        %v2993 = vadd.f32 %v2963, %v2786
        %v2994 = vadd.f32 %v2976, %v2799
        %v2995 = vadd.f32 %v2989, %v2812
        %v2996 = vadd.f32 %v2992, %v947
        %v2997 = vadd.f32 %v2993, %v948
        %v2998 = vadd.f32 %v2994, %v949
        %v2999 = vadd.f32 %v2995, %v950
        %v3000 = vxor.u32 %v2996, 2147483648
        %v3001 = vmul.f32 %v3000, 1.442695
        %v3002 = vpow.pop %v3001
        %v3003 = vadd.f32 %v3002, 1.0
        %v3004 = vrcp.pop %v3003
        %v3005 = vmul.f32 %v3003, %v3004
        %v3006 = vsub.f32 1.0, %v3005
        %v3007 = vmul.f32 %v3004, %v3006
        %v3008 = vadd.f32 %v3004, %v3007
        %vm3009 = vweird.f32 %v3003
        %vm3010 = vweird.f32 %v3004
        %vm3011 = vmor %vm3009, %vm3010
        %v3012 = vsel %vm3011, %v3004, %v3008
        %v3013 = vand.u32 2147483647, %v3003
        %vm3014 = vcmp.eq.f32.partialorder %v3013, 8.507059e+37
        %v3015 = vand.u32 %v3003, 2147483648
        %v3016 = vor.u32 1.1754944e-38, %v3015
        %v3017 = vsel %vm3014, %v3016, %v3012
        %v3018 = vmul.f32 1.0, %v3017
        %v3019 = vxor.u32 %v2997, 2147483648
        %v3020 = vmul.f32 %v3019, 1.442695
        %v3021 = vpow.pop %v3020
        %v3022 = vadd.f32 %v3021, 1.0
        %v3023 = vrcp.pop %v3022
        %v3024 = vmul.f32 %v3022, %v3023
        %v3025 = vsub.f32 1.0, %v3024
        %v3026 = vmul.f32 %v3023, %v3025
        %v3027 = vadd.f32 %v3023, %v3026
        %vm3028 = vweird.f32 %v3022
        %vm3029 = vweird.f32 %v3023
        %vm3030 = vmor %vm3028, %vm3029
        %v3031 = vsel %vm3030, %v3023, %v3027
        %v3032 = vand.u32 2147483647, %v3022
        %vm3033 = vcmp.eq.f32.partialorder %v3032, 8.507059e+37
        %v3034 = vand.u32 %v3022, 2147483648
        %v3035 = vor.u32 1.1754944e-38, %v3034
        %v3036 = vsel %vm3033, %v3035, %v3031
        %v3037 = vmul.f32 1.0, %v3036
        %v3038 = vtanh.pop %v2998
        %v3039 = vxor.u32 %v2999, 2147483648
        %v3040 = vmul.f32 %v3039, 1.442695
        %v3041 = vpow.pop %v3040
        %v3042 = vadd.f32 %v3041, 1.0
        %v3043 = vrcp.pop %v3042
        %v3044 = vmul.f32 %v3042, %v3043
        %v3045 = vsub.f32 1.0, %v3044
        %v3046 = vmul.f32 %v3043, %v3045
        %v3047 = vadd.f32 %v3043, %v3046
        %vm3048 = vweird.f32 %v3042
        %vm3049 = vweird.f32 %v3043
        %vm3050 = vmor %vm3048, %vm3049
        %v3051 = vsel %vm3050, %v3043, %v3047
        %v3052 = vand.u32 2147483647, %v3042
        %vm3053 = vcmp.eq.f32.partialorder %v3052, 8.507059e+37
        %v3054 = vand.u32 %v3042, 2147483648
        %v3055 = vor.u32 1.1754944e-38, %v3054
        %v3056 = vsel %vm3053, %v3055, %v3051
        %v3057 = vmul.f32 1.0, %v3056
        %v3058 = vmul.f32 %v3037, %v2744
        %v3059 = vmul.f32 %v3018, %v3038
        %v3060 = vadd.f32 %v3058, %v3059
        %v3061 = vtanh.pop %v3060
        %v3062 = vmul.f32 %v3057, %v3061
        %v3063 = vpack.c.bf16 %v3062, %v3062
        %3064 = vmatpush.bf16.msra.mxu0 %v1786
        %3065 = vmatpush.bf16.msra.mxu0 %v1785
        %3066 = vmatpush.bf16.msra.mxu0 %v1784
        %3067 = vmatpush.bf16.msra.mxu0 %v1783
        %3068 = vmatpush.bf16.msra.mxu0 %v1782
        %3069 = vmatpush.bf16.msra.mxu0 %v1781
        %3070 = vmatpush.bf16.msra.mxu0 %v1780
        %3071 = vmatpush.bf16.msra.mxu0 %v1779
        %3072 = vmatmul.bf16.gmra.mxu0 %v3063
        %v3073 = vpop.f32.mrf.mxu0
        %v3074 = vadd.f32 %v957, %v3073
        %v3075 = vpop.f32.mrf.mxu0
        %3076 = vdwg.mxu0
        %s3077 = scalar_lea.vmem %s452, 32 [#allocation19]
        %3078 = vst [vmem:[%s3077] sm:$0xff] %v3074
        %3079 = vmatpush.bf16.msra.mxu0 %v1091
        %3080 = vmatpush.bf16.msra.mxu0 %v1087
        %3081 = vmatpush.bf16.msra.mxu0 %v1083
        %3082 = vmatpush.bf16.msra.mxu0 %v1079
        %3083 = vmatpush.bf16.msra.mxu0 %v1075
        %3084 = vmatpush.bf16.msra.mxu0 %v1071
        %3085 = vmatpush.bf16.msra.mxu0 %v1067
        %3086 = vmatpush.bf16.msra.mxu0 %v1063
        %3087 = vmatmul.bf16.gmra.mxu0 %v3063
        %v3088 = vpop.f32.mrf.mxu0
        %v3089 = vadd.f32 0.0, %v3088
        %v3090 = vpop.f32.mrf.mxu0
        %3091 = vdwg.mxu0
        %3092 = vmatpush.bf16.msra.mxu0 %v1092
        %3093 = vmatpush.bf16.msra.mxu0 %v1088
        %3094 = vmatpush.bf16.msra.mxu0 %v1084
        %3095 = vmatpush.bf16.msra.mxu0 %v1080
        %3096 = vmatpush.bf16.msra.mxu0 %v1076
        %3097 = vmatpush.bf16.msra.mxu0 %v1072
        %3098 = vmatpush.bf16.msra.mxu0 %v1068
        %3099 = vmatpush.bf16.msra.mxu0 %v1064
        %3100 = vmatmul.bf16.gmra.mxu0 %v3063
        %v3101 = vpop.f32.mrf.mxu0
        %v3102 = vadd.f32 0.0, %v3101
        %v3103 = vpop.f32.mrf.mxu0
        %3104 = vdwg.mxu0
        %3105 = vmatpush.bf16.msra.mxu0 %v1093
        %3106 = vmatpush.bf16.msra.mxu0 %v1089
        %3107 = vmatpush.bf16.msra.mxu0 %v1085
        %3108 = vmatpush.bf16.msra.mxu0 %v1081
        %3109 = vmatpush.bf16.msra.mxu0 %v1077
        %3110 = vmatpush.bf16.msra.mxu0 %v1073
        %3111 = vmatpush.bf16.msra.mxu0 %v1069
        %3112 = vmatpush.bf16.msra.mxu0 %v1065
        %3113 = vmatmul.bf16.gmra.mxu0 %v3063
        %v3114 = vpop.f32.mrf.mxu0
        %v3115 = vadd.f32 0.0, %v3114
        %v3116 = vpop.f32.mrf.mxu0
        %3117 = vdwg.mxu0
        %3118 = vmatpush.bf16.msra.mxu0 %v1094
        %3119 = vmatpush.bf16.msra.mxu0 %v1090
        %3120 = vmatpush.bf16.msra.mxu0 %v1086
        %3121 = vmatpush.bf16.msra.mxu0 %v1082
        %3122 = vmatpush.bf16.msra.mxu0 %v1078
        %3123 = vmatpush.bf16.msra.mxu0 %v1074
        %3124 = vmatpush.bf16.msra.mxu0 %v1070
        %3125 = vmatpush.bf16.msra.mxu0 %v1066
        %3126 = vmatmul.bf16.gmra.mxu0 %v3063
        %v3127 = vpop.f32.mrf.mxu0
        %v3128 = vadd.f32 0.0, %v3127
        %v3129 = vpop.f32.mrf.mxu0
        %3130 = vdwg.mxu0
        %s3131 = scalar_lea.vmem [#allocation7], 160
        %v3132 = vld [vmem:[%s3131] sm:$0xff]
        %v3133 = vld [vmem:[%s3131 + $0x8] sm:$0xff]
        %v3134 = vld [vmem:[%s3131 + $0x10] sm:$0xff]
        %v3135 = vld [vmem:[%s3131 + $0x18] sm:$0xff]
        %v3136 = vadd.f32 %v3132, %v2898
        %v3137 = vadd.f32 %v3133, %v2911
        %v3138 = vadd.f32 %v3134, %v2924
        %v3139 = vadd.f32 %v3135, %v2937
        %v3140 = vxor.u32 %v3136, 2147483648
        %v3141 = vmul.f32 %v3140, 1.442695
        %v3142 = vpow.pop %v3141
        %v3143 = vadd.f32 %v3142, 1.0
        %v3144 = vrcp.pop %v3143
        %v3145 = vmul.f32 %v3143, %v3144
        %v3146 = vsub.f32 1.0, %v3145
        %v3147 = vmul.f32 %v3144, %v3146
        %v3148 = vadd.f32 %v3144, %v3147
        %vm3149 = vweird.f32 %v3143
        %vm3150 = vweird.f32 %v3144
        %vm3151 = vmor %vm3149, %vm3150
        %v3152 = vsel %vm3151, %v3144, %v3148
        %v3153 = vand.u32 2147483647, %v3143
        %vm3154 = vcmp.eq.f32.partialorder %v3153, 8.507059e+37
        %v3155 = vand.u32 %v3143, 2147483648
        %v3156 = vor.u32 1.1754944e-38, %v3155
        %v3157 = vsel %vm3154, %v3156, %v3152
        %v3158 = vmul.f32 1.0, %v3157
        %v3159 = vxor.u32 %v3137, 2147483648
        %v3160 = vmul.f32 %v3159, 1.442695
        %v3161 = vpow.pop %v3160
        %v3162 = vadd.f32 %v3161, 1.0
        %v3163 = vrcp.pop %v3162
        %v3164 = vmul.f32 %v3162, %v3163
        %v3165 = vsub.f32 1.0, %v3164
        %v3166 = vmul.f32 %v3163, %v3165
        %v3167 = vadd.f32 %v3163, %v3166
        %vm3168 = vweird.f32 %v3162
        %vm3169 = vweird.f32 %v3163
        %vm3170 = vmor %vm3168, %vm3169
        %v3171 = vsel %vm3170, %v3163, %v3167
        %v3172 = vand.u32 2147483647, %v3162
        %vm3173 = vcmp.eq.f32.partialorder %v3172, 8.507059e+37
        %v3174 = vand.u32 %v3162, 2147483648
        %v3175 = vor.u32 1.1754944e-38, %v3174
        %v3176 = vsel %vm3173, %v3175, %v3171
        %v3177 = vmul.f32 1.0, %v3176
        %v3178 = vtanh.pop %v3138
        %v3179 = vxor.u32 %v3139, 2147483648
        %v3180 = vmul.f32 %v3179, 1.442695
        %v3181 = vpow.pop %v3180
        %v3182 = vadd.f32 %v3181, 1.0
        %v3183 = vrcp.pop %v3182
        %v3184 = vmul.f32 %v3182, %v3183
        %v3185 = vsub.f32 1.0, %v3184
        %v3186 = vmul.f32 %v3183, %v3185
        %v3187 = vadd.f32 %v3183, %v3186
        %vm3188 = vweird.f32 %v3182
        %vm3189 = vweird.f32 %v3183
        %vm3190 = vmor %vm3188, %vm3189
        %v3191 = vsel %vm3190, %v3183, %v3187
        %v3192 = vand.u32 2147483647, %v3182
        %vm3193 = vcmp.eq.f32.partialorder %v3192, 8.507059e+37
        %v3194 = vand.u32 %v3182, 2147483648
        %v3195 = vor.u32 1.1754944e-38, %v3194
        %v3196 = vsel %vm3193, %v3195, %v3191
        %v3197 = vmul.f32 1.0, %v3196
        %v3198 = vmul.f32 %v3177, %v2884
        %v3199 = vmul.f32 %v3158, %v3178
        %v3200 = vadd.f32 %v3198, %v3199
        %v3201 = vtanh.pop %v3200
        %v3202 = vmul.f32 %v3197, %v3201
        %v3203 = vpack.c.bf16 %v3202, %v3202
        %3204 = vmatpush.bf16.msra.mxu0 %v1499
        %3205 = vmatpush.bf16.msra.mxu0 %v1491
        %3206 = vmatpush.bf16.msra.mxu0 %v1483
        %3207 = vmatpush.bf16.msra.mxu0 %v1475
        %3208 = vmatpush.bf16.msra.mxu0 %v1467
        %3209 = vmatpush.bf16.msra.mxu0 %v1459
        %3210 = vmatpush.bf16.msra.mxu0 %v1451
        %3211 = vmatpush.bf16.msra.mxu0 %v1443
        %3212 = vmatmul.bf16.gmra.mxu0 %v3203
        %v3213 = vpop.f32.mrf.mxu0
        %v3214 = vadd.f32 0.0, %v3213
        %v3215 = vpop.f32.mrf.mxu0
        %3216 = vdwg.mxu0
        %3217 = vmatpush.bf16.msra.mxu0 %v1500
        %3218 = vmatpush.bf16.msra.mxu0 %v1492
        %3219 = vmatpush.bf16.msra.mxu0 %v1484
        %3220 = vmatpush.bf16.msra.mxu0 %v1476
        %3221 = vmatpush.bf16.msra.mxu0 %v1468
        %3222 = vmatpush.bf16.msra.mxu0 %v1460
        %3223 = vmatpush.bf16.msra.mxu0 %v1452
        %3224 = vmatpush.bf16.msra.mxu0 %v1444
        %3225 = vmatmul.bf16.gmra.mxu0 %v3203
        %v3226 = vpop.f32.mrf.mxu0
        %v3227 = vadd.f32 0.0, %v3226
        %v3228 = vpop.f32.mrf.mxu0
        %3229 = vdwg.mxu0
        %3230 = vmatpush.bf16.msra.mxu0 %v1501
        %3231 = vmatpush.bf16.msra.mxu0 %v1493
        %3232 = vmatpush.bf16.msra.mxu0 %v1485
        %3233 = vmatpush.bf16.msra.mxu0 %v1477
        %3234 = vmatpush.bf16.msra.mxu0 %v1469
        %3235 = vmatpush.bf16.msra.mxu0 %v1461
        %3236 = vmatpush.bf16.msra.mxu0 %v1453
        %3237 = vmatpush.bf16.msra.mxu0 %v1445
        %3238 = vmatmul.bf16.gmra.mxu0 %v3203
        %v3239 = vpop.f32.mrf.mxu0
        %v3240 = vadd.f32 0.0, %v3239
        %v3241 = vpop.f32.mrf.mxu0
        %3242 = vdwg.mxu0
        %3243 = vmatpush.bf16.msra.mxu0 %v1502
        %3244 = vmatpush.bf16.msra.mxu0 %v1494
        %3245 = vmatpush.bf16.msra.mxu0 %v1486
        %3246 = vmatpush.bf16.msra.mxu0 %v1478
        %3247 = vmatpush.bf16.msra.mxu0 %v1470
        %3248 = vmatpush.bf16.msra.mxu0 %v1462
        %3249 = vmatpush.bf16.msra.mxu0 %v1454
        %3250 = vmatpush.bf16.msra.mxu0 %v1446
        %3251 = vmatmul.bf16.gmra.mxu0 %v3203
        %v3252 = vpop.f32.mrf.mxu0
        %v3253 = vadd.f32 0.0, %v3252
        %v3254 = vpop.f32.mrf.mxu0
        %3255 = vdwg.mxu0
        %3256 = vmatpush.bf16.msra.mxu0 %v1503
        %3257 = vmatpush.bf16.msra.mxu0 %v1495
        %3258 = vmatpush.bf16.msra.mxu0 %v1487
        %3259 = vmatpush.bf16.msra.mxu0 %v1479
        %3260 = vmatpush.bf16.msra.mxu0 %v1471
        %3261 = vmatpush.bf16.msra.mxu0 %v1463
        %3262 = vmatpush.bf16.msra.mxu0 %v1455
        %3263 = vmatpush.bf16.msra.mxu0 %v1447
        %3264 = vmatmul.bf16.gmra.mxu0 %v3203
        %v3265 = vpop.f32.mrf.mxu0
        %v3266 = vadd.f32 0.0, %v3265
        %v3267 = vpop.f32.mrf.mxu0
        %3268 = vdwg.mxu0
        %3269 = vmatpush.bf16.msra.mxu0 %v1504
        %3270 = vmatpush.bf16.msra.mxu0 %v1496
        %3271 = vmatpush.bf16.msra.mxu0 %v1488
        %3272 = vmatpush.bf16.msra.mxu0 %v1480
        %3273 = vmatpush.bf16.msra.mxu0 %v1472
        %3274 = vmatpush.bf16.msra.mxu0 %v1464
        %3275 = vmatpush.bf16.msra.mxu0 %v1456
        %3276 = vmatpush.bf16.msra.mxu0 %v1448
        %3277 = vmatmul.bf16.gmra.mxu0 %v3203
        %v3278 = vpop.f32.mrf.mxu0
        %v3279 = vadd.f32 0.0, %v3278
        %v3280 = vpop.f32.mrf.mxu0
        %3281 = vdwg.mxu0
        %3282 = vmatpush.bf16.msra.mxu0 %v1505
        %3283 = vmatpush.bf16.msra.mxu0 %v1497
        %3284 = vmatpush.bf16.msra.mxu0 %v1489
        %3285 = vmatpush.bf16.msra.mxu0 %v1481
        %3286 = vmatpush.bf16.msra.mxu0 %v1473
        %3287 = vmatpush.bf16.msra.mxu0 %v1465
        %3288 = vmatpush.bf16.msra.mxu0 %v1457
        %3289 = vmatpush.bf16.msra.mxu0 %v1449
        %3290 = vmatmul.bf16.gmra.mxu0 %v3203
        %v3291 = vpop.f32.mrf.mxu0
        %v3292 = vadd.f32 0.0, %v3291
        %v3293 = vpop.f32.mrf.mxu0
        %3294 = vdwg.mxu0
        %3295 = vmatpush.bf16.msra.mxu0 %v1506
        %3296 = vmatpush.bf16.msra.mxu0 %v1498
        %3297 = vmatpush.bf16.msra.mxu0 %v1490
        %3298 = vmatpush.bf16.msra.mxu0 %v1482
        %3299 = vmatpush.bf16.msra.mxu0 %v1474
        %3300 = vmatpush.bf16.msra.mxu0 %v1466
        %3301 = vmatpush.bf16.msra.mxu0 %v1458
        %3302 = vmatpush.bf16.msra.mxu0 %v1450
        %3303 = vmatmul.bf16.gmra.mxu0 %v3203
        %v3304 = vpop.f32.mrf.mxu0
        %v3305 = vadd.f32 0.0, %v3304
        %v3306 = vpop.f32.mrf.mxu0
        %3307 = vdwg.mxu0
        %v3308 = vadd.f32 %v3266, %v3089
        %v3309 = vadd.f32 %v3279, %v3102
        %v3310 = vadd.f32 %v3292, %v3115
        %v3311 = vadd.f32 %v3305, %v3128
        %v3312 = vadd.f32 %v3308, %v947
        %v3313 = vadd.f32 %v3309, %v948
        %v3314 = vadd.f32 %v3310, %v949
        %v3315 = vadd.f32 %v3311, %v950
        %v3316 = vxor.u32 %v3312, 2147483648
        %v3317 = vmul.f32 %v3316, 1.442695
        %v3318 = vpow.pop %v3317
        %v3319 = vadd.f32 %v3318, 1.0
        %v3320 = vrcp.pop %v3319
        %v3321 = vmul.f32 %v3319, %v3320
        %v3322 = vsub.f32 1.0, %v3321
        %v3323 = vmul.f32 %v3320, %v3322
        %v3324 = vadd.f32 %v3320, %v3323
        %vm3325 = vweird.f32 %v3319
        %vm3326 = vweird.f32 %v3320
        %vm3327 = vmor %vm3325, %vm3326
        %v3328 = vsel %vm3327, %v3320, %v3324
        %v3329 = vand.u32 2147483647, %v3319
        %vm3330 = vcmp.eq.f32.partialorder %v3329, 8.507059e+37
        %v3331 = vand.u32 %v3319, 2147483648
        %v3332 = vor.u32 1.1754944e-38, %v3331
        %v3333 = vsel %vm3330, %v3332, %v3328
        %v3334 = vmul.f32 1.0, %v3333
        %v3335 = vxor.u32 %v3313, 2147483648
        %v3336 = vmul.f32 %v3335, 1.442695
        %v3337 = vpow.pop %v3336
        %v3338 = vadd.f32 %v3337, 1.0
        %v3339 = vrcp.pop %v3338
        %v3340 = vmul.f32 %v3338, %v3339
        %v3341 = vsub.f32 1.0, %v3340
        %v3342 = vmul.f32 %v3339, %v3341
        %v3343 = vadd.f32 %v3339, %v3342
        %vm3344 = vweird.f32 %v3338
        %vm3345 = vweird.f32 %v3339
        %vm3346 = vmor %vm3344, %vm3345
        %v3347 = vsel %vm3346, %v3339, %v3343
        %v3348 = vand.u32 2147483647, %v3338
        %vm3349 = vcmp.eq.f32.partialorder %v3348, 8.507059e+37
        %v3350 = vand.u32 %v3338, 2147483648
        %v3351 = vor.u32 1.1754944e-38, %v3350
        %v3352 = vsel %vm3349, %v3351, %v3347
        %v3353 = vmul.f32 1.0, %v3352
        %v3354 = vtanh.pop %v3314
        %v3355 = vxor.u32 %v3315, 2147483648
        %v3356 = vmul.f32 %v3355, 1.442695
        %v3357 = vpow.pop %v3356
        %v3358 = vadd.f32 %v3357, 1.0
        %v3359 = vrcp.pop %v3358
        %v3360 = vmul.f32 %v3358, %v3359
        %v3361 = vsub.f32 1.0, %v3360
        %v3362 = vmul.f32 %v3359, %v3361
        %v3363 = vadd.f32 %v3359, %v3362
        %vm3364 = vweird.f32 %v3358
        %vm3365 = vweird.f32 %v3359
        %vm3366 = vmor %vm3364, %vm3365
        %v3367 = vsel %vm3366, %v3359, %v3363
        %v3368 = vand.u32 2147483647, %v3358
        %vm3369 = vcmp.eq.f32.partialorder %v3368, 8.507059e+37
        %v3370 = vand.u32 %v3358, 2147483648
        %v3371 = vor.u32 1.1754944e-38, %v3370
        %v3372 = vsel %vm3369, %v3371, %v3367
        %v3373 = vmul.f32 1.0, %v3372
        %v3374 = vmul.f32 %v3353, %v3060
        %v3375 = vmul.f32 %v3334, %v3354
        %v3376 = vadd.f32 %v3374, %v3375
        %v3377 = vtanh.pop %v3376
        %v3378 = vmul.f32 %v3373, %v3377
        %v3379 = vpack.c.bf16 %v3378, %v3378
        %3380 = vmatpush.bf16.msra.mxu0 %v1786
        %3381 = vmatpush.bf16.msra.mxu0 %v1785
        %3382 = vmatpush.bf16.msra.mxu0 %v1784
        %3383 = vmatpush.bf16.msra.mxu0 %v1783
        %3384 = vmatpush.bf16.msra.mxu0 %v1782
        %3385 = vmatpush.bf16.msra.mxu0 %v1781
        %3386 = vmatpush.bf16.msra.mxu0 %v1780
        %3387 = vmatpush.bf16.msra.mxu0 %v1779
        %3388 = vmatmul.bf16.gmra.mxu0 %v3379
        %v3389 = vpop.f32.mrf.mxu0
        %v3390 = vadd.f32 %v957, %v3389
        %v3391 = vpop.f32.mrf.mxu0
        %3392 = vdwg.mxu0
        %s3393 = scalar_lea.vmem %s452, 40 [#allocation19]
        %3394 = vst [vmem:[%s3393] sm:$0xff] %v3390
        %3395 = vmatpush.bf16.msra.mxu0 %v1091
        %3396 = vmatpush.bf16.msra.mxu0 %v1087
        %3397 = vmatpush.bf16.msra.mxu0 %v1083
        %3398 = vmatpush.bf16.msra.mxu0 %v1079
        %3399 = vmatpush.bf16.msra.mxu0 %v1075
        %3400 = vmatpush.bf16.msra.mxu0 %v1071
        %3401 = vmatpush.bf16.msra.mxu0 %v1067
        %3402 = vmatpush.bf16.msra.mxu0 %v1063
        %3403 = vmatmul.bf16.gmra.mxu0 %v3379
        %v3404 = vpop.f32.mrf.mxu0
        %v3405 = vadd.f32 0.0, %v3404
        %v3406 = vpop.f32.mrf.mxu0
        %3407 = vdwg.mxu0
        %3408 = vmatpush.bf16.msra.mxu0 %v1092
        %3409 = vmatpush.bf16.msra.mxu0 %v1088
        %3410 = vmatpush.bf16.msra.mxu0 %v1084
        %3411 = vmatpush.bf16.msra.mxu0 %v1080
        %3412 = vmatpush.bf16.msra.mxu0 %v1076
        %3413 = vmatpush.bf16.msra.mxu0 %v1072
        %3414 = vmatpush.bf16.msra.mxu0 %v1068
        %3415 = vmatpush.bf16.msra.mxu0 %v1064
        %3416 = vmatmul.bf16.gmra.mxu0 %v3379
        %v3417 = vpop.f32.mrf.mxu0
        %v3418 = vadd.f32 0.0, %v3417
        %v3419 = vpop.f32.mrf.mxu0
        %3420 = vdwg.mxu0
        %3421 = vmatpush.bf16.msra.mxu0 %v1093
        %3422 = vmatpush.bf16.msra.mxu0 %v1089
        %3423 = vmatpush.bf16.msra.mxu0 %v1085
        %3424 = vmatpush.bf16.msra.mxu0 %v1081
        %3425 = vmatpush.bf16.msra.mxu0 %v1077
        %3426 = vmatpush.bf16.msra.mxu0 %v1073
        %3427 = vmatpush.bf16.msra.mxu0 %v1069
        %3428 = vmatpush.bf16.msra.mxu0 %v1065
        %3429 = vmatmul.bf16.gmra.mxu0 %v3379
        %v3430 = vpop.f32.mrf.mxu0
        %v3431 = vadd.f32 0.0, %v3430
        %v3432 = vpop.f32.mrf.mxu0
        %3433 = vdwg.mxu0
        %3434 = vmatpush.bf16.msra.mxu0 %v1094
        %3435 = vmatpush.bf16.msra.mxu0 %v1090
        %3436 = vmatpush.bf16.msra.mxu0 %v1086
        %3437 = vmatpush.bf16.msra.mxu0 %v1082
        %3438 = vmatpush.bf16.msra.mxu0 %v1078
        %3439 = vmatpush.bf16.msra.mxu0 %v1074
        %3440 = vmatpush.bf16.msra.mxu0 %v1070
        %3441 = vmatpush.bf16.msra.mxu0 %v1066
        %3442 = vmatmul.bf16.gmra.mxu0 %v3379
        %v3443 = vpop.f32.mrf.mxu0
        %v3444 = vadd.f32 0.0, %v3443
        %v3445 = vpop.f32.mrf.mxu0
        %3446 = vdwg.mxu0
        %s3447 = scalar_lea.vmem [#allocation7], 192
        %v3448 = vld [vmem:[%s3447] sm:$0xff]
        %v3449 = vld [vmem:[%s3447 + $0x8] sm:$0xff]
        %v3450 = vld [vmem:[%s3447 + $0x10] sm:$0xff]
        %v3451 = vld [vmem:[%s3447 + $0x18] sm:$0xff]
        %v3452 = vadd.f32 %v3448, %v3214
        %v3453 = vadd.f32 %v3449, %v3227
        %v3454 = vadd.f32 %v3450, %v3240
        %v3455 = vadd.f32 %v3451, %v3253
        %v3456 = vxor.u32 %v3452, 2147483648
        %v3457 = vmul.f32 %v3456, 1.442695
        %v3458 = vpow.pop %v3457
        %v3459 = vadd.f32 %v3458, 1.0
        %v3460 = vrcp.pop %v3459
        %v3461 = vmul.f32 %v3459, %v3460
        %v3462 = vsub.f32 1.0, %v3461
        %v3463 = vmul.f32 %v3460, %v3462
        %v3464 = vadd.f32 %v3460, %v3463
        %vm3465 = vweird.f32 %v3459
        %vm3466 = vweird.f32 %v3460
        %vm3467 = vmor %vm3465, %vm3466
        %v3468 = vsel %vm3467, %v3460, %v3464
        %v3469 = vand.u32 2147483647, %v3459
        %vm3470 = vcmp.eq.f32.partialorder %v3469, 8.507059e+37
        %v3471 = vand.u32 %v3459, 2147483648
        %v3472 = vor.u32 1.1754944e-38, %v3471
        %v3473 = vsel %vm3470, %v3472, %v3468
        %v3474 = vmul.f32 1.0, %v3473
        %v3475 = vxor.u32 %v3453, 2147483648
        %v3476 = vmul.f32 %v3475, 1.442695
        %v3477 = vpow.pop %v3476
        %v3478 = vadd.f32 %v3477, 1.0
        %v3479 = vrcp.pop %v3478
        %v3480 = vmul.f32 %v3478, %v3479
        %v3481 = vsub.f32 1.0, %v3480
        %v3482 = vmul.f32 %v3479, %v3481
        %v3483 = vadd.f32 %v3479, %v3482
        %vm3484 = vweird.f32 %v3478
        %vm3485 = vweird.f32 %v3479
        %vm3486 = vmor %vm3484, %vm3485
        %v3487 = vsel %vm3486, %v3479, %v3483
        %v3488 = vand.u32 2147483647, %v3478
        %vm3489 = vcmp.eq.f32.partialorder %v3488, 8.507059e+37
        %v3490 = vand.u32 %v3478, 2147483648
        %v3491 = vor.u32 1.1754944e-38, %v3490
        %v3492 = vsel %vm3489, %v3491, %v3487
        %v3493 = vmul.f32 1.0, %v3492
        %v3494 = vtanh.pop %v3454
        %v3495 = vxor.u32 %v3455, 2147483648
        %v3496 = vmul.f32 %v3495, 1.442695
        %v3497 = vpow.pop %v3496
        %v3498 = vadd.f32 %v3497, 1.0
        %v3499 = vrcp.pop %v3498
        %v3500 = vmul.f32 %v3498, %v3499
        %v3501 = vsub.f32 1.0, %v3500
        %v3502 = vmul.f32 %v3499, %v3501
        %v3503 = vadd.f32 %v3499, %v3502
        %vm3504 = vweird.f32 %v3498
        %vm3505 = vweird.f32 %v3499
        %vm3506 = vmor %vm3504, %vm3505
        %v3507 = vsel %vm3506, %v3499, %v3503
        %v3508 = vand.u32 2147483647, %v3498
        %vm3509 = vcmp.eq.f32.partialorder %v3508, 8.507059e+37
        %v3510 = vand.u32 %v3498, 2147483648
        %v3511 = vor.u32 1.1754944e-38, %v3510
        %v3512 = vsel %vm3509, %v3511, %v3507
        %v3513 = vmul.f32 1.0, %v3512
        %v3514 = vmul.f32 %v3493, %v3200
        %v3515 = vmul.f32 %v3474, %v3494
        %v3516 = vadd.f32 %v3514, %v3515
        %v3517 = vtanh.pop %v3516
        %v3518 = vmul.f32 %v3513, %v3517
        %v3519 = vpack.c.bf16 %v3518, %v3518
        %3520 = vmatpush.bf16.msra.mxu0 %v1499
        %3521 = vmatpush.bf16.msra.mxu0 %v1491
        %3522 = vmatpush.bf16.msra.mxu0 %v1483
        %3523 = vmatpush.bf16.msra.mxu0 %v1475
        %3524 = vmatpush.bf16.msra.mxu0 %v1467
        %3525 = vmatpush.bf16.msra.mxu0 %v1459
        %3526 = vmatpush.bf16.msra.mxu0 %v1451
        %3527 = vmatpush.bf16.msra.mxu0 %v1443
        %3528 = vmatmul.bf16.gmra.mxu0 %v3519
        %v3529 = vpop.f32.mrf.mxu0
        %v3530 = vadd.f32 0.0, %v3529
        %v3531 = vpop.f32.mrf.mxu0
        %3532 = vdwg.mxu0
        %3533 = vmatpush.bf16.msra.mxu0 %v1500
        %3534 = vmatpush.bf16.msra.mxu0 %v1492
        %3535 = vmatpush.bf16.msra.mxu0 %v1484
        %3536 = vmatpush.bf16.msra.mxu0 %v1476
        %3537 = vmatpush.bf16.msra.mxu0 %v1468
        %3538 = vmatpush.bf16.msra.mxu0 %v1460
        %3539 = vmatpush.bf16.msra.mxu0 %v1452
        %3540 = vmatpush.bf16.msra.mxu0 %v1444
        %3541 = vmatmul.bf16.gmra.mxu0 %v3519
        %v3542 = vpop.f32.mrf.mxu0
        %v3543 = vadd.f32 0.0, %v3542
        %v3544 = vpop.f32.mrf.mxu0
        %3545 = vdwg.mxu0
        %3546 = vmatpush.bf16.msra.mxu0 %v1501
        %3547 = vmatpush.bf16.msra.mxu0 %v1493
        %3548 = vmatpush.bf16.msra.mxu0 %v1485
        %3549 = vmatpush.bf16.msra.mxu0 %v1477
        %3550 = vmatpush.bf16.msra.mxu0 %v1469
        %3551 = vmatpush.bf16.msra.mxu0 %v1461
        %3552 = vmatpush.bf16.msra.mxu0 %v1453
        %3553 = vmatpush.bf16.msra.mxu0 %v1445
        %3554 = vmatmul.bf16.gmra.mxu0 %v3519
        %v3555 = vpop.f32.mrf.mxu0
        %v3556 = vadd.f32 0.0, %v3555
        %v3557 = vpop.f32.mrf.mxu0
        %3558 = vdwg.mxu0
        %3559 = vmatpush.bf16.msra.mxu0 %v1502
        %3560 = vmatpush.bf16.msra.mxu0 %v1494
        %3561 = vmatpush.bf16.msra.mxu0 %v1486
        %3562 = vmatpush.bf16.msra.mxu0 %v1478
        %3563 = vmatpush.bf16.msra.mxu0 %v1470
        %3564 = vmatpush.bf16.msra.mxu0 %v1462
        %3565 = vmatpush.bf16.msra.mxu0 %v1454
        %3566 = vmatpush.bf16.msra.mxu0 %v1446
        %3567 = vmatmul.bf16.gmra.mxu0 %v3519
        %v3568 = vpop.f32.mrf.mxu0
        %v3569 = vadd.f32 0.0, %v3568
        %v3570 = vpop.f32.mrf.mxu0
        %3571 = vdwg.mxu0
        %3572 = vmatpush.bf16.msra.mxu0 %v1503
        %3573 = vmatpush.bf16.msra.mxu0 %v1495
        %3574 = vmatpush.bf16.msra.mxu0 %v1487
        %3575 = vmatpush.bf16.msra.mxu0 %v1479
        %3576 = vmatpush.bf16.msra.mxu0 %v1471
        %3577 = vmatpush.bf16.msra.mxu0 %v1463
        %3578 = vmatpush.bf16.msra.mxu0 %v1455
        %3579 = vmatpush.bf16.msra.mxu0 %v1447
        %3580 = vmatmul.bf16.gmra.mxu0 %v3519
        %v3581 = vpop.f32.mrf.mxu0
        %v3582 = vadd.f32 0.0, %v3581
        %v3583 = vpop.f32.mrf.mxu0
        %3584 = vdwg.mxu0
        %3585 = vmatpush.bf16.msra.mxu0 %v1504
        %3586 = vmatpush.bf16.msra.mxu0 %v1496
        %3587 = vmatpush.bf16.msra.mxu0 %v1488
        %3588 = vmatpush.bf16.msra.mxu0 %v1480
        %3589 = vmatpush.bf16.msra.mxu0 %v1472
        %3590 = vmatpush.bf16.msra.mxu0 %v1464
        %3591 = vmatpush.bf16.msra.mxu0 %v1456
        %3592 = vmatpush.bf16.msra.mxu0 %v1448
        %3593 = vmatmul.bf16.gmra.mxu0 %v3519
        %v3594 = vpop.f32.mrf.mxu0
        %v3595 = vadd.f32 0.0, %v3594
        %v3596 = vpop.f32.mrf.mxu0
        %3597 = vdwg.mxu0
        %3598 = vmatpush.bf16.msra.mxu0 %v1505
        %3599 = vmatpush.bf16.msra.mxu0 %v1497
        %3600 = vmatpush.bf16.msra.mxu0 %v1489
        %3601 = vmatpush.bf16.msra.mxu0 %v1481
        %3602 = vmatpush.bf16.msra.mxu0 %v1473
        %3603 = vmatpush.bf16.msra.mxu0 %v1465
        %3604 = vmatpush.bf16.msra.mxu0 %v1457
        %3605 = vmatpush.bf16.msra.mxu0 %v1449
        %3606 = vmatmul.bf16.gmra.mxu0 %v3519
        %v3607 = vpop.f32.mrf.mxu0
        %v3608 = vadd.f32 0.0, %v3607
        %v3609 = vpop.f32.mrf.mxu0
        %3610 = vdwg.mxu0
        %3611 = vmatpush.bf16.msra.mxu0 %v1506
        %3612 = vmatpush.bf16.msra.mxu0 %v1498
        %3613 = vmatpush.bf16.msra.mxu0 %v1490
        %3614 = vmatpush.bf16.msra.mxu0 %v1482
        %3615 = vmatpush.bf16.msra.mxu0 %v1474
        %3616 = vmatpush.bf16.msra.mxu0 %v1466
        %3617 = vmatpush.bf16.msra.mxu0 %v1458
        %3618 = vmatpush.bf16.msra.mxu0 %v1450
        %3619 = vmatmul.bf16.gmra.mxu0 %v3519
        %v3620 = vpop.f32.mrf.mxu0
        %v3621 = vadd.f32 0.0, %v3620
        %v3622 = vpop.f32.mrf.mxu0
        %3623 = vdwg.mxu0
        %v3624 = vadd.f32 %v3582, %v3405
        %v3625 = vadd.f32 %v3595, %v3418
        %v3626 = vadd.f32 %v3608, %v3431
        %v3627 = vadd.f32 %v3621, %v3444
        %v3628 = vadd.f32 %v3624, %v947
        %v3629 = vadd.f32 %v3625, %v948
        %v3630 = vadd.f32 %v3626, %v949
        %v3631 = vadd.f32 %v3627, %v950
        %v3632 = vxor.u32 %v3628, 2147483648
        %v3633 = vmul.f32 %v3632, 1.442695
        %v3634 = vpow.pop %v3633
        %v3635 = vadd.f32 %v3634, 1.0
        %v3636 = vrcp.pop %v3635
        %v3637 = vmul.f32 %v3635, %v3636
        %v3638 = vsub.f32 1.0, %v3637
        %v3639 = vmul.f32 %v3636, %v3638
        %v3640 = vadd.f32 %v3636, %v3639
        %vm3641 = vweird.f32 %v3635
        %vm3642 = vweird.f32 %v3636
        %vm3643 = vmor %vm3641, %vm3642
        %v3644 = vsel %vm3643, %v3636, %v3640
        %v3645 = vand.u32 2147483647, %v3635
        %vm3646 = vcmp.eq.f32.partialorder %v3645, 8.507059e+37
        %v3647 = vand.u32 %v3635, 2147483648
        %v3648 = vor.u32 1.1754944e-38, %v3647
        %v3649 = vsel %vm3646, %v3648, %v3644
        %v3650 = vmul.f32 1.0, %v3649
        %v3651 = vxor.u32 %v3629, 2147483648
        %v3652 = vmul.f32 %v3651, 1.442695
        %v3653 = vpow.pop %v3652
        %v3654 = vadd.f32 %v3653, 1.0
        %v3655 = vrcp.pop %v3654
        %v3656 = vmul.f32 %v3654, %v3655
        %v3657 = vsub.f32 1.0, %v3656
        %v3658 = vmul.f32 %v3655, %v3657
        %v3659 = vadd.f32 %v3655, %v3658
        %vm3660 = vweird.f32 %v3654
        %vm3661 = vweird.f32 %v3655
        %vm3662 = vmor %vm3660, %vm3661
        %v3663 = vsel %vm3662, %v3655, %v3659
        %v3664 = vand.u32 2147483647, %v3654
        %vm3665 = vcmp.eq.f32.partialorder %v3664, 8.507059e+37
        %v3666 = vand.u32 %v3654, 2147483648
        %v3667 = vor.u32 1.1754944e-38, %v3666
        %v3668 = vsel %vm3665, %v3667, %v3663
        %v3669 = vmul.f32 1.0, %v3668
        %v3670 = vtanh.pop %v3630
        %v3671 = vxor.u32 %v3631, 2147483648
        %v3672 = vmul.f32 %v3671, 1.442695
        %v3673 = vpow.pop %v3672
        %v3674 = vadd.f32 %v3673, 1.0
        %v3675 = vrcp.pop %v3674
        %v3676 = vmul.f32 %v3674, %v3675
        %v3677 = vsub.f32 1.0, %v3676
        %v3678 = vmul.f32 %v3675, %v3677
        %v3679 = vadd.f32 %v3675, %v3678
        %vm3680 = vweird.f32 %v3674
        %vm3681 = vweird.f32 %v3675
        %vm3682 = vmor %vm3680, %vm3681
        %v3683 = vsel %vm3682, %v3675, %v3679
        %v3684 = vand.u32 2147483647, %v3674
        %vm3685 = vcmp.eq.f32.partialorder %v3684, 8.507059e+37
        %v3686 = vand.u32 %v3674, 2147483648
        %v3687 = vor.u32 1.1754944e-38, %v3686
        %v3688 = vsel %vm3685, %v3687, %v3683
        %v3689 = vmul.f32 1.0, %v3688
        %v3690 = vmul.f32 %v3669, %v3376
        %v3691 = vmul.f32 %v3650, %v3670
        %v3692 = vadd.f32 %v3690, %v3691
        %v3693 = vtanh.pop %v3692
        %v3694 = vmul.f32 %v3689, %v3693
        %v3695 = vpack.c.bf16 %v3694, %v3694
        %3696 = vmatpush.bf16.msra.mxu0 %v1786
        %3697 = vmatpush.bf16.msra.mxu0 %v1785
        %3698 = vmatpush.bf16.msra.mxu0 %v1784
        %3699 = vmatpush.bf16.msra.mxu0 %v1783
        %3700 = vmatpush.bf16.msra.mxu0 %v1782
        %3701 = vmatpush.bf16.msra.mxu0 %v1781
        %3702 = vmatpush.bf16.msra.mxu0 %v1780
        %3703 = vmatpush.bf16.msra.mxu0 %v1779
        %3704 = vmatmul.bf16.gmra.mxu0 %v3695
        %v3705 = vpop.f32.mrf.mxu0
        %v3706 = vadd.f32 %v957, %v3705
        %v3707 = vpop.f32.mrf.mxu0
        %3708 = vdwg.mxu0
        %s3709 = scalar_lea.vmem %s452, 48 [#allocation19]
        %3710 = vst [vmem:[%s3709] sm:$0xff] %v3706
        %3711 = vmatpush.bf16.msra.mxu0 %v1091
        %3712 = vmatpush.bf16.msra.mxu0 %v1087
        %3713 = vmatpush.bf16.msra.mxu0 %v1083
        %3714 = vmatpush.bf16.msra.mxu0 %v1079
        %3715 = vmatpush.bf16.msra.mxu0 %v1075
        %3716 = vmatpush.bf16.msra.mxu0 %v1071
        %3717 = vmatpush.bf16.msra.mxu0 %v1067
        %3718 = vmatpush.bf16.msra.mxu0 %v1063
        %3719 = vmatmul.bf16.gmra.mxu0 %v3695
        %v3720 = vpop.f32.mrf.mxu0
        %v3721 = vadd.f32 0.0, %v3720
        %v3722 = vpop.f32.mrf.mxu0
        %3723 = vdwg.mxu0
        %3724 = vmatpush.bf16.msra.mxu0 %v1092
        %3725 = vmatpush.bf16.msra.mxu0 %v1088
        %3726 = vmatpush.bf16.msra.mxu0 %v1084
        %3727 = vmatpush.bf16.msra.mxu0 %v1080
        %3728 = vmatpush.bf16.msra.mxu0 %v1076
        %3729 = vmatpush.bf16.msra.mxu0 %v1072
        %3730 = vmatpush.bf16.msra.mxu0 %v1068
        %3731 = vmatpush.bf16.msra.mxu0 %v1064
        %3732 = vmatmul.bf16.gmra.mxu0 %v3695
        %v3733 = vpop.f32.mrf.mxu0
        %v3734 = vadd.f32 0.0, %v3733
        %v3735 = vpop.f32.mrf.mxu0
        %3736 = vdwg.mxu0
        %3737 = vmatpush.bf16.msra.mxu0 %v1093
        %3738 = vmatpush.bf16.msra.mxu0 %v1089
        %3739 = vmatpush.bf16.msra.mxu0 %v1085
        %3740 = vmatpush.bf16.msra.mxu0 %v1081
        %3741 = vmatpush.bf16.msra.mxu0 %v1077
        %3742 = vmatpush.bf16.msra.mxu0 %v1073
        %3743 = vmatpush.bf16.msra.mxu0 %v1069
        %3744 = vmatpush.bf16.msra.mxu0 %v1065
        %3745 = vmatmul.bf16.gmra.mxu0 %v3695
        %v3746 = vpop.f32.mrf.mxu0
        %v3747 = vadd.f32 0.0, %v3746
        %v3748 = vpop.f32.mrf.mxu0
        %3749 = vdwg.mxu0
        %3750 = vmatpush.bf16.msra.mxu0 %v1094
        %3751 = vmatpush.bf16.msra.mxu0 %v1090
        %3752 = vmatpush.bf16.msra.mxu0 %v1086
        %3753 = vmatpush.bf16.msra.mxu0 %v1082
        %3754 = vmatpush.bf16.msra.mxu0 %v1078
        %3755 = vmatpush.bf16.msra.mxu0 %v1074
        %3756 = vmatpush.bf16.msra.mxu0 %v1070
        %3757 = vmatpush.bf16.msra.mxu0 %v1066
        %3758 = vmatmul.bf16.gmra.mxu0 %v3695
        %v3759 = vpop.f32.mrf.mxu0
        %v3760 = vadd.f32 0.0, %v3759
        %v3761 = vpop.f32.mrf.mxu0
        %3762 = vdwg.mxu0
        %s3763 = scalar_lea.vmem [#allocation7], 224
        %v3764 = vld [vmem:[%s3763] sm:$0xff]
        %v3765 = vld [vmem:[%s3763 + $0x8] sm:$0xff]
        %v3766 = vld [vmem:[%s3763 + $0x10] sm:$0xff]
        %v3767 = vld [vmem:[%s3763 + $0x18] sm:$0xff]
        %v3768 = vadd.f32 %v3764, %v3530
        %v3769 = vadd.f32 %v3765, %v3543
        %v3770 = vadd.f32 %v3766, %v3556
        %v3771 = vadd.f32 %v3767, %v3569
        %v3772 = vxor.u32 %v3768, 2147483648
        %v3773 = vmul.f32 %v3772, 1.442695
        %v3774 = vpow.pop %v3773
        %v3775 = vadd.f32 %v3774, 1.0
        %v3776 = vrcp.pop %v3775
        %v3777 = vmul.f32 %v3775, %v3776
        %v3778 = vsub.f32 1.0, %v3777
        %v3779 = vmul.f32 %v3776, %v3778
        %v3780 = vadd.f32 %v3776, %v3779
        %vm3781 = vweird.f32 %v3775
        %vm3782 = vweird.f32 %v3776
        %vm3783 = vmor %vm3781, %vm3782
        %v3784 = vsel %vm3783, %v3776, %v3780
        %v3785 = vand.u32 2147483647, %v3775
        %vm3786 = vcmp.eq.f32.partialorder %v3785, 8.507059e+37
        %v3787 = vand.u32 %v3775, 2147483648
        %v3788 = vor.u32 1.1754944e-38, %v3787
        %v3789 = vsel %vm3786, %v3788, %v3784
        %v3790 = vmul.f32 1.0, %v3789
        %v3791 = vxor.u32 %v3769, 2147483648
        %v3792 = vmul.f32 %v3791, 1.442695
        %v3793 = vpow.pop %v3792
        %v3794 = vadd.f32 %v3793, 1.0
        %v3795 = vrcp.pop %v3794
        %v3796 = vmul.f32 %v3794, %v3795
        %v3797 = vsub.f32 1.0, %v3796
        %v3798 = vmul.f32 %v3795, %v3797
        %v3799 = vadd.f32 %v3795, %v3798
        %vm3800 = vweird.f32 %v3794
        %vm3801 = vweird.f32 %v3795
        %vm3802 = vmor %vm3800, %vm3801
        %v3803 = vsel %vm3802, %v3795, %v3799
        %v3804 = vand.u32 2147483647, %v3794
        %vm3805 = vcmp.eq.f32.partialorder %v3804, 8.507059e+37
        %v3806 = vand.u32 %v3794, 2147483648
        %v3807 = vor.u32 1.1754944e-38, %v3806
        %v3808 = vsel %vm3805, %v3807, %v3803
        %v3809 = vmul.f32 1.0, %v3808
        %v3810 = vtanh.pop %v3770
        %v3811 = vxor.u32 %v3771, 2147483648
        %v3812 = vmul.f32 %v3811, 1.442695
        %v3813 = vpow.pop %v3812
        %v3814 = vadd.f32 %v3813, 1.0
        %v3815 = vrcp.pop %v3814
        %v3816 = vmul.f32 %v3814, %v3815
        %v3817 = vsub.f32 1.0, %v3816
        %v3818 = vmul.f32 %v3815, %v3817
        %v3819 = vadd.f32 %v3815, %v3818
        %vm3820 = vweird.f32 %v3814
        %vm3821 = vweird.f32 %v3815
        %vm3822 = vmor %vm3820, %vm3821
        %v3823 = vsel %vm3822, %v3815, %v3819
        %v3824 = vand.u32 2147483647, %v3814
        %vm3825 = vcmp.eq.f32.partialorder %v3824, 8.507059e+37
        %v3826 = vand.u32 %v3814, 2147483648
        %v3827 = vor.u32 1.1754944e-38, %v3826
        %v3828 = vsel %vm3825, %v3827, %v3823
        %v3829 = vmul.f32 1.0, %v3828
        %v3830 = vmul.f32 %v3809, %v3516
        %v3831 = vmul.f32 %v3790, %v3810
        %v3832 = vadd.f32 %v3830, %v3831
        %v3833 = vtanh.pop %v3832
        %v3834 = vmul.f32 %v3829, %v3833
        %v3835 = vpack.c.bf16 %v3834, %v3834
        %3836 = vmatpush.bf16.msra.mxu0 %v1499
        %3837 = vmatpush.bf16.msra.mxu0 %v1491
        %3838 = vmatpush.bf16.msra.mxu0 %v1483
        %3839 = vmatpush.bf16.msra.mxu0 %v1475
        %3840 = vmatpush.bf16.msra.mxu0 %v1467
        %3841 = vmatpush.bf16.msra.mxu0 %v1459
        %3842 = vmatpush.bf16.msra.mxu0 %v1451
        %3843 = vmatpush.bf16.msra.mxu0 %v1443
        %3844 = vmatmul.bf16.gmra.mxu0 %v3835
        %v3845 = vpop.f32.mrf.mxu0
        %v3846 = vadd.f32 0.0, %v3845
        %v3847 = vpop.f32.mrf.mxu0
        %3848 = vdwg.mxu0
        %3849 = vmatpush.bf16.msra.mxu0 %v1500
        %3850 = vmatpush.bf16.msra.mxu0 %v1492
        %3851 = vmatpush.bf16.msra.mxu0 %v1484
        %3852 = vmatpush.bf16.msra.mxu0 %v1476
        %3853 = vmatpush.bf16.msra.mxu0 %v1468
        %3854 = vmatpush.bf16.msra.mxu0 %v1460
        %3855 = vmatpush.bf16.msra.mxu0 %v1452
        %3856 = vmatpush.bf16.msra.mxu0 %v1444
        %3857 = vmatmul.bf16.gmra.mxu0 %v3835
        %v3858 = vpop.f32.mrf.mxu0
        %v3859 = vadd.f32 0.0, %v3858
        %v3860 = vpop.f32.mrf.mxu0
        %3861 = vdwg.mxu0
        %3862 = vmatpush.bf16.msra.mxu0 %v1501
        %3863 = vmatpush.bf16.msra.mxu0 %v1493
        %3864 = vmatpush.bf16.msra.mxu0 %v1485
        %3865 = vmatpush.bf16.msra.mxu0 %v1477
        %3866 = vmatpush.bf16.msra.mxu0 %v1469
        %3867 = vmatpush.bf16.msra.mxu0 %v1461
        %3868 = vmatpush.bf16.msra.mxu0 %v1453
        %3869 = vmatpush.bf16.msra.mxu0 %v1445
        %3870 = vmatmul.bf16.gmra.mxu0 %v3835
        %v3871 = vpop.f32.mrf.mxu0
        %v3872 = vadd.f32 0.0, %v3871
        %v3873 = vpop.f32.mrf.mxu0
        %3874 = vdwg.mxu0
        %3875 = vmatpush.bf16.msra.mxu0 %v1502
        %3876 = vmatpush.bf16.msra.mxu0 %v1494
        %3877 = vmatpush.bf16.msra.mxu0 %v1486
        %3878 = vmatpush.bf16.msra.mxu0 %v1478
        %3879 = vmatpush.bf16.msra.mxu0 %v1470
        %3880 = vmatpush.bf16.msra.mxu0 %v1462
        %3881 = vmatpush.bf16.msra.mxu0 %v1454
        %3882 = vmatpush.bf16.msra.mxu0 %v1446
        %3883 = vmatmul.bf16.gmra.mxu0 %v3835
        %v3884 = vpop.f32.mrf.mxu0
        %v3885 = vadd.f32 0.0, %v3884
        %v3886 = vpop.f32.mrf.mxu0
        %3887 = vdwg.mxu0
        %3888 = vmatpush.bf16.msra.mxu0 %v1503
        %3889 = vmatpush.bf16.msra.mxu0 %v1495
        %3890 = vmatpush.bf16.msra.mxu0 %v1487
        %3891 = vmatpush.bf16.msra.mxu0 %v1479
        %3892 = vmatpush.bf16.msra.mxu0 %v1471
        %3893 = vmatpush.bf16.msra.mxu0 %v1463
        %3894 = vmatpush.bf16.msra.mxu0 %v1455
        %3895 = vmatpush.bf16.msra.mxu0 %v1447
        %3896 = vmatmul.bf16.gmra.mxu0 %v3835
        %v3897 = vpop.f32.mrf.mxu0
        %v3898 = vadd.f32 0.0, %v3897
        %v3899 = vpop.f32.mrf.mxu0
        %3900 = vdwg.mxu0
        %3901 = vmatpush.bf16.msra.mxu0 %v1504
        %3902 = vmatpush.bf16.msra.mxu0 %v1496
        %3903 = vmatpush.bf16.msra.mxu0 %v1488
        %3904 = vmatpush.bf16.msra.mxu0 %v1480
        %3905 = vmatpush.bf16.msra.mxu0 %v1472
        %3906 = vmatpush.bf16.msra.mxu0 %v1464
        %3907 = vmatpush.bf16.msra.mxu0 %v1456
        %3908 = vmatpush.bf16.msra.mxu0 %v1448
        %3909 = vmatmul.bf16.gmra.mxu0 %v3835
        %v3910 = vpop.f32.mrf.mxu0
        %v3911 = vadd.f32 0.0, %v3910
        %v3912 = vpop.f32.mrf.mxu0
        %3913 = vdwg.mxu0
        %3914 = vmatpush.bf16.msra.mxu0 %v1505
        %3915 = vmatpush.bf16.msra.mxu0 %v1497
        %3916 = vmatpush.bf16.msra.mxu0 %v1489
        %3917 = vmatpush.bf16.msra.mxu0 %v1481
        %3918 = vmatpush.bf16.msra.mxu0 %v1473
        %3919 = vmatpush.bf16.msra.mxu0 %v1465
        %3920 = vmatpush.bf16.msra.mxu0 %v1457
        %3921 = vmatpush.bf16.msra.mxu0 %v1449
        %3922 = vmatmul.bf16.gmra.mxu0 %v3835
        %v3923 = vpop.f32.mrf.mxu0
        %v3924 = vadd.f32 0.0, %v3923
        %v3925 = vpop.f32.mrf.mxu0
        %3926 = vdwg.mxu0
        %3927 = vmatpush.bf16.msra.mxu0 %v1506
        %3928 = vmatpush.bf16.msra.mxu0 %v1498
        %3929 = vmatpush.bf16.msra.mxu0 %v1490
        %3930 = vmatpush.bf16.msra.mxu0 %v1482
        %3931 = vmatpush.bf16.msra.mxu0 %v1474
        %3932 = vmatpush.bf16.msra.mxu0 %v1466
        %3933 = vmatpush.bf16.msra.mxu0 %v1458
        %3934 = vmatpush.bf16.msra.mxu0 %v1450
        %3935 = vmatmul.bf16.gmra.mxu0 %v3835
        %v3936 = vpop.f32.mrf.mxu0
        %v3937 = vadd.f32 0.0, %v3936
        %v3938 = vpop.f32.mrf.mxu0
        %3939 = vdwg.mxu0
        %v3940 = vadd.f32 %v3898, %v3721
        %v3941 = vadd.f32 %v3911, %v3734
        %v3942 = vadd.f32 %v3924, %v3747
        %v3943 = vadd.f32 %v3937, %v3760
        %v3944 = vadd.f32 %v3940, %v947
        %v3945 = vadd.f32 %v3941, %v948
        %v3946 = vadd.f32 %v3942, %v949
        %v3947 = vadd.f32 %v3943, %v950
        %v3948 = vxor.u32 %v3944, 2147483648
        %v3949 = vmul.f32 %v3948, 1.442695
        %v3950 = vpow.pop %v3949
        %v3951 = vadd.f32 %v3950, 1.0
        %v3952 = vrcp.pop %v3951
        %v3953 = vmul.f32 %v3951, %v3952
        %v3954 = vsub.f32 1.0, %v3953
        %v3955 = vmul.f32 %v3952, %v3954
        %v3956 = vadd.f32 %v3952, %v3955
        %vm3957 = vweird.f32 %v3951
        %vm3958 = vweird.f32 %v3952
        %vm3959 = vmor %vm3957, %vm3958
        %v3960 = vsel %vm3959, %v3952, %v3956
        %v3961 = vand.u32 2147483647, %v3951
        %vm3962 = vcmp.eq.f32.partialorder %v3961, 8.507059e+37
        %v3963 = vand.u32 %v3951, 2147483648
        %v3964 = vor.u32 1.1754944e-38, %v3963
        %v3965 = vsel %vm3962, %v3964, %v3960
        %v3966 = vmul.f32 1.0, %v3965
        %v3967 = vxor.u32 %v3945, 2147483648
        %v3968 = vmul.f32 %v3967, 1.442695
        %v3969 = vpow.pop %v3968
        %v3970 = vadd.f32 %v3969, 1.0
        %v3971 = vrcp.pop %v3970
        %v3972 = vmul.f32 %v3970, %v3971
        %v3973 = vsub.f32 1.0, %v3972
        %v3974 = vmul.f32 %v3971, %v3973
        %v3975 = vadd.f32 %v3971, %v3974
        %vm3976 = vweird.f32 %v3970
        %vm3977 = vweird.f32 %v3971
        %vm3978 = vmor %vm3976, %vm3977
        %v3979 = vsel %vm3978, %v3971, %v3975
        %v3980 = vand.u32 2147483647, %v3970
        %vm3981 = vcmp.eq.f32.partialorder %v3980, 8.507059e+37
        %v3982 = vand.u32 %v3970, 2147483648
        %v3983 = vor.u32 1.1754944e-38, %v3982
        %v3984 = vsel %vm3981, %v3983, %v3979
        %v3985 = vmul.f32 1.0, %v3984
        %v3986 = vtanh.pop %v3946
        %v3987 = vxor.u32 %v3947, 2147483648
        %v3988 = vmul.f32 %v3987, 1.442695
        %v3989 = vpow.pop %v3988
        %v3990 = vadd.f32 %v3989, 1.0
        %v3991 = vrcp.pop %v3990
        %v3992 = vmul.f32 %v3990, %v3991
        %v3993 = vsub.f32 1.0, %v3992
        %v3994 = vmul.f32 %v3991, %v3993
        %v3995 = vadd.f32 %v3991, %v3994
        %vm3996 = vweird.f32 %v3990
        %vm3997 = vweird.f32 %v3991
        %vm3998 = vmor %vm3996, %vm3997
        %v3999 = vsel %vm3998, %v3991, %v3995
        %v4000 = vand.u32 2147483647, %v3990
        %vm4001 = vcmp.eq.f32.partialorder %v4000, 8.507059e+37
        %v4002 = vand.u32 %v3990, 2147483648
        %v4003 = vor.u32 1.1754944e-38, %v4002
        %v4004 = vsel %vm4001, %v4003, %v3999
        %v4005 = vmul.f32 1.0, %v4004
        %v4006 = vmul.f32 %v3985, %v3692
        %v4007 = vmul.f32 %v3966, %v3986
        %v4008 = vadd.f32 %v4006, %v4007
        %v4009 = vtanh.pop %v4008
        %v4010 = vmul.f32 %v4005, %v4009
        %v4011 = vpack.c.bf16 %v4010, %v4010
        %4012 = vmatpush.bf16.msra.mxu0 %v1786
        %4013 = vmatpush.bf16.msra.mxu0 %v1785
        %4014 = vmatpush.bf16.msra.mxu0 %v1784
        %4015 = vmatpush.bf16.msra.mxu0 %v1783
        %4016 = vmatpush.bf16.msra.mxu0 %v1782
        %4017 = vmatpush.bf16.msra.mxu0 %v1781
        %4018 = vmatpush.bf16.msra.mxu0 %v1780
        %4019 = vmatpush.bf16.msra.mxu0 %v1779
        %4020 = vmatmul.bf16.gmra.mxu0 %v4011
        %v4021 = vpop.f32.mrf.mxu0
        %v4022 = vadd.f32 %v957, %v4021
        %v4023 = vpop.f32.mrf.mxu0
        %4024 = vdwg.mxu0
        %s4025 = scalar_lea.vmem %s452, 56 [#allocation19]
        %4026 = vst [vmem:[%s4025] sm:$0xff] %v4022
        %4027 = vst [vmem:[#allocation2] sm:$0xff] %v3834
        %4028 = vst [vmem:[#allocation3] sm:$0xff] %v3832
        %4029 = vst [vmem:[#allocation4] sm:$0xff] %v4010
        %4030 = vst [vmem:[#allocation5] sm:$0xff] %v4008
        %4031 = vst [vmem:[#allocation6] sm:$0xff] %v3846
        %4032 = vst [vmem:[#allocation6 + $0x8] sm:$0xff] %v3859
        %4033 = vst [vmem:[#allocation6 + $0x10] sm:$0xff] %v3872
        %4034 = vst [vmem:[#allocation6 + $0x18] sm:$0xff] %v3885
        %s4035 = sand.u32 %s213, 1
        %s4036 = scalar_lea.sflag [#allocation10], %s4035
        %s4037 = sand.u32 %s213, 1
        %s4038 = smul.addr %s4037, 64
        %s4039 = scalar_lea.vmem [#allocation19], %s4038
        // Predicated region
        $region81: #{tpu_custom_call.1} parent=51 // pred_check
          %p4040 = pneg %p223
        $region82: #{tpu_custom_call.1} parent=51 // pred_check_branch
          %4042 = sbr.rel (%p4040) target = $region84
        $region83: #{tpu_custom_call.1} parent=51 // pred_region
          %s4043 = smul.u32 8, %s32
          %4045 = vsyncadd %s4036, 0
          %s4046 = smul.addr %s4043, 8
          %s4047 = scalar_lea.hbm %s8, %s4046
          %s4048 = sshll.u32 %s4039, 4
          %s4049 = int_to_ptr.vmem [resolvable:$true] %s4048
          %s4050 = sshll.u32 %s4047, 4
          %s4051 = int_to_ptr.hbm [resolvable:$true] %s4050
          %4056 = dma.vmem_to_hbm [thread:$0]  %s4049, 1024, %s4051, %s4036, 128, 128, 8
        $region84: #{tpu_custom_call.1} parent=51 // pred_fallthru
          _
        // Predicated region
        $region85: #{tpu_custom_call.1} parent=51 // pred_check
          %p4057 = pneg %p244
        $region86: #{tpu_custom_call.1} parent=51 // pred_check_branch
          %4059 = sbr.rel (%p4057) target = $region88
        $region87: #{tpu_custom_call.1} parent=51 // pred_region
          %4061 = vsyncadd [#allocation21], 0
          %s4062 = sshll.u32 [#allocation20], 4
          %s4063 = int_to_ptr.vmem [resolvable:$true] %s4062
          %s4064 = sshll.u32 %s9, 4
          %s4065 = int_to_ptr.hbm [resolvable:$true] %s4064
          %4070 = dma.vmem_to_hbm [thread:$0]  %s4063, 256, %s4065, [#allocation21], 128, 128, 8
        $region88: #{tpu_custom_call.1} parent=51 // pred_fallthru
          _
        // Predicated region
        $region89: #{tpu_custom_call.1} parent=51 // pred_check
          %p4071 = pneg %p265
        $region90: #{tpu_custom_call.1} parent=51 // pred_check_branch
          %4073 = sbr.rel (%p4071) target = $region92
        $region91: #{tpu_custom_call.1} parent=51 // pred_region
          %4075 = vsyncadd [#allocation21], 0
          %s4076 = sshll.u32 [#allocation22], 4
          %s4077 = int_to_ptr.vmem [resolvable:$true] %s4076
          %s4078 = sshll.u32 %s10, 4
          %s4079 = int_to_ptr.hbm [resolvable:$true] %s4078
          %4084 = dma.vmem_to_hbm [thread:$0]  %s4077, 256, %s4079, [#allocation21], 128, 128, 8
        $region92: #{tpu_custom_call.1} parent=51 // pred_fallthru
          _
        // Predicated region
        $region93: #{tpu_custom_call.1} parent=51 // pred_check
          %p4085 = pneg %p244
        $region94: #{tpu_custom_call.1} parent=51 // pred_check_branch
          %4087 = sbr.rel (%p4085) target = $region96
        $region95: #{tpu_custom_call.1} parent=51 // pred_region
          %4089 = dma.done [#allocation21], 256
        $region96: #{tpu_custom_call.1} parent=51 // pred_fallthru
          _
        // Predicated region
        $region97: #{tpu_custom_call.1} parent=51 // pred_check
          %p4090 = pneg %p265
        $region98: #{tpu_custom_call.1} parent=51 // pred_check_branch
          %4092 = sbr.rel (%p4090) target = $region100
        $region99: #{tpu_custom_call.1} parent=51 // pred_region
          %4094 = dma.done [#allocation21], 256
        $region100: #{tpu_custom_call.1} parent=51 // pred_fallthru
          _
      $region52: #{tpu_custom_call.1} parent=5 // pred_fallthru
        _
      %p4095 = scmp.le.s32.totalorder 2, %s27
      // Predicated region
      $region101: #{tpu_custom_call.1} parent=5 // pred_check
        %p4096 = pneg %p4095
      $region102: #{tpu_custom_call.1} parent=5 // pred_check_branch
        %4098 = sbr.rel (%p4096) target = $region104
      $region103: #{tpu_custom_call.1} parent=5 // pred_region
        %s4099 = ssub.s32 %s27, 2
        // Predicated region
        $region105: #{tpu_custom_call.1} parent=103 // pred_check
          %p4100 = pneg %p229
        $region106: #{tpu_custom_call.1} parent=103 // pred_check_branch
          %4102 = sbr.rel (%p4100) target = $region108
        $region107: #{tpu_custom_call.1} parent=103 // pred_region
          %s4103 = sand.u32 %s214, 1
          %s4104 = scalar_lea.sflag [#allocation10], %s4103
          %s4105 = sand.u32 %s214, 1
          %s4106 = smul.addr %s4105, 64
          %s4107 = scalar_lea.vmem [#allocation19], %s4106
          %4109 = dma.done %s4104, 1024
        $region108: #{tpu_custom_call.1} parent=103 // pred_fallthru
          _
      $region104: #{tpu_custom_call.1} parent=5 // pred_fallthru
        _
    $region6: #{tpu_custom_call.1} parent=1 // loop_footer
      %s31 = sadd.s32 1, %s27
    $region7: #{tpu_custom_call.1} parent=1 // loop_footer_branch
      %26 = sbr.rel target = $region3
    $region8: #{tpu_custom_call.1} parent=1 // loop_exit
      _
    %4110 = vsyncpa [#allocation9], 1
    %s4111 = scalar_lea.sflag [#allocation9], 1
    %4112 = vsyncpa %s4111, 1
    %4113 = vsyncpa [#allocation12], 1
    %4114 = vsyncpa [#allocation15], 1
    %4115 = vsyncpa [#allocation18], 1
    %4116 = vsyncpa [#allocation10], 1
    %s4117 = scalar_lea.sflag [#allocation10], 1
    %4118 = vsyncpa %s4117, 1
    %4119 = vsyncpa [#allocation21], 1

</llo_original>
